<compile_context>
chip_gen: v6e
topology: v6e:2x2x1
jax: 0.10.0
libtpu: 0.0.40
codegen_flags: <defaults>
</compile_context>

<pallas_src>
import numpy as np

import jax
import jax.numpy as jnp
from jax import lax
from jax.experimental import pallas as pl
from jax.experimental.pallas import tpu as pltpu


# ---------------------------------------------------------------------------
# Static shape configuration (small shapes consistent with the module)
# ---------------------------------------------------------------------------
N = 2           # batch
H0 = W0 = 16    # input spatial size


def _conv_out(hw):  # 3x3, stride 2, pad 1
    return (hw + 2 - 3) // 2 + 1


def _round8(x):
    return (x + 7) // 8 * 8


H1 = H0 + 2          # 18  (1x1 convs with padding=1)
H2 = _conv_out(H1)   # 9
H3 = _conv_out(H2)   # 5
H4 = _conv_out(H3)   # 3

M0 = N * H0 * H0     # 512  rows of the y0 slab (pre-bias 1x1-conv interior)
M2 = N * H2 * H2     # 162  valid rows of v8
M3 = N * H3 * H3     # 50   valid rows of v11
M4 = N * H4 * H4     # 18   valid rows of v12
M2P = _round8(M2)    # 168
M3P = _round8(M3)    # 56
M4P = _round8(M4)    # 24


# ---------------------------------------------------------------------------
# Parameters (HWIO weights, deterministic init)
# ---------------------------------------------------------------------------
_CONV_DEFS = {
    # name: (kh, kw, cin, cout)
    "c1": (1, 1, 3, 8), "c2": (1, 1, 3, 8), "c3": (1, 1, 3, 8), "c4": (1, 1, 3, 8),
    "c5": (3, 3, 32, 32), "c6": (3, 3, 32, 32),
    "c7": (3, 3, 64, 32), "c8": (3, 3, 64, 32),
    "c9": (3, 3, 64, 32),
}


def init_params(key):
    params = {}
    keys = jax.random.split(key, len(_CONV_DEFS))
    for k, (name, (kh, kw, cin, cout)) in zip(keys, _CONV_DEFS.items()):
        kw_, kb_ = jax.random.split(k)
        bound = 1.0 / float(np.sqrt(kh * kw * cin))
        params[name] = {
            "w": jax.random.uniform(kw_, (kh, kw, cin, cout), jnp.float32,
                                    -bound, bound),
            "b": jax.random.uniform(kb_, (cout,), jnp.float32, -bound, bound),
        }
    return params


# ---------------------------------------------------------------------------
# Host-side gather tables (pure functions of static shapes; built once)
# ---------------------------------------------------------------------------
def _stage2_tables(n):
    """Stage 2 (3x3 / stride 2 / pad 1 on the padded 1x1-conv output v5).

    Returns:
      sel: (9, M2P, M0)  one-hot gather into the *pre-bias interior* y0 slab.
      inb: (M2P, 9)      1.0 where the tap lands inside the 18x18 v5 grid
                         (those taps carry the stage-1 bias b1).
    """
    sel = np.zeros((9, M2P, M0), np.float32)
    inb = np.zeros((M2P, 9), np.float32)
    for b in range(n):
        for ho in range(H2):
            for wo in range(H2):
                m = (b * H2 + ho) * H2 + wo
                for i in range(3):
                    for j in range(3):
                        t = i * 3 + j
                        hi, wi = 2 * ho + i - 1, 2 * wo + j - 1
                        if 0 <= hi < H1 and 0 <= wi < H1:
                            inb[m, t] = 1.0
                            if 1 <= hi <= H0 and 1 <= wi <= W0:
                                r = (b * H0 + (hi - 1)) * W0 + (wi - 1)
                                sel[t, m, r] = 1.0
    return sel, inb


def _stage_selectors(n, hin, hout, m_in_pad, m_out_pad):
    """3x3 / stride 2 / pad 1 one-hot gathers (zero padding == no selection)."""
    sel = np.zeros((9, m_out_pad, m_in_pad), np.float32)
    for b in range(n):
        for ho in range(hout):
            for wo in range(hout):
                m = (b * hout + ho) * hout + wo
                for i in range(3):
                    for j in range(3):
                        hi, wi = 2 * ho + i - 1, 2 * wo + j - 1
                        if 0 <= hi < hin and 0 <= wi < hin:
                            sel[i * 3 + j, m, (b * hin + hi) * hin + wi] = 1.0
    return sel


def prepare_params(params):
    """One-time host-side packing: weights, gather tables, folded biases."""
    p = params
    bf16 = jnp.bfloat16

    # Stage 1: conv1..conv4 (1x1) -> two (3,16) matmuls (x1 -> ch 0:16, x2 -> 16:32).
    w12 = jnp.concatenate([p["c1"]["w"][0, 0], p["c2"]["w"][0, 0]], axis=1)   # (3,16)
    w34 = jnp.concatenate([p["c3"]["w"][0, 0], p["c4"]["w"][0, 0]], axis=1)   # (3,16)
    b1 = jnp.concatenate([p["c1"]["b"], p["c2"]["b"],
                          p["c3"]["b"], p["c4"]["b"]])                        # (32,)

    # Stage 2: conv5 + conv6 (shared input v5) -> Cout = 64, K = 9*32 = 288.
    w2 = jnp.concatenate([p["c5"]["w"], p["c6"]["w"]], axis=-1).reshape(288, 64)
    b2 = jnp.concatenate([p["c5"]["b"], p["c6"]["b"]])                        # (64,)
    s2, inb2 = _stage2_tables(N)
    # Fold b1 (interior rows AND the bias-only pad ring of the 1x1 convs) plus
    # b2 into a per-output-row bias: bias2[m] = sum_t inb2[m,t]*(b1 @ W2_t) + b2
    bw = jnp.stack([b1 @ w2[t * 32:(t + 1) * 32, :] for t in range(9)])       # (9,64)
    bias2 = jnp.asarray(inb2, jnp.float32) @ bw + b2[None, :]                 # (M2P,64)

    # Stage 3: conv7 + conv8 -> Cout = 64, K = 9*64 = 576.
    w3 = jnp.concatenate([p["c7"]["w"], p["c8"]["w"]], axis=-1).reshape(576, 64)
    b3 = jnp.concatenate([p["c7"]["b"], p["c8"]["b"]])[None, :]               # (1,64)
    s3 = _stage_selectors(N, H2, H3, M2P, M3P)

    # Stage 4: conv9 -> Cout = 32, K = 576.
    w4 = p["c9"]["w"].reshape(576, 32)
    b4 = p["c9"]["b"][None, :]                                                # (1,32)
    s4 = _stage_selectors(N, H3, H4, M3P, M4P)

    return dict(
        w12=w12, w34=w34,
        s2=jnp.asarray(s2, bf16), w2=w2.astype(bf16), bias2=bias2,
        s3=jnp.asarray(s3, bf16), w3=w3.astype(bf16), b3=b3,
        s4=jnp.asarray(s4, bf16), w4=w4.astype(bf16), b4=b4,
    )


# ---------------------------------------------------------------------------
# The single fused Pallas kernel (no scratch, no in-kernel selector building)
# ---------------------------------------------------------------------------
def _fused_forward_kernel(x1_ref, x2_ref, w12_ref, w34_ref,
                          s2_ref, w2_ref, bias2_ref,
                          s3_ref, w3_ref, b3_ref,
                          s4_ref, w4_ref, b4_ref,
                          out_ref):
    f32 = jnp.float32
    bf16 = jnp.bfloat16

    # ---- stage 1: conv1..conv4 (1x1).  Pre-bias interior values only; the
    # bias + pad-ring contribution is folded into bias2 on the host. ----------
    ya = jnp.dot(x1_ref[...], w12_ref[...], preferred_element_type=f32)   # (512,16)
    yb = jnp.dot(x2_ref[...], w34_ref[...], preferred_element_type=f32)   # (512,16)
    y0 = jnp.concatenate([ya, yb], axis=1).astype(bf16)                   # (512,32)

    # ---- generic 3x3 / stride-2 / pad-1 stage (pair of convs fused) ---------
    def conv3x3_s2(v_bf16, s_ref, w_ref, bias):
        # im2col via 9 precomputed one-hot gathers, then ONE K = 9*cin matmul.
        taps = [jnp.dot(s_ref[t], v_bf16, preferred_element_type=f32).astype(bf16)
                for t in range(9)]
        cim = jnp.concatenate(taps, axis=1)                    # (m_out, 9*cin)
        return jnp.dot(cim, w_ref[...], preferred_element_type=f32) + bias

    v8 = conv3x3_s2(y0, s2_ref, w2_ref, bias2_ref[...])                 # (168, 64)
    v11 = conv3x3_s2(v8.astype(bf16), s3_ref, w3_ref, b3_ref[...])      # (56, 64)
    v12 = conv3x3_s2(v11.astype(bf16), s4_ref, w4_ref, b4_ref[...])     # (24, 32)

    out_ref[...] = v12


# ---------------------------------------------------------------------------
# Forward pass (single pallas_call; only tiny NCHW<->slab glue outside)
# ---------------------------------------------------------------------------
@jax.jit
def model_forward(prep, x1_nchw, x2_nchw):
    x1s = jnp.transpose(x1_nchw, (0, 2, 3, 1)).reshape(M0, 3)
    x2s = jnp.transpose(x2_nchw, (0, 2, 3, 1)).reshape(M0, 3)

    vmem = pl.BlockSpec(memory_space=pltpu.MemorySpace.VMEM)
    out = pl.pallas_call(
        _fused_forward_kernel,
        out_shape=jax.ShapeDtypeStruct((M4P, 32), jnp.float32),
        in_specs=[vmem] * 13,
        out_specs=vmem,
        compiler_params=pltpu.CompilerParams(vmem_limit_bytes=32 * 1024 * 1024),
    )(x1s, x2s, prep["w12"], prep["w34"],
      prep["s2"], prep["w2"], prep["bias2"],
      prep["s3"], prep["w3"], prep["b3"],
      prep["s4"], prep["w4"], prep["b4"])

    v12 = out[:M4]                                             # (18, 32) valid rows
    return jnp.transpose(v12.reshape(N, H4, H4, 32), (0, 3, 1, 2))   # NCHW


# ---------------------------------------------------------------------------
# Pure-JAX reference (mirrors Model.forward) for the correctness check
# ---------------------------------------------------------------------------
def _ref_conv(x, w_hwio, b, stride, pad):
    w_oihw = jnp.transpose(w_hwio, (3, 2, 0, 1))
    y = lax.conv_general_dilated(
        x, w_oihw, window_strides=(stride, stride),
        padding=((pad, pad), (pad, pad)),
        dimension_numbers=("NCHW", "OIHW", "NCHW"),
        precision=lax.Precision.HIGHEST)
    return y + b[None, :, None, None]


def reference_forward(params, x1, x2):
    p = params
    v1 = _ref_conv(x1, p["c1"]["w"], p["c1"]["b"], 1, 1)
    v2 = _ref_conv(x1, p["c2"]["w"], p["c2"]["b"], 1, 1)
    v3 = _ref_conv(x2, p["c3"]["w"], p["c3"]["b"], 1, 1)
    v4 = _ref_conv(x2, p["c4"]["w"], p["c4"]["b"], 1, 1)
    v5 = jnp.concatenate([v1, v2, v3, v4], axis=1)
    v6 = _ref_conv(v5, p["c5"]["w"], p["c5"]["b"], 2, 1)
    v7 = _ref_conv(v5, p["c6"]["w"], p["c6"]["b"], 2, 1)
    v8 = jnp.concatenate([v6, v7], axis=1)
    v9 = _ref_conv(v8, p["c7"]["w"], p["c7"]["b"], 2, 1)
    v10 = _ref_conv(v8, p["c8"]["w"], p["c8"]["b"], 2, 1)
    v11 = jnp.concatenate([v9, v10], axis=1)
    return _ref_conv(v11, p["c9"]["w"], p["c9"]["b"], 2, 1)


if __name__ == "__main__":
    key = jax.random.PRNGKey(0)
    k1, k2, kp = jax.random.split(key, 3)

    x1 = jax.random.normal(k1, (N, 3, H0, W0), jnp.float32)
    x2 = jax.random.normal(k2, (N, 3, H0, W0), jnp.float32)

    params = init_params(kp)
    prep = prepare_params(params)      # one-time packing, off the hot path

    out = model_forward(prep, x1, x2)
    jax.block_until_ready(out)
    assert out.shape == (N, 32, H4, H4), out.shape

    ref = reference_forward(params, x1, x2)
    max_abs_err = float(jnp.max(jnp.abs(out - ref)))
    # bf16 MXU operands with f32 accumulation: bf16-path tolerance.
    assert max_abs_err < 3e-2, f"mismatch vs reference: max abs err {max_abs_err}"

    print("KERNEL_OK")
</pallas_src>

<mosaic_0001>
module attributes {stable_mosaic.version = 11 : i64} {
  func.func @_fused_forward_kernel(%arg0: memref<512x3xf32, #tpu.memory_space<vmem>>, %arg1: memref<512x3xf32, #tpu.memory_space<vmem>>, %arg2: memref<3x16xf32, #tpu.memory_space<vmem>>, %arg3: memref<3x16xf32, #tpu.memory_space<vmem>>, %arg4: memref<9x168x512xbf16, #tpu.memory_space<vmem>>, %arg5: memref<288x64xbf16, #tpu.memory_space<vmem>>, %arg6: memref<168x64xf32, #tpu.memory_space<vmem>>, %arg7: memref<9x56x168xbf16, #tpu.memory_space<vmem>>, %arg8: memref<576x64xbf16, #tpu.memory_space<vmem>>, %arg9: memref<1x64xf32, #tpu.memory_space<vmem>>, %arg10: memref<9x24x56xbf16, #tpu.memory_space<vmem>>, %arg11: memref<576x32xbf16, #tpu.memory_space<vmem>>, %arg12: memref<1x32xf32, #tpu.memory_space<vmem>>, %arg13: memref<24x32xf32, #tpu.memory_space<vmem>>) attributes {dimension_semantics = [], scalar_prefetch = 0 : i64, scratch_operands = 0 : i64, tpu.core_type = #tpu.core_type<tc>} {
    %c0 = arith.constant 0 : index
    %c0_0 = arith.constant 0 : index
    %0 = vector.load %arg0[%c0, %c0_0] : memref<512x3xf32, #tpu.memory_space<vmem>>, vector<512x3xf32>
    %c0_1 = arith.constant 0 : index
    %c0_2 = arith.constant 0 : index
    %1 = vector.load %arg2[%c0_1, %c0_2] : memref<3x16xf32, #tpu.memory_space<vmem>>, vector<3x16xf32>
    %cst = arith.constant dense<0.000000e+00> : vector<512x16xf32>
    %2 = tpu.matmul %0, %1, %cst {dimension_numbers = #tpu.dot_dimension_numbers<[1], [0], [0], [1], [0, 0, 1, 1], [], []>} : vector<512x3xf32>, vector<3x16xf32>, vector<512x16xf32> -> vector<512x16xf32>
    %c0_3 = arith.constant 0 : index
    %c0_4 = arith.constant 0 : index
    %3 = vector.load %arg1[%c0_3, %c0_4] : memref<512x3xf32, #tpu.memory_space<vmem>>, vector<512x3xf32>
    %c0_5 = arith.constant 0 : index
    %c0_6 = arith.constant 0 : index
    %4 = vector.load %arg3[%c0_5, %c0_6] : memref<3x16xf32, #tpu.memory_space<vmem>>, vector<3x16xf32>
    %cst_7 = arith.constant dense<0.000000e+00> : vector<512x16xf32>
    %5 = tpu.matmul %3, %4, %cst_7 {dimension_numbers = #tpu.dot_dimension_numbers<[1], [0], [0], [1], [0, 0, 1, 1], [], []>} : vector<512x3xf32>, vector<3x16xf32>, vector<512x16xf32> -> vector<512x16xf32>
    %6 = tpu.concatenate %2, %5 in 1 : vector<512x16xf32>, vector<512x16xf32> -> vector<512x32xf32>
    %7 = arith.truncf %6 : vector<512x32xf32> to vector<512x32xbf16>
    %c0_8 = arith.constant 0 : index
    %c0_9 = arith.constant 0 : index
    %8 = vector.load %arg6[%c0_8, %c0_9] : memref<168x64xf32, #tpu.memory_space<vmem>>, vector<168x64xf32>
    %c0_10 = arith.constant 0 : index
    %c0_11 = arith.constant 0 : index
    %c0_12 = arith.constant 0 : index
    %9 = vector.load %arg4[%c0_10, %c0_11, %c0_12] : memref<9x168x512xbf16, #tpu.memory_space<vmem>>, vector<1x168x512xbf16>
    %10 = vector.shape_cast %9 : vector<1x168x512xbf16> to vector<168x512xbf16>
    %cst_13 = arith.constant dense<0.000000e+00> : vector<168x32xf32>
    %11 = tpu.matmul %10, %7, %cst_13 {dimension_numbers = #tpu.dot_dimension_numbers<[1], [0], [0], [1], [0, 0, 1, 1], [], []>} : vector<168x512xbf16>, vector<512x32xbf16>, vector<168x32xf32> -> vector<168x32xf32>
    %12 = arith.truncf %11 : vector<168x32xf32> to vector<168x32xbf16>
    %c1 = arith.constant 1 : index
    %c0_14 = arith.constant 0 : index
    %c0_15 = arith.constant 0 : index
    %13 = vector.load %arg4[%c1, %c0_14, %c0_15] : memref<9x168x512xbf16, #tpu.memory_space<vmem>>, vector<1x168x512xbf16>
    %14 = vector.shape_cast %13 : vector<1x168x512xbf16> to vector<168x512xbf16>
    %cst_16 = arith.constant dense<0.000000e+00> : vector<168x32xf32>
    %15 = tpu.matmul %14, %7, %cst_16 {dimension_numbers = #tpu.dot_dimension_numbers<[1], [0], [0], [1], [0, 0, 1, 1], [], []>} : vector<168x512xbf16>, vector<512x32xbf16>, vector<168x32xf32> -> vector<168x32xf32>
    %16 = arith.truncf %15 : vector<168x32xf32> to vector<168x32xbf16>
    %c2 = arith.constant 2 : index
    %c0_17 = arith.constant 0 : index
    %c0_18 = arith.constant 0 : index
    %17 = vector.load %arg4[%c2, %c0_17, %c0_18] : memref<9x168x512xbf16, #tpu.memory_space<vmem>>, vector<1x168x512xbf16>
    %18 = vector.shape_cast %17 : vector<1x168x512xbf16> to vector<168x512xbf16>
    %cst_19 = arith.constant dense<0.000000e+00> : vector<168x32xf32>
    %19 = tpu.matmul %18, %7, %cst_19 {dimension_numbers = #tpu.dot_dimension_numbers<[1], [0], [0], [1], [0, 0, 1, 1], [], []>} : vector<168x512xbf16>, vector<512x32xbf16>, vector<168x32xf32> -> vector<168x32xf32>
    %20 = arith.truncf %19 : vector<168x32xf32> to vector<168x32xbf16>
    %c3 = arith.constant 3 : index
    %c0_20 = arith.constant 0 : index
    %c0_21 = arith.constant 0 : index
    %21 = vector.load %arg4[%c3, %c0_20, %c0_21] : memref<9x168x512xbf16, #tpu.memory_space<vmem>>, vector<1x168x512xbf16>
    %22 = vector.shape_cast %21 : vector<1x168x512xbf16> to vector<168x512xbf16>
    %cst_22 = arith.constant dense<0.000000e+00> : vector<168x32xf32>
    %23 = tpu.matmul %22, %7, %cst_22 {dimension_numbers = #tpu.dot_dimension_numbers<[1], [0], [0], [1], [0, 0, 1, 1], [], []>} : vector<168x512xbf16>, vector<512x32xbf16>, vector<168x32xf32> -> vector<168x32xf32>
    %24 = arith.truncf %23 : vector<168x32xf32> to vector<168x32xbf16>
    %c4 = arith.constant 4 : index
    %c0_23 = arith.constant 0 : index
    %c0_24 = arith.constant 0 : index
    %25 = vector.load %arg4[%c4, %c0_23, %c0_24] : memref<9x168x512xbf16, #tpu.memory_space<vmem>>, vector<1x168x512xbf16>
    %26 = vector.shape_cast %25 : vector<1x168x512xbf16> to vector<168x512xbf16>
    %cst_25 = arith.constant dense<0.000000e+00> : vector<168x32xf32>
    %27 = tpu.matmul %26, %7, %cst_25 {dimension_numbers = #tpu.dot_dimension_numbers<[1], [0], [0], [1], [0, 0, 1, 1], [], []>} : vector<168x512xbf16>, vector<512x32xbf16>, vector<168x32xf32> -> vector<168x32xf32>
    %28 = arith.truncf %27 : vector<168x32xf32> to vector<168x32xbf16>
    %c5 = arith.constant 5 : index
    %c0_26 = arith.constant 0 : index
    %c0_27 = arith.constant 0 : index
    %29 = vector.load %arg4[%c5, %c0_26, %c0_27] : memref<9x168x512xbf16, #tpu.memory_space<vmem>>, vector<1x168x512xbf16>
    %30 = vector.shape_cast %29 : vector<1x168x512xbf16> to vector<168x512xbf16>
    %cst_28 = arith.constant dense<0.000000e+00> : vector<168x32xf32>
    %31 = tpu.matmul %30, %7, %cst_28 {dimension_numbers = #tpu.dot_dimension_numbers<[1], [0], [0], [1], [0, 0, 1, 1], [], []>} : vector<168x512xbf16>, vector<512x32xbf16>, vector<168x32xf32> -> vector<168x32xf32>
    %32 = arith.truncf %31 : vector<168x32xf32> to vector<168x32xbf16>
    %c6 = arith.constant 6 : index
    %c0_29 = arith.constant 0 : index
    %c0_30 = arith.constant 0 : index
    %33 = vector.load %arg4[%c6, %c0_29, %c0_30] : memref<9x168x512xbf16, #tpu.memory_space<vmem>>, vector<1x168x512xbf16>
    %34 = vector.shape_cast %33 : vector<1x168x512xbf16> to vector<168x512xbf16>
    %cst_31 = arith.constant dense<0.000000e+00> : vector<168x32xf32>
    %35 = tpu.matmul %34, %7, %cst_31 {dimension_numbers = #tpu.dot_dimension_numbers<[1], [0], [0], [1], [0, 0, 1, 1], [], []>} : vector<168x512xbf16>, vector<512x32xbf16>, vector<168x32xf32> -> vector<168x32xf32>
    %36 = arith.truncf %35 : vector<168x32xf32> to vector<168x32xbf16>
    %c7 = arith.constant 7 : index
    %c0_32 = arith.constant 0 : index
    %c0_33 = arith.constant 0 : index
    %37 = vector.load %arg4[%c7, %c0_32, %c0_33] : memref<9x168x512xbf16, #tpu.memory_space<vmem>>, vector<1x168x512xbf16>
    %38 = vector.shape_cast %37 : vector<1x168x512xbf16> to vector<168x512xbf16>
    %cst_34 = arith.constant dense<0.000000e+00> : vector<168x32xf32>
    %39 = tpu.matmul %38, %7, %cst_34 {dimension_numbers = #tpu.dot_dimension_numbers<[1], [0], [0], [1], [0, 0, 1, 1], [], []>} : vector<168x512xbf16>, vector<512x32xbf16>, vector<168x32xf32> -> vector<168x32xf32>
    %40 = arith.truncf %39 : vector<168x32xf32> to vector<168x32xbf16>
    %c8 = arith.constant 8 : index
    %c0_35 = arith.constant 0 : index
    %c0_36 = arith.constant 0 : index
    %41 = vector.load %arg4[%c8, %c0_35, %c0_36] : memref<9x168x512xbf16, #tpu.memory_space<vmem>>, vector<1x168x512xbf16>
    %42 = vector.shape_cast %41 : vector<1x168x512xbf16> to vector<168x512xbf16>
    %cst_37 = arith.constant dense<0.000000e+00> : vector<168x32xf32>
    %43 = tpu.matmul %42, %7, %cst_37 {dimension_numbers = #tpu.dot_dimension_numbers<[1], [0], [0], [1], [0, 0, 1, 1], [], []>} : vector<168x512xbf16>, vector<512x32xbf16>, vector<168x32xf32> -> vector<168x32xf32>
    %44 = arith.truncf %43 : vector<168x32xf32> to vector<168x32xbf16>
    %45 = tpu.concatenate %12, %16, %20, %24, %28, %32, %36, %40, %44 in 1 : vector<168x32xbf16>, vector<168x32xbf16>, vector<168x32xbf16>, vector<168x32xbf16>, vector<168x32xbf16>, vector<168x32xbf16>, vector<168x32xbf16>, vector<168x32xbf16>, vector<168x32xbf16> -> vector<168x288xbf16>
    %c0_38 = arith.constant 0 : index
    %c0_39 = arith.constant 0 : index
    %46 = vector.load %arg5[%c0_38, %c0_39] : memref<288x64xbf16, #tpu.memory_space<vmem>>, vector<288x64xbf16>
    %cst_40 = arith.constant dense<0.000000e+00> : vector<168x64xf32>
    %47 = tpu.matmul %45, %46, %cst_40 {dimension_numbers = #tpu.dot_dimension_numbers<[1], [0], [0], [1], [0, 0, 1, 1], [], []>} : vector<168x288xbf16>, vector<288x64xbf16>, vector<168x64xf32> -> vector<168x64xf32>
    %48 = arith.addf %47, %8 : vector<168x64xf32>
    %49 = arith.truncf %48 : vector<168x64xf32> to vector<168x64xbf16>
    %c0_41 = arith.constant 0 : index
    %c0_42 = arith.constant 0 : index
    %50 = vector.load %arg9[%c0_41, %c0_42] : memref<1x64xf32, #tpu.memory_space<vmem>>, vector<1x64xf32>
    %c0_43 = arith.constant 0 : index
    %c0_44 = arith.constant 0 : index
    %c0_45 = arith.constant 0 : index
    %51 = vector.load %arg7[%c0_43, %c0_44, %c0_45] : memref<9x56x168xbf16, #tpu.memory_space<vmem>>, vector<1x56x168xbf16>
    %52 = vector.shape_cast %51 : vector<1x56x168xbf16> to vector<56x168xbf16>
    %cst_46 = arith.constant dense<0.000000e+00> : vector<56x64xf32>
    %53 = tpu.matmul %52, %49, %cst_46 {dimension_numbers = #tpu.dot_dimension_numbers<[1], [0], [0], [1], [0, 0, 1, 1], [], []>} : vector<56x168xbf16>, vector<168x64xbf16>, vector<56x64xf32> -> vector<56x64xf32>
    %54 = arith.truncf %53 : vector<56x64xf32> to vector<56x64xbf16>
    %c1_47 = arith.constant 1 : index
    %c0_48 = arith.constant 0 : index
    %c0_49 = arith.constant 0 : index
    %55 = vector.load %arg7[%c1_47, %c0_48, %c0_49] : memref<9x56x168xbf16, #tpu.memory_space<vmem>>, vector<1x56x168xbf16>
    %56 = vector.shape_cast %55 : vector<1x56x168xbf16> to vector<56x168xbf16>
    %cst_50 = arith.constant dense<0.000000e+00> : vector<56x64xf32>
    %57 = tpu.matmul %56, %49, %cst_50 {dimension_numbers = #tpu.dot_dimension_numbers<[1], [0], [0], [1], [0, 0, 1, 1], [], []>} : vector<56x168xbf16>, vector<168x64xbf16>, vector<56x64xf32> -> vector<56x64xf32>
    %58 = arith.truncf %57 : vector<56x64xf32> to vector<56x64xbf16>
    %c2_51 = arith.constant 2 : index
    %c0_52 = arith.constant 0 : index
    %c0_53 = arith.constant 0 : index
    %59 = vector.load %arg7[%c2_51, %c0_52, %c0_53] : memref<9x56x168xbf16, #tpu.memory_space<vmem>>, vector<1x56x168xbf16>
    %60 = vector.shape_cast %59 : vector<1x56x168xbf16> to vector<56x168xbf16>
    %cst_54 = arith.constant dense<0.000000e+00> : vector<56x64xf32>
    %61 = tpu.matmul %60, %49, %cst_54 {dimension_numbers = #tpu.dot_dimension_numbers<[1], [0], [0], [1], [0, 0, 1, 1], [], []>} : vector<56x168xbf16>, vector<168x64xbf16>, vector<56x64xf32> -> vector<56x64xf32>
    %62 = arith.truncf %61 : vector<56x64xf32> to vector<56x64xbf16>
    %c3_55 = arith.constant 3 : index
    %c0_56 = arith.constant 0 : index
    %c0_57 = arith.constant 0 : index
    %63 = vector.load %arg7[%c3_55, %c0_56, %c0_57] : memref<9x56x168xbf16, #tpu.memory_space<vmem>>, vector<1x56x168xbf16>
    %64 = vector.shape_cast %63 : vector<1x56x168xbf16> to vector<56x168xbf16>
    %cst_58 = arith.constant dense<0.000000e+00> : vector<56x64xf32>
    %65 = tpu.matmul %64, %49, %cst_58 {dimension_numbers = #tpu.dot_dimension_numbers<[1], [0], [0], [1], [0, 0, 1, 1], [], []>} : vector<56x168xbf16>, vector<168x64xbf16>, vector<56x64xf32> -> vector<56x64xf32>
    %66 = arith.truncf %65 : vector<56x64xf32> to vector<56x64xbf16>
    %c4_59 = arith.constant 4 : index
    %c0_60 = arith.constant 0 : index
    %c0_61 = arith.constant 0 : index
    %67 = vector.load %arg7[%c4_59, %c0_60, %c0_61] : memref<9x56x168xbf16, #tpu.memory_space<vmem>>, vector<1x56x168xbf16>
    %68 = vector.shape_cast %67 : vector<1x56x168xbf16> to vector<56x168xbf16>
    %cst_62 = arith.constant dense<0.000000e+00> : vector<56x64xf32>
    %69 = tpu.matmul %68, %49, %cst_62 {dimension_numbers = #tpu.dot_dimension_numbers<[1], [0], [0], [1], [0, 0, 1, 1], [], []>} : vector<56x168xbf16>, vector<168x64xbf16>, vector<56x64xf32> -> vector<56x64xf32>
    %70 = arith.truncf %69 : vector<56x64xf32> to vector<56x64xbf16>
    %c5_63 = arith.constant 5 : index
    %c0_64 = arith.constant 0 : index
    %c0_65 = arith.constant 0 : index
    %71 = vector.load %arg7[%c5_63, %c0_64, %c0_65] : memref<9x56x168xbf16, #tpu.memory_space<vmem>>, vector<1x56x168xbf16>
    %72 = vector.shape_cast %71 : vector<1x56x168xbf16> to vector<56x168xbf16>
    %cst_66 = arith.constant dense<0.000000e+00> : vector<56x64xf32>
    %73 = tpu.matmul %72, %49, %cst_66 {dimension_numbers = #tpu.dot_dimension_numbers<[1], [0], [0], [1], [0, 0, 1, 1], [], []>} : vector<56x168xbf16>, vector<168x64xbf16>, vector<56x64xf32> -> vector<56x64xf32>
    %74 = arith.truncf %73 : vector<56x64xf32> to vector<56x64xbf16>
    %c6_67 = arith.constant 6 : index
    %c0_68 = arith.constant 0 : index
    %c0_69 = arith.constant 0 : index
    %75 = vector.load %arg7[%c6_67, %c0_68, %c0_69] : memref<9x56x168xbf16, #tpu.memory_space<vmem>>, vector<1x56x168xbf16>
    %76 = vector.shape_cast %75 : vector<1x56x168xbf16> to vector<56x168xbf16>
    %cst_70 = arith.constant dense<0.000000e+00> : vector<56x64xf32>
    %77 = tpu.matmul %76, %49, %cst_70 {dimension_numbers = #tpu.dot_dimension_numbers<[1], [0], [0], [1], [0, 0, 1, 1], [], []>} : vector<56x168xbf16>, vector<168x64xbf16>, vector<56x64xf32> -> vector<56x64xf32>
    %78 = arith.truncf %77 : vector<56x64xf32> to vector<56x64xbf16>
    %c7_71 = arith.constant 7 : index
    %c0_72 = arith.constant 0 : index
    %c0_73 = arith.constant 0 : index
    %79 = vector.load %arg7[%c7_71, %c0_72, %c0_73] : memref<9x56x168xbf16, #tpu.memory_space<vmem>>, vector<1x56x168xbf16>
    %80 = vector.shape_cast %79 : vector<1x56x168xbf16> to vector<56x168xbf16>
    %cst_74 = arith.constant dense<0.000000e+00> : vector<56x64xf32>
    %81 = tpu.matmul %80, %49, %cst_74 {dimension_numbers = #tpu.dot_dimension_numbers<[1], [0], [0], [1], [0, 0, 1, 1], [], []>} : vector<56x168xbf16>, vector<168x64xbf16>, vector<56x64xf32> -> vector<56x64xf32>
    %82 = arith.truncf %81 : vector<56x64xf32> to vector<56x64xbf16>
    %c8_75 = arith.constant 8 : index
    %c0_76 = arith.constant 0 : index
    %c0_77 = arith.constant 0 : index
    %83 = vector.load %arg7[%c8_75, %c0_76, %c0_77] : memref<9x56x168xbf16, #tpu.memory_space<vmem>>, vector<1x56x168xbf16>
    %84 = vector.shape_cast %83 : vector<1x56x168xbf16> to vector<56x168xbf16>
    %cst_78 = arith.constant dense<0.000000e+00> : vector<56x64xf32>
    %85 = tpu.matmul %84, %49, %cst_78 {dimension_numbers = #tpu.dot_dimension_numbers<[1], [0], [0], [1], [0, 0, 1, 1], [], []>} : vector<56x168xbf16>, vector<168x64xbf16>, vector<56x64xf32> -> vector<56x64xf32>
    %86 = arith.truncf %85 : vector<56x64xf32> to vector<56x64xbf16>
    %87 = tpu.concatenate %54, %58, %62, %66, %70, %74, %78, %82, %86 in 1 : vector<56x64xbf16>, vector<56x64xbf16>, vector<56x64xbf16>, vector<56x64xbf16>, vector<56x64xbf16>, vector<56x64xbf16>, vector<56x64xbf16>, vector<56x64xbf16>, vector<56x64xbf16> -> vector<56x576xbf16>
    %c0_79 = arith.constant 0 : index
    %c0_80 = arith.constant 0 : index
    %88 = vector.load %arg8[%c0_79, %c0_80] : memref<576x64xbf16, #tpu.memory_space<vmem>>, vector<576x64xbf16>
    %cst_81 = arith.constant dense<0.000000e+00> : vector<56x64xf32>
    %89 = tpu.matmul %87, %88, %cst_81 {dimension_numbers = #tpu.dot_dimension_numbers<[1], [0], [0], [1], [0, 0, 1, 1], [], []>} : vector<56x576xbf16>, vector<576x64xbf16>, vector<56x64xf32> -> vector<56x64xf32>
    %90 = vector.broadcast %50 : vector<1x64xf32> to vector<56x64xf32>
    %91 = arith.addf %89, %90 : vector<56x64xf32>
    %92 = arith.truncf %91 : vector<56x64xf32> to vector<56x64xbf16>
    %c0_82 = arith.constant 0 : index
    %c0_83 = arith.constant 0 : index
    %93 = vector.load %arg12[%c0_82, %c0_83] : memref<1x32xf32, #tpu.memory_space<vmem>>, vector<1x32xf32>
    %c0_84 = arith.constant 0 : index
    %c0_85 = arith.constant 0 : index
    %c0_86 = arith.constant 0 : index
    %94 = vector.load %arg10[%c0_84, %c0_85, %c0_86] : memref<9x24x56xbf16, #tpu.memory_space<vmem>>, vector<1x24x56xbf16>
    %95 = vector.shape_cast %94 : vector<1x24x56xbf16> to vector<24x56xbf16>
    %cst_87 = arith.constant dense<0.000000e+00> : vector<24x64xf32>
    %96 = tpu.matmul %95, %92, %cst_87 {dimension_numbers = #tpu.dot_dimension_numbers<[1], [0], [0], [1], [0, 0, 1, 1], [], []>} : vector<24x56xbf16>, vector<56x64xbf16>, vector<24x64xf32> -> vector<24x64xf32>
    %97 = arith.truncf %96 : vector<24x64xf32> to vector<24x64xbf16>
    %c1_88 = arith.constant 1 : index
    %c0_89 = arith.constant 0 : index
    %c0_90 = arith.constant 0 : index
    %98 = vector.load %arg10[%c1_88, %c0_89, %c0_90] : memref<9x24x56xbf16, #tpu.memory_space<vmem>>, vector<1x24x56xbf16>
    %99 = vector.shape_cast %98 : vector<1x24x56xbf16> to vector<24x56xbf16>
    %cst_91 = arith.constant dense<0.000000e+00> : vector<24x64xf32>
    %100 = tpu.matmul %99, %92, %cst_91 {dimension_numbers = #tpu.dot_dimension_numbers<[1], [0], [0], [1], [0, 0, 1, 1], [], []>} : vector<24x56xbf16>, vector<56x64xbf16>, vector<24x64xf32> -> vector<24x64xf32>
    %101 = arith.truncf %100 : vector<24x64xf32> to vector<24x64xbf16>
    %c2_92 = arith.constant 2 : index
    %c0_93 = arith.constant 0 : index
    %c0_94 = arith.constant 0 : index
    %102 = vector.load %arg10[%c2_92, %c0_93, %c0_94] : memref<9x24x56xbf16, #tpu.memory_space<vmem>>, vector<1x24x56xbf16>
    %103 = vector.shape_cast %102 : vector<1x24x56xbf16> to vector<24x56xbf16>
    %cst_95 = arith.constant dense<0.000000e+00> : vector<24x64xf32>
    %104 = tpu.matmul %103, %92, %cst_95 {dimension_numbers = #tpu.dot_dimension_numbers<[1], [0], [0], [1], [0, 0, 1, 1], [], []>} : vector<24x56xbf16>, vector<56x64xbf16>, vector<24x64xf32> -> vector<24x64xf32>
    %105 = arith.truncf %104 : vector<24x64xf32> to vector<24x64xbf16>
    %c3_96 = arith.constant 3 : index
    %c0_97 = arith.constant 0 : index
    %c0_98 = arith.constant 0 : index
    %106 = vector.load %arg10[%c3_96, %c0_97, %c0_98] : memref<9x24x56xbf16, #tpu.memory_space<vmem>>, vector<1x24x56xbf16>
    %107 = vector.shape_cast %106 : vector<1x24x56xbf16> to vector<24x56xbf16>
    %cst_99 = arith.constant dense<0.000000e+00> : vector<24x64xf32>
    %108 = tpu.matmul %107, %92, %cst_99 {dimension_numbers = #tpu.dot_dimension_numbers<[1], [0], [0], [1], [0, 0, 1, 1], [], []>} : vector<24x56xbf16>, vector<56x64xbf16>, vector<24x64xf32> -> vector<24x64xf32>
    %109 = arith.truncf %108 : vector<24x64xf32> to vector<24x64xbf16>
    %c4_100 = arith.constant 4 : index
    %c0_101 = arith.constant 0 : index
    %c0_102 = arith.constant 0 : index
    %110 = vector.load %arg10[%c4_100, %c0_101, %c0_102] : memref<9x24x56xbf16, #tpu.memory_space<vmem>>, vector<1x24x56xbf16>
    %111 = vector.shape_cast %110 : vector<1x24x56xbf16> to vector<24x56xbf16>
    %cst_103 = arith.constant dense<0.000000e+00> : vector<24x64xf32>
    %112 = tpu.matmul %111, %92, %cst_103 {dimension_numbers = #tpu.dot_dimension_numbers<[1], [0], [0], [1], [0, 0, 1, 1], [], []>} : vector<24x56xbf16>, vector<56x64xbf16>, vector<24x64xf32> -> vector<24x64xf32>
    %113 = arith.truncf %112 : vector<24x64xf32> to vector<24x64xbf16>
    %c5_104 = arith.constant 5 : index
    %c0_105 = arith.constant 0 : index
    %c0_106 = arith.constant 0 : index
    %114 = vector.load %arg10[%c5_104, %c0_105, %c0_106] : memref<9x24x56xbf16, #tpu.memory_space<vmem>>, vector<1x24x56xbf16>
    %115 = vector.shape_cast %114 : vector<1x24x56xbf16> to vector<24x56xbf16>
    %cst_107 = arith.constant dense<0.000000e+00> : vector<24x64xf32>
    %116 = tpu.matmul %115, %92, %cst_107 {dimension_numbers = #tpu.dot_dimension_numbers<[1], [0], [0], [1], [0, 0, 1, 1], [], []>} : vector<24x56xbf16>, vector<56x64xbf16>, vector<24x64xf32> -> vector<24x64xf32>
    %117 = arith.truncf %116 : vector<24x64xf32> to vector<24x64xbf16>
    %c6_108 = arith.constant 6 : index
    %c0_109 = arith.constant 0 : index
    %c0_110 = arith.constant 0 : index
    %118 = vector.load %arg10[%c6_108, %c0_109, %c0_110] : memref<9x24x56xbf16, #tpu.memory_space<vmem>>, vector<1x24x56xbf16>
    %119 = vector.shape_cast %118 : vector<1x24x56xbf16> to vector<24x56xbf16>
    %cst_111 = arith.constant dense<0.000000e+00> : vector<24x64xf32>
    %120 = tpu.matmul %119, %92, %cst_111 {dimension_numbers = #tpu.dot_dimension_numbers<[1], [0], [0], [1], [0, 0, 1, 1], [], []>} : vector<24x56xbf16>, vector<56x64xbf16>, vector<24x64xf32> -> vector<24x64xf32>
    %121 = arith.truncf %120 : vector<24x64xf32> to vector<24x64xbf16>
    %c7_112 = arith.constant 7 : index
    %c0_113 = arith.constant 0 : index
    %c0_114 = arith.constant 0 : index
    %122 = vector.load %arg10[%c7_112, %c0_113, %c0_114] : memref<9x24x56xbf16, #tpu.memory_space<vmem>>, vector<1x24x56xbf16>
    %123 = vector.shape_cast %122 : vector<1x24x56xbf16> to vector<24x56xbf16>
    %cst_115 = arith.constant dense<0.000000e+00> : vector<24x64xf32>
    %124 = tpu.matmul %123, %92, %cst_115 {dimension_numbers = #tpu.dot_dimension_numbers<[1], [0], [0], [1], [0, 0, 1, 1], [], []>} : vector<24x56xbf16>, vector<56x64xbf16>, vector<24x64xf32> -> vector<24x64xf32>
    %125 = arith.truncf %124 : vector<24x64xf32> to vector<24x64xbf16>
    %c8_116 = arith.constant 8 : index
    %c0_117 = arith.constant 0 : index
    %c0_118 = arith.constant 0 : index
    %126 = vector.load %arg10[%c8_116, %c0_117, %c0_118] : memref<9x24x56xbf16, #tpu.memory_space<vmem>>, vector<1x24x56xbf16>
    %127 = vector.shape_cast %126 : vector<1x24x56xbf16> to vector<24x56xbf16>
    %cst_119 = arith.constant dense<0.000000e+00> : vector<24x64xf32>
    %128 = tpu.matmul %127, %92, %cst_119 {dimension_numbers = #tpu.dot_dimension_numbers<[1], [0], [0], [1], [0, 0, 1, 1], [], []>} : vector<24x56xbf16>, vector<56x64xbf16>, vector<24x64xf32> -> vector<24x64xf32>
    %129 = arith.truncf %128 : vector<24x64xf32> to vector<24x64xbf16>
    %130 = tpu.concatenate %97, %101, %105, %109, %113, %117, %121, %125, %129 in 1 : vector<24x64xbf16>, vector<24x64xbf16>, vector<24x64xbf16>, vector<24x64xbf16>, vector<24x64xbf16>, vector<24x64xbf16>, vector<24x64xbf16>, vector<24x64xbf16>, vector<24x64xbf16> -> vector<24x576xbf16>
    %c0_120 = arith.constant 0 : index
    %c0_121 = arith.constant 0 : index
    %131 = vector.load %arg11[%c0_120, %c0_121] : memref<576x32xbf16, #tpu.memory_space<vmem>>, vector<576x32xbf16>
    %cst_122 = arith.constant dense<0.000000e+00> : vector<24x32xf32>
    %132 = tpu.matmul %130, %131, %cst_122 {dimension_numbers = #tpu.dot_dimension_numbers<[1], [0], [0], [1], [0, 0, 1, 1], [], []>} : vector<24x576xbf16>, vector<576x32xbf16>, vector<24x32xf32> -> vector<24x32xf32>
    %133 = vector.broadcast %93 : vector<1x32xf32> to vector<24x32xf32>
    %134 = arith.addf %132, %133 : vector<24x32xf32>
    %c0_123 = arith.constant 0 : index
    %c0_124 = arith.constant 0 : index
    %135 = vector.load %arg13[%c0_123, %c0_124] : memref<24x32xf32, #tpu.memory_space<vmem>>, vector<24x32xf32>
    tpu.vector_store %arg13[%c0_123, %c0_124], %134 {strides = array<i32>} : memref<24x32xf32, #tpu.memory_space<vmem>>, vector<24x32xf32>,
    return
  }
}

</mosaic_0001>

<llo_original>
// kernel: model_forward.1
$region0: #{model_forward.1}
  #allocation0 [shape = 'u32[]', space=smem, size = 0x4, offset = 0x4, fixed_abs, tag = 'smem constant byte address 0x4 - core index']
  #allocation1 [shape = 'u32[144,128]{1,0:T(1,128)}', space=vmem, size = 0x12000, scoped, tag = 'internal scratch']
  %s0 = inlined_call_operand.vmem [shape: f32[512,3], index: 0, kind: input, shape index: {}]
  %s1 = inlined_call_operand.vmem [shape: f32[512,3], index: 1, kind: input, shape index: {}]
  %s2 = inlined_call_operand.hbm [shape: f32[3,16], index: 2, kind: input, shape index: {}]
  %s3 = inlined_call_operand.hbm [shape: f32[3,16], index: 3, kind: input, shape index: {}]
  %s4 = inlined_call_operand.hbm [shape: bf16[9,168,512], index: 4, kind: input, shape index: {}]
  %s5 = inlined_call_operand.vmem [shape: bf16[288,64], index: 5, kind: input, shape index: {}]
  %s6 = inlined_call_operand.vmem [shape: f32[168,64], index: 6, kind: input, shape index: {}]
  %s7 = inlined_call_operand.vmem [shape: bf16[9,56,168], index: 7, kind: input, shape index: {}]
  %s8 = inlined_call_operand.vmem [shape: bf16[576,64], index: 8, kind: input, shape index: {}]
  %s9 = inlined_call_operand.hbm [shape: f32[1,64], index: 9, kind: input, shape index: {}]
  %s10 = inlined_call_operand.hbm [shape: bf16[9,24,56], index: 10, kind: input, shape index: {}]
  %s11 = inlined_call_operand.vmem [shape: bf16[576,32], index: 11, kind: input, shape index: {}]
  %s12 = inlined_call_operand.hbm [shape: f32[1,32], index: 12, kind: input, shape index: {}]
  %s13 = inlined_call_operand.vmem [shape: f32[24,32], index: 13, kind: output, shape index: {}]
  %s14 = sld [smem:[#allocation0]]
  $region86: #{model_forward.1} parent=0
    _
  %s16 = ssub.s32 1, %s14
  %s17 = scalar_select 0, %s16, %s14
  $region1: #{model_forward.1} parent=0
    #allocation2 [shape = 'u8[2048]{0}', space=vmem, size = 0x800, scoped, tag = 'input window, operand 2, single buffered']
    #allocation3 [shape = 's32[1]{0}', space=sflag, size = 0x4, scoped, tag = 'scoped memory for model_forward.1']
    #allocation4 [shape = 'u8[2048]{0}', space=vmem, size = 0x800, scoped, tag = 'input window, operand 3, single buffered']
    #allocation5 [shape = 's32[1]{0}', space=sflag, size = 0x4, scoped, tag = 'scoped memory for model_forward.1']
    #allocation6 [shape = 'u8[1548288]{0}', space=vmem, size = 0x17a000, scoped, tag = 'input window, operand 4, single buffered']
    #allocation7 [shape = 'u8[512]{0}', space=vmem, size = 0x400, scoped, tag = 'input window, operand 9, single buffered']
    #allocation8 [shape = 's32[1]{0}', space=sflag, size = 0x4, scoped, tag = 'scoped memory for model_forward.1']
    #allocation9 [shape = 'u8[55296]{0}', space=vmem, size = 0xd800, scoped, tag = 'input window, operand 10, single buffered']
    #allocation10 [shape = 'u8[512]{0}', space=vmem, size = 0x400, scoped, tag = 'input window, operand 12, single buffered']
    #allocation11 [shape = 's32[1]{0}', space=sflag, size = 0x4, scoped, tag = 'scoped memory for model_forward.1']
    %18 = vsyncpa [#allocation3], 0
    %19 = vsyncpa [#allocation5], 0
    %20 = vsyncpa [#allocation8], 0
    %21 = vsyncpa [#allocation11], 0
    // Predicated region
    $region2: #{model_forward.1} parent=1 // pred_check
      _
    $region3: #{model_forward.1} parent=1 // pred_check_branch
      %23 = sbr.rel (0) target = $region5
    $region4: #{model_forward.1} parent=1 // pred_region
      _
    $region5: #{model_forward.1} parent=1 // pred_fallthru
      _
    // Predicated region
    $region6: #{model_forward.1} parent=1 // pred_check
      _
    $region7: #{model_forward.1} parent=1 // pred_check_branch
      %25 = sbr.rel (0) target = $region9
    $region8: #{model_forward.1} parent=1 // pred_region
      _
    $region9: #{model_forward.1} parent=1 // pred_fallthru
      _
    // Predicated region
    $region10: #{model_forward.1} parent=1 // pred_check
      _
    $region11: #{model_forward.1} parent=1 // pred_check_branch
      %27 = sbr.rel (0) target = $region13
    $region12: #{model_forward.1} parent=1 // pred_region
      %s29 = ssub.s32 64, 64
      %30 = vsyncadd [#allocation3], %s29
      %s32 = sshll.u32 [#allocation2], 4
      %s33 = int_to_ptr.vmem [resolvable:$true] %s32
      %35 = dma.hbm_to_vmem [thread:$0]  %s2, 64, %s33, [#allocation3]
    $region13: #{model_forward.1} parent=1 // pred_fallthru
      _
    // Predicated region
    $region14: #{model_forward.1} parent=1 // pred_check
      _
    $region15: #{model_forward.1} parent=1 // pred_check_branch
      %37 = sbr.rel (0) target = $region17
    $region16: #{model_forward.1} parent=1 // pred_region
      %s39 = ssub.s32 64, 64
      %40 = vsyncadd [#allocation5], %s39
      %s42 = sshll.u32 [#allocation4], 4
      %s43 = int_to_ptr.vmem [resolvable:$true] %s42
      %45 = dma.hbm_to_vmem [thread:$0]  %s3, 64, %s43, [#allocation5]
    $region17: #{model_forward.1} parent=1 // pred_fallthru
      _
    // Predicated region
    $region18: #{model_forward.1} parent=1 // pred_check
      _
    $region19: #{model_forward.1} parent=1 // pred_check_branch
      %47 = sbr.rel (0) target = $region21
    $region20: #{model_forward.1} parent=1 // pred_region
      %s49 = ssub.s32 48384, 48384
      %50 = vsyncadd [#allocation5], %s49
      %s51 = sshll.u32 [#allocation6], 4
      %s52 = int_to_ptr.vmem [resolvable:$true] %s51
      %57 = dma.hbm_to_vmem [thread:$0]  %s4, 48384, %s52, [#allocation5], 256, 256, 16
    $region21: #{model_forward.1} parent=1 // pred_fallthru
      _
    // Predicated region
    $region22: #{model_forward.1} parent=1 // pred_check
      _
    $region23: #{model_forward.1} parent=1 // pred_check_branch
      %59 = sbr.rel (0) target = $region25
    $region24: #{model_forward.1} parent=1 // pred_region
      _
    $region25: #{model_forward.1} parent=1 // pred_fallthru
      _
    // Predicated region
    $region26: #{model_forward.1} parent=1 // pred_check
      _
    $region27: #{model_forward.1} parent=1 // pred_check_branch
      %61 = sbr.rel (0) target = $region29
    $region28: #{model_forward.1} parent=1 // pred_region
      _
    $region29: #{model_forward.1} parent=1 // pred_fallthru
      _
    // Predicated region
    $region30: #{model_forward.1} parent=1 // pred_check
      _
    $region31: #{model_forward.1} parent=1 // pred_check_branch
      %63 = sbr.rel (0) target = $region33
    $region32: #{model_forward.1} parent=1 // pred_region
      _
    $region33: #{model_forward.1} parent=1 // pred_fallthru
      _
    // Predicated region
    $region34: #{model_forward.1} parent=1 // pred_check
      _
    $region35: #{model_forward.1} parent=1 // pred_check_branch
      %65 = sbr.rel (0) target = $region37
    $region36: #{model_forward.1} parent=1 // pred_region
      _
    $region37: #{model_forward.1} parent=1 // pred_fallthru
      _
    // Predicated region
    $region38: #{model_forward.1} parent=1 // pred_check
      _
    $region39: #{model_forward.1} parent=1 // pred_check_branch
      %67 = sbr.rel (0) target = $region41
    $region40: #{model_forward.1} parent=1 // pred_region
      %s69 = ssub.s32 16, 16
      %70 = vsyncadd [#allocation8], %s69
      %s72 = sshll.u32 [#allocation7], 4
      %s73 = int_to_ptr.vmem [resolvable:$true] %s72
      %75 = dma.hbm_to_vmem [thread:$0]  %s9, 16, %s73, [#allocation8]
    $region41: #{model_forward.1} parent=1 // pred_fallthru
      _
    // Predicated region
    $region42: #{model_forward.1} parent=1 // pred_check
      _
    $region43: #{model_forward.1} parent=1 // pred_check_branch
      %77 = sbr.rel (0) target = $region45
    $region44: #{model_forward.1} parent=1 // pred_region
      %s79 = ssub.s32 1728, 1728
      %80 = vsyncadd [#allocation8], %s79
      %s81 = sshll.u32 [#allocation9], 4
      %s82 = int_to_ptr.vmem [resolvable:$true] %s81
      %87 = dma.hbm_to_vmem [thread:$0]  %s10, 1728, %s82, [#allocation8], 64, 64, 4
    $region45: #{model_forward.1} parent=1 // pred_fallthru
      _
    // Predicated region
    $region46: #{model_forward.1} parent=1 // pred_check
      _
    $region47: #{model_forward.1} parent=1 // pred_check_branch
      %89 = sbr.rel (0) target = $region49
    $region48: #{model_forward.1} parent=1 // pred_region
      _
    $region49: #{model_forward.1} parent=1 // pred_fallthru
      _
    // Predicated region
    $region50: #{model_forward.1} parent=1 // pred_check
      _
    $region51: #{model_forward.1} parent=1 // pred_check_branch
      %91 = sbr.rel (0) target = $region53
    $region52: #{model_forward.1} parent=1 // pred_region
      %s93 = ssub.s32 16, 16
      %94 = vsyncadd [#allocation11], %s93
      %s96 = sshll.u32 [#allocation10], 4
      %s97 = int_to_ptr.vmem [resolvable:$true] %s96
      %99 = dma.hbm_to_vmem [thread:$0]  %s12, 16, %s97, [#allocation11]
    $region53: #{model_forward.1} parent=1 // pred_fallthru
      _
    // Predicated region
    $region54: #{model_forward.1} parent=1 // pred_check
      _
    $region55: #{model_forward.1} parent=1 // pred_check_branch
      %101 = sbr.rel (0) target = $region57
    $region56: #{model_forward.1} parent=1 // pred_region
      %102 = dma.done [#allocation3], 64
    $region57: #{model_forward.1} parent=1 // pred_fallthru
      _
    // Predicated region
    $region58: #{model_forward.1} parent=1 // pred_check
      _
    $region59: #{model_forward.1} parent=1 // pred_check_branch
      %104 = sbr.rel (0) target = $region61
    $region60: #{model_forward.1} parent=1 // pred_region
      %105 = dma.done [#allocation5], 64
    $region61: #{model_forward.1} parent=1 // pred_fallthru
      _
    // Predicated region
    $region62: #{model_forward.1} parent=1 // pred_check
      _
    $region63: #{model_forward.1} parent=1 // pred_check_branch
      %107 = sbr.rel (0) target = $region65
    $region64: #{model_forward.1} parent=1 // pred_region
      %108 = dma.done [#allocation5], 48384
    $region65: #{model_forward.1} parent=1 // pred_fallthru
      _
    // Predicated region
    $region66: #{model_forward.1} parent=1 // pred_check
      _
    $region67: #{model_forward.1} parent=1 // pred_check_branch
      %110 = sbr.rel (0) target = $region69
    $region68: #{model_forward.1} parent=1 // pred_region
      %111 = dma.done [#allocation8], 16
    $region69: #{model_forward.1} parent=1 // pred_fallthru
      _
    // Predicated region
    $region70: #{model_forward.1} parent=1 // pred_check
      _
    $region71: #{model_forward.1} parent=1 // pred_check_branch
      %113 = sbr.rel (0) target = $region73
    $region72: #{model_forward.1} parent=1 // pred_region
      %114 = dma.done [#allocation8], 1728
    $region73: #{model_forward.1} parent=1 // pred_fallthru
      _
    // Predicated region
    $region74: #{model_forward.1} parent=1 // pred_check
      _
    $region75: #{model_forward.1} parent=1 // pred_check_branch
      %116 = sbr.rel (0) target = $region77
    $region76: #{model_forward.1} parent=1 // pred_region
      %117 = dma.done [#allocation11], 16
    $region77: #{model_forward.1} parent=1 // pred_fallthru
      _
    %v119 = vld [vmem:[%s0] sm:$0xff]
    %v120 = vld [vmem:[%s0 + $0x8] sm:$0xff]
    %v121 = vld [vmem:[%s0 + $0x10] sm:$0xff]
    %v122 = vld [vmem:[%s0 + $0x18] sm:$0xff]
    %v123 = vld [vmem:[%s0 + $0x20] sm:$0xff]
    %v124 = vld [vmem:[%s0 + $0x28] sm:$0xff]
    %v125 = vld [vmem:[%s0 + $0x30] sm:$0xff]
    %v126 = vld [vmem:[%s0 + $0x38] sm:$0xff]
    %v127 = vld [vmem:[%s0 + $0x40] sm:$0xff]
    %v128 = vld [vmem:[%s0 + $0x48] sm:$0xff]
    %v129 = vld [vmem:[%s0 + $0x50] sm:$0xff]
    %v130 = vld [vmem:[%s0 + $0x58] sm:$0xff]
    %v131 = vld [vmem:[%s0 + $0x60] sm:$0xff]
    %v132 = vld [vmem:[%s0 + $0x68] sm:$0xff]
    %v133 = vld [vmem:[%s0 + $0x70] sm:$0xff]
    %v134 = vld [vmem:[%s0 + $0x78] sm:$0xff]
    %v135 = vld [vmem:[%s0 + $0x80] sm:$0xff]
    %v136 = vld [vmem:[%s0 + $0x88] sm:$0xff]
    %v137 = vld [vmem:[%s0 + $0x90] sm:$0xff]
    %v138 = vld [vmem:[%s0 + $0x98] sm:$0xff]
    %v139 = vld [vmem:[%s0 + $0xa0] sm:$0xff]
    %v140 = vld [vmem:[%s0 + $0xa8] sm:$0xff]
    %v141 = vld [vmem:[%s0 + $0xb0] sm:$0xff]
    %v142 = vld [vmem:[%s0 + $0xb8] sm:$0xff]
    %v143 = vld [vmem:[%s0 + $0xc0] sm:$0xff]
    %v144 = vld [vmem:[%s0 + $0xc8] sm:$0xff]
    %v145 = vld [vmem:[%s0 + $0xd0] sm:$0xff]
    %v146 = vld [vmem:[%s0 + $0xd8] sm:$0xff]
    %v147 = vld [vmem:[%s0 + $0xe0] sm:$0xff]
    %v148 = vld [vmem:[%s0 + $0xe8] sm:$0xff]
    %v149 = vld [vmem:[%s0 + $0xf0] sm:$0xff]
    %v150 = vld [vmem:[%s0 + $0xf8] sm:$0xff]
    %v151 = vld [vmem:[%s0 + $0x100] sm:$0xff]
    %v152 = vld [vmem:[%s0 + $0x108] sm:$0xff]
    %v153 = vld [vmem:[%s0 + $0x110] sm:$0xff]
    %v154 = vld [vmem:[%s0 + $0x118] sm:$0xff]
    %v155 = vld [vmem:[%s0 + $0x120] sm:$0xff]
    %v156 = vld [vmem:[%s0 + $0x128] sm:$0xff]
    %v157 = vld [vmem:[%s0 + $0x130] sm:$0xff]
    %v158 = vld [vmem:[%s0 + $0x138] sm:$0xff]
    %v159 = vld [vmem:[%s0 + $0x140] sm:$0xff]
    %v160 = vld [vmem:[%s0 + $0x148] sm:$0xff]
    %v161 = vld [vmem:[%s0 + $0x150] sm:$0xff]
    %v162 = vld [vmem:[%s0 + $0x158] sm:$0xff]
    %v163 = vld [vmem:[%s0 + $0x160] sm:$0xff]
    %v164 = vld [vmem:[%s0 + $0x168] sm:$0xff]
    %v165 = vld [vmem:[%s0 + $0x170] sm:$0xff]
    %v166 = vld [vmem:[%s0 + $0x178] sm:$0xff]
    %v167 = vld [vmem:[%s0 + $0x180] sm:$0xff]
    %v168 = vld [vmem:[%s0 + $0x188] sm:$0xff]
    %v169 = vld [vmem:[%s0 + $0x190] sm:$0xff]
    %v170 = vld [vmem:[%s0 + $0x198] sm:$0xff]
    %v171 = vld [vmem:[%s0 + $0x1a0] sm:$0xff]
    %v172 = vld [vmem:[%s0 + $0x1a8] sm:$0xff]
    %v173 = vld [vmem:[%s0 + $0x1b0] sm:$0xff]
    %v174 = vld [vmem:[%s0 + $0x1b8] sm:$0xff]
    %v175 = vld [vmem:[%s0 + $0x1c0] sm:$0xff]
    %v176 = vld [vmem:[%s0 + $0x1c8] sm:$0xff]
    %v177 = vld [vmem:[%s0 + $0x1d0] sm:$0xff]
    %v178 = vld [vmem:[%s0 + $0x1d8] sm:$0xff]
    %v179 = vld [vmem:[%s0 + $0x1e0] sm:$0xff]
    %v180 = vld [vmem:[%s0 + $0x1e8] sm:$0xff]
    %v181 = vld [vmem:[%s0 + $0x1f0] sm:$0xff]
    %v182 = vld [vmem:[%s0 + $0x1f8] sm:$0xff]
    %v183 = vld [vmem:[#allocation2] sm:$0x7]
    %vm184 = vcmask 23552
    %v186 = vsel %vm184, %v119, 0
    %v189 = vsel %vm184, %v120, 0
    %v192 = vsel %vm184, %v121, 0
    %v195 = vsel %vm184, %v122, 0
    %v198 = vsel %vm184, %v123, 0
    %v201 = vsel %vm184, %v124, 0
    %v204 = vsel %vm184, %v125, 0
    %v207 = vsel %vm184, %v126, 0
    %v210 = vsel %vm184, %v127, 0
    %v213 = vsel %vm184, %v128, 0
    %v216 = vsel %vm184, %v129, 0
    %v219 = vsel %vm184, %v130, 0
    %v222 = vsel %vm184, %v131, 0
    %v225 = vsel %vm184, %v132, 0
    %v228 = vsel %vm184, %v133, 0
    %v231 = vsel %vm184, %v134, 0
    %v234 = vsel %vm184, %v135, 0
    %v237 = vsel %vm184, %v136, 0
    %v240 = vsel %vm184, %v137, 0
    %v243 = vsel %vm184, %v138, 0
    %v246 = vsel %vm184, %v139, 0
    %v249 = vsel %vm184, %v140, 0
    %v252 = vsel %vm184, %v141, 0
    %v255 = vsel %vm184, %v142, 0
    %v258 = vsel %vm184, %v143, 0
    %v261 = vsel %vm184, %v144, 0
    %v264 = vsel %vm184, %v145, 0
    %v267 = vsel %vm184, %v146, 0
    %v270 = vsel %vm184, %v147, 0
    %v273 = vsel %vm184, %v148, 0
    %v276 = vsel %vm184, %v149, 0
    %v279 = vsel %vm184, %v150, 0
    %v282 = vsel %vm184, %v151, 0
    %v285 = vsel %vm184, %v152, 0
    %v288 = vsel %vm184, %v153, 0
    %v291 = vsel %vm184, %v154, 0
    %v294 = vsel %vm184, %v155, 0
    %v297 = vsel %vm184, %v156, 0
    %v300 = vsel %vm184, %v157, 0
    %v303 = vsel %vm184, %v158, 0
    %v306 = vsel %vm184, %v159, 0
    %v309 = vsel %vm184, %v160, 0
    %v312 = vsel %vm184, %v161, 0
    %v315 = vsel %vm184, %v162, 0
    %v318 = vsel %vm184, %v163, 0
    %v321 = vsel %vm184, %v164, 0
    %v324 = vsel %vm184, %v165, 0
    %v327 = vsel %vm184, %v166, 0
    %v330 = vsel %vm184, %v167, 0
    %v333 = vsel %vm184, %v168, 0
    %v336 = vsel %vm184, %v169, 0
    %v339 = vsel %vm184, %v170, 0
    %v342 = vsel %vm184, %v171, 0
    %v345 = vsel %vm184, %v172, 0
    %v348 = vsel %vm184, %v173, 0
    %v351 = vsel %vm184, %v174, 0
    %v354 = vsel %vm184, %v175, 0
    %v357 = vsel %vm184, %v176, 0
    %v360 = vsel %vm184, %v177, 0
    %v363 = vsel %vm184, %v178, 0
    %v366 = vsel %vm184, %v179, 0
    %v369 = vsel %vm184, %v180, 0
    %v372 = vsel %vm184, %v181, 0
    %v375 = vsel %vm184, %v182, 0
    %vm377 = vcmask 1042432
    %v379 = vsel %vm377, %v183, 0
    %381 = vmatprep.subr.mxu0 0.0
    %382 = vmatpush1.msra.mxu0 0.0
    %383 = vmatprep.subr.mxu0 0.0
    %384 = vmatpush1.msra.mxu0 0.0
    %385 = vmatprep.subr.mxu0 0.0
    %386 = vmatpush1.msra.mxu0 0.0
    %387 = vmatprep.subr.mxu0 0.0
    %388 = vmatpush1.msra.mxu0 0.0
    %389 = vmatprep.subr.mxu0 0.0
    %390 = vmatpush1.msra.mxu0 0.0
    %391 = vmatprep.subr.mxu0 0.0
    %392 = vmatpush1.msra.mxu0 0.0
    %393 = vmatprep.subr.mxu0 0.0
    %394 = vmatpush1.msra.mxu0 0.0
    %395 = vmatprep.subr.mxu0 0.0
    %396 = vmatpush1.msra.mxu0 0.0
    %397 = vmatprep.subr.mxu0 0.0
    %398 = vmatpush1.msra.mxu0 0.0
    %399 = vmatprep.subr.mxu0 0.0
    %400 = vmatpush1.msra.mxu0 0.0
    %401 = vmatprep.subr.mxu0 0.0
    %402 = vmatpush1.msra.mxu0 0.0
    %403 = vmatprep.subr.mxu0 0.0
    %404 = vmatpush1.msra.mxu0 0.0
    %405 = vmatprep.subr.mxu0 0.0
    %406 = vmatpush1.msra.mxu0 0.0
    %407 = vmatprep.subr.mxu0 0.0
    %408 = vmatpush1.msra.mxu0 0.0
    %409 = vmatprep.subr.mxu0 0.0
    %410 = vmatpush1.msra.mxu0 0.0
    %411 = vmatprep.subr.mxu0 0.0
    %412 = vmatpush1.msra.mxu0 %v379
    %413 = vmatprep.subr.mxu0 0.0
    %414 = vmatpush2.msra.mxu0 0.0
    %415 = vmatprep.subr.mxu0 0.0
    %416 = vmatpush2.msra.mxu0 0.0
    %417 = vmatprep.subr.mxu0 0.0
    %418 = vmatpush2.msra.mxu0 0.0
    %419 = vmatprep.subr.mxu0 0.0
    %420 = vmatpush2.msra.mxu0 0.0
    %421 = vmatprep.subr.mxu0 0.0
    %422 = vmatpush2.msra.mxu0 0.0
    %423 = vmatprep.subr.mxu0 0.0
    %424 = vmatpush2.msra.mxu0 0.0
    %425 = vmatprep.subr.mxu0 0.0
    %426 = vmatpush2.msra.mxu0 0.0
    %427 = vmatprep.subr.mxu0 0.0
    %428 = vmatpush2.msra.mxu0 0.0
    %429 = vmatprep.subr.mxu0 0.0
    %430 = vmatpush2.msra.mxu0 0.0
    %431 = vmatprep.subr.mxu0 0.0
    %432 = vmatpush2.msra.mxu0 0.0
    %433 = vmatprep.subr.mxu0 0.0
    %434 = vmatpush2.msra.mxu0 0.0
    %435 = vmatprep.subr.mxu0 0.0
    %436 = vmatpush2.msra.mxu0 0.0
    %437 = vmatprep.subr.mxu0 0.0
    %438 = vmatpush2.msra.mxu0 0.0
    %439 = vmatprep.subr.mxu0 0.0
    %440 = vmatpush2.msra.mxu0 0.0
    %441 = vmatprep.subr.mxu0 0.0
    %442 = vmatpush2.msra.mxu0 0.0
    %443 = vmatprep.subr.mxu0 0.0
    %444 = vmatpush2.msra.mxu0 0.0
    %445 = vmatprep.mubr.f32.mxu0 0.0
    %446 = vmatmul.mubr.f32.gmra.mxu0 %v186
    %v447 = vpop.f32.mrf.mxu0
    %v448 = vadd.f32 0.0, %v447
    %v449 = vpop.f32.mrf.mxu0
    %450 = vmatprep.mubr.f32.mxu0 0.0
    %451 = vmatmul.mubr.f32.gmra.mxu0 %v189
    %v452 = vpop.f32.mrf.mxu0
    %v453 = vadd.f32 0.0, %v452
    %v454 = vpop.f32.mrf.mxu0
    %455 = vmatprep.mubr.f32.mxu0 0.0
    %456 = vmatmul.mubr.f32.gmra.mxu0 %v192
    %v457 = vpop.f32.mrf.mxu0
    %v458 = vadd.f32 0.0, %v457
    %v459 = vpop.f32.mrf.mxu0
    %460 = vmatprep.mubr.f32.mxu0 0.0
    %461 = vmatmul.mubr.f32.gmra.mxu0 %v195
    %v462 = vpop.f32.mrf.mxu0
    %v463 = vadd.f32 0.0, %v462
    %v464 = vpop.f32.mrf.mxu0
    %465 = vmatprep.mubr.f32.mxu0 0.0
    %466 = vmatmul.mubr.f32.gmra.mxu0 %v198
    %v467 = vpop.f32.mrf.mxu0
    %v468 = vadd.f32 0.0, %v467
    %v469 = vpop.f32.mrf.mxu0
    %470 = vmatprep.mubr.f32.mxu0 0.0
    %471 = vmatmul.mubr.f32.gmra.mxu0 %v201
    %v472 = vpop.f32.mrf.mxu0
    %v473 = vadd.f32 0.0, %v472
    %v474 = vpop.f32.mrf.mxu0
    %475 = vmatprep.mubr.f32.mxu0 0.0
    %476 = vmatmul.mubr.f32.gmra.mxu0 %v204
    %v477 = vpop.f32.mrf.mxu0
    %v478 = vadd.f32 0.0, %v477
    %v479 = vpop.f32.mrf.mxu0
    %480 = vmatprep.mubr.f32.mxu0 0.0
    %481 = vmatmul.mubr.f32.gmra.mxu0 %v207
    %v482 = vpop.f32.mrf.mxu0
    %v483 = vadd.f32 0.0, %v482
    %v484 = vpop.f32.mrf.mxu0
    %485 = vmatprep.mubr.f32.mxu0 0.0
    %486 = vmatmul.mubr.f32.gmra.mxu0 %v210
    %v487 = vpop.f32.mrf.mxu0
    %v488 = vadd.f32 0.0, %v487
    %v489 = vpop.f32.mrf.mxu0
    %490 = vmatprep.mubr.f32.mxu0 0.0
    %491 = vmatmul.mubr.f32.gmra.mxu0 %v213
    %v492 = vpop.f32.mrf.mxu0
    %v493 = vadd.f32 0.0, %v492
    %v494 = vpop.f32.mrf.mxu0
    %495 = vmatprep.mubr.f32.mxu0 0.0
    %496 = vmatmul.mubr.f32.gmra.mxu0 %v216
    %v497 = vpop.f32.mrf.mxu0
    %v498 = vadd.f32 0.0, %v497
    %v499 = vpop.f32.mrf.mxu0
    %500 = vmatprep.mubr.f32.mxu0 0.0
    %501 = vmatmul.mubr.f32.gmra.mxu0 %v219
    %v502 = vpop.f32.mrf.mxu0
    %v503 = vadd.f32 0.0, %v502
    %v504 = vpop.f32.mrf.mxu0
    %505 = vmatprep.mubr.f32.mxu0 0.0
    %506 = vmatmul.mubr.f32.gmra.mxu0 %v222
    %v507 = vpop.f32.mrf.mxu0
    %v508 = vadd.f32 0.0, %v507
    %v509 = vpop.f32.mrf.mxu0
    %510 = vmatprep.mubr.f32.mxu0 0.0
    %511 = vmatmul.mubr.f32.gmra.mxu0 %v225
    %v512 = vpop.f32.mrf.mxu0
    %v513 = vadd.f32 0.0, %v512
    %v514 = vpop.f32.mrf.mxu0
    %515 = vmatprep.mubr.f32.mxu0 0.0
    %516 = vmatmul.mubr.f32.gmra.mxu0 %v228
    %v517 = vpop.f32.mrf.mxu0
    %v518 = vadd.f32 0.0, %v517
    %v519 = vpop.f32.mrf.mxu0
    %520 = vmatprep.mubr.f32.mxu0 0.0
    %521 = vmatmul.mubr.f32.gmra.mxu0 %v231
    %v522 = vpop.f32.mrf.mxu0
    %v523 = vadd.f32 0.0, %v522
    %v524 = vpop.f32.mrf.mxu0
    %525 = vmatprep.mubr.f32.mxu0 0.0
    %526 = vmatmul.mubr.f32.gmra.mxu0 %v234
    %v527 = vpop.f32.mrf.mxu0
    %v528 = vadd.f32 0.0, %v527
    %v529 = vpop.f32.mrf.mxu0
    %530 = vmatprep.mubr.f32.mxu0 0.0
    %531 = vmatmul.mubr.f32.gmra.mxu0 %v237
    %v532 = vpop.f32.mrf.mxu0
    %v533 = vadd.f32 0.0, %v532
    %v534 = vpop.f32.mrf.mxu0
    %535 = vmatprep.mubr.f32.mxu0 0.0
    %536 = vmatmul.mubr.f32.gmra.mxu0 %v240
    %v537 = vpop.f32.mrf.mxu0
    %v538 = vadd.f32 0.0, %v537
    %v539 = vpop.f32.mrf.mxu0
    %540 = vmatprep.mubr.f32.mxu0 0.0
    %541 = vmatmul.mubr.f32.gmra.mxu0 %v243
    %v542 = vpop.f32.mrf.mxu0
    %v543 = vadd.f32 0.0, %v542
    %v544 = vpop.f32.mrf.mxu0
    %545 = vmatprep.mubr.f32.mxu0 0.0
    %546 = vmatmul.mubr.f32.gmra.mxu0 %v246
    %v547 = vpop.f32.mrf.mxu0
    %v548 = vadd.f32 0.0, %v547
    %v549 = vpop.f32.mrf.mxu0
    %550 = vmatprep.mubr.f32.mxu0 0.0
    %551 = vmatmul.mubr.f32.gmra.mxu0 %v249
    %v552 = vpop.f32.mrf.mxu0
    %v553 = vadd.f32 0.0, %v552
    %v554 = vpop.f32.mrf.mxu0
    %555 = vmatprep.mubr.f32.mxu0 0.0
    %556 = vmatmul.mubr.f32.gmra.mxu0 %v252
    %v557 = vpop.f32.mrf.mxu0
    %v558 = vadd.f32 0.0, %v557
    %v559 = vpop.f32.mrf.mxu0
    %560 = vmatprep.mubr.f32.mxu0 0.0
    %561 = vmatmul.mubr.f32.gmra.mxu0 %v255
    %v562 = vpop.f32.mrf.mxu0
    %v563 = vadd.f32 0.0, %v562
    %v564 = vpop.f32.mrf.mxu0
    %565 = vmatprep.mubr.f32.mxu0 0.0
    %566 = vmatmul.mubr.f32.gmra.mxu0 %v258
    %v567 = vpop.f32.mrf.mxu0
    %v568 = vadd.f32 0.0, %v567
    %v569 = vpop.f32.mrf.mxu0
    %570 = vmatprep.mubr.f32.mxu0 0.0
    %571 = vmatmul.mubr.f32.gmra.mxu0 %v261
    %v572 = vpop.f32.mrf.mxu0
    %v573 = vadd.f32 0.0, %v572
    %v574 = vpop.f32.mrf.mxu0
    %575 = vmatprep.mubr.f32.mxu0 0.0
    %576 = vmatmul.mubr.f32.gmra.mxu0 %v264
    %v577 = vpop.f32.mrf.mxu0
    %v578 = vadd.f32 0.0, %v577
    %v579 = vpop.f32.mrf.mxu0
    %580 = vmatprep.mubr.f32.mxu0 0.0
    %581 = vmatmul.mubr.f32.gmra.mxu0 %v267
    %v582 = vpop.f32.mrf.mxu0
    %v583 = vadd.f32 0.0, %v582
    %v584 = vpop.f32.mrf.mxu0
    %585 = vmatprep.mubr.f32.mxu0 0.0
    %586 = vmatmul.mubr.f32.gmra.mxu0 %v270
    %v587 = vpop.f32.mrf.mxu0
    %v588 = vadd.f32 0.0, %v587
    %v589 = vpop.f32.mrf.mxu0
    %590 = vmatprep.mubr.f32.mxu0 0.0
    %591 = vmatmul.mubr.f32.gmra.mxu0 %v273
    %v592 = vpop.f32.mrf.mxu0
    %v593 = vadd.f32 0.0, %v592
    %v594 = vpop.f32.mrf.mxu0
    %595 = vmatprep.mubr.f32.mxu0 0.0
    %596 = vmatmul.mubr.f32.gmra.mxu0 %v276
    %v597 = vpop.f32.mrf.mxu0
    %v598 = vadd.f32 0.0, %v597
    %v599 = vpop.f32.mrf.mxu0
    %600 = vmatprep.mubr.f32.mxu0 0.0
    %601 = vmatmul.mubr.f32.gmra.mxu0 %v279
    %v602 = vpop.f32.mrf.mxu0
    %v603 = vadd.f32 0.0, %v602
    %v604 = vpop.f32.mrf.mxu0
    %605 = vmatprep.mubr.f32.mxu0 0.0
    %606 = vmatmul.mubr.f32.gmra.mxu0 %v282
    %v607 = vpop.f32.mrf.mxu0
    %v608 = vadd.f32 0.0, %v607
    %v609 = vpop.f32.mrf.mxu0
    %610 = vmatprep.mubr.f32.mxu0 0.0
    %611 = vmatmul.mubr.f32.gmra.mxu0 %v285
    %v612 = vpop.f32.mrf.mxu0
    %v613 = vadd.f32 0.0, %v612
    %v614 = vpop.f32.mrf.mxu0
    %615 = vmatprep.mubr.f32.mxu0 0.0
    %616 = vmatmul.mubr.f32.gmra.mxu0 %v288
    %v617 = vpop.f32.mrf.mxu0
    %v618 = vadd.f32 0.0, %v617
    %v619 = vpop.f32.mrf.mxu0
    %620 = vmatprep.mubr.f32.mxu0 0.0
    %621 = vmatmul.mubr.f32.gmra.mxu0 %v291
    %v622 = vpop.f32.mrf.mxu0
    %v623 = vadd.f32 0.0, %v622
    %v624 = vpop.f32.mrf.mxu0
    %625 = vmatprep.mubr.f32.mxu0 0.0
    %626 = vmatmul.mubr.f32.gmra.mxu0 %v294
    %v627 = vpop.f32.mrf.mxu0
    %v628 = vadd.f32 0.0, %v627
    %v629 = vpop.f32.mrf.mxu0
    %630 = vmatprep.mubr.f32.mxu0 0.0
    %631 = vmatmul.mubr.f32.gmra.mxu0 %v297
    %v632 = vpop.f32.mrf.mxu0
    %v633 = vadd.f32 0.0, %v632
    %v634 = vpop.f32.mrf.mxu0
    %635 = vmatprep.mubr.f32.mxu0 0.0
    %636 = vmatmul.mubr.f32.gmra.mxu0 %v300
    %v637 = vpop.f32.mrf.mxu0
    %v638 = vadd.f32 0.0, %v637
    %v639 = vpop.f32.mrf.mxu0
    %640 = vmatprep.mubr.f32.mxu0 0.0
    %641 = vmatmul.mubr.f32.gmra.mxu0 %v303
    %v642 = vpop.f32.mrf.mxu0
    %v643 = vadd.f32 0.0, %v642
    %v644 = vpop.f32.mrf.mxu0
    %645 = vmatprep.mubr.f32.mxu0 0.0
    %646 = vmatmul.mubr.f32.gmra.mxu0 %v306
    %v647 = vpop.f32.mrf.mxu0
    %v648 = vadd.f32 0.0, %v647
    %v649 = vpop.f32.mrf.mxu0
    %650 = vmatprep.mubr.f32.mxu0 0.0
    %651 = vmatmul.mubr.f32.gmra.mxu0 %v309
    %v652 = vpop.f32.mrf.mxu0
    %v653 = vadd.f32 0.0, %v652
    %v654 = vpop.f32.mrf.mxu0
    %655 = vmatprep.mubr.f32.mxu0 0.0
    %656 = vmatmul.mubr.f32.gmra.mxu0 %v312
    %v657 = vpop.f32.mrf.mxu0
    %v658 = vadd.f32 0.0, %v657
    %v659 = vpop.f32.mrf.mxu0
    %660 = vmatprep.mubr.f32.mxu0 0.0
    %661 = vmatmul.mubr.f32.gmra.mxu0 %v315
    %v662 = vpop.f32.mrf.mxu0
    %v663 = vadd.f32 0.0, %v662
    %v664 = vpop.f32.mrf.mxu0
    %665 = vmatprep.mubr.f32.mxu0 0.0
    %666 = vmatmul.mubr.f32.gmra.mxu0 %v318
    %v667 = vpop.f32.mrf.mxu0
    %v668 = vadd.f32 0.0, %v667
    %v669 = vpop.f32.mrf.mxu0
    %670 = vmatprep.mubr.f32.mxu0 0.0
    %671 = vmatmul.mubr.f32.gmra.mxu0 %v321
    %v672 = vpop.f32.mrf.mxu0
    %v673 = vadd.f32 0.0, %v672
    %v674 = vpop.f32.mrf.mxu0
    %675 = vmatprep.mubr.f32.mxu0 0.0
    %676 = vmatmul.mubr.f32.gmra.mxu0 %v324
    %v677 = vpop.f32.mrf.mxu0
    %v678 = vadd.f32 0.0, %v677
    %v679 = vpop.f32.mrf.mxu0
    %680 = vmatprep.mubr.f32.mxu0 0.0
    %681 = vmatmul.mubr.f32.gmra.mxu0 %v327
    %v682 = vpop.f32.mrf.mxu0
    %v683 = vadd.f32 0.0, %v682
    %v684 = vpop.f32.mrf.mxu0
    %685 = vmatprep.mubr.f32.mxu0 0.0
    %686 = vmatmul.mubr.f32.gmra.mxu0 %v330
    %v687 = vpop.f32.mrf.mxu0
    %v688 = vadd.f32 0.0, %v687
    %v689 = vpop.f32.mrf.mxu0
    %690 = vmatprep.mubr.f32.mxu0 0.0
    %691 = vmatmul.mubr.f32.gmra.mxu0 %v333
    %v692 = vpop.f32.mrf.mxu0
    %v693 = vadd.f32 0.0, %v692
    %v694 = vpop.f32.mrf.mxu0
    %695 = vmatprep.mubr.f32.mxu0 0.0
    %696 = vmatmul.mubr.f32.gmra.mxu0 %v336
    %v697 = vpop.f32.mrf.mxu0
    %v698 = vadd.f32 0.0, %v697
    %v699 = vpop.f32.mrf.mxu0
    %700 = vmatprep.mubr.f32.mxu0 0.0
    %701 = vmatmul.mubr.f32.gmra.mxu0 %v339
    %v702 = vpop.f32.mrf.mxu0
    %v703 = vadd.f32 0.0, %v702
    %v704 = vpop.f32.mrf.mxu0
    %705 = vmatprep.mubr.f32.mxu0 0.0
    %706 = vmatmul.mubr.f32.gmra.mxu0 %v342
    %v707 = vpop.f32.mrf.mxu0
    %v708 = vadd.f32 0.0, %v707
    %v709 = vpop.f32.mrf.mxu0
    %710 = vmatprep.mubr.f32.mxu0 0.0
    %711 = vmatmul.mubr.f32.gmra.mxu0 %v345
    %v712 = vpop.f32.mrf.mxu0
    %v713 = vadd.f32 0.0, %v712
    %v714 = vpop.f32.mrf.mxu0
    %715 = vmatprep.mubr.f32.mxu0 0.0
    %716 = vmatmul.mubr.f32.gmra.mxu0 %v348
    %v717 = vpop.f32.mrf.mxu0
    %v718 = vadd.f32 0.0, %v717
    %v719 = vpop.f32.mrf.mxu0
    %720 = vmatprep.mubr.f32.mxu0 0.0
    %721 = vmatmul.mubr.f32.gmra.mxu0 %v351
    %v722 = vpop.f32.mrf.mxu0
    %v723 = vadd.f32 0.0, %v722
    %v724 = vpop.f32.mrf.mxu0
    %725 = vmatprep.mubr.f32.mxu0 0.0
    %726 = vmatmul.mubr.f32.gmra.mxu0 %v354
    %v727 = vpop.f32.mrf.mxu0
    %v728 = vadd.f32 0.0, %v727
    %v729 = vpop.f32.mrf.mxu0
    %730 = vmatprep.mubr.f32.mxu0 0.0
    %731 = vmatmul.mubr.f32.gmra.mxu0 %v357
    %v732 = vpop.f32.mrf.mxu0
    %v733 = vadd.f32 0.0, %v732
    %v734 = vpop.f32.mrf.mxu0
    %735 = vmatprep.mubr.f32.mxu0 0.0
    %736 = vmatmul.mubr.f32.gmra.mxu0 %v360
    %v737 = vpop.f32.mrf.mxu0
    %v738 = vadd.f32 0.0, %v737
    %v739 = vpop.f32.mrf.mxu0
    %740 = vmatprep.mubr.f32.mxu0 0.0
    %741 = vmatmul.mubr.f32.gmra.mxu0 %v363
    %v742 = vpop.f32.mrf.mxu0
    %v743 = vadd.f32 0.0, %v742
    %v744 = vpop.f32.mrf.mxu0
    %745 = vmatprep.mubr.f32.mxu0 0.0
    %746 = vmatmul.mubr.f32.gmra.mxu0 %v366
    %v747 = vpop.f32.mrf.mxu0
    %v748 = vadd.f32 0.0, %v747
    %v749 = vpop.f32.mrf.mxu0
    %750 = vmatprep.mubr.f32.mxu0 0.0
    %751 = vmatmul.mubr.f32.gmra.mxu0 %v369
    %v752 = vpop.f32.mrf.mxu0
    %v753 = vadd.f32 0.0, %v752
    %v754 = vpop.f32.mrf.mxu0
    %755 = vmatprep.mubr.f32.mxu0 0.0
    %756 = vmatmul.mubr.f32.gmra.mxu0 %v372
    %v757 = vpop.f32.mrf.mxu0
    %v758 = vadd.f32 0.0, %v757
    %v759 = vpop.f32.mrf.mxu0
    %760 = vmatprep.mubr.f32.mxu0 0.0
    %761 = vmatmul.mubr.f32.gmra.mxu0 %v375
    %v762 = vpop.f32.mrf.mxu0
    %v763 = vadd.f32 0.0, %v762
    %v764 = vpop.f32.mrf.mxu0
    %765 = vdwg.mxu0
    %v766 = vld [vmem:[%s1] sm:$0xff]
    %v767 = vld [vmem:[%s1 + $0x8] sm:$0xff]
    %v768 = vld [vmem:[%s1 + $0x10] sm:$0xff]
    %v769 = vld [vmem:[%s1 + $0x18] sm:$0xff]
    %v770 = vld [vmem:[%s1 + $0x20] sm:$0xff]
    %v771 = vld [vmem:[%s1 + $0x28] sm:$0xff]
    %v772 = vld [vmem:[%s1 + $0x30] sm:$0xff]
    %v773 = vld [vmem:[%s1 + $0x38] sm:$0xff]
    %v774 = vld [vmem:[%s1 + $0x40] sm:$0xff]
    %v775 = vld [vmem:[%s1 + $0x48] sm:$0xff]
    %v776 = vld [vmem:[%s1 + $0x50] sm:$0xff]
    %v777 = vld [vmem:[%s1 + $0x58] sm:$0xff]
    %v778 = vld [vmem:[%s1 + $0x60] sm:$0xff]
    %v779 = vld [vmem:[%s1 + $0x68] sm:$0xff]
    %v780 = vld [vmem:[%s1 + $0x70] sm:$0xff]
    %v781 = vld [vmem:[%s1 + $0x78] sm:$0xff]
    %v782 = vld [vmem:[%s1 + $0x80] sm:$0xff]
    %v783 = vld [vmem:[%s1 + $0x88] sm:$0xff]
    %v784 = vld [vmem:[%s1 + $0x90] sm:$0xff]
    %v785 = vld [vmem:[%s1 + $0x98] sm:$0xff]
    %v786 = vld [vmem:[%s1 + $0xa0] sm:$0xff]
    %v787 = vld [vmem:[%s1 + $0xa8] sm:$0xff]
    %v788 = vld [vmem:[%s1 + $0xb0] sm:$0xff]
    %v789 = vld [vmem:[%s1 + $0xb8] sm:$0xff]
    %v790 = vld [vmem:[%s1 + $0xc0] sm:$0xff]
    %v791 = vld [vmem:[%s1 + $0xc8] sm:$0xff]
    %v792 = vld [vmem:[%s1 + $0xd0] sm:$0xff]
    %v793 = vld [vmem:[%s1 + $0xd8] sm:$0xff]
    %v794 = vld [vmem:[%s1 + $0xe0] sm:$0xff]
    %v795 = vld [vmem:[%s1 + $0xe8] sm:$0xff]
    %v796 = vld [vmem:[%s1 + $0xf0] sm:$0xff]
    %v797 = vld [vmem:[%s1 + $0xf8] sm:$0xff]
    %v798 = vld [vmem:[%s1 + $0x100] sm:$0xff]
    %v799 = vld [vmem:[%s1 + $0x108] sm:$0xff]
    %v800 = vld [vmem:[%s1 + $0x110] sm:$0xff]
    %v801 = vld [vmem:[%s1 + $0x118] sm:$0xff]
    %v802 = vld [vmem:[%s1 + $0x120] sm:$0xff]
    %v803 = vld [vmem:[%s1 + $0x128] sm:$0xff]
    %v804 = vld [vmem:[%s1 + $0x130] sm:$0xff]
    %v805 = vld [vmem:[%s1 + $0x138] sm:$0xff]
    %v806 = vld [vmem:[%s1 + $0x140] sm:$0xff]
    %v807 = vld [vmem:[%s1 + $0x148] sm:$0xff]
    %v808 = vld [vmem:[%s1 + $0x150] sm:$0xff]
    %v809 = vld [vmem:[%s1 + $0x158] sm:$0xff]
    %v810 = vld [vmem:[%s1 + $0x160] sm:$0xff]
    %v811 = vld [vmem:[%s1 + $0x168] sm:$0xff]
    %v812 = vld [vmem:[%s1 + $0x170] sm:$0xff]
    %v813 = vld [vmem:[%s1 + $0x178] sm:$0xff]
    %v814 = vld [vmem:[%s1 + $0x180] sm:$0xff]
    %v815 = vld [vmem:[%s1 + $0x188] sm:$0xff]
    %v816 = vld [vmem:[%s1 + $0x190] sm:$0xff]
    %v817 = vld [vmem:[%s1 + $0x198] sm:$0xff]
    %v818 = vld [vmem:[%s1 + $0x1a0] sm:$0xff]
    %v819 = vld [vmem:[%s1 + $0x1a8] sm:$0xff]
    %v820 = vld [vmem:[%s1 + $0x1b0] sm:$0xff]
    %v821 = vld [vmem:[%s1 + $0x1b8] sm:$0xff]
    %v822 = vld [vmem:[%s1 + $0x1c0] sm:$0xff]
    %v823 = vld [vmem:[%s1 + $0x1c8] sm:$0xff]
    %v824 = vld [vmem:[%s1 + $0x1d0] sm:$0xff]
    %v825 = vld [vmem:[%s1 + $0x1d8] sm:$0xff]
    %v826 = vld [vmem:[%s1 + $0x1e0] sm:$0xff]
    %v827 = vld [vmem:[%s1 + $0x1e8] sm:$0xff]
    %v828 = vld [vmem:[%s1 + $0x1f0] sm:$0xff]
    %v829 = vld [vmem:[%s1 + $0x1f8] sm:$0xff]
    %v830 = vld [vmem:[#allocation4] sm:$0x7]
    %v832 = vsel %vm184, %v766, 0
    %v835 = vsel %vm184, %v767, 0
    %v838 = vsel %vm184, %v768, 0
    %v841 = vsel %vm184, %v769, 0
    %v844 = vsel %vm184, %v770, 0
    %v847 = vsel %vm184, %v771, 0
    %v850 = vsel %vm184, %v772, 0
    %v853 = vsel %vm184, %v773, 0
    %v856 = vsel %vm184, %v774, 0
    %v859 = vsel %vm184, %v775, 0
    %v862 = vsel %vm184, %v776, 0
    %v865 = vsel %vm184, %v777, 0
    %v868 = vsel %vm184, %v778, 0
    %v871 = vsel %vm184, %v779, 0
    %v874 = vsel %vm184, %v780, 0
    %v877 = vsel %vm184, %v781, 0
    %v880 = vsel %vm184, %v782, 0
    %v883 = vsel %vm184, %v783, 0
    %v886 = vsel %vm184, %v784, 0
    %v889 = vsel %vm184, %v785, 0
    %v892 = vsel %vm184, %v786, 0
    %v895 = vsel %vm184, %v787, 0
    %v898 = vsel %vm184, %v788, 0
    %v901 = vsel %vm184, %v789, 0
    %v904 = vsel %vm184, %v790, 0
    %v907 = vsel %vm184, %v791, 0
    %v910 = vsel %vm184, %v792, 0
    %v913 = vsel %vm184, %v793, 0
    %v916 = vsel %vm184, %v794, 0
    %v919 = vsel %vm184, %v795, 0
    %v922 = vsel %vm184, %v796, 0
    %v925 = vsel %vm184, %v797, 0
    %v928 = vsel %vm184, %v798, 0
    %v931 = vsel %vm184, %v799, 0
    %v934 = vsel %vm184, %v800, 0
    %v937 = vsel %vm184, %v801, 0
    %v940 = vsel %vm184, %v802, 0
    %v943 = vsel %vm184, %v803, 0
    %v946 = vsel %vm184, %v804, 0
    %v949 = vsel %vm184, %v805, 0
    %v952 = vsel %vm184, %v806, 0
    %v955 = vsel %vm184, %v807, 0
    %v958 = vsel %vm184, %v808, 0
    %v961 = vsel %vm184, %v809, 0
    %v964 = vsel %vm184, %v810, 0
    %v967 = vsel %vm184, %v811, 0
    %v970 = vsel %vm184, %v812, 0
    %v973 = vsel %vm184, %v813, 0
    %v976 = vsel %vm184, %v814, 0
    %v979 = vsel %vm184, %v815, 0
    %v982 = vsel %vm184, %v816, 0
    %v985 = vsel %vm184, %v817, 0
    %v988 = vsel %vm184, %v818, 0
    %v991 = vsel %vm184, %v819, 0
    %v994 = vsel %vm184, %v820, 0
    %v997 = vsel %vm184, %v821, 0
    %v1000 = vsel %vm184, %v822, 0
    %v1003 = vsel %vm184, %v823, 0
    %v1006 = vsel %vm184, %v824, 0
    %v1009 = vsel %vm184, %v825, 0
    %v1012 = vsel %vm184, %v826, 0
    %v1015 = vsel %vm184, %v827, 0
    %v1018 = vsel %vm184, %v828, 0
    %v1021 = vsel %vm184, %v829, 0
    %v1024 = vsel %vm377, %v830, 0
    %1026 = vmatprep.subr.mxu0 0.0
    %1027 = vmatpush1.msra.mxu0 0.0
    %1028 = vmatprep.subr.mxu0 0.0
    %1029 = vmatpush1.msra.mxu0 0.0
    %1030 = vmatprep.subr.mxu0 0.0
    %1031 = vmatpush1.msra.mxu0 0.0
    %1032 = vmatprep.subr.mxu0 0.0
    %1033 = vmatpush1.msra.mxu0 0.0
    %1034 = vmatprep.subr.mxu0 0.0
    %1035 = vmatpush1.msra.mxu0 0.0
    %1036 = vmatprep.subr.mxu0 0.0
    %1037 = vmatpush1.msra.mxu0 0.0
    %1038 = vmatprep.subr.mxu0 0.0
    %1039 = vmatpush1.msra.mxu0 0.0
    %1040 = vmatprep.subr.mxu0 0.0
    %1041 = vmatpush1.msra.mxu0 0.0
    %1042 = vmatprep.subr.mxu0 0.0
    %1043 = vmatpush1.msra.mxu0 0.0
    %1044 = vmatprep.subr.mxu0 0.0
    %1045 = vmatpush1.msra.mxu0 0.0
    %1046 = vmatprep.subr.mxu0 0.0
    %1047 = vmatpush1.msra.mxu0 0.0
    %1048 = vmatprep.subr.mxu0 0.0
    %1049 = vmatpush1.msra.mxu0 0.0
    %1050 = vmatprep.subr.mxu0 0.0
    %1051 = vmatpush1.msra.mxu0 0.0
    %1052 = vmatprep.subr.mxu0 0.0
    %1053 = vmatpush1.msra.mxu0 0.0
    %1054 = vmatprep.subr.mxu0 0.0
    %1055 = vmatpush1.msra.mxu0 0.0
    %1056 = vmatprep.subr.mxu0 0.0
    %1057 = vmatpush1.msra.mxu0 %v1024
    %1058 = vmatprep.subr.mxu0 0.0
    %1059 = vmatpush2.msra.mxu0 0.0
    %1060 = vmatprep.subr.mxu0 0.0
    %1061 = vmatpush2.msra.mxu0 0.0
    %1062 = vmatprep.subr.mxu0 0.0
    %1063 = vmatpush2.msra.mxu0 0.0
    %1064 = vmatprep.subr.mxu0 0.0
    %1065 = vmatpush2.msra.mxu0 0.0
    %1066 = vmatprep.subr.mxu0 0.0
    %1067 = vmatpush2.msra.mxu0 0.0
    %1068 = vmatprep.subr.mxu0 0.0
    %1069 = vmatpush2.msra.mxu0 0.0
    %1070 = vmatprep.subr.mxu0 0.0
    %1071 = vmatpush2.msra.mxu0 0.0
    %1072 = vmatprep.subr.mxu0 0.0
    %1073 = vmatpush2.msra.mxu0 0.0
    %1074 = vmatprep.subr.mxu0 0.0
    %1075 = vmatpush2.msra.mxu0 0.0
    %1076 = vmatprep.subr.mxu0 0.0
    %1077 = vmatpush2.msra.mxu0 0.0
    %1078 = vmatprep.subr.mxu0 0.0
    %1079 = vmatpush2.msra.mxu0 0.0
    %1080 = vmatprep.subr.mxu0 0.0
    %1081 = vmatpush2.msra.mxu0 0.0
    %1082 = vmatprep.subr.mxu0 0.0
    %1083 = vmatpush2.msra.mxu0 0.0
    %1084 = vmatprep.subr.mxu0 0.0
    %1085 = vmatpush2.msra.mxu0 0.0
    %1086 = vmatprep.subr.mxu0 0.0
    %1087 = vmatpush2.msra.mxu0 0.0
    %1088 = vmatprep.subr.mxu0 0.0
    %1089 = vmatpush2.msra.mxu0 0.0
    %1090 = vmatprep.mubr.f32.mxu0 0.0
    %1091 = vmatmul.mubr.f32.gmra.mxu0 %v832
    %v1092 = vpop.f32.mrf.mxu0
    %v1093 = vadd.f32 0.0, %v1092
    %v1094 = vpop.f32.mrf.mxu0
    %1095 = vmatprep.mubr.f32.mxu0 0.0
    %1096 = vmatmul.mubr.f32.gmra.mxu0 %v835
    %v1097 = vpop.f32.mrf.mxu0
    %v1098 = vadd.f32 0.0, %v1097
    %v1099 = vpop.f32.mrf.mxu0
    %1100 = vmatprep.mubr.f32.mxu0 0.0
    %1101 = vmatmul.mubr.f32.gmra.mxu0 %v838
    %v1102 = vpop.f32.mrf.mxu0
    %v1103 = vadd.f32 0.0, %v1102
    %v1104 = vpop.f32.mrf.mxu0
    %1105 = vmatprep.mubr.f32.mxu0 0.0
    %1106 = vmatmul.mubr.f32.gmra.mxu0 %v841
    %v1107 = vpop.f32.mrf.mxu0
    %v1108 = vadd.f32 0.0, %v1107
    %v1109 = vpop.f32.mrf.mxu0
    %1110 = vmatprep.mubr.f32.mxu0 0.0
    %1111 = vmatmul.mubr.f32.gmra.mxu0 %v844
    %v1112 = vpop.f32.mrf.mxu0
    %v1113 = vadd.f32 0.0, %v1112
    %v1114 = vpop.f32.mrf.mxu0
    %1115 = vmatprep.mubr.f32.mxu0 0.0
    %1116 = vmatmul.mubr.f32.gmra.mxu0 %v847
    %v1117 = vpop.f32.mrf.mxu0
    %v1118 = vadd.f32 0.0, %v1117
    %v1119 = vpop.f32.mrf.mxu0
    %1120 = vmatprep.mubr.f32.mxu0 0.0
    %1121 = vmatmul.mubr.f32.gmra.mxu0 %v850
    %v1122 = vpop.f32.mrf.mxu0
    %v1123 = vadd.f32 0.0, %v1122
    %v1124 = vpop.f32.mrf.mxu0
    %1125 = vmatprep.mubr.f32.mxu0 0.0
    %1126 = vmatmul.mubr.f32.gmra.mxu0 %v853
    %v1127 = vpop.f32.mrf.mxu0
    %v1128 = vadd.f32 0.0, %v1127
    %v1129 = vpop.f32.mrf.mxu0
    %1130 = vmatprep.mubr.f32.mxu0 0.0
    %1131 = vmatmul.mubr.f32.gmra.mxu0 %v856
    %v1132 = vpop.f32.mrf.mxu0
    %v1133 = vadd.f32 0.0, %v1132
    %v1134 = vpop.f32.mrf.mxu0
    %1135 = vmatprep.mubr.f32.mxu0 0.0
    %1136 = vmatmul.mubr.f32.gmra.mxu0 %v859
    %v1137 = vpop.f32.mrf.mxu0
    %v1138 = vadd.f32 0.0, %v1137
    %v1139 = vpop.f32.mrf.mxu0
    %1140 = vmatprep.mubr.f32.mxu0 0.0
    %1141 = vmatmul.mubr.f32.gmra.mxu0 %v862
    %v1142 = vpop.f32.mrf.mxu0
    %v1143 = vadd.f32 0.0, %v1142
    %v1144 = vpop.f32.mrf.mxu0
    %1145 = vmatprep.mubr.f32.mxu0 0.0
    %1146 = vmatmul.mubr.f32.gmra.mxu0 %v865
    %v1147 = vpop.f32.mrf.mxu0
    %v1148 = vadd.f32 0.0, %v1147
    %v1149 = vpop.f32.mrf.mxu0
    %1150 = vmatprep.mubr.f32.mxu0 0.0
    %1151 = vmatmul.mubr.f32.gmra.mxu0 %v868
    %v1152 = vpop.f32.mrf.mxu0
    %v1153 = vadd.f32 0.0, %v1152
    %v1154 = vpop.f32.mrf.mxu0
    %1155 = vmatprep.mubr.f32.mxu0 0.0
    %1156 = vmatmul.mubr.f32.gmra.mxu0 %v871
    %v1157 = vpop.f32.mrf.mxu0
    %v1158 = vadd.f32 0.0, %v1157
    %v1159 = vpop.f32.mrf.mxu0
    %1160 = vmatprep.mubr.f32.mxu0 0.0
    %1161 = vmatmul.mubr.f32.gmra.mxu0 %v874
    %v1162 = vpop.f32.mrf.mxu0
    %v1163 = vadd.f32 0.0, %v1162
    %v1164 = vpop.f32.mrf.mxu0
    %1165 = vmatprep.mubr.f32.mxu0 0.0
    %1166 = vmatmul.mubr.f32.gmra.mxu0 %v877
    %v1167 = vpop.f32.mrf.mxu0
    %v1168 = vadd.f32 0.0, %v1167
    %v1169 = vpop.f32.mrf.mxu0
    %1170 = vmatprep.mubr.f32.mxu0 0.0
    %1171 = vmatmul.mubr.f32.gmra.mxu0 %v880
    %v1172 = vpop.f32.mrf.mxu0
    %v1173 = vadd.f32 0.0, %v1172
    %v1174 = vpop.f32.mrf.mxu0
    %1175 = vmatprep.mubr.f32.mxu0 0.0
    %1176 = vmatmul.mubr.f32.gmra.mxu0 %v883
    %v1177 = vpop.f32.mrf.mxu0
    %v1178 = vadd.f32 0.0, %v1177
    %v1179 = vpop.f32.mrf.mxu0
    %1180 = vmatprep.mubr.f32.mxu0 0.0
    %1181 = vmatmul.mubr.f32.gmra.mxu0 %v886
    %v1182 = vpop.f32.mrf.mxu0
    %v1183 = vadd.f32 0.0, %v1182
    %v1184 = vpop.f32.mrf.mxu0
    %1185 = vmatprep.mubr.f32.mxu0 0.0
    %1186 = vmatmul.mubr.f32.gmra.mxu0 %v889
    %v1187 = vpop.f32.mrf.mxu0
    %v1188 = vadd.f32 0.0, %v1187
    %v1189 = vpop.f32.mrf.mxu0
    %1190 = vmatprep.mubr.f32.mxu0 0.0
    %1191 = vmatmul.mubr.f32.gmra.mxu0 %v892
    %v1192 = vpop.f32.mrf.mxu0
    %v1193 = vadd.f32 0.0, %v1192
    %v1194 = vpop.f32.mrf.mxu0
    %1195 = vmatprep.mubr.f32.mxu0 0.0
    %1196 = vmatmul.mubr.f32.gmra.mxu0 %v895
    %v1197 = vpop.f32.mrf.mxu0
    %v1198 = vadd.f32 0.0, %v1197
    %v1199 = vpop.f32.mrf.mxu0
    %1200 = vmatprep.mubr.f32.mxu0 0.0
    %1201 = vmatmul.mubr.f32.gmra.mxu0 %v898
    %v1202 = vpop.f32.mrf.mxu0
    %v1203 = vadd.f32 0.0, %v1202
    %v1204 = vpop.f32.mrf.mxu0
    %1205 = vmatprep.mubr.f32.mxu0 0.0
    %1206 = vmatmul.mubr.f32.gmra.mxu0 %v901
    %v1207 = vpop.f32.mrf.mxu0
    %v1208 = vadd.f32 0.0, %v1207
    %v1209 = vpop.f32.mrf.mxu0
    %1210 = vmatprep.mubr.f32.mxu0 0.0
    %1211 = vmatmul.mubr.f32.gmra.mxu0 %v904
    %v1212 = vpop.f32.mrf.mxu0
    %v1213 = vadd.f32 0.0, %v1212
    %v1214 = vpop.f32.mrf.mxu0
    %1215 = vmatprep.mubr.f32.mxu0 0.0
    %1216 = vmatmul.mubr.f32.gmra.mxu0 %v907
    %v1217 = vpop.f32.mrf.mxu0
    %v1218 = vadd.f32 0.0, %v1217
    %v1219 = vpop.f32.mrf.mxu0
    %1220 = vmatprep.mubr.f32.mxu0 0.0
    %1221 = vmatmul.mubr.f32.gmra.mxu0 %v910
    %v1222 = vpop.f32.mrf.mxu0
    %v1223 = vadd.f32 0.0, %v1222
    %v1224 = vpop.f32.mrf.mxu0
    %1225 = vmatprep.mubr.f32.mxu0 0.0
    %1226 = vmatmul.mubr.f32.gmra.mxu0 %v913
    %v1227 = vpop.f32.mrf.mxu0
    %v1228 = vadd.f32 0.0, %v1227
    %v1229 = vpop.f32.mrf.mxu0
    %1230 = vmatprep.mubr.f32.mxu0 0.0
    %1231 = vmatmul.mubr.f32.gmra.mxu0 %v916
    %v1232 = vpop.f32.mrf.mxu0
    %v1233 = vadd.f32 0.0, %v1232
    %v1234 = vpop.f32.mrf.mxu0
    %1235 = vmatprep.mubr.f32.mxu0 0.0
    %1236 = vmatmul.mubr.f32.gmra.mxu0 %v919
    %v1237 = vpop.f32.mrf.mxu0
    %v1238 = vadd.f32 0.0, %v1237
    %v1239 = vpop.f32.mrf.mxu0
    %1240 = vmatprep.mubr.f32.mxu0 0.0
    %1241 = vmatmul.mubr.f32.gmra.mxu0 %v922
    %v1242 = vpop.f32.mrf.mxu0
    %v1243 = vadd.f32 0.0, %v1242
    %v1244 = vpop.f32.mrf.mxu0
    %1245 = vmatprep.mubr.f32.mxu0 0.0
    %1246 = vmatmul.mubr.f32.gmra.mxu0 %v925
    %v1247 = vpop.f32.mrf.mxu0
    %v1248 = vadd.f32 0.0, %v1247
    %v1249 = vpop.f32.mrf.mxu0
    %1250 = vmatprep.mubr.f32.mxu0 0.0
    %1251 = vmatmul.mubr.f32.gmra.mxu0 %v928
    %v1252 = vpop.f32.mrf.mxu0
    %v1253 = vadd.f32 0.0, %v1252
    %v1254 = vpop.f32.mrf.mxu0
    %1255 = vmatprep.mubr.f32.mxu0 0.0
    %1256 = vmatmul.mubr.f32.gmra.mxu0 %v931
    %v1257 = vpop.f32.mrf.mxu0
    %v1258 = vadd.f32 0.0, %v1257
    %v1259 = vpop.f32.mrf.mxu0
    %1260 = vmatprep.mubr.f32.mxu0 0.0
    %1261 = vmatmul.mubr.f32.gmra.mxu0 %v934
    %v1262 = vpop.f32.mrf.mxu0
    %v1263 = vadd.f32 0.0, %v1262
    %v1264 = vpop.f32.mrf.mxu0
    %1265 = vmatprep.mubr.f32.mxu0 0.0
    %1266 = vmatmul.mubr.f32.gmra.mxu0 %v937
    %v1267 = vpop.f32.mrf.mxu0
    %v1268 = vadd.f32 0.0, %v1267
    %v1269 = vpop.f32.mrf.mxu0
    %1270 = vmatprep.mubr.f32.mxu0 0.0
    %1271 = vmatmul.mubr.f32.gmra.mxu0 %v940
    %v1272 = vpop.f32.mrf.mxu0
    %v1273 = vadd.f32 0.0, %v1272
    %v1274 = vpop.f32.mrf.mxu0
    %1275 = vmatprep.mubr.f32.mxu0 0.0
    %1276 = vmatmul.mubr.f32.gmra.mxu0 %v943
    %v1277 = vpop.f32.mrf.mxu0
    %v1278 = vadd.f32 0.0, %v1277
    %v1279 = vpop.f32.mrf.mxu0
    %1280 = vmatprep.mubr.f32.mxu0 0.0
    %1281 = vmatmul.mubr.f32.gmra.mxu0 %v946
    %v1282 = vpop.f32.mrf.mxu0
    %v1283 = vadd.f32 0.0, %v1282
    %v1284 = vpop.f32.mrf.mxu0
    %1285 = vmatprep.mubr.f32.mxu0 0.0
    %1286 = vmatmul.mubr.f32.gmra.mxu0 %v949
    %v1287 = vpop.f32.mrf.mxu0
    %v1288 = vadd.f32 0.0, %v1287
    %v1289 = vpop.f32.mrf.mxu0
    %1290 = vmatprep.mubr.f32.mxu0 0.0
    %1291 = vmatmul.mubr.f32.gmra.mxu0 %v952
    %v1292 = vpop.f32.mrf.mxu0
    %v1293 = vadd.f32 0.0, %v1292
    %v1294 = vpop.f32.mrf.mxu0
    %1295 = vmatprep.mubr.f32.mxu0 0.0
    %1296 = vmatmul.mubr.f32.gmra.mxu0 %v955
    %v1297 = vpop.f32.mrf.mxu0
    %v1298 = vadd.f32 0.0, %v1297
    %v1299 = vpop.f32.mrf.mxu0
    %1300 = vmatprep.mubr.f32.mxu0 0.0
    %1301 = vmatmul.mubr.f32.gmra.mxu0 %v958
    %v1302 = vpop.f32.mrf.mxu0
    %v1303 = vadd.f32 0.0, %v1302
    %v1304 = vpop.f32.mrf.mxu0
    %1305 = vmatprep.mubr.f32.mxu0 0.0
    %1306 = vmatmul.mubr.f32.gmra.mxu0 %v961
    %v1307 = vpop.f32.mrf.mxu0
    %v1308 = vadd.f32 0.0, %v1307
    %v1309 = vpop.f32.mrf.mxu0
    %1310 = vmatprep.mubr.f32.mxu0 0.0
    %1311 = vmatmul.mubr.f32.gmra.mxu0 %v964
    %v1312 = vpop.f32.mrf.mxu0
    %v1313 = vadd.f32 0.0, %v1312
    %v1314 = vpop.f32.mrf.mxu0
    %1315 = vmatprep.mubr.f32.mxu0 0.0
    %1316 = vmatmul.mubr.f32.gmra.mxu0 %v967
    %v1317 = vpop.f32.mrf.mxu0
    %v1318 = vadd.f32 0.0, %v1317
    %v1319 = vpop.f32.mrf.mxu0
    %1320 = vmatprep.mubr.f32.mxu0 0.0
    %1321 = vmatmul.mubr.f32.gmra.mxu0 %v970
    %v1322 = vpop.f32.mrf.mxu0
    %v1323 = vadd.f32 0.0, %v1322
    %v1324 = vpop.f32.mrf.mxu0
    %1325 = vmatprep.mubr.f32.mxu0 0.0
    %1326 = vmatmul.mubr.f32.gmra.mxu0 %v973
    %v1327 = vpop.f32.mrf.mxu0
    %v1328 = vadd.f32 0.0, %v1327
    %v1329 = vpop.f32.mrf.mxu0
    %1330 = vmatprep.mubr.f32.mxu0 0.0
    %1331 = vmatmul.mubr.f32.gmra.mxu0 %v976
    %v1332 = vpop.f32.mrf.mxu0
    %v1333 = vadd.f32 0.0, %v1332
    %v1334 = vpop.f32.mrf.mxu0
    %1335 = vmatprep.mubr.f32.mxu0 0.0
    %1336 = vmatmul.mubr.f32.gmra.mxu0 %v979
    %v1337 = vpop.f32.mrf.mxu0
    %v1338 = vadd.f32 0.0, %v1337
    %v1339 = vpop.f32.mrf.mxu0
    %1340 = vmatprep.mubr.f32.mxu0 0.0
    %1341 = vmatmul.mubr.f32.gmra.mxu0 %v982
    %v1342 = vpop.f32.mrf.mxu0
    %v1343 = vadd.f32 0.0, %v1342
    %v1344 = vpop.f32.mrf.mxu0
    %1345 = vmatprep.mubr.f32.mxu0 0.0
    %1346 = vmatmul.mubr.f32.gmra.mxu0 %v985
    %v1347 = vpop.f32.mrf.mxu0
    %v1348 = vadd.f32 0.0, %v1347
    %v1349 = vpop.f32.mrf.mxu0
    %1350 = vmatprep.mubr.f32.mxu0 0.0
    %1351 = vmatmul.mubr.f32.gmra.mxu0 %v988
    %v1352 = vpop.f32.mrf.mxu0
    %v1353 = vadd.f32 0.0, %v1352
    %v1354 = vpop.f32.mrf.mxu0
    %1355 = vmatprep.mubr.f32.mxu0 0.0
    %1356 = vmatmul.mubr.f32.gmra.mxu0 %v991
    %v1357 = vpop.f32.mrf.mxu0
    %v1358 = vadd.f32 0.0, %v1357
    %v1359 = vpop.f32.mrf.mxu0
    %1360 = vmatprep.mubr.f32.mxu0 0.0
    %1361 = vmatmul.mubr.f32.gmra.mxu0 %v994
    %v1362 = vpop.f32.mrf.mxu0
    %v1363 = vadd.f32 0.0, %v1362
    %v1364 = vpop.f32.mrf.mxu0
    %1365 = vmatprep.mubr.f32.mxu0 0.0
    %1366 = vmatmul.mubr.f32.gmra.mxu0 %v997
    %v1367 = vpop.f32.mrf.mxu0
    %v1368 = vadd.f32 0.0, %v1367
    %v1369 = vpop.f32.mrf.mxu0
    %1370 = vmatprep.mubr.f32.mxu0 0.0
    %1371 = vmatmul.mubr.f32.gmra.mxu0 %v1000
    %v1372 = vpop.f32.mrf.mxu0
    %v1373 = vadd.f32 0.0, %v1372
    %v1374 = vpop.f32.mrf.mxu0
    %1375 = vmatprep.mubr.f32.mxu0 0.0
    %1376 = vmatmul.mubr.f32.gmra.mxu0 %v1003
    %v1377 = vpop.f32.mrf.mxu0
    %v1378 = vadd.f32 0.0, %v1377
    %v1379 = vpop.f32.mrf.mxu0
    %1380 = vmatprep.mubr.f32.mxu0 0.0
    %1381 = vmatmul.mubr.f32.gmra.mxu0 %v1006
    %v1382 = vpop.f32.mrf.mxu0
    %v1383 = vadd.f32 0.0, %v1382
    %v1384 = vpop.f32.mrf.mxu0
    %1385 = vmatprep.mubr.f32.mxu0 0.0
    %1386 = vmatmul.mubr.f32.gmra.mxu0 %v1009
    %v1387 = vpop.f32.mrf.mxu0
    %v1388 = vadd.f32 0.0, %v1387
    %v1389 = vpop.f32.mrf.mxu0
    %1390 = vmatprep.mubr.f32.mxu0 0.0
    %1391 = vmatmul.mubr.f32.gmra.mxu0 %v1012
    %v1392 = vpop.f32.mrf.mxu0
    %v1393 = vadd.f32 0.0, %v1392
    %v1394 = vpop.f32.mrf.mxu0
    %1395 = vmatprep.mubr.f32.mxu0 0.0
    %1396 = vmatmul.mubr.f32.gmra.mxu0 %v1015
    %v1397 = vpop.f32.mrf.mxu0
    %v1398 = vadd.f32 0.0, %v1397
    %v1399 = vpop.f32.mrf.mxu0
    %1400 = vmatprep.mubr.f32.mxu0 0.0
    %1401 = vmatmul.mubr.f32.gmra.mxu0 %v1018
    %v1402 = vpop.f32.mrf.mxu0
    %v1403 = vadd.f32 0.0, %v1402
    %v1404 = vpop.f32.mrf.mxu0
    %1405 = vmatprep.mubr.f32.mxu0 0.0
    %1406 = vmatmul.mubr.f32.gmra.mxu0 %v1021
    %v1407 = vpop.f32.mrf.mxu0
    %v1408 = vadd.f32 0.0, %v1407
    %v1409 = vpop.f32.mrf.mxu0
    %1410 = vdwg.mxu0
    %1475 = vrot.lane.b32.xlu0 %v1093, 16
    %v1476 = vpop.permute.xlu0 %1475
    %1477 = vrot.lane.b32.xlu0 %v1098, 16
    %v1478 = vpop.permute.xlu0 %1477
    %1479 = vrot.lane.b32.xlu0 %v1103, 16
    %v1480 = vpop.permute.xlu0 %1479
    %1481 = vrot.lane.b32.xlu0 %v1108, 16
    %v1482 = vpop.permute.xlu0 %1481
    %1483 = vrot.lane.b32.xlu0 %v1113, 16
    %v1484 = vpop.permute.xlu0 %1483
    %1485 = vrot.lane.b32.xlu0 %v1118, 16
    %v1486 = vpop.permute.xlu0 %1485
    %1487 = vrot.lane.b32.xlu0 %v1123, 16
    %v1488 = vpop.permute.xlu0 %1487
    %1489 = vrot.lane.b32.xlu0 %v1128, 16
    %v1490 = vpop.permute.xlu0 %1489
    %1491 = vrot.lane.b32.xlu0 %v1133, 16
    %v1492 = vpop.permute.xlu0 %1491
    %1493 = vrot.lane.b32.xlu0 %v1138, 16
    %v1494 = vpop.permute.xlu0 %1493
    %1495 = vrot.lane.b32.xlu0 %v1143, 16
    %v1496 = vpop.permute.xlu0 %1495
    %1497 = vrot.lane.b32.xlu0 %v1148, 16
    %v1498 = vpop.permute.xlu0 %1497
    %1499 = vrot.lane.b32.xlu0 %v1153, 16
    %v1500 = vpop.permute.xlu0 %1499
    %1501 = vrot.lane.b32.xlu0 %v1158, 16
    %v1502 = vpop.permute.xlu0 %1501
    %1503 = vrot.lane.b32.xlu0 %v1163, 16
    %v1504 = vpop.permute.xlu0 %1503
    %1505 = vrot.lane.b32.xlu0 %v1168, 16
    %v1506 = vpop.permute.xlu0 %1505
    %1507 = vrot.lane.b32.xlu0 %v1173, 16
    %v1508 = vpop.permute.xlu0 %1507
    %1509 = vrot.lane.b32.xlu0 %v1178, 16
    %v1510 = vpop.permute.xlu0 %1509
    %1511 = vrot.lane.b32.xlu0 %v1183, 16
    %v1512 = vpop.permute.xlu0 %1511
    %1513 = vrot.lane.b32.xlu0 %v1188, 16
    %v1514 = vpop.permute.xlu0 %1513
    %1515 = vrot.lane.b32.xlu0 %v1193, 16
    %v1516 = vpop.permute.xlu0 %1515
    %1517 = vrot.lane.b32.xlu0 %v1198, 16
    %v1518 = vpop.permute.xlu0 %1517
    %1519 = vrot.lane.b32.xlu0 %v1203, 16
    %v1520 = vpop.permute.xlu0 %1519
    %1521 = vrot.lane.b32.xlu0 %v1208, 16
    %v1522 = vpop.permute.xlu0 %1521
    %1523 = vrot.lane.b32.xlu0 %v1213, 16
    %v1524 = vpop.permute.xlu0 %1523
    %1525 = vrot.lane.b32.xlu0 %v1218, 16
    %v1526 = vpop.permute.xlu0 %1525
    %1527 = vrot.lane.b32.xlu0 %v1223, 16
    %v1528 = vpop.permute.xlu0 %1527
    %1529 = vrot.lane.b32.xlu0 %v1228, 16
    %v1530 = vpop.permute.xlu0 %1529
    %1531 = vrot.lane.b32.xlu0 %v1233, 16
    %v1532 = vpop.permute.xlu0 %1531
    %1533 = vrot.lane.b32.xlu0 %v1238, 16
    %v1534 = vpop.permute.xlu0 %1533
    %1535 = vrot.lane.b32.xlu0 %v1243, 16
    %v1536 = vpop.permute.xlu0 %1535
    %1537 = vrot.lane.b32.xlu0 %v1248, 16
    %v1538 = vpop.permute.xlu0 %1537
    %1539 = vrot.lane.b32.xlu0 %v1253, 16
    %v1540 = vpop.permute.xlu0 %1539
    %1541 = vrot.lane.b32.xlu0 %v1258, 16
    %v1542 = vpop.permute.xlu0 %1541
    %1543 = vrot.lane.b32.xlu0 %v1263, 16
    %v1544 = vpop.permute.xlu0 %1543
    %1545 = vrot.lane.b32.xlu0 %v1268, 16
    %v1546 = vpop.permute.xlu0 %1545
    %1547 = vrot.lane.b32.xlu0 %v1273, 16
    %v1548 = vpop.permute.xlu0 %1547
    %1549 = vrot.lane.b32.xlu0 %v1278, 16
    %v1550 = vpop.permute.xlu0 %1549
    %1551 = vrot.lane.b32.xlu0 %v1283, 16
    %v1552 = vpop.permute.xlu0 %1551
    %1553 = vrot.lane.b32.xlu0 %v1288, 16
    %v1554 = vpop.permute.xlu0 %1553
    %1555 = vrot.lane.b32.xlu0 %v1293, 16
    %v1556 = vpop.permute.xlu0 %1555
    %1557 = vrot.lane.b32.xlu0 %v1298, 16
    %v1558 = vpop.permute.xlu0 %1557
    %1559 = vrot.lane.b32.xlu0 %v1303, 16
    %v1560 = vpop.permute.xlu0 %1559
    %1561 = vrot.lane.b32.xlu0 %v1308, 16
    %v1562 = vpop.permute.xlu0 %1561
    %1563 = vrot.lane.b32.xlu0 %v1313, 16
    %v1564 = vpop.permute.xlu0 %1563
    %1565 = vrot.lane.b32.xlu0 %v1318, 16
    %v1566 = vpop.permute.xlu0 %1565
    %1567 = vrot.lane.b32.xlu0 %v1323, 16
    %v1568 = vpop.permute.xlu0 %1567
    %1569 = vrot.lane.b32.xlu0 %v1328, 16
    %v1570 = vpop.permute.xlu0 %1569
    %1571 = vrot.lane.b32.xlu0 %v1333, 16
    %v1572 = vpop.permute.xlu0 %1571
    %1573 = vrot.lane.b32.xlu0 %v1338, 16
    %v1574 = vpop.permute.xlu0 %1573
    %1575 = vrot.lane.b32.xlu0 %v1343, 16
    %v1576 = vpop.permute.xlu0 %1575
    %1577 = vrot.lane.b32.xlu0 %v1348, 16
    %v1578 = vpop.permute.xlu0 %1577
    %1579 = vrot.lane.b32.xlu0 %v1353, 16
    %v1580 = vpop.permute.xlu0 %1579
    %1581 = vrot.lane.b32.xlu0 %v1358, 16
    %v1582 = vpop.permute.xlu0 %1581
    %1583 = vrot.lane.b32.xlu0 %v1363, 16
    %v1584 = vpop.permute.xlu0 %1583
    %1585 = vrot.lane.b32.xlu0 %v1368, 16
    %v1586 = vpop.permute.xlu0 %1585
    %1587 = vrot.lane.b32.xlu0 %v1373, 16
    %v1588 = vpop.permute.xlu0 %1587
    %1589 = vrot.lane.b32.xlu0 %v1378, 16
    %v1590 = vpop.permute.xlu0 %1589
    %1591 = vrot.lane.b32.xlu0 %v1383, 16
    %v1592 = vpop.permute.xlu0 %1591
    %1593 = vrot.lane.b32.xlu0 %v1388, 16
    %v1594 = vpop.permute.xlu0 %1593
    %1595 = vrot.lane.b32.xlu0 %v1393, 16
    %v1596 = vpop.permute.xlu0 %1595
    %1597 = vrot.lane.b32.xlu0 %v1398, 16
    %v1598 = vpop.permute.xlu0 %1597
    %1599 = vrot.lane.b32.xlu0 %v1403, 16
    %v1600 = vpop.permute.xlu0 %1599
    %1601 = vrot.lane.b32.xlu0 %v1408, 16
    %v1602 = vpop.permute.xlu0 %1601
    %vm1667 = vcmask 130048
    %v1668 = vsel %vm1667, %v448, %v1476
    %v1669 = vsel %vm1667, %v453, %v1478
    %v1670 = vsel %vm1667, %v458, %v1480
    %v1671 = vsel %vm1667, %v463, %v1482
    %v1672 = vsel %vm1667, %v468, %v1484
    %v1673 = vsel %vm1667, %v473, %v1486
    %v1674 = vsel %vm1667, %v478, %v1488
    %v1675 = vsel %vm1667, %v483, %v1490
    %v1676 = vsel %vm1667, %v488, %v1492
    %v1677 = vsel %vm1667, %v493, %v1494
    %v1678 = vsel %vm1667, %v498, %v1496
    %v1679 = vsel %vm1667, %v503, %v1498
    %v1680 = vsel %vm1667, %v508, %v1500
    %v1681 = vsel %vm1667, %v513, %v1502
    %v1682 = vsel %vm1667, %v518, %v1504
    %v1683 = vsel %vm1667, %v523, %v1506
    %v1684 = vsel %vm1667, %v528, %v1508
    %v1685 = vsel %vm1667, %v533, %v1510
    %v1686 = vsel %vm1667, %v538, %v1512
    %v1687 = vsel %vm1667, %v543, %v1514
    %v1688 = vsel %vm1667, %v548, %v1516
    %v1689 = vsel %vm1667, %v553, %v1518
    %v1690 = vsel %vm1667, %v558, %v1520
    %v1691 = vsel %vm1667, %v563, %v1522
    %v1692 = vsel %vm1667, %v568, %v1524
    %v1693 = vsel %vm1667, %v573, %v1526
    %v1694 = vsel %vm1667, %v578, %v1528
    %v1695 = vsel %vm1667, %v583, %v1530
    %v1696 = vsel %vm1667, %v588, %v1532
    %v1697 = vsel %vm1667, %v593, %v1534
    %v1698 = vsel %vm1667, %v598, %v1536
    %v1699 = vsel %vm1667, %v603, %v1538
    %v1700 = vsel %vm1667, %v608, %v1540
    %v1701 = vsel %vm1667, %v613, %v1542
    %v1702 = vsel %vm1667, %v618, %v1544
    %v1703 = vsel %vm1667, %v623, %v1546
    %v1704 = vsel %vm1667, %v628, %v1548
    %v1705 = vsel %vm1667, %v633, %v1550
    %v1706 = vsel %vm1667, %v638, %v1552
    %v1707 = vsel %vm1667, %v643, %v1554
    %v1708 = vsel %vm1667, %v648, %v1556
    %v1709 = vsel %vm1667, %v653, %v1558
    %v1710 = vsel %vm1667, %v658, %v1560
    %v1711 = vsel %vm1667, %v663, %v1562
    %v1712 = vsel %vm1667, %v668, %v1564
    %v1713 = vsel %vm1667, %v673, %v1566
    %v1714 = vsel %vm1667, %v678, %v1568
    %v1715 = vsel %vm1667, %v683, %v1570
    %v1716 = vsel %vm1667, %v688, %v1572
    %v1717 = vsel %vm1667, %v693, %v1574
    %v1718 = vsel %vm1667, %v698, %v1576
    %v1719 = vsel %vm1667, %v703, %v1578
    %v1720 = vsel %vm1667, %v708, %v1580
    %v1721 = vsel %vm1667, %v713, %v1582
    %v1722 = vsel %vm1667, %v718, %v1584
    %v1723 = vsel %vm1667, %v723, %v1586
    %v1724 = vsel %vm1667, %v728, %v1588
    %v1725 = vsel %vm1667, %v733, %v1590
    %v1726 = vsel %vm1667, %v738, %v1592
    %v1727 = vsel %vm1667, %v743, %v1594
    %v1728 = vsel %vm1667, %v748, %v1596
    %v1729 = vsel %vm1667, %v753, %v1598
    %v1730 = vsel %vm1667, %v758, %v1600
    %v1731 = vsel %vm1667, %v763, %v1602
    %v1732 = vpack.c.bf16 %v1669, %v1668
    %v1733 = vpack.c.bf16 %v1671, %v1670
    %v1734 = vpack.c.bf16 %v1673, %v1672
    %v1735 = vpack.c.bf16 %v1675, %v1674
    %v1736 = vpack.c.bf16 %v1677, %v1676
    %v1737 = vpack.c.bf16 %v1679, %v1678
    %v1738 = vpack.c.bf16 %v1681, %v1680
    %v1739 = vpack.c.bf16 %v1683, %v1682
    %v1740 = vpack.c.bf16 %v1685, %v1684
    %v1741 = vpack.c.bf16 %v1687, %v1686
    %v1742 = vpack.c.bf16 %v1689, %v1688
    %v1743 = vpack.c.bf16 %v1691, %v1690
    %v1744 = vpack.c.bf16 %v1693, %v1692
    %v1745 = vpack.c.bf16 %v1695, %v1694
    %v1746 = vpack.c.bf16 %v1697, %v1696
    %v1747 = vpack.c.bf16 %v1699, %v1698
    %v1748 = vpack.c.bf16 %v1701, %v1700
    %v1749 = vpack.c.bf16 %v1703, %v1702
    %v1750 = vpack.c.bf16 %v1705, %v1704
    %v1751 = vpack.c.bf16 %v1707, %v1706
    %v1752 = vpack.c.bf16 %v1709, %v1708
    %v1753 = vpack.c.bf16 %v1711, %v1710
    %v1754 = vpack.c.bf16 %v1713, %v1712
    %v1755 = vpack.c.bf16 %v1715, %v1714
    %v1756 = vpack.c.bf16 %v1717, %v1716
    %v1757 = vpack.c.bf16 %v1719, %v1718
    %v1758 = vpack.c.bf16 %v1721, %v1720
    %v1759 = vpack.c.bf16 %v1723, %v1722
    %v1760 = vpack.c.bf16 %v1725, %v1724
    %v1761 = vpack.c.bf16 %v1727, %v1726
    %v1762 = vpack.c.bf16 %v1729, %v1728
    %v1763 = vpack.c.bf16 %v1731, %v1730
    %v1764 = vld [vmem:[%s6] sm:$0xff]
    %v1765 = vld [vmem:[%s6 + $0x8] sm:$0xff]
    %v1766 = vld [vmem:[%s6 + $0x10] sm:$0xff]
    %v1767 = vld [vmem:[%s6 + $0x18] sm:$0xff]
    %v1768 = vld [vmem:[%s6 + $0x20] sm:$0xff]
    %v1769 = vld [vmem:[%s6 + $0x28] sm:$0xff]
    %v1770 = vld [vmem:[%s6 + $0x30] sm:$0xff]
    %v1771 = vld [vmem:[%s6 + $0x38] sm:$0xff]
    %v1772 = vld [vmem:[%s6 + $0x40] sm:$0xff]
    %v1773 = vld [vmem:[%s6 + $0x48] sm:$0xff]
    %v1774 = vld [vmem:[%s6 + $0x50] sm:$0xff]
    %v1775 = vld [vmem:[%s6 + $0x58] sm:$0xff]
    %v1776 = vld [vmem:[%s6 + $0x60] sm:$0xff]
    %v1777 = vld [vmem:[%s6 + $0x68] sm:$0xff]
    %v1778 = vld [vmem:[%s6 + $0x70] sm:$0xff]
    %v1779 = vld [vmem:[%s6 + $0x78] sm:$0xff]
    %v1780 = vld [vmem:[%s6 + $0x80] sm:$0xff]
    %v1781 = vld [vmem:[%s6 + $0x88] sm:$0xff]
    %v1782 = vld [vmem:[%s6 + $0x90] sm:$0xff]
    %v1783 = vld [vmem:[%s6 + $0x98] sm:$0xff]
    %v1784 = vld [vmem:[%s6 + $0xa0] sm:$0xff]
    %v1785 = vld [vmem:[#allocation6] sm:$0xff]
    %v1786 = vld [vmem:[#allocation6 + $0x8] sm:$0xff]
    %v1787 = vld [vmem:[#allocation6 + $0x10] sm:$0xff]
    %v1788 = vld [vmem:[#allocation6 + $0x18] sm:$0xff]
    %v1789 = vld [vmem:[#allocation6 + $0x20] sm:$0xff]
    %v1790 = vld [vmem:[#allocation6 + $0x28] sm:$0xff]
    %v1791 = vld [vmem:[#allocation6 + $0x30] sm:$0xff]
    %v1792 = vld [vmem:[#allocation6 + $0x38] sm:$0xff]
    %v1793 = vld [vmem:[#allocation6 + $0x40] sm:$0xff]
    %v1794 = vld [vmem:[#allocation6 + $0x48] sm:$0xff]
    %v1795 = vld [vmem:[#allocation6 + $0x50] sm:$0xff]
    %v1796 = vld [vmem:[#allocation6 + $0x58] sm:$0xff]
    %v1797 = vld [vmem:[#allocation6 + $0x60] sm:$0xff]
    %v1798 = vld [vmem:[#allocation6 + $0x68] sm:$0xff]
    %v1799 = vld [vmem:[#allocation6 + $0x70] sm:$0xff]
    %v1800 = vld [vmem:[#allocation6 + $0x78] sm:$0xff]
    %v1801 = vld [vmem:[#allocation6 + $0x80] sm:$0xff]
    %v1802 = vld [vmem:[#allocation6 + $0x88] sm:$0xff]
    %v1803 = vld [vmem:[#allocation6 + $0x90] sm:$0xff]
    %v1804 = vld [vmem:[#allocation6 + $0x98] sm:$0xff]
    %v1805 = vld [vmem:[#allocation6 + $0xa0] sm:$0xff]
    %v1806 = vld [vmem:[#allocation6 + $0xa8] sm:$0xff]
    %v1807 = vld [vmem:[#allocation6 + $0xb0] sm:$0xff]
    %v1808 = vld [vmem:[#allocation6 + $0xb8] sm:$0xff]
    %v1809 = vld [vmem:[#allocation6 + $0xc0] sm:$0xff]
    %v1810 = vld [vmem:[#allocation6 + $0xc8] sm:$0xff]
    %v1811 = vld [vmem:[#allocation6 + $0xd0] sm:$0xff]
    %v1812 = vld [vmem:[#allocation6 + $0xd8] sm:$0xff]
    %v1813 = vld [vmem:[#allocation6 + $0xe0] sm:$0xff]
    %v1814 = vld [vmem:[#allocation6 + $0xe8] sm:$0xff]
    %v1815 = vld [vmem:[#allocation6 + $0xf0] sm:$0xff]
    %v1816 = vld [vmem:[#allocation6 + $0xf8] sm:$0xff]
    %v1817 = vld [vmem:[#allocation6 + $0x100] sm:$0xff]
    %v1818 = vld [vmem:[#allocation6 + $0x108] sm:$0xff]
    %v1819 = vld [vmem:[#allocation6 + $0x110] sm:$0xff]
    %v1820 = vld [vmem:[#allocation6 + $0x118] sm:$0xff]
    %v1821 = vld [vmem:[#allocation6 + $0x120] sm:$0xff]
    %v1822 = vld [vmem:[#allocation6 + $0x128] sm:$0xff]
    %v1823 = vld [vmem:[#allocation6 + $0x130] sm:$0xff]
    %v1824 = vld [vmem:[#allocation6 + $0x138] sm:$0xff]
    %v1825 = vld [vmem:[#allocation6 + $0x140] sm:$0xff]
    %v1826 = vld [vmem:[#allocation6 + $0x148] sm:$0xff]
    %v1869 = vunpack.c.l.b16 %v1785
    %v1870 = vunpack.c.h.b16 %v1785
    %v1871 = vunpack.c.l.b16 %v1786
    %v1872 = vunpack.c.h.b16 %v1786
    %v1873 = vunpack.c.l.b16 %v1787
    %v1874 = vunpack.c.h.b16 %v1787
    %v1875 = vunpack.c.l.b16 %v1788
    %v1876 = vunpack.c.h.b16 %v1788
    %v1877 = vunpack.c.l.b16 %v1789
    %v1878 = vunpack.c.h.b16 %v1789
    %v1879 = vunpack.c.l.b16 %v1790
    %v1880 = vunpack.c.h.b16 %v1790
    %v1881 = vunpack.c.l.b16 %v1791
    %v1882 = vunpack.c.h.b16 %v1791
    %v1883 = vunpack.c.l.b16 %v1792
    %v1884 = vunpack.c.h.b16 %v1792
    %v1885 = vunpack.c.l.b16 %v1793
    %v1886 = vunpack.c.h.b16 %v1793
    %v1887 = vunpack.c.l.b16 %v1794
    %v1888 = vunpack.c.h.b16 %v1794
    %v1889 = vunpack.c.l.b16 %v1795
    %v1890 = vunpack.c.h.b16 %v1795
    %v1891 = vunpack.c.l.b16 %v1796
    %v1892 = vunpack.c.h.b16 %v1796
    %v1893 = vunpack.c.l.b16 %v1797
    %v1894 = vunpack.c.h.b16 %v1797
    %v1895 = vunpack.c.l.b16 %v1798
    %v1896 = vunpack.c.h.b16 %v1798
    %v1897 = vunpack.c.l.b16 %v1799
    %v1898 = vunpack.c.h.b16 %v1799
    %v1899 = vunpack.c.l.b16 %v1800
    %v1900 = vunpack.c.h.b16 %v1800
    %v1901 = vunpack.c.l.b16 %v1801
    %v1902 = vunpack.c.h.b16 %v1801
    %v1903 = vunpack.c.l.b16 %v1802
    %v1904 = vunpack.c.h.b16 %v1802
    %v1905 = vunpack.c.l.b16 %v1803
    %v1906 = vunpack.c.h.b16 %v1803
    %v1907 = vunpack.c.l.b16 %v1804
    %v1908 = vunpack.c.h.b16 %v1804
    %v1909 = vunpack.c.l.b16 %v1805
    %v1910 = vunpack.c.h.b16 %v1805
    %v1911 = vunpack.c.l.b16 %v1806
    %v1912 = vunpack.c.h.b16 %v1806
    %v1913 = vunpack.c.l.b16 %v1807
    %v1914 = vunpack.c.h.b16 %v1807
    %v1915 = vunpack.c.l.b16 %v1808
    %v1916 = vunpack.c.h.b16 %v1808
    %v1917 = vunpack.c.l.b16 %v1809
    %v1918 = vunpack.c.h.b16 %v1809
    %v1919 = vunpack.c.l.b16 %v1810
    %v1920 = vunpack.c.h.b16 %v1810
    %v1921 = vunpack.c.l.b16 %v1811
    %v1922 = vunpack.c.h.b16 %v1811
    %v1923 = vunpack.c.l.b16 %v1812
    %v1924 = vunpack.c.h.b16 %v1812
    %v1925 = vunpack.c.l.b16 %v1813
    %v1926 = vunpack.c.h.b16 %v1813
    %v1927 = vunpack.c.l.b16 %v1814
    %v1928 = vunpack.c.h.b16 %v1814
    %v1929 = vunpack.c.l.b16 %v1815
    %v1930 = vunpack.c.h.b16 %v1815
    %v1931 = vunpack.c.l.b16 %v1816
    %v1932 = vunpack.c.h.b16 %v1816
    %v1933 = vunpack.c.l.b16 %v1817
    %v1934 = vunpack.c.h.b16 %v1817
    %v1935 = vunpack.c.l.b16 %v1818
    %v1936 = vunpack.c.h.b16 %v1818
    %v1937 = vunpack.c.l.b16 %v1819
    %v1938 = vunpack.c.h.b16 %v1819
    %v1939 = vunpack.c.l.b16 %v1820
    %v1940 = vunpack.c.h.b16 %v1820
    %v1941 = vunpack.c.l.b16 %v1821
    %v1942 = vunpack.c.h.b16 %v1821
    %v1943 = vunpack.c.l.b16 %v1822
    %v1944 = vunpack.c.h.b16 %v1822
    %v1945 = vunpack.c.l.b16 %v1823
    %v1946 = vunpack.c.h.b16 %v1823
    %v1947 = vunpack.c.l.b16 %v1824
    %v1948 = vunpack.c.h.b16 %v1824
    %v1949 = vunpack.c.l.b16 %v1825
    %v1950 = vunpack.c.h.b16 %v1825
    %v1951 = vunpack.c.l.b16 %v1826
    %v1952 = vunpack.c.h.b16 %v1826
    %v1953 = vpack.c.b16 %v1873, %v1869
    %v1954 = vpack.c.b16 %v1874, %v1870
    %v1955 = vpack.c.b16 %v1875, %v1871
    %v1956 = vpack.c.b16 %v1876, %v1872
    %v1957 = vpack.c.b16 %v1881, %v1877
    %v1958 = vpack.c.b16 %v1882, %v1878
    %v1959 = vpack.c.b16 %v1883, %v1879
    %v1960 = vpack.c.b16 %v1884, %v1880
    %v1961 = vpack.c.b16 %v1889, %v1885
    %v1962 = vpack.c.b16 %v1890, %v1886
    %v1963 = vpack.c.b16 %v1891, %v1887
    %v1964 = vpack.c.b16 %v1892, %v1888
    %v1965 = vpack.c.b16 %v1897, %v1893
    %v1966 = vpack.c.b16 %v1898, %v1894
    %v1967 = vpack.c.b16 %v1899, %v1895
    %v1968 = vpack.c.b16 %v1900, %v1896
    %v1969 = vpack.c.b16 %v1905, %v1901
    %v1970 = vpack.c.b16 %v1906, %v1902
    %v1971 = vpack.c.b16 %v1907, %v1903
    %v1972 = vpack.c.b16 %v1908, %v1904
    %v1973 = vpack.c.b16 %v1913, %v1909
    %v1974 = vpack.c.b16 %v1914, %v1910
    %v1975 = vpack.c.b16 %v1915, %v1911
    %v1976 = vpack.c.b16 %v1916, %v1912
    %v1977 = vpack.c.b16 %v1921, %v1917
    %v1978 = vpack.c.b16 %v1922, %v1918
    %v1979 = vpack.c.b16 %v1923, %v1919
    %v1980 = vpack.c.b16 %v1924, %v1920
    %v1981 = vpack.c.b16 %v1929, %v1925
    %v1982 = vpack.c.b16 %v1930, %v1926
    %v1983 = vpack.c.b16 %v1931, %v1927
    %v1984 = vpack.c.b16 %v1932, %v1928
    %v1985 = vpack.c.b16 %v1937, %v1933
    %v1986 = vpack.c.b16 %v1938, %v1934
    %v1987 = vpack.c.b16 %v1939, %v1935
    %v1988 = vpack.c.b16 %v1940, %v1936
    %v1989 = vpack.c.b16 %v1945, %v1941
    %v1990 = vpack.c.b16 %v1946, %v1942
    %v1991 = vpack.c.b16 %v1947, %v1943
    %v1992 = vpack.c.b16 %v1948, %v1944
    %v1993 = vpack.c.b16 %v1949, %v1949
    %v1994 = vpack.c.b16 %v1950, %v1950
    %v1995 = vpack.c.b16 %v1951, %v1951
    %v1996 = vpack.c.b16 %v1952, %v1952
    %2041 = vmatprep.subr.bf16.mxu0 0
    %2042 = vmatpush1.bf16.msra.mxu0 %v1739
    %2043 = vmatprep.subr.bf16.mxu0 0
    %2044 = vmatpush1.bf16.msra.mxu0 %v1738
    %2045 = vmatprep.subr.bf16.mxu0 0
    %2046 = vmatpush1.bf16.msra.mxu0 %v1737
    %2047 = vmatprep.subr.bf16.mxu0 0
    %2048 = vmatpush1.bf16.msra.mxu0 %v1736
    %2049 = vmatprep.subr.bf16.mxu0 0
    %2050 = vmatpush1.bf16.msra.mxu0 %v1735
    %2051 = vmatprep.subr.bf16.mxu0 0
    %2052 = vmatpush1.bf16.msra.mxu0 %v1734
    %2053 = vmatprep.subr.bf16.mxu0 0
    %2054 = vmatpush1.bf16.msra.mxu0 %v1733
    %2055 = vmatprep.subr.bf16.mxu0 0
    %2056 = vmatpush1.bf16.msra.mxu0 %v1732
    %2057 = vmatprep.subr.bf16.mxu0 0
    %2058 = vmatpush2.bf16.msra.mxu0 %v1747
    %2059 = vmatprep.subr.bf16.mxu0 0
    %2060 = vmatpush2.bf16.msra.mxu0 %v1746
    %2061 = vmatprep.subr.bf16.mxu0 0
    %2062 = vmatpush2.bf16.msra.mxu0 %v1745
    %2063 = vmatprep.subr.bf16.mxu0 0
    %2064 = vmatpush2.bf16.msra.mxu0 %v1744
    %2065 = vmatprep.subr.bf16.mxu0 0
    %2066 = vmatpush2.bf16.msra.mxu0 %v1743
    %2067 = vmatprep.subr.bf16.mxu0 0
    %2068 = vmatpush2.bf16.msra.mxu0 %v1742
    %2069 = vmatprep.subr.bf16.mxu0 0
    %2070 = vmatpush2.bf16.msra.mxu0 %v1741
    %2071 = vmatprep.subr.bf16.mxu0 0
    %2072 = vmatpush2.bf16.msra.mxu0 %v1740
    %2073 = vmatprep.mubr.bf16.mxu0 %v1954
    %2074 = vmatmul.mubr.bf16.gmra.mxu0 %v1953
    %v2075 = vpop.f32.mrf.mxu0
    %v2076 = vadd.f32 0.0, %v2075
    %v2077 = vpop.f32.mrf.mxu0
    %v2078 = vpop.f32.mrf.mxu0
    %v2079 = vadd.f32 0.0, %v2078
    %v2080 = vpop.f32.mrf.mxu0
    %2081 = vmatprep.mubr.bf16.mxu0 %v1958
    %2082 = vmatmul.mubr.bf16.gmra.mxu0 %v1957
    %v2083 = vpop.f32.mrf.mxu0
    %v2084 = vadd.f32 0.0, %v2083
    %v2085 = vpop.f32.mrf.mxu0
    %v2086 = vpop.f32.mrf.mxu0
    %v2087 = vadd.f32 0.0, %v2086
    %v2088 = vpop.f32.mrf.mxu0
    %2089 = vmatprep.mubr.bf16.mxu0 %v1962
    %2090 = vmatmul.mubr.bf16.gmra.mxu0 %v1961
    %v2091 = vpop.f32.mrf.mxu0
    %v2092 = vadd.f32 0.0, %v2091
    %v2093 = vpop.f32.mrf.mxu0
    %v2094 = vpop.f32.mrf.mxu0
    %v2095 = vadd.f32 0.0, %v2094
    %v2096 = vpop.f32.mrf.mxu0
    %2097 = vmatprep.mubr.bf16.mxu0 %v1966
    %2098 = vmatmul.mubr.bf16.gmra.mxu0 %v1965
    %v2099 = vpop.f32.mrf.mxu0
    %v2100 = vadd.f32 0.0, %v2099
    %v2101 = vpop.f32.mrf.mxu0
    %v2102 = vpop.f32.mrf.mxu0
    %v2103 = vadd.f32 0.0, %v2102
    %v2104 = vpop.f32.mrf.mxu0
    %2105 = vmatprep.mubr.bf16.mxu0 %v1970
    %2106 = vmatmul.mubr.bf16.gmra.mxu0 %v1969
    %v2107 = vpop.f32.mrf.mxu0
    %v2108 = vadd.f32 0.0, %v2107
    %v2109 = vpop.f32.mrf.mxu0
    %v2110 = vpop.f32.mrf.mxu0
    %v2111 = vadd.f32 0.0, %v2110
    %v2112 = vpop.f32.mrf.mxu0
    %2113 = vmatprep.mubr.bf16.mxu0 %v1974
    %2114 = vmatmul.mubr.bf16.gmra.mxu0 %v1973
    %v2115 = vpop.f32.mrf.mxu0
    %v2116 = vadd.f32 0.0, %v2115
    %v2117 = vpop.f32.mrf.mxu0
    %v2118 = vpop.f32.mrf.mxu0
    %v2119 = vadd.f32 0.0, %v2118
    %v2120 = vpop.f32.mrf.mxu0
    %2121 = vmatprep.mubr.bf16.mxu0 %v1978
    %2122 = vmatmul.mubr.bf16.gmra.mxu0 %v1977
    %v2123 = vpop.f32.mrf.mxu0
    %v2124 = vadd.f32 0.0, %v2123
    %v2125 = vpop.f32.mrf.mxu0
    %v2126 = vpop.f32.mrf.mxu0
    %v2127 = vadd.f32 0.0, %v2126
    %v2128 = vpop.f32.mrf.mxu0
    %2129 = vmatprep.mubr.bf16.mxu0 %v1982
    %2130 = vmatmul.mubr.bf16.gmra.mxu0 %v1981
    %v2131 = vpop.f32.mrf.mxu0
    %v2132 = vadd.f32 0.0, %v2131
    %v2133 = vpop.f32.mrf.mxu0
    %v2134 = vpop.f32.mrf.mxu0
    %v2135 = vadd.f32 0.0, %v2134
    %v2136 = vpop.f32.mrf.mxu0
    %2137 = vmatprep.mubr.bf16.mxu0 %v1986
    %2138 = vmatmul.mubr.bf16.gmra.mxu0 %v1985
    %v2139 = vpop.f32.mrf.mxu0
    %v2140 = vadd.f32 0.0, %v2139
    %v2141 = vpop.f32.mrf.mxu0
    %v2142 = vpop.f32.mrf.mxu0
    %v2143 = vadd.f32 0.0, %v2142
    %v2144 = vpop.f32.mrf.mxu0
    %2145 = vmatprep.mubr.bf16.mxu0 %v1990
    %2146 = vmatmul.mubr.bf16.gmra.mxu0 %v1989
    %v2147 = vpop.f32.mrf.mxu0
    %v2148 = vadd.f32 0.0, %v2147
    %v2149 = vpop.f32.mrf.mxu0
    %v2150 = vpop.f32.mrf.mxu0
    %v2151 = vadd.f32 0.0, %v2150
    %v2152 = vpop.f32.mrf.mxu0
    %2153 = vmatprep.mubr.bf16.mxu0 %v1994
    %2154 = vmatmul.mubr.bf16.gmra.mxu0 %v1993
    %v2155 = vpop.f32.mrf.mxu0
    %v2156 = vadd.f32 0.0, %v2155
    %v2157 = vpop.f32.mrf.mxu0
    %v2158 = vpop.f32.mrf.mxu0
    %v2159 = vpop.f32.mrf.mxu0
    %2160 = vdwg.mxu0
    %2161 = vmatprep.subr.bf16.mxu0 0
    %2162 = vmatpush1.bf16.msra.mxu0 %v1755
    %2163 = vmatprep.subr.bf16.mxu0 0
    %2164 = vmatpush1.bf16.msra.mxu0 %v1754
    %2165 = vmatprep.subr.bf16.mxu0 0
    %2166 = vmatpush1.bf16.msra.mxu0 %v1753
    %2167 = vmatprep.subr.bf16.mxu0 0
    %2168 = vmatpush1.bf16.msra.mxu0 %v1752
    %2169 = vmatprep.subr.bf16.mxu0 0
    %2170 = vmatpush1.bf16.msra.mxu0 %v1751
    %2171 = vmatprep.subr.bf16.mxu0 0
    %2172 = vmatpush1.bf16.msra.mxu0 %v1750
    %2173 = vmatprep.subr.bf16.mxu0 0
    %2174 = vmatpush1.bf16.msra.mxu0 %v1749
    %2175 = vmatprep.subr.bf16.mxu0 0
    %2176 = vmatpush1.bf16.msra.mxu0 %v1748
    %2177 = vmatprep.subr.bf16.mxu0 0
    %2178 = vmatpush2.bf16.msra.mxu0 %v1763
    %2179 = vmatprep.subr.bf16.mxu0 0
    %2180 = vmatpush2.bf16.msra.mxu0 %v1762
    %2181 = vmatprep.subr.bf16.mxu0 0
    %2182 = vmatpush2.bf16.msra.mxu0 %v1761
    %2183 = vmatprep.subr.bf16.mxu0 0
    %2184 = vmatpush2.bf16.msra.mxu0 %v1760
    %2185 = vmatprep.subr.bf16.mxu0 0
    %2186 = vmatpush2.bf16.msra.mxu0 %v1759
    %2187 = vmatprep.subr.bf16.mxu0 0
    %2188 = vmatpush2.bf16.msra.mxu0 %v1758
    %2189 = vmatprep.subr.bf16.mxu0 0
    %2190 = vmatpush2.bf16.msra.mxu0 %v1757
    %2191 = vmatprep.subr.bf16.mxu0 0
    %2192 = vmatpush2.bf16.msra.mxu0 %v1756
    %2193 = vmatprep.mubr.bf16.mxu0 %v1956
    %2194 = vmatmul.mubr.bf16.gmra.mxu0 %v1955
    %v2195 = vpop.f32.mrf.mxu0
    %v2196 = vadd.f32 %v2076, %v2195
    %v2197 = vpop.f32.mrf.mxu0
    %v2198 = vpop.f32.mrf.mxu0
    %v2199 = vadd.f32 %v2079, %v2198
    %v2200 = vpop.f32.mrf.mxu0
    %2201 = vmatprep.mubr.bf16.mxu0 %v1960
    %2202 = vmatmul.mubr.bf16.gmra.mxu0 %v1959
    %v2203 = vpop.f32.mrf.mxu0
    %v2204 = vadd.f32 %v2084, %v2203
    %v2205 = vpop.f32.mrf.mxu0
    %v2206 = vpop.f32.mrf.mxu0
    %v2207 = vadd.f32 %v2087, %v2206
    %v2208 = vpop.f32.mrf.mxu0
    %2209 = vmatprep.mubr.bf16.mxu0 %v1964
    %2210 = vmatmul.mubr.bf16.gmra.mxu0 %v1963
    %v2211 = vpop.f32.mrf.mxu0
    %v2212 = vadd.f32 %v2092, %v2211
    %v2213 = vpop.f32.mrf.mxu0
    %v2214 = vpop.f32.mrf.mxu0
    %v2215 = vadd.f32 %v2095, %v2214
    %v2216 = vpop.f32.mrf.mxu0
    %2217 = vmatprep.mubr.bf16.mxu0 %v1968
    %2218 = vmatmul.mubr.bf16.gmra.mxu0 %v1967
    %v2219 = vpop.f32.mrf.mxu0
    %v2220 = vadd.f32 %v2100, %v2219
    %v2221 = vpop.f32.mrf.mxu0
    %v2222 = vpop.f32.mrf.mxu0
    %v2223 = vadd.f32 %v2103, %v2222
    %v2224 = vpop.f32.mrf.mxu0
    %2225 = vmatprep.mubr.bf16.mxu0 %v1972
    %2226 = vmatmul.mubr.bf16.gmra.mxu0 %v1971
    %v2227 = vpop.f32.mrf.mxu0
    %v2228 = vadd.f32 %v2108, %v2227
    %v2229 = vpop.f32.mrf.mxu0
    %v2230 = vpop.f32.mrf.mxu0
    %v2231 = vadd.f32 %v2111, %v2230
    %v2232 = vpop.f32.mrf.mxu0
    %2233 = vmatprep.mubr.bf16.mxu0 %v1976
    %2234 = vmatmul.mubr.bf16.gmra.mxu0 %v1975
    %v2235 = vpop.f32.mrf.mxu0
    %v2236 = vadd.f32 %v2116, %v2235
    %v2237 = vpop.f32.mrf.mxu0
    %v2238 = vpop.f32.mrf.mxu0
    %v2239 = vadd.f32 %v2119, %v2238
    %v2240 = vpop.f32.mrf.mxu0
    %2241 = vmatprep.mubr.bf16.mxu0 %v1980
    %2242 = vmatmul.mubr.bf16.gmra.mxu0 %v1979
    %v2243 = vpop.f32.mrf.mxu0
    %v2244 = vadd.f32 %v2124, %v2243
    %v2245 = vpop.f32.mrf.mxu0
    %v2246 = vpop.f32.mrf.mxu0
    %v2247 = vadd.f32 %v2127, %v2246
    %v2248 = vpop.f32.mrf.mxu0
    %2249 = vmatprep.mubr.bf16.mxu0 %v1984
    %2250 = vmatmul.mubr.bf16.gmra.mxu0 %v1983
    %v2251 = vpop.f32.mrf.mxu0
    %v2252 = vadd.f32 %v2132, %v2251
    %v2253 = vpop.f32.mrf.mxu0
    %v2254 = vpop.f32.mrf.mxu0
    %v2255 = vadd.f32 %v2135, %v2254
    %v2256 = vpop.f32.mrf.mxu0
    %2257 = vmatprep.mubr.bf16.mxu0 %v1988
    %2258 = vmatmul.mubr.bf16.gmra.mxu0 %v1987
    %v2259 = vpop.f32.mrf.mxu0
    %v2260 = vadd.f32 %v2140, %v2259
    %v2261 = vpop.f32.mrf.mxu0
    %v2262 = vpop.f32.mrf.mxu0
    %v2263 = vadd.f32 %v2143, %v2262
    %v2264 = vpop.f32.mrf.mxu0
    %2265 = vmatprep.mubr.bf16.mxu0 %v1992
    %2266 = vmatmul.mubr.bf16.gmra.mxu0 %v1991
    %v2267 = vpop.f32.mrf.mxu0
    %v2268 = vadd.f32 %v2148, %v2267
    %v2269 = vpop.f32.mrf.mxu0
    %v2270 = vpop.f32.mrf.mxu0
    %v2271 = vadd.f32 %v2151, %v2270
    %v2272 = vpop.f32.mrf.mxu0
    %2273 = vmatprep.mubr.bf16.mxu0 %v1996
    %2274 = vmatmul.mubr.bf16.gmra.mxu0 %v1995
    %v2275 = vpop.f32.mrf.mxu0
    %v2276 = vadd.f32 %v2156, %v2275
    %v2277 = vpop.f32.mrf.mxu0
    %v2278 = vpop.f32.mrf.mxu0
    %v2279 = vpop.f32.mrf.mxu0
    %2280 = vdwg.mxu0
    %v2281 = vpack.c.bf16 %v2199, %v2196
    %v2282 = vpack.c.bf16 %v2207, %v2204
    %v2283 = vpack.c.bf16 %v2215, %v2212
    %v2284 = vpack.c.bf16 %v2223, %v2220
    %v2285 = vpack.c.bf16 %v2231, %v2228
    %v2286 = vpack.c.bf16 %v2239, %v2236
    %v2287 = vpack.c.bf16 %v2247, %v2244
    %v2288 = vpack.c.bf16 %v2255, %v2252
    %v2289 = vpack.c.bf16 %v2263, %v2260
    %v2290 = vpack.c.bf16 %v2271, %v2268
    %v2291 = vpack.c.bf16 %v2276, %v2276
    %s2292 = scalar_lea.vmem [#allocation6], 336
    %v2293 = vld [vmem:[%s2292] sm:$0xff]
    %v2294 = vld [vmem:[%s2292 + $0x8] sm:$0xff]
    %v2295 = vld [vmem:[%s2292 + $0x10] sm:$0xff]
    %v2296 = vld [vmem:[%s2292 + $0x18] sm:$0xff]
    %v2297 = vld [vmem:[%s2292 + $0x20] sm:$0xff]
    %v2298 = vld [vmem:[%s2292 + $0x28] sm:$0xff]
    %v2299 = vld [vmem:[%s2292 + $0x30] sm:$0xff]
    %v2300 = vld [vmem:[%s2292 + $0x38] sm:$0xff]
    %v2301 = vld [vmem:[%s2292 + $0x40] sm:$0xff]
    %v2302 = vld [vmem:[%s2292 + $0x48] sm:$0xff]
    %v2303 = vld [vmem:[%s2292 + $0x50] sm:$0xff]
    %v2304 = vld [vmem:[%s2292 + $0x58] sm:$0xff]
    %v2305 = vld [vmem:[%s2292 + $0x60] sm:$0xff]
    %v2306 = vld [vmem:[%s2292 + $0x68] sm:$0xff]
    %v2307 = vld [vmem:[%s2292 + $0x70] sm:$0xff]
    %v2308 = vld [vmem:[%s2292 + $0x78] sm:$0xff]
    %v2309 = vld [vmem:[%s2292 + $0x80] sm:$0xff]
    %v2310 = vld [vmem:[%s2292 + $0x88] sm:$0xff]
    %v2311 = vld [vmem:[%s2292 + $0x90] sm:$0xff]
    %v2312 = vld [vmem:[%s2292 + $0x98] sm:$0xff]
    %v2313 = vld [vmem:[%s2292 + $0xa0] sm:$0xff]
    %v2314 = vld [vmem:[%s2292 + $0xa8] sm:$0xff]
    %v2315 = vld [vmem:[%s2292 + $0xb0] sm:$0xff]
    %v2316 = vld [vmem:[%s2292 + $0xb8] sm:$0xff]
    %v2317 = vld [vmem:[%s2292 + $0xc0] sm:$0xff]
    %v2318 = vld [vmem:[%s2292 + $0xc8] sm:$0xff]
    %v2319 = vld [vmem:[%s2292 + $0xd0] sm:$0xff]
    %v2320 = vld [vmem:[%s2292 + $0xd8] sm:$0xff]
    %v2321 = vld [vmem:[%s2292 + $0xe0] sm:$0xff]
    %v2322 = vld [vmem:[%s2292 + $0xe8] sm:$0xff]
    %v2323 = vld [vmem:[%s2292 + $0xf0] sm:$0xff]
    %v2324 = vld [vmem:[%s2292 + $0xf8] sm:$0xff]
    %v2325 = vld [vmem:[%s2292 + $0x100] sm:$0xff]
    %v2326 = vld [vmem:[%s2292 + $0x108] sm:$0xff]
    %v2327 = vld [vmem:[%s2292 + $0x110] sm:$0xff]
    %v2328 = vld [vmem:[%s2292 + $0x118] sm:$0xff]
    %v2329 = vld [vmem:[%s2292 + $0x120] sm:$0xff]
    %v2330 = vld [vmem:[%s2292 + $0x128] sm:$0xff]
    %v2331 = vld [vmem:[%s2292 + $0x130] sm:$0xff]
    %v2332 = vld [vmem:[%s2292 + $0x138] sm:$0xff]
    %v2333 = vld [vmem:[%s2292 + $0x140] sm:$0xff]
    %v2334 = vld [vmem:[%s2292 + $0x148] sm:$0xff]
    %v2377 = vunpack.c.l.b16 %v2293
    %v2378 = vunpack.c.h.b16 %v2293
    %v2379 = vunpack.c.l.b16 %v2294
    %v2380 = vunpack.c.h.b16 %v2294
    %v2381 = vunpack.c.l.b16 %v2295
    %v2382 = vunpack.c.h.b16 %v2295
    %v2383 = vunpack.c.l.b16 %v2296
    %v2384 = vunpack.c.h.b16 %v2296
    %v2385 = vunpack.c.l.b16 %v2297
    %v2386 = vunpack.c.h.b16 %v2297
    %v2387 = vunpack.c.l.b16 %v2298
    %v2388 = vunpack.c.h.b16 %v2298
    %v2389 = vunpack.c.l.b16 %v2299
    %v2390 = vunpack.c.h.b16 %v2299
    %v2391 = vunpack.c.l.b16 %v2300
    %v2392 = vunpack.c.h.b16 %v2300
    %v2393 = vunpack.c.l.b16 %v2301
    %v2394 = vunpack.c.h.b16 %v2301
    %v2395 = vunpack.c.l.b16 %v2302
    %v2396 = vunpack.c.h.b16 %v2302
    %v2397 = vunpack.c.l.b16 %v2303
    %v2398 = vunpack.c.h.b16 %v2303
    %v2399 = vunpack.c.l.b16 %v2304
    %v2400 = vunpack.c.h.b16 %v2304
    %v2401 = vunpack.c.l.b16 %v2305
    %v2402 = vunpack.c.h.b16 %v2305
    %v2403 = vunpack.c.l.b16 %v2306
    %v2404 = vunpack.c.h.b16 %v2306
    %v2405 = vunpack.c.l.b16 %v2307
    %v2406 = vunpack.c.h.b16 %v2307
    %v2407 = vunpack.c.l.b16 %v2308
    %v2408 = vunpack.c.h.b16 %v2308
    %v2409 = vunpack.c.l.b16 %v2309
    %v2410 = vunpack.c.h.b16 %v2309
    %v2411 = vunpack.c.l.b16 %v2310
    %v2412 = vunpack.c.h.b16 %v2310
    %v2413 = vunpack.c.l.b16 %v2311
    %v2414 = vunpack.c.h.b16 %v2311
    %v2415 = vunpack.c.l.b16 %v2312
    %v2416 = vunpack.c.h.b16 %v2312
    %v2417 = vunpack.c.l.b16 %v2313
    %v2418 = vunpack.c.h.b16 %v2313
    %v2419 = vunpack.c.l.b16 %v2314
    %v2420 = vunpack.c.h.b16 %v2314
    %v2421 = vunpack.c.l.b16 %v2315
    %v2422 = vunpack.c.h.b16 %v2315
    %v2423 = vunpack.c.l.b16 %v2316
    %v2424 = vunpack.c.h.b16 %v2316
    %v2425 = vunpack.c.l.b16 %v2317
    %v2426 = vunpack.c.h.b16 %v2317
    %v2427 = vunpack.c.l.b16 %v2318
    %v2428 = vunpack.c.h.b16 %v2318
    %v2429 = vunpack.c.l.b16 %v2319
    %v2430 = vunpack.c.h.b16 %v2319
    %v2431 = vunpack.c.l.b16 %v2320
    %v2432 = vunpack.c.h.b16 %v2320
    %v2433 = vunpack.c.l.b16 %v2321
    %v2434 = vunpack.c.h.b16 %v2321
    %v2435 = vunpack.c.l.b16 %v2322
    %v2436 = vunpack.c.h.b16 %v2322
    %v2437 = vunpack.c.l.b16 %v2323
    %v2438 = vunpack.c.h.b16 %v2323
    %v2439 = vunpack.c.l.b16 %v2324
    %v2440 = vunpack.c.h.b16 %v2324
    %v2441 = vunpack.c.l.b16 %v2325
    %v2442 = vunpack.c.h.b16 %v2325
    %v2443 = vunpack.c.l.b16 %v2326
    %v2444 = vunpack.c.h.b16 %v2326
    %v2445 = vunpack.c.l.b16 %v2327
    %v2446 = vunpack.c.h.b16 %v2327
    %v2447 = vunpack.c.l.b16 %v2328
    %v2448 = vunpack.c.h.b16 %v2328
    %v2449 = vunpack.c.l.b16 %v2329
    %v2450 = vunpack.c.h.b16 %v2329
    %v2451 = vunpack.c.l.b16 %v2330
    %v2452 = vunpack.c.h.b16 %v2330
    %v2453 = vunpack.c.l.b16 %v2331
    %v2454 = vunpack.c.h.b16 %v2331
    %v2455 = vunpack.c.l.b16 %v2332
    %v2456 = vunpack.c.h.b16 %v2332
    %v2457 = vunpack.c.l.b16 %v2333
    %v2458 = vunpack.c.h.b16 %v2333
    %v2459 = vunpack.c.l.b16 %v2334
    %v2460 = vunpack.c.h.b16 %v2334
    %v2461 = vpack.c.b16 %v2381, %v2377
    %v2462 = vpack.c.b16 %v2382, %v2378
    %v2463 = vpack.c.b16 %v2383, %v2379
    %v2464 = vpack.c.b16 %v2384, %v2380
    %v2465 = vpack.c.b16 %v2389, %v2385
    %v2466 = vpack.c.b16 %v2390, %v2386
    %v2467 = vpack.c.b16 %v2391, %v2387
    %v2468 = vpack.c.b16 %v2392, %v2388
    %v2469 = vpack.c.b16 %v2397, %v2393
    %v2470 = vpack.c.b16 %v2398, %v2394
    %v2471 = vpack.c.b16 %v2399, %v2395
    %v2472 = vpack.c.b16 %v2400, %v2396
    %v2473 = vpack.c.b16 %v2405, %v2401
    %v2474 = vpack.c.b16 %v2406, %v2402
    %v2475 = vpack.c.b16 %v2407, %v2403
    %v2476 = vpack.c.b16 %v2408, %v2404
    %v2477 = vpack.c.b16 %v2413, %v2409
    %v2478 = vpack.c.b16 %v2414, %v2410
    %v2479 = vpack.c.b16 %v2415, %v2411
    %v2480 = vpack.c.b16 %v2416, %v2412
    %v2481 = vpack.c.b16 %v2421, %v2417
    %v2482 = vpack.c.b16 %v2422, %v2418
    %v2483 = vpack.c.b16 %v2423, %v2419
    %v2484 = vpack.c.b16 %v2424, %v2420
    %v2485 = vpack.c.b16 %v2429, %v2425
    %v2486 = vpack.c.b16 %v2430, %v2426
    %v2487 = vpack.c.b16 %v2431, %v2427
    %v2488 = vpack.c.b16 %v2432, %v2428
    %v2489 = vpack.c.b16 %v2437, %v2433
    %v2490 = vpack.c.b16 %v2438, %v2434
    %v2491 = vpack.c.b16 %v2439, %v2435
    %v2492 = vpack.c.b16 %v2440, %v2436
    %v2493 = vpack.c.b16 %v2445, %v2441
    %v2494 = vpack.c.b16 %v2446, %v2442
    %v2495 = vpack.c.b16 %v2447, %v2443
    %v2496 = vpack.c.b16 %v2448, %v2444
    %v2497 = vpack.c.b16 %v2453, %v2449
    %v2498 = vpack.c.b16 %v2454, %v2450
    %v2499 = vpack.c.b16 %v2455, %v2451
    %v2500 = vpack.c.b16 %v2456, %v2452
    %v2501 = vpack.c.b16 %v2457, %v2457
    %v2502 = vpack.c.b16 %v2458, %v2458
    %v2503 = vpack.c.b16 %v2459, %v2459
    %v2504 = vpack.c.b16 %v2460, %v2460
    %2549 = vmatprep.subr.bf16.mxu0 0
    %2550 = vmatpush1.bf16.msra.mxu0 %v1739
    %2551 = vmatprep.subr.bf16.mxu0 0
    %2552 = vmatpush1.bf16.msra.mxu0 %v1738
    %2553 = vmatprep.subr.bf16.mxu0 0
    %2554 = vmatpush1.bf16.msra.mxu0 %v1737
    %2555 = vmatprep.subr.bf16.mxu0 0
    %2556 = vmatpush1.bf16.msra.mxu0 %v1736
    %2557 = vmatprep.subr.bf16.mxu0 0
    %2558 = vmatpush1.bf16.msra.mxu0 %v1735
    %2559 = vmatprep.subr.bf16.mxu0 0
    %2560 = vmatpush1.bf16.msra.mxu0 %v1734
    %2561 = vmatprep.subr.bf16.mxu0 0
    %2562 = vmatpush1.bf16.msra.mxu0 %v1733
    %2563 = vmatprep.subr.bf16.mxu0 0
    %2564 = vmatpush1.bf16.msra.mxu0 %v1732
    %2565 = vmatprep.subr.bf16.mxu0 0
    %2566 = vmatpush2.bf16.msra.mxu0 %v1747
    %2567 = vmatprep.subr.bf16.mxu0 0
    %2568 = vmatpush2.bf16.msra.mxu0 %v1746
    %2569 = vmatprep.subr.bf16.mxu0 0
    %2570 = vmatpush2.bf16.msra.mxu0 %v1745
    %2571 = vmatprep.subr.bf16.mxu0 0
    %2572 = vmatpush2.bf16.msra.mxu0 %v1744
    %2573 = vmatprep.subr.bf16.mxu0 0
    %2574 = vmatpush2.bf16.msra.mxu0 %v1743
    %2575 = vmatprep.subr.bf16.mxu0 0
    %2576 = vmatpush2.bf16.msra.mxu0 %v1742
    %2577 = vmatprep.subr.bf16.mxu0 0
    %2578 = vmatpush2.bf16.msra.mxu0 %v1741
    %2579 = vmatprep.subr.bf16.mxu0 0
    %2580 = vmatpush2.bf16.msra.mxu0 %v1740
    %2581 = vmatprep.mubr.bf16.mxu0 %v2462
    %2582 = vmatmul.mubr.bf16.gmra.mxu0 %v2461
    %v2583 = vpop.f32.mrf.mxu0
    %v2584 = vadd.f32 0.0, %v2583
    %v2585 = vpop.f32.mrf.mxu0
    %v2586 = vpop.f32.mrf.mxu0
    %v2587 = vadd.f32 0.0, %v2586
    %v2588 = vpop.f32.mrf.mxu0
    %2589 = vmatprep.mubr.bf16.mxu0 %v2466
    %2590 = vmatmul.mubr.bf16.gmra.mxu0 %v2465
    %v2591 = vpop.f32.mrf.mxu0
    %v2592 = vadd.f32 0.0, %v2591
    %v2593 = vpop.f32.mrf.mxu0
    %v2594 = vpop.f32.mrf.mxu0
    %v2595 = vadd.f32 0.0, %v2594
    %v2596 = vpop.f32.mrf.mxu0
    %2597 = vmatprep.mubr.bf16.mxu0 %v2470
    %2598 = vmatmul.mubr.bf16.gmra.mxu0 %v2469
    %v2599 = vpop.f32.mrf.mxu0
    %v2600 = vadd.f32 0.0, %v2599
    %v2601 = vpop.f32.mrf.mxu0
    %v2602 = vpop.f32.mrf.mxu0
    %v2603 = vadd.f32 0.0, %v2602
    %v2604 = vpop.f32.mrf.mxu0
    %2605 = vmatprep.mubr.bf16.mxu0 %v2474
    %2606 = vmatmul.mubr.bf16.gmra.mxu0 %v2473
    %v2607 = vpop.f32.mrf.mxu0
    %v2608 = vadd.f32 0.0, %v2607
    %v2609 = vpop.f32.mrf.mxu0
    %v2610 = vpop.f32.mrf.mxu0
    %v2611 = vadd.f32 0.0, %v2610
    %v2612 = vpop.f32.mrf.mxu0
    %2613 = vmatprep.mubr.bf16.mxu0 %v2478
    %2614 = vmatmul.mubr.bf16.gmra.mxu0 %v2477
    %v2615 = vpop.f32.mrf.mxu0
    %v2616 = vadd.f32 0.0, %v2615
    %v2617 = vpop.f32.mrf.mxu0
    %v2618 = vpop.f32.mrf.mxu0
    %v2619 = vadd.f32 0.0, %v2618
    %v2620 = vpop.f32.mrf.mxu0
    %2621 = vmatprep.mubr.bf16.mxu0 %v2482
    %2622 = vmatmul.mubr.bf16.gmra.mxu0 %v2481
    %v2623 = vpop.f32.mrf.mxu0
    %v2624 = vadd.f32 0.0, %v2623
    %v2625 = vpop.f32.mrf.mxu0
    %v2626 = vpop.f32.mrf.mxu0
    %v2627 = vadd.f32 0.0, %v2626
    %v2628 = vpop.f32.mrf.mxu0
    %2629 = vmatprep.mubr.bf16.mxu0 %v2486
    %2630 = vmatmul.mubr.bf16.gmra.mxu0 %v2485
    %v2631 = vpop.f32.mrf.mxu0
    %v2632 = vadd.f32 0.0, %v2631
    %v2633 = vpop.f32.mrf.mxu0
    %v2634 = vpop.f32.mrf.mxu0
    %v2635 = vadd.f32 0.0, %v2634
    %v2636 = vpop.f32.mrf.mxu0
    %2637 = vmatprep.mubr.bf16.mxu0 %v2490
    %2638 = vmatmul.mubr.bf16.gmra.mxu0 %v2489
    %v2639 = vpop.f32.mrf.mxu0
    %v2640 = vadd.f32 0.0, %v2639
    %v2641 = vpop.f32.mrf.mxu0
    %v2642 = vpop.f32.mrf.mxu0
    %v2643 = vadd.f32 0.0, %v2642
    %v2644 = vpop.f32.mrf.mxu0
    %2645 = vmatprep.mubr.bf16.mxu0 %v2494
    %2646 = vmatmul.mubr.bf16.gmra.mxu0 %v2493
    %v2647 = vpop.f32.mrf.mxu0
    %v2648 = vadd.f32 0.0, %v2647
    %v2649 = vpop.f32.mrf.mxu0
    %v2650 = vpop.f32.mrf.mxu0
    %v2651 = vadd.f32 0.0, %v2650
    %v2652 = vpop.f32.mrf.mxu0
    %2653 = vmatprep.mubr.bf16.mxu0 %v2498
    %2654 = vmatmul.mubr.bf16.gmra.mxu0 %v2497
    %v2655 = vpop.f32.mrf.mxu0
    %v2656 = vadd.f32 0.0, %v2655
    %v2657 = vpop.f32.mrf.mxu0
    %v2658 = vpop.f32.mrf.mxu0
    %v2659 = vadd.f32 0.0, %v2658
    %v2660 = vpop.f32.mrf.mxu0
    %2661 = vmatprep.mubr.bf16.mxu0 %v2502
    %2662 = vmatmul.mubr.bf16.gmra.mxu0 %v2501
    %v2663 = vpop.f32.mrf.mxu0
    %v2664 = vadd.f32 0.0, %v2663
    %v2665 = vpop.f32.mrf.mxu0
    %v2666 = vpop.f32.mrf.mxu0
    %v2667 = vpop.f32.mrf.mxu0
    %2668 = vdwg.mxu0
    %2669 = vmatprep.subr.bf16.mxu0 0
    %2670 = vmatpush1.bf16.msra.mxu0 %v1755
    %2671 = vmatprep.subr.bf16.mxu0 0
    %2672 = vmatpush1.bf16.msra.mxu0 %v1754
    %2673 = vmatprep.subr.bf16.mxu0 0
    %2674 = vmatpush1.bf16.msra.mxu0 %v1753
    %2675 = vmatprep.subr.bf16.mxu0 0
    %2676 = vmatpush1.bf16.msra.mxu0 %v1752
    %2677 = vmatprep.subr.bf16.mxu0 0
    %2678 = vmatpush1.bf16.msra.mxu0 %v1751
    %2679 = vmatprep.subr.bf16.mxu0 0
    %2680 = vmatpush1.bf16.msra.mxu0 %v1750
    %2681 = vmatprep.subr.bf16.mxu0 0
    %2682 = vmatpush1.bf16.msra.mxu0 %v1749
    %2683 = vmatprep.subr.bf16.mxu0 0
    %2684 = vmatpush1.bf16.msra.mxu0 %v1748
    %2685 = vmatprep.subr.bf16.mxu0 0
    %2686 = vmatpush2.bf16.msra.mxu0 %v1763
    %2687 = vmatprep.subr.bf16.mxu0 0
    %2688 = vmatpush2.bf16.msra.mxu0 %v1762
    %2689 = vmatprep.subr.bf16.mxu0 0
    %2690 = vmatpush2.bf16.msra.mxu0 %v1761
    %2691 = vmatprep.subr.bf16.mxu0 0
    %2692 = vmatpush2.bf16.msra.mxu0 %v1760
    %2693 = vmatprep.subr.bf16.mxu0 0
    %2694 = vmatpush2.bf16.msra.mxu0 %v1759
    %2695 = vmatprep.subr.bf16.mxu0 0
    %2696 = vmatpush2.bf16.msra.mxu0 %v1758
    %2697 = vmatprep.subr.bf16.mxu0 0
    %2698 = vmatpush2.bf16.msra.mxu0 %v1757
    %2699 = vmatprep.subr.bf16.mxu0 0
    %2700 = vmatpush2.bf16.msra.mxu0 %v1756
    %2701 = vmatprep.mubr.bf16.mxu0 %v2464
    %2702 = vmatmul.mubr.bf16.gmra.mxu0 %v2463
    %v2703 = vpop.f32.mrf.mxu0
    %v2704 = vadd.f32 %v2584, %v2703
    %v2705 = vpop.f32.mrf.mxu0
    %v2706 = vpop.f32.mrf.mxu0
    %v2707 = vadd.f32 %v2587, %v2706
    %v2708 = vpop.f32.mrf.mxu0
    %2709 = vmatprep.mubr.bf16.mxu0 %v2468
    %2710 = vmatmul.mubr.bf16.gmra.mxu0 %v2467
    %v2711 = vpop.f32.mrf.mxu0
    %v2712 = vadd.f32 %v2592, %v2711
    %v2713 = vpop.f32.mrf.mxu0
    %v2714 = vpop.f32.mrf.mxu0
    %v2715 = vadd.f32 %v2595, %v2714
    %v2716 = vpop.f32.mrf.mxu0
    %2717 = vmatprep.mubr.bf16.mxu0 %v2472
    %2718 = vmatmul.mubr.bf16.gmra.mxu0 %v2471
    %v2719 = vpop.f32.mrf.mxu0
    %v2720 = vadd.f32 %v2600, %v2719
    %v2721 = vpop.f32.mrf.mxu0
    %v2722 = vpop.f32.mrf.mxu0
    %v2723 = vadd.f32 %v2603, %v2722
    %v2724 = vpop.f32.mrf.mxu0
    %2725 = vmatprep.mubr.bf16.mxu0 %v2476
    %2726 = vmatmul.mubr.bf16.gmra.mxu0 %v2475
    %v2727 = vpop.f32.mrf.mxu0
    %v2728 = vadd.f32 %v2608, %v2727
    %v2729 = vpop.f32.mrf.mxu0
    %v2730 = vpop.f32.mrf.mxu0
    %v2731 = vadd.f32 %v2611, %v2730
    %v2732 = vpop.f32.mrf.mxu0
    %2733 = vmatprep.mubr.bf16.mxu0 %v2480
    %2734 = vmatmul.mubr.bf16.gmra.mxu0 %v2479
    %v2735 = vpop.f32.mrf.mxu0
    %v2736 = vadd.f32 %v2616, %v2735
    %v2737 = vpop.f32.mrf.mxu0
    %v2738 = vpop.f32.mrf.mxu0
    %v2739 = vadd.f32 %v2619, %v2738
    %v2740 = vpop.f32.mrf.mxu0
    %2741 = vmatprep.mubr.bf16.mxu0 %v2484
    %2742 = vmatmul.mubr.bf16.gmra.mxu0 %v2483
    %v2743 = vpop.f32.mrf.mxu0
    %v2744 = vadd.f32 %v2624, %v2743
    %v2745 = vpop.f32.mrf.mxu0
    %v2746 = vpop.f32.mrf.mxu0
    %v2747 = vadd.f32 %v2627, %v2746
    %v2748 = vpop.f32.mrf.mxu0
    %2749 = vmatprep.mubr.bf16.mxu0 %v2488
    %2750 = vmatmul.mubr.bf16.gmra.mxu0 %v2487
    %v2751 = vpop.f32.mrf.mxu0
    %v2752 = vadd.f32 %v2632, %v2751
    %v2753 = vpop.f32.mrf.mxu0
    %v2754 = vpop.f32.mrf.mxu0
    %v2755 = vadd.f32 %v2635, %v2754
    %v2756 = vpop.f32.mrf.mxu0
    %2757 = vmatprep.mubr.bf16.mxu0 %v2492
    %2758 = vmatmul.mubr.bf16.gmra.mxu0 %v2491
    %v2759 = vpop.f32.mrf.mxu0
    %v2760 = vadd.f32 %v2640, %v2759
    %v2761 = vpop.f32.mrf.mxu0
    %v2762 = vpop.f32.mrf.mxu0
    %v2763 = vadd.f32 %v2643, %v2762
    %v2764 = vpop.f32.mrf.mxu0
    %2765 = vmatprep.mubr.bf16.mxu0 %v2496
    %2766 = vmatmul.mubr.bf16.gmra.mxu0 %v2495
    %v2767 = vpop.f32.mrf.mxu0
    %v2768 = vadd.f32 %v2648, %v2767
    %v2769 = vpop.f32.mrf.mxu0
    %v2770 = vpop.f32.mrf.mxu0
    %v2771 = vadd.f32 %v2651, %v2770
    %v2772 = vpop.f32.mrf.mxu0
    %2773 = vmatprep.mubr.bf16.mxu0 %v2500
    %2774 = vmatmul.mubr.bf16.gmra.mxu0 %v2499
    %v2775 = vpop.f32.mrf.mxu0
    %v2776 = vadd.f32 %v2656, %v2775
    %v2777 = vpop.f32.mrf.mxu0
    %v2778 = vpop.f32.mrf.mxu0
    %v2779 = vadd.f32 %v2659, %v2778
    %v2780 = vpop.f32.mrf.mxu0
    %2781 = vmatprep.mubr.bf16.mxu0 %v2504
    %2782 = vmatmul.mubr.bf16.gmra.mxu0 %v2503
    %v2783 = vpop.f32.mrf.mxu0
    %v2784 = vadd.f32 %v2664, %v2783
    %v2785 = vpop.f32.mrf.mxu0
    %v2786 = vpop.f32.mrf.mxu0
    %v2787 = vpop.f32.mrf.mxu0
    %2788 = vdwg.mxu0
    %v2789 = vpack.c.bf16 %v2707, %v2704
    %v2790 = vpack.c.bf16 %v2715, %v2712
    %v2791 = vpack.c.bf16 %v2723, %v2720
    %v2792 = vpack.c.bf16 %v2731, %v2728
    %v2793 = vpack.c.bf16 %v2739, %v2736
    %v2794 = vpack.c.bf16 %v2747, %v2744
    %v2795 = vpack.c.bf16 %v2755, %v2752
    %v2796 = vpack.c.bf16 %v2763, %v2760
    %v2797 = vpack.c.bf16 %v2771, %v2768
    %v2798 = vpack.c.bf16 %v2779, %v2776
    %v2799 = vpack.c.bf16 %v2784, %v2784
    %s2800 = scalar_lea.vmem [#allocation6], 672
    %v2801 = vld [vmem:[%s2800] sm:$0xff]
    %v2802 = vld [vmem:[%s2800 + $0x8] sm:$0xff]
    %v2803 = vld [vmem:[%s2800 + $0x10] sm:$0xff]
    %v2804 = vld [vmem:[%s2800 + $0x18] sm:$0xff]
    %v2805 = vld [vmem:[%s2800 + $0x20] sm:$0xff]
    %v2806 = vld [vmem:[%s2800 + $0x28] sm:$0xff]
    %v2807 = vld [vmem:[%s2800 + $0x30] sm:$0xff]
    %v2808 = vld [vmem:[%s2800 + $0x38] sm:$0xff]
    %v2809 = vld [vmem:[%s2800 + $0x40] sm:$0xff]
    %v2810 = vld [vmem:[%s2800 + $0x48] sm:$0xff]
    %v2811 = vld [vmem:[%s2800 + $0x50] sm:$0xff]
    %v2812 = vld [vmem:[%s2800 + $0x58] sm:$0xff]
    %v2813 = vld [vmem:[%s2800 + $0x60] sm:$0xff]
    %v2814 = vld [vmem:[%s2800 + $0x68] sm:$0xff]
    %v2815 = vld [vmem:[%s2800 + $0x70] sm:$0xff]
    %v2816 = vld [vmem:[%s2800 + $0x78] sm:$0xff]
    %v2817 = vld [vmem:[%s2800 + $0x80] sm:$0xff]
    %v2818 = vld [vmem:[%s2800 + $0x88] sm:$0xff]
    %v2819 = vld [vmem:[%s2800 + $0x90] sm:$0xff]
    %v2820 = vld [vmem:[%s2800 + $0x98] sm:$0xff]
    %v2821 = vld [vmem:[%s2800 + $0xa0] sm:$0xff]
    %v2822 = vld [vmem:[%s2800 + $0xa8] sm:$0xff]
    %v2823 = vld [vmem:[%s2800 + $0xb0] sm:$0xff]
    %v2824 = vld [vmem:[%s2800 + $0xb8] sm:$0xff]
    %v2825 = vld [vmem:[%s2800 + $0xc0] sm:$0xff]
    %v2826 = vld [vmem:[%s2800 + $0xc8] sm:$0xff]
    %v2827 = vld [vmem:[%s2800 + $0xd0] sm:$0xff]
    %v2828 = vld [vmem:[%s2800 + $0xd8] sm:$0xff]
    %v2829 = vld [vmem:[%s2800 + $0xe0] sm:$0xff]
    %v2830 = vld [vmem:[%s2800 + $0xe8] sm:$0xff]
    %v2831 = vld [vmem:[%s2800 + $0xf0] sm:$0xff]
    %v2832 = vld [vmem:[%s2800 + $0xf8] sm:$0xff]
    %v2833 = vld [vmem:[%s2800 + $0x100] sm:$0xff]
    %v2834 = vld [vmem:[%s2800 + $0x108] sm:$0xff]
    %v2835 = vld [vmem:[%s2800 + $0x110] sm:$0xff]
    %v2836 = vld [vmem:[%s2800 + $0x118] sm:$0xff]
    %v2837 = vld [vmem:[%s2800 + $0x120] sm:$0xff]
    %v2838 = vld [vmem:[%s2800 + $0x128] sm:$0xff]
    %v2839 = vld [vmem:[%s2800 + $0x130] sm:$0xff]
    %v2840 = vld [vmem:[%s2800 + $0x138] sm:$0xff]
    %v2841 = vld [vmem:[%s2800 + $0x140] sm:$0xff]
    %v2842 = vld [vmem:[%s2800 + $0x148] sm:$0xff]
    %v2885 = vunpack.c.l.b16 %v2801
    %v2886 = vunpack.c.h.b16 %v2801
    %v2887 = vunpack.c.l.b16 %v2802
    %v2888 = vunpack.c.h.b16 %v2802
    %v2889 = vunpack.c.l.b16 %v2803
    %v2890 = vunpack.c.h.b16 %v2803
    %v2891 = vunpack.c.l.b16 %v2804
    %v2892 = vunpack.c.h.b16 %v2804
    %v2893 = vunpack.c.l.b16 %v2805
    %v2894 = vunpack.c.h.b16 %v2805
    %v2895 = vunpack.c.l.b16 %v2806
    %v2896 = vunpack.c.h.b16 %v2806
    %v2897 = vunpack.c.l.b16 %v2807
    %v2898 = vunpack.c.h.b16 %v2807
    %v2899 = vunpack.c.l.b16 %v2808
    %v2900 = vunpack.c.h.b16 %v2808
    %v2901 = vunpack.c.l.b16 %v2809
    %v2902 = vunpack.c.h.b16 %v2809
    %v2903 = vunpack.c.l.b16 %v2810
    %v2904 = vunpack.c.h.b16 %v2810
    %v2905 = vunpack.c.l.b16 %v2811
    %v2906 = vunpack.c.h.b16 %v2811
    %v2907 = vunpack.c.l.b16 %v2812
    %v2908 = vunpack.c.h.b16 %v2812
    %v2909 = vunpack.c.l.b16 %v2813
    %v2910 = vunpack.c.h.b16 %v2813
    %v2911 = vunpack.c.l.b16 %v2814
    %v2912 = vunpack.c.h.b16 %v2814
    %v2913 = vunpack.c.l.b16 %v2815
    %v2914 = vunpack.c.h.b16 %v2815
    %v2915 = vunpack.c.l.b16 %v2816
    %v2916 = vunpack.c.h.b16 %v2816
    %v2917 = vunpack.c.l.b16 %v2817
    %v2918 = vunpack.c.h.b16 %v2817
    %v2919 = vunpack.c.l.b16 %v2818
    %v2920 = vunpack.c.h.b16 %v2818
    %v2921 = vunpack.c.l.b16 %v2819
    %v2922 = vunpack.c.h.b16 %v2819
    %v2923 = vunpack.c.l.b16 %v2820
    %v2924 = vunpack.c.h.b16 %v2820
    %v2925 = vunpack.c.l.b16 %v2821
    %v2926 = vunpack.c.h.b16 %v2821
    %v2927 = vunpack.c.l.b16 %v2822
    %v2928 = vunpack.c.h.b16 %v2822
    %v2929 = vunpack.c.l.b16 %v2823
    %v2930 = vunpack.c.h.b16 %v2823
    %v2931 = vunpack.c.l.b16 %v2824
    %v2932 = vunpack.c.h.b16 %v2824
    %v2933 = vunpack.c.l.b16 %v2825
    %v2934 = vunpack.c.h.b16 %v2825
    %v2935 = vunpack.c.l.b16 %v2826
    %v2936 = vunpack.c.h.b16 %v2826
    %v2937 = vunpack.c.l.b16 %v2827
    %v2938 = vunpack.c.h.b16 %v2827
    %v2939 = vunpack.c.l.b16 %v2828
    %v2940 = vunpack.c.h.b16 %v2828
    %v2941 = vunpack.c.l.b16 %v2829
    %v2942 = vunpack.c.h.b16 %v2829
    %v2943 = vunpack.c.l.b16 %v2830
    %v2944 = vunpack.c.h.b16 %v2830
    %v2945 = vunpack.c.l.b16 %v2831
    %v2946 = vunpack.c.h.b16 %v2831
    %v2947 = vunpack.c.l.b16 %v2832
    %v2948 = vunpack.c.h.b16 %v2832
    %v2949 = vunpack.c.l.b16 %v2833
    %v2950 = vunpack.c.h.b16 %v2833
    %v2951 = vunpack.c.l.b16 %v2834
    %v2952 = vunpack.c.h.b16 %v2834
    %v2953 = vunpack.c.l.b16 %v2835
    %v2954 = vunpack.c.h.b16 %v2835
    %v2955 = vunpack.c.l.b16 %v2836
    %v2956 = vunpack.c.h.b16 %v2836
    %v2957 = vunpack.c.l.b16 %v2837
    %v2958 = vunpack.c.h.b16 %v2837
    %v2959 = vunpack.c.l.b16 %v2838
    %v2960 = vunpack.c.h.b16 %v2838
    %v2961 = vunpack.c.l.b16 %v2839
    %v2962 = vunpack.c.h.b16 %v2839
    %v2963 = vunpack.c.l.b16 %v2840
    %v2964 = vunpack.c.h.b16 %v2840
    %v2965 = vunpack.c.l.b16 %v2841
    %v2966 = vunpack.c.h.b16 %v2841
    %v2967 = vunpack.c.l.b16 %v2842
    %v2968 = vunpack.c.h.b16 %v2842
    %v2969 = vpack.c.b16 %v2889, %v2885
    %v2970 = vpack.c.b16 %v2890, %v2886
    %v2971 = vpack.c.b16 %v2891, %v2887
    %v2972 = vpack.c.b16 %v2892, %v2888
    %v2973 = vpack.c.b16 %v2897, %v2893
    %v2974 = vpack.c.b16 %v2898, %v2894
    %v2975 = vpack.c.b16 %v2899, %v2895
    %v2976 = vpack.c.b16 %v2900, %v2896
    %v2977 = vpack.c.b16 %v2905, %v2901
    %v2978 = vpack.c.b16 %v2906, %v2902
    %v2979 = vpack.c.b16 %v2907, %v2903
    %v2980 = vpack.c.b16 %v2908, %v2904
    %v2981 = vpack.c.b16 %v2913, %v2909
    %v2982 = vpack.c.b16 %v2914, %v2910
    %v2983 = vpack.c.b16 %v2915, %v2911
    %v2984 = vpack.c.b16 %v2916, %v2912
    %v2985 = vpack.c.b16 %v2921, %v2917
    %v2986 = vpack.c.b16 %v2922, %v2918
    %v2987 = vpack.c.b16 %v2923, %v2919
    %v2988 = vpack.c.b16 %v2924, %v2920
    %v2989 = vpack.c.b16 %v2929, %v2925
    %v2990 = vpack.c.b16 %v2930, %v2926
    %v2991 = vpack.c.b16 %v2931, %v2927
    %v2992 = vpack.c.b16 %v2932, %v2928
    %v2993 = vpack.c.b16 %v2937, %v2933
    %v2994 = vpack.c.b16 %v2938, %v2934
    %v2995 = vpack.c.b16 %v2939, %v2935
    %v2996 = vpack.c.b16 %v2940, %v2936
    %v2997 = vpack.c.b16 %v2945, %v2941
    %v2998 = vpack.c.b16 %v2946, %v2942
    %v2999 = vpack.c.b16 %v2947, %v2943
    %v3000 = vpack.c.b16 %v2948, %v2944
    %v3001 = vpack.c.b16 %v2953, %v2949
    %v3002 = vpack.c.b16 %v2954, %v2950
    %v3003 = vpack.c.b16 %v2955, %v2951
    %v3004 = vpack.c.b16 %v2956, %v2952
    %v3005 = vpack.c.b16 %v2961, %v2957
    %v3006 = vpack.c.b16 %v2962, %v2958
    %v3007 = vpack.c.b16 %v2963, %v2959
    %v3008 = vpack.c.b16 %v2964, %v2960
    %v3009 = vpack.c.b16 %v2965, %v2965
    %v3010 = vpack.c.b16 %v2966, %v2966
    %v3011 = vpack.c.b16 %v2967, %v2967
    %v3012 = vpack.c.b16 %v2968, %v2968
    %3057 = vmatprep.subr.bf16.mxu0 0
    %3058 = vmatpush1.bf16.msra.mxu0 %v1739
    %3059 = vmatprep.subr.bf16.mxu0 0
    %3060 = vmatpush1.bf16.msra.mxu0 %v1738
    %3061 = vmatprep.subr.bf16.mxu0 0
    %3062 = vmatpush1.bf16.msra.mxu0 %v1737
    %3063 = vmatprep.subr.bf16.mxu0 0
    %3064 = vmatpush1.bf16.msra.mxu0 %v1736
    %3065 = vmatprep.subr.bf16.mxu0 0
    %3066 = vmatpush1.bf16.msra.mxu0 %v1735
    %3067 = vmatprep.subr.bf16.mxu0 0
    %3068 = vmatpush1.bf16.msra.mxu0 %v1734
    %3069 = vmatprep.subr.bf16.mxu0 0
    %3070 = vmatpush1.bf16.msra.mxu0 %v1733
    %3071 = vmatprep.subr.bf16.mxu0 0
    %3072 = vmatpush1.bf16.msra.mxu0 %v1732
    %3073 = vmatprep.subr.bf16.mxu0 0
    %3074 = vmatpush2.bf16.msra.mxu0 %v1747
    %3075 = vmatprep.subr.bf16.mxu0 0
    %3076 = vmatpush2.bf16.msra.mxu0 %v1746
    %3077 = vmatprep.subr.bf16.mxu0 0
    %3078 = vmatpush2.bf16.msra.mxu0 %v1745
    %3079 = vmatprep.subr.bf16.mxu0 0
    %3080 = vmatpush2.bf16.msra.mxu0 %v1744
    %3081 = vmatprep.subr.bf16.mxu0 0
    %3082 = vmatpush2.bf16.msra.mxu0 %v1743
    %3083 = vmatprep.subr.bf16.mxu0 0
    %3084 = vmatpush2.bf16.msra.mxu0 %v1742
    %3085 = vmatprep.subr.bf16.mxu0 0
    %3086 = vmatpush2.bf16.msra.mxu0 %v1741
    %3087 = vmatprep.subr.bf16.mxu0 0
    %3088 = vmatpush2.bf16.msra.mxu0 %v1740
    %3089 = vmatprep.mubr.bf16.mxu0 %v2970
    %3090 = vmatmul.mubr.bf16.gmra.mxu0 %v2969
    %v3091 = vpop.f32.mrf.mxu0
    %v3092 = vadd.f32 0.0, %v3091
    %v3093 = vpop.f32.mrf.mxu0
    %v3094 = vpop.f32.mrf.mxu0
    %v3095 = vadd.f32 0.0, %v3094
    %v3096 = vpop.f32.mrf.mxu0
    %3097 = vmatprep.mubr.bf16.mxu0 %v2974
    %3098 = vmatmul.mubr.bf16.gmra.mxu0 %v2973
    %v3099 = vpop.f32.mrf.mxu0
    %v3100 = vadd.f32 0.0, %v3099
    %v3101 = vpop.f32.mrf.mxu0
    %v3102 = vpop.f32.mrf.mxu0
    %v3103 = vadd.f32 0.0, %v3102
    %v3104 = vpop.f32.mrf.mxu0
    %3105 = vmatprep.mubr.bf16.mxu0 %v2978
    %3106 = vmatmul.mubr.bf16.gmra.mxu0 %v2977
    %v3107 = vpop.f32.mrf.mxu0
    %v3108 = vadd.f32 0.0, %v3107
    %v3109 = vpop.f32.mrf.mxu0
    %v3110 = vpop.f32.mrf.mxu0
    %v3111 = vadd.f32 0.0, %v3110
    %v3112 = vpop.f32.mrf.mxu0
    %3113 = vmatprep.mubr.bf16.mxu0 %v2982
    %3114 = vmatmul.mubr.bf16.gmra.mxu0 %v2981
    %v3115 = vpop.f32.mrf.mxu0
    %v3116 = vadd.f32 0.0, %v3115
    %v3117 = vpop.f32.mrf.mxu0
    %v3118 = vpop.f32.mrf.mxu0
    %v3119 = vadd.f32 0.0, %v3118
    %v3120 = vpop.f32.mrf.mxu0
    %3121 = vmatprep.mubr.bf16.mxu0 %v2986
    %3122 = vmatmul.mubr.bf16.gmra.mxu0 %v2985
    %v3123 = vpop.f32.mrf.mxu0
    %v3124 = vadd.f32 0.0, %v3123
    %v3125 = vpop.f32.mrf.mxu0
    %v3126 = vpop.f32.mrf.mxu0
    %v3127 = vadd.f32 0.0, %v3126
    %v3128 = vpop.f32.mrf.mxu0
    %3129 = vmatprep.mubr.bf16.mxu0 %v2990
    %3130 = vmatmul.mubr.bf16.gmra.mxu0 %v2989
    %v3131 = vpop.f32.mrf.mxu0
    %v3132 = vadd.f32 0.0, %v3131
    %v3133 = vpop.f32.mrf.mxu0
    %v3134 = vpop.f32.mrf.mxu0
    %v3135 = vadd.f32 0.0, %v3134
    %v3136 = vpop.f32.mrf.mxu0
    %3137 = vmatprep.mubr.bf16.mxu0 %v2994
    %3138 = vmatmul.mubr.bf16.gmra.mxu0 %v2993
    %v3139 = vpop.f32.mrf.mxu0
    %v3140 = vadd.f32 0.0, %v3139
    %v3141 = vpop.f32.mrf.mxu0
    %v3142 = vpop.f32.mrf.mxu0
    %v3143 = vadd.f32 0.0, %v3142
    %v3144 = vpop.f32.mrf.mxu0
    %3145 = vmatprep.mubr.bf16.mxu0 %v2998
    %3146 = vmatmul.mubr.bf16.gmra.mxu0 %v2997
    %v3147 = vpop.f32.mrf.mxu0
    %v3148 = vadd.f32 0.0, %v3147
    %v3149 = vpop.f32.mrf.mxu0
    %v3150 = vpop.f32.mrf.mxu0
    %v3151 = vadd.f32 0.0, %v3150
    %v3152 = vpop.f32.mrf.mxu0
    %3153 = vmatprep.mubr.bf16.mxu0 %v3002
    %3154 = vmatmul.mubr.bf16.gmra.mxu0 %v3001
    %v3155 = vpop.f32.mrf.mxu0
    %v3156 = vadd.f32 0.0, %v3155
    %v3157 = vpop.f32.mrf.mxu0
    %v3158 = vpop.f32.mrf.mxu0
    %v3159 = vadd.f32 0.0, %v3158
    %v3160 = vpop.f32.mrf.mxu0
    %3161 = vmatprep.mubr.bf16.mxu0 %v3006
    %3162 = vmatmul.mubr.bf16.gmra.mxu0 %v3005
    %v3163 = vpop.f32.mrf.mxu0
    %v3164 = vadd.f32 0.0, %v3163
    %v3165 = vpop.f32.mrf.mxu0
    %v3166 = vpop.f32.mrf.mxu0
    %v3167 = vadd.f32 0.0, %v3166
    %v3168 = vpop.f32.mrf.mxu0
    %3169 = vmatprep.mubr.bf16.mxu0 %v3010
    %3170 = vmatmul.mubr.bf16.gmra.mxu0 %v3009
    %v3171 = vpop.f32.mrf.mxu0
    %v3172 = vadd.f32 0.0, %v3171
    %v3173 = vpop.f32.mrf.mxu0
    %v3174 = vpop.f32.mrf.mxu0
    %v3175 = vpop.f32.mrf.mxu0
    %3176 = vdwg.mxu0
    %3177 = vmatprep.subr.bf16.mxu0 0
    %3178 = vmatpush1.bf16.msra.mxu0 %v1755
    %3179 = vmatprep.subr.bf16.mxu0 0
    %3180 = vmatpush1.bf16.msra.mxu0 %v1754
    %3181 = vmatprep.subr.bf16.mxu0 0
    %3182 = vmatpush1.bf16.msra.mxu0 %v1753
    %3183 = vmatprep.subr.bf16.mxu0 0
    %3184 = vmatpush1.bf16.msra.mxu0 %v1752
    %3185 = vmatprep.subr.bf16.mxu0 0
    %3186 = vmatpush1.bf16.msra.mxu0 %v1751
    %3187 = vmatprep.subr.bf16.mxu0 0
    %3188 = vmatpush1.bf16.msra.mxu0 %v1750
    %3189 = vmatprep.subr.bf16.mxu0 0
    %3190 = vmatpush1.bf16.msra.mxu0 %v1749
    %3191 = vmatprep.subr.bf16.mxu0 0
    %3192 = vmatpush1.bf16.msra.mxu0 %v1748
    %3193 = vmatprep.subr.bf16.mxu0 0
    %3194 = vmatpush2.bf16.msra.mxu0 %v1763
    %3195 = vmatprep.subr.bf16.mxu0 0
    %3196 = vmatpush2.bf16.msra.mxu0 %v1762
    %3197 = vmatprep.subr.bf16.mxu0 0
    %3198 = vmatpush2.bf16.msra.mxu0 %v1761
    %3199 = vmatprep.subr.bf16.mxu0 0
    %3200 = vmatpush2.bf16.msra.mxu0 %v1760
    %3201 = vmatprep.subr.bf16.mxu0 0
    %3202 = vmatpush2.bf16.msra.mxu0 %v1759
    %3203 = vmatprep.subr.bf16.mxu0 0
    %3204 = vmatpush2.bf16.msra.mxu0 %v1758
    %3205 = vmatprep.subr.bf16.mxu0 0
    %3206 = vmatpush2.bf16.msra.mxu0 %v1757
    %3207 = vmatprep.subr.bf16.mxu0 0
    %3208 = vmatpush2.bf16.msra.mxu0 %v1756
    %3209 = vmatprep.mubr.bf16.mxu0 %v2972
    %3210 = vmatmul.mubr.bf16.gmra.mxu0 %v2971
    %v3211 = vpop.f32.mrf.mxu0
    %v3212 = vadd.f32 %v3092, %v3211
    %v3213 = vpop.f32.mrf.mxu0
    %v3214 = vpop.f32.mrf.mxu0
    %v3215 = vadd.f32 %v3095, %v3214
    %v3216 = vpop.f32.mrf.mxu0
    %3217 = vmatprep.mubr.bf16.mxu0 %v2976
    %3218 = vmatmul.mubr.bf16.gmra.mxu0 %v2975
    %v3219 = vpop.f32.mrf.mxu0
    %v3220 = vadd.f32 %v3100, %v3219
    %v3221 = vpop.f32.mrf.mxu0
    %v3222 = vpop.f32.mrf.mxu0
    %v3223 = vadd.f32 %v3103, %v3222
    %v3224 = vpop.f32.mrf.mxu0
    %3225 = vmatprep.mubr.bf16.mxu0 %v2980
    %3226 = vmatmul.mubr.bf16.gmra.mxu0 %v2979
    %v3227 = vpop.f32.mrf.mxu0
    %v3228 = vadd.f32 %v3108, %v3227
    %v3229 = vpop.f32.mrf.mxu0
    %v3230 = vpop.f32.mrf.mxu0
    %v3231 = vadd.f32 %v3111, %v3230
    %v3232 = vpop.f32.mrf.mxu0
    %3233 = vmatprep.mubr.bf16.mxu0 %v2984
    %3234 = vmatmul.mubr.bf16.gmra.mxu0 %v2983
    %v3235 = vpop.f32.mrf.mxu0
    %v3236 = vadd.f32 %v3116, %v3235
    %v3237 = vpop.f32.mrf.mxu0
    %v3238 = vpop.f32.mrf.mxu0
    %v3239 = vadd.f32 %v3119, %v3238
    %v3240 = vpop.f32.mrf.mxu0
    %3241 = vmatprep.mubr.bf16.mxu0 %v2988
    %3242 = vmatmul.mubr.bf16.gmra.mxu0 %v2987
    %v3243 = vpop.f32.mrf.mxu0
    %v3244 = vadd.f32 %v3124, %v3243
    %v3245 = vpop.f32.mrf.mxu0
    %v3246 = vpop.f32.mrf.mxu0
    %v3247 = vadd.f32 %v3127, %v3246
    %v3248 = vpop.f32.mrf.mxu0
    %3249 = vmatprep.mubr.bf16.mxu0 %v2992
    %3250 = vmatmul.mubr.bf16.gmra.mxu0 %v2991
    %v3251 = vpop.f32.mrf.mxu0
    %v3252 = vadd.f32 %v3132, %v3251
    %v3253 = vpop.f32.mrf.mxu0
    %v3254 = vpop.f32.mrf.mxu0
    %v3255 = vadd.f32 %v3135, %v3254
    %v3256 = vpop.f32.mrf.mxu0
    %3257 = vmatprep.mubr.bf16.mxu0 %v2996
    %3258 = vmatmul.mubr.bf16.gmra.mxu0 %v2995
    %v3259 = vpop.f32.mrf.mxu0
    %v3260 = vadd.f32 %v3140, %v3259
    %v3261 = vpop.f32.mrf.mxu0
    %v3262 = vpop.f32.mrf.mxu0
    %v3263 = vadd.f32 %v3143, %v3262
    %v3264 = vpop.f32.mrf.mxu0
    %3265 = vmatprep.mubr.bf16.mxu0 %v3000
    %3266 = vmatmul.mubr.bf16.gmra.mxu0 %v2999
    %v3267 = vpop.f32.mrf.mxu0
    %v3268 = vadd.f32 %v3148, %v3267
    %v3269 = vpop.f32.mrf.mxu0
    %v3270 = vpop.f32.mrf.mxu0
    %v3271 = vadd.f32 %v3151, %v3270
    %v3272 = vpop.f32.mrf.mxu0
    %3273 = vmatprep.mubr.bf16.mxu0 %v3004
    %3274 = vmatmul.mubr.bf16.gmra.mxu0 %v3003
    %v3275 = vpop.f32.mrf.mxu0
    %v3276 = vadd.f32 %v3156, %v3275
    %v3277 = vpop.f32.mrf.mxu0
    %v3278 = vpop.f32.mrf.mxu0
    %v3279 = vadd.f32 %v3159, %v3278
    %v3280 = vpop.f32.mrf.mxu0
    %3281 = vmatprep.mubr.bf16.mxu0 %v3008
    %3282 = vmatmul.mubr.bf16.gmra.mxu0 %v3007
    %v3283 = vpop.f32.mrf.mxu0
    %v3284 = vadd.f32 %v3164, %v3283
    %v3285 = vpop.f32.mrf.mxu0
    %v3286 = vpop.f32.mrf.mxu0
    %v3287 = vadd.f32 %v3167, %v3286
    %v3288 = vpop.f32.mrf.mxu0
    %3289 = vmatprep.mubr.bf16.mxu0 %v3012
    %3290 = vmatmul.mubr.bf16.gmra.mxu0 %v3011
    %v3291 = vpop.f32.mrf.mxu0
    %v3292 = vadd.f32 %v3172, %v3291
    %v3293 = vpop.f32.mrf.mxu0
    %v3294 = vpop.f32.mrf.mxu0
    %v3295 = vpop.f32.mrf.mxu0
    %3296 = vdwg.mxu0
    %v3297 = vpack.c.bf16 %v3215, %v3212
    %v3298 = vpack.c.bf16 %v3223, %v3220
    %v3299 = vpack.c.bf16 %v3231, %v3228
    %v3300 = vpack.c.bf16 %v3239, %v3236
    %v3301 = vpack.c.bf16 %v3247, %v3244
    %v3302 = vpack.c.bf16 %v3255, %v3252
    %v3303 = vpack.c.bf16 %v3263, %v3260
    %v3304 = vpack.c.bf16 %v3271, %v3268
    %v3305 = vpack.c.bf16 %v3279, %v3276
    %v3306 = vpack.c.bf16 %v3287, %v3284
    %v3307 = vpack.c.bf16 %v3292, %v3292
    %s3308 = scalar_lea.vmem [#allocation6], 1008
    %v3309 = vld [vmem:[%s3308] sm:$0xff]
    %v3310 = vld [vmem:[%s3308 + $0x8] sm:$0xff]
    %v3311 = vld [vmem:[%s3308 + $0x10] sm:$0xff]
    %v3312 = vld [vmem:[%s3308 + $0x18] sm:$0xff]
    %v3313 = vld [vmem:[%s3308 + $0x20] sm:$0xff]
    %v3314 = vld [vmem:[%s3308 + $0x28] sm:$0xff]
    %v3315 = vld [vmem:[%s3308 + $0x30] sm:$0xff]
    %v3316 = vld [vmem:[%s3308 + $0x38] sm:$0xff]
    %v3317 = vld [vmem:[%s3308 + $0x40] sm:$0xff]
    %v3318 = vld [vmem:[%s3308 + $0x48] sm:$0xff]
    %v3319 = vld [vmem:[%s3308 + $0x50] sm:$0xff]
    %v3320 = vld [vmem:[%s3308 + $0x58] sm:$0xff]
    %v3321 = vld [vmem:[%s3308 + $0x60] sm:$0xff]
    %v3322 = vld [vmem:[%s3308 + $0x68] sm:$0xff]
    %v3323 = vld [vmem:[%s3308 + $0x70] sm:$0xff]
    %v3324 = vld [vmem:[%s3308 + $0x78] sm:$0xff]
    %v3325 = vld [vmem:[%s3308 + $0x80] sm:$0xff]
    %v3326 = vld [vmem:[%s3308 + $0x88] sm:$0xff]
    %v3327 = vld [vmem:[%s3308 + $0x90] sm:$0xff]
    %v3328 = vld [vmem:[%s3308 + $0x98] sm:$0xff]
    %v3329 = vld [vmem:[%s3308 + $0xa0] sm:$0xff]
    %v3330 = vld [vmem:[%s3308 + $0xa8] sm:$0xff]
    %v3331 = vld [vmem:[%s3308 + $0xb0] sm:$0xff]
    %v3332 = vld [vmem:[%s3308 + $0xb8] sm:$0xff]
    %v3333 = vld [vmem:[%s3308 + $0xc0] sm:$0xff]
    %v3334 = vld [vmem:[%s3308 + $0xc8] sm:$0xff]
    %v3335 = vld [vmem:[%s3308 + $0xd0] sm:$0xff]
    %v3336 = vld [vmem:[%s3308 + $0xd8] sm:$0xff]
    %v3337 = vld [vmem:[%s3308 + $0xe0] sm:$0xff]
    %v3338 = vld [vmem:[%s3308 + $0xe8] sm:$0xff]
    %v3339 = vld [vmem:[%s3308 + $0xf0] sm:$0xff]
    %v3340 = vld [vmem:[%s3308 + $0xf8] sm:$0xff]
    %v3341 = vld [vmem:[%s3308 + $0x100] sm:$0xff]
    %v3342 = vld [vmem:[%s3308 + $0x108] sm:$0xff]
    %v3343 = vld [vmem:[%s3308 + $0x110] sm:$0xff]
    %v3344 = vld [vmem:[%s3308 + $0x118] sm:$0xff]
    %v3345 = vld [vmem:[%s3308 + $0x120] sm:$0xff]
    %v3346 = vld [vmem:[%s3308 + $0x128] sm:$0xff]
    %v3347 = vld [vmem:[%s3308 + $0x130] sm:$0xff]
    %v3348 = vld [vmem:[%s3308 + $0x138] sm:$0xff]
    %v3349 = vld [vmem:[%s3308 + $0x140] sm:$0xff]
    %v3350 = vld [vmem:[%s3308 + $0x148] sm:$0xff]
    %v3393 = vunpack.c.l.b16 %v3309
    %v3394 = vunpack.c.h.b16 %v3309
    %v3395 = vunpack.c.l.b16 %v3310
    %v3396 = vunpack.c.h.b16 %v3310
    %v3397 = vunpack.c.l.b16 %v3311
    %v3398 = vunpack.c.h.b16 %v3311
    %v3399 = vunpack.c.l.b16 %v3312
    %v3400 = vunpack.c.h.b16 %v3312
    %v3401 = vunpack.c.l.b16 %v3313
    %v3402 = vunpack.c.h.b16 %v3313
    %v3403 = vunpack.c.l.b16 %v3314
    %v3404 = vunpack.c.h.b16 %v3314
    %v3405 = vunpack.c.l.b16 %v3315
    %v3406 = vunpack.c.h.b16 %v3315
    %v3407 = vunpack.c.l.b16 %v3316
    %v3408 = vunpack.c.h.b16 %v3316
    %v3409 = vunpack.c.l.b16 %v3317
    %v3410 = vunpack.c.h.b16 %v3317
    %v3411 = vunpack.c.l.b16 %v3318
    %v3412 = vunpack.c.h.b16 %v3318
    %v3413 = vunpack.c.l.b16 %v3319
    %v3414 = vunpack.c.h.b16 %v3319
    %v3415 = vunpack.c.l.b16 %v3320
    %v3416 = vunpack.c.h.b16 %v3320
    %v3417 = vunpack.c.l.b16 %v3321
    %v3418 = vunpack.c.h.b16 %v3321
    %v3419 = vunpack.c.l.b16 %v3322
    %v3420 = vunpack.c.h.b16 %v3322
    %v3421 = vunpack.c.l.b16 %v3323
    %v3422 = vunpack.c.h.b16 %v3323
    %v3423 = vunpack.c.l.b16 %v3324
    %v3424 = vunpack.c.h.b16 %v3324
    %v3425 = vunpack.c.l.b16 %v3325
    %v3426 = vunpack.c.h.b16 %v3325
    %v3427 = vunpack.c.l.b16 %v3326
    %v3428 = vunpack.c.h.b16 %v3326
    %v3429 = vunpack.c.l.b16 %v3327
    %v3430 = vunpack.c.h.b16 %v3327
    %v3431 = vunpack.c.l.b16 %v3328
    %v3432 = vunpack.c.h.b16 %v3328
    %v3433 = vunpack.c.l.b16 %v3329
    %v3434 = vunpack.c.h.b16 %v3329
    %v3435 = vunpack.c.l.b16 %v3330
    %v3436 = vunpack.c.h.b16 %v3330
    %v3437 = vunpack.c.l.b16 %v3331
    %v3438 = vunpack.c.h.b16 %v3331
    %v3439 = vunpack.c.l.b16 %v3332
    %v3440 = vunpack.c.h.b16 %v3332
    %v3441 = vunpack.c.l.b16 %v3333
    %v3442 = vunpack.c.h.b16 %v3333
    %v3443 = vunpack.c.l.b16 %v3334
    %v3444 = vunpack.c.h.b16 %v3334
    %v3445 = vunpack.c.l.b16 %v3335
    %v3446 = vunpack.c.h.b16 %v3335
    %v3447 = vunpack.c.l.b16 %v3336
    %v3448 = vunpack.c.h.b16 %v3336
    %v3449 = vunpack.c.l.b16 %v3337
    %v3450 = vunpack.c.h.b16 %v3337
    %v3451 = vunpack.c.l.b16 %v3338
    %v3452 = vunpack.c.h.b16 %v3338
    %v3453 = vunpack.c.l.b16 %v3339
    %v3454 = vunpack.c.h.b16 %v3339
    %v3455 = vunpack.c.l.b16 %v3340
    %v3456 = vunpack.c.h.b16 %v3340
    %v3457 = vunpack.c.l.b16 %v3341
    %v3458 = vunpack.c.h.b16 %v3341
    %v3459 = vunpack.c.l.b16 %v3342
    %v3460 = vunpack.c.h.b16 %v3342
    %v3461 = vunpack.c.l.b16 %v3343
    %v3462 = vunpack.c.h.b16 %v3343
    %v3463 = vunpack.c.l.b16 %v3344
    %v3464 = vunpack.c.h.b16 %v3344
    %v3465 = vunpack.c.l.b16 %v3345
    %v3466 = vunpack.c.h.b16 %v3345
    %v3467 = vunpack.c.l.b16 %v3346
    %v3468 = vunpack.c.h.b16 %v3346
    %v3469 = vunpack.c.l.b16 %v3347
    %v3470 = vunpack.c.h.b16 %v3347
    %v3471 = vunpack.c.l.b16 %v3348
    %v3472 = vunpack.c.h.b16 %v3348
    %v3473 = vunpack.c.l.b16 %v3349
    %v3474 = vunpack.c.h.b16 %v3349
    %v3475 = vunpack.c.l.b16 %v3350
    %v3476 = vunpack.c.h.b16 %v3350
    %v3477 = vpack.c.b16 %v3397, %v3393
    %v3478 = vpack.c.b16 %v3398, %v3394
    %v3479 = vpack.c.b16 %v3399, %v3395
    %v3480 = vpack.c.b16 %v3400, %v3396
    %v3481 = vpack.c.b16 %v3405, %v3401
    %v3482 = vpack.c.b16 %v3406, %v3402
    %v3483 = vpack.c.b16 %v3407, %v3403
    %v3484 = vpack.c.b16 %v3408, %v3404
    %v3485 = vpack.c.b16 %v3413, %v3409
    %v3486 = vpack.c.b16 %v3414, %v3410
    %v3487 = vpack.c.b16 %v3415, %v3411
    %v3488 = vpack.c.b16 %v3416, %v3412
    %v3489 = vpack.c.b16 %v3421, %v3417
    %v3490 = vpack.c.b16 %v3422, %v3418
    %v3491 = vpack.c.b16 %v3423, %v3419
    %v3492 = vpack.c.b16 %v3424, %v3420
    %v3493 = vpack.c.b16 %v3429, %v3425
    %v3494 = vpack.c.b16 %v3430, %v3426
    %v3495 = vpack.c.b16 %v3431, %v3427
    %v3496 = vpack.c.b16 %v3432, %v3428
    %v3497 = vpack.c.b16 %v3437, %v3433
    %v3498 = vpack.c.b16 %v3438, %v3434
    %v3499 = vpack.c.b16 %v3439, %v3435
    %v3500 = vpack.c.b16 %v3440, %v3436
    %v3501 = vpack.c.b16 %v3445, %v3441
    %v3502 = vpack.c.b16 %v3446, %v3442
    %v3503 = vpack.c.b16 %v3447, %v3443
    %v3504 = vpack.c.b16 %v3448, %v3444
    %v3505 = vpack.c.b16 %v3453, %v3449
    %v3506 = vpack.c.b16 %v3454, %v3450
    %v3507 = vpack.c.b16 %v3455, %v3451
    %v3508 = vpack.c.b16 %v3456, %v3452
    %v3509 = vpack.c.b16 %v3461, %v3457
    %v3510 = vpack.c.b16 %v3462, %v3458
    %v3511 = vpack.c.b16 %v3463, %v3459
    %v3512 = vpack.c.b16 %v3464, %v3460
    %v3513 = vpack.c.b16 %v3469, %v3465
    %v3514 = vpack.c.b16 %v3470, %v3466
    %v3515 = vpack.c.b16 %v3471, %v3467
    %v3516 = vpack.c.b16 %v3472, %v3468
    %v3517 = vpack.c.b16 %v3473, %v3473
    %v3518 = vpack.c.b16 %v3474, %v3474
    %v3519 = vpack.c.b16 %v3475, %v3475
    %v3520 = vpack.c.b16 %v3476, %v3476
    %3565 = vmatprep.subr.bf16.mxu0 0
    %3566 = vmatpush1.bf16.msra.mxu0 %v1739
    %3567 = vmatprep.subr.bf16.mxu0 0
    %3568 = vmatpush1.bf16.msra.mxu0 %v1738
    %3569 = vmatprep.subr.bf16.mxu0 0
    %3570 = vmatpush1.bf16.msra.mxu0 %v1737
    %3571 = vmatprep.subr.bf16.mxu0 0
    %3572 = vmatpush1.bf16.msra.mxu0 %v1736
    %3573 = vmatprep.subr.bf16.mxu0 0
    %3574 = vmatpush1.bf16.msra.mxu0 %v1735
    %3575 = vmatprep.subr.bf16.mxu0 0
    %3576 = vmatpush1.bf16.msra.mxu0 %v1734
    %3577 = vmatprep.subr.bf16.mxu0 0
    %3578 = vmatpush1.bf16.msra.mxu0 %v1733
    %3579 = vmatprep.subr.bf16.mxu0 0
    %3580 = vmatpush1.bf16.msra.mxu0 %v1732
    %3581 = vmatprep.subr.bf16.mxu0 0
    %3582 = vmatpush2.bf16.msra.mxu0 %v1747
    %3583 = vmatprep.subr.bf16.mxu0 0
    %3584 = vmatpush2.bf16.msra.mxu0 %v1746
    %3585 = vmatprep.subr.bf16.mxu0 0
    %3586 = vmatpush2.bf16.msra.mxu0 %v1745
    %3587 = vmatprep.subr.bf16.mxu0 0
    %3588 = vmatpush2.bf16.msra.mxu0 %v1744
    %3589 = vmatprep.subr.bf16.mxu0 0
    %3590 = vmatpush2.bf16.msra.mxu0 %v1743
    %3591 = vmatprep.subr.bf16.mxu0 0
    %3592 = vmatpush2.bf16.msra.mxu0 %v1742
    %3593 = vmatprep.subr.bf16.mxu0 0
    %3594 = vmatpush2.bf16.msra.mxu0 %v1741
    %3595 = vmatprep.subr.bf16.mxu0 0
    %3596 = vmatpush2.bf16.msra.mxu0 %v1740
    %3597 = vmatprep.mubr.bf16.mxu0 %v3478
    %3598 = vmatmul.mubr.bf16.gmra.mxu0 %v3477
    %v3599 = vpop.f32.mrf.mxu0
    %v3600 = vadd.f32 0.0, %v3599
    %v3601 = vpop.f32.mrf.mxu0
    %v3602 = vpop.f32.mrf.mxu0
    %v3603 = vadd.f32 0.0, %v3602
    %v3604 = vpop.f32.mrf.mxu0
    %3605 = vmatprep.mubr.bf16.mxu0 %v3482
    %3606 = vmatmul.mubr.bf16.gmra.mxu0 %v3481
    %v3607 = vpop.f32.mrf.mxu0
    %v3608 = vadd.f32 0.0, %v3607
    %v3609 = vpop.f32.mrf.mxu0
    %v3610 = vpop.f32.mrf.mxu0
    %v3611 = vadd.f32 0.0, %v3610
    %v3612 = vpop.f32.mrf.mxu0
    %3613 = vmatprep.mubr.bf16.mxu0 %v3486
    %3614 = vmatmul.mubr.bf16.gmra.mxu0 %v3485
    %v3615 = vpop.f32.mrf.mxu0
    %v3616 = vadd.f32 0.0, %v3615
    %v3617 = vpop.f32.mrf.mxu0
    %v3618 = vpop.f32.mrf.mxu0
    %v3619 = vadd.f32 0.0, %v3618
    %v3620 = vpop.f32.mrf.mxu0
    %3621 = vmatprep.mubr.bf16.mxu0 %v3490
    %3622 = vmatmul.mubr.bf16.gmra.mxu0 %v3489
    %v3623 = vpop.f32.mrf.mxu0
    %v3624 = vadd.f32 0.0, %v3623
    %v3625 = vpop.f32.mrf.mxu0
    %v3626 = vpop.f32.mrf.mxu0
    %v3627 = vadd.f32 0.0, %v3626
    %v3628 = vpop.f32.mrf.mxu0
    %3629 = vmatprep.mubr.bf16.mxu0 %v3494
    %3630 = vmatmul.mubr.bf16.gmra.mxu0 %v3493
    %v3631 = vpop.f32.mrf.mxu0
    %v3632 = vadd.f32 0.0, %v3631
    %v3633 = vpop.f32.mrf.mxu0
    %v3634 = vpop.f32.mrf.mxu0
    %v3635 = vadd.f32 0.0, %v3634
    %v3636 = vpop.f32.mrf.mxu0
    %3637 = vmatprep.mubr.bf16.mxu0 %v3498
    %3638 = vmatmul.mubr.bf16.gmra.mxu0 %v3497
    %v3639 = vpop.f32.mrf.mxu0
    %v3640 = vadd.f32 0.0, %v3639
    %v3641 = vpop.f32.mrf.mxu0
    %v3642 = vpop.f32.mrf.mxu0
    %v3643 = vadd.f32 0.0, %v3642
    %v3644 = vpop.f32.mrf.mxu0
    %3645 = vmatprep.mubr.bf16.mxu0 %v3502
    %3646 = vmatmul.mubr.bf16.gmra.mxu0 %v3501
    %v3647 = vpop.f32.mrf.mxu0
    %v3648 = vadd.f32 0.0, %v3647
    %v3649 = vpop.f32.mrf.mxu0
    %v3650 = vpop.f32.mrf.mxu0
    %v3651 = vadd.f32 0.0, %v3650
    %v3652 = vpop.f32.mrf.mxu0
    %3653 = vmatprep.mubr.bf16.mxu0 %v3506
    %3654 = vmatmul.mubr.bf16.gmra.mxu0 %v3505
    %v3655 = vpop.f32.mrf.mxu0
    %v3656 = vadd.f32 0.0, %v3655
    %v3657 = vpop.f32.mrf.mxu0
    %v3658 = vpop.f32.mrf.mxu0
    %v3659 = vadd.f32 0.0, %v3658
    %v3660 = vpop.f32.mrf.mxu0
    %3661 = vmatprep.mubr.bf16.mxu0 %v3510
    %3662 = vmatmul.mubr.bf16.gmra.mxu0 %v3509
    %v3663 = vpop.f32.mrf.mxu0
    %v3664 = vadd.f32 0.0, %v3663
    %v3665 = vpop.f32.mrf.mxu0
    %v3666 = vpop.f32.mrf.mxu0
    %v3667 = vadd.f32 0.0, %v3666
    %v3668 = vpop.f32.mrf.mxu0
    %3669 = vmatprep.mubr.bf16.mxu0 %v3514
    %3670 = vmatmul.mubr.bf16.gmra.mxu0 %v3513
    %v3671 = vpop.f32.mrf.mxu0
    %v3672 = vadd.f32 0.0, %v3671
    %v3673 = vpop.f32.mrf.mxu0
    %v3674 = vpop.f32.mrf.mxu0
    %v3675 = vadd.f32 0.0, %v3674
    %v3676 = vpop.f32.mrf.mxu0
    %3677 = vmatprep.mubr.bf16.mxu0 %v3518
    %3678 = vmatmul.mubr.bf16.gmra.mxu0 %v3517
    %v3679 = vpop.f32.mrf.mxu0
    %v3680 = vadd.f32 0.0, %v3679
    %v3681 = vpop.f32.mrf.mxu0
    %v3682 = vpop.f32.mrf.mxu0
    %v3683 = vpop.f32.mrf.mxu0
    %3684 = vdwg.mxu0
    %3685 = vmatprep.subr.bf16.mxu0 0
    %3686 = vmatpush1.bf16.msra.mxu0 %v1755
    %3687 = vmatprep.subr.bf16.mxu0 0
    %3688 = vmatpush1.bf16.msra.mxu0 %v1754
    %3689 = vmatprep.subr.bf16.mxu0 0
    %3690 = vmatpush1.bf16.msra.mxu0 %v1753
    %3691 = vmatprep.subr.bf16.mxu0 0
    %3692 = vmatpush1.bf16.msra.mxu0 %v1752
    %3693 = vmatprep.subr.bf16.mxu0 0
    %3694 = vmatpush1.bf16.msra.mxu0 %v1751
    %3695 = vmatprep.subr.bf16.mxu0 0
    %3696 = vmatpush1.bf16.msra.mxu0 %v1750
    %3697 = vmatprep.subr.bf16.mxu0 0
    %3698 = vmatpush1.bf16.msra.mxu0 %v1749
    %3699 = vmatprep.subr.bf16.mxu0 0
    %3700 = vmatpush1.bf16.msra.mxu0 %v1748
    %3701 = vmatprep.subr.bf16.mxu0 0
    %3702 = vmatpush2.bf16.msra.mxu0 %v1763
    %3703 = vmatprep.subr.bf16.mxu0 0
    %3704 = vmatpush2.bf16.msra.mxu0 %v1762
    %3705 = vmatprep.subr.bf16.mxu0 0
    %3706 = vmatpush2.bf16.msra.mxu0 %v1761
    %3707 = vmatprep.subr.bf16.mxu0 0
    %3708 = vmatpush2.bf16.msra.mxu0 %v1760
    %3709 = vmatprep.subr.bf16.mxu0 0
    %3710 = vmatpush2.bf16.msra.mxu0 %v1759
    %3711 = vmatprep.subr.bf16.mxu0 0
    %3712 = vmatpush2.bf16.msra.mxu0 %v1758
    %3713 = vmatprep.subr.bf16.mxu0 0
    %3714 = vmatpush2.bf16.msra.mxu0 %v1757
    %3715 = vmatprep.subr.bf16.mxu0 0
    %3716 = vmatpush2.bf16.msra.mxu0 %v1756
    %3717 = vmatprep.mubr.bf16.mxu0 %v3480
    %3718 = vmatmul.mubr.bf16.gmra.mxu0 %v3479
    %v3719 = vpop.f32.mrf.mxu0
    %v3720 = vadd.f32 %v3600, %v3719
    %v3721 = vpop.f32.mrf.mxu0
    %v3722 = vpop.f32.mrf.mxu0
    %v3723 = vadd.f32 %v3603, %v3722
    %v3724 = vpop.f32.mrf.mxu0
    %3725 = vmatprep.mubr.bf16.mxu0 %v3484
    %3726 = vmatmul.mubr.bf16.gmra.mxu0 %v3483
    %v3727 = vpop.f32.mrf.mxu0
    %v3728 = vadd.f32 %v3608, %v3727
    %v3729 = vpop.f32.mrf.mxu0
    %v3730 = vpop.f32.mrf.mxu0
    %v3731 = vadd.f32 %v3611, %v3730
    %v3732 = vpop.f32.mrf.mxu0
    %3733 = vmatprep.mubr.bf16.mxu0 %v3488
    %3734 = vmatmul.mubr.bf16.gmra.mxu0 %v3487
    %v3735 = vpop.f32.mrf.mxu0
    %v3736 = vadd.f32 %v3616, %v3735
    %v3737 = vpop.f32.mrf.mxu0
    %v3738 = vpop.f32.mrf.mxu0
    %v3739 = vadd.f32 %v3619, %v3738
    %v3740 = vpop.f32.mrf.mxu0
    %3741 = vmatprep.mubr.bf16.mxu0 %v3492
    %3742 = vmatmul.mubr.bf16.gmra.mxu0 %v3491
    %v3743 = vpop.f32.mrf.mxu0
    %v3744 = vadd.f32 %v3624, %v3743
    %v3745 = vpop.f32.mrf.mxu0
    %v3746 = vpop.f32.mrf.mxu0
    %v3747 = vadd.f32 %v3627, %v3746
    %v3748 = vpop.f32.mrf.mxu0
    %3749 = vmatprep.mubr.bf16.mxu0 %v3496
    %3750 = vmatmul.mubr.bf16.gmra.mxu0 %v3495
    %v3751 = vpop.f32.mrf.mxu0
    %v3752 = vadd.f32 %v3632, %v3751
    %v3753 = vpop.f32.mrf.mxu0
    %v3754 = vpop.f32.mrf.mxu0
    %v3755 = vadd.f32 %v3635, %v3754
    %v3756 = vpop.f32.mrf.mxu0
    %3757 = vmatprep.mubr.bf16.mxu0 %v3500
    %3758 = vmatmul.mubr.bf16.gmra.mxu0 %v3499
    %v3759 = vpop.f32.mrf.mxu0
    %v3760 = vadd.f32 %v3640, %v3759
    %v3761 = vpop.f32.mrf.mxu0
    %v3762 = vpop.f32.mrf.mxu0
    %v3763 = vadd.f32 %v3643, %v3762
    %v3764 = vpop.f32.mrf.mxu0
    %3765 = vmatprep.mubr.bf16.mxu0 %v3504
    %3766 = vmatmul.mubr.bf16.gmra.mxu0 %v3503
    %v3767 = vpop.f32.mrf.mxu0
    %v3768 = vadd.f32 %v3648, %v3767
    %v3769 = vpop.f32.mrf.mxu0
    %v3770 = vpop.f32.mrf.mxu0
    %v3771 = vadd.f32 %v3651, %v3770
    %v3772 = vpop.f32.mrf.mxu0
    %3773 = vmatprep.mubr.bf16.mxu0 %v3508
    %3774 = vmatmul.mubr.bf16.gmra.mxu0 %v3507
    %v3775 = vpop.f32.mrf.mxu0
    %v3776 = vadd.f32 %v3656, %v3775
    %v3777 = vpop.f32.mrf.mxu0
    %v3778 = vpop.f32.mrf.mxu0
    %v3779 = vadd.f32 %v3659, %v3778
    %v3780 = vpop.f32.mrf.mxu0
    %3781 = vmatprep.mubr.bf16.mxu0 %v3512
    %3782 = vmatmul.mubr.bf16.gmra.mxu0 %v3511
    %v3783 = vpop.f32.mrf.mxu0
    %v3784 = vadd.f32 %v3664, %v3783
    %v3785 = vpop.f32.mrf.mxu0
    %v3786 = vpop.f32.mrf.mxu0
    %v3787 = vadd.f32 %v3667, %v3786
    %v3788 = vpop.f32.mrf.mxu0
    %3789 = vmatprep.mubr.bf16.mxu0 %v3516
    %3790 = vmatmul.mubr.bf16.gmra.mxu0 %v3515
    %v3791 = vpop.f32.mrf.mxu0
    %v3792 = vadd.f32 %v3672, %v3791
    %v3793 = vpop.f32.mrf.mxu0
    %v3794 = vpop.f32.mrf.mxu0
    %v3795 = vadd.f32 %v3675, %v3794
    %v3796 = vpop.f32.mrf.mxu0
    %3797 = vmatprep.mubr.bf16.mxu0 %v3520
    %3798 = vmatmul.mubr.bf16.gmra.mxu0 %v3519
    %v3799 = vpop.f32.mrf.mxu0
    %v3800 = vadd.f32 %v3680, %v3799
    %v3801 = vpop.f32.mrf.mxu0
    %v3802 = vpop.f32.mrf.mxu0
    %v3803 = vpop.f32.mrf.mxu0
    %3804 = vdwg.mxu0
    %v3805 = vpack.c.bf16 %v3723, %v3720
    %v3806 = vpack.c.bf16 %v3731, %v3728
    %v3807 = vpack.c.bf16 %v3739, %v3736
    %v3808 = vpack.c.bf16 %v3747, %v3744
    %v3809 = vpack.c.bf16 %v3755, %v3752
    %v3810 = vpack.c.bf16 %v3763, %v3760
    %v3811 = vpack.c.bf16 %v3771, %v3768
    %v3812 = vpack.c.bf16 %v3779, %v3776
    %v3813 = vpack.c.bf16 %v3787, %v3784
    %v3814 = vpack.c.bf16 %v3795, %v3792
    %v3815 = vpack.c.bf16 %v3800, %v3800
    %s3816 = scalar_lea.vmem [#allocation6], 1344
    %v3817 = vld [vmem:[%s3816] sm:$0xff]
    %v3818 = vld [vmem:[%s3816 + $0x8] sm:$0xff]
    %v3819 = vld [vmem:[%s3816 + $0x10] sm:$0xff]
    %v3820 = vld [vmem:[%s3816 + $0x18] sm:$0xff]
    %v3821 = vld [vmem:[%s3816 + $0x20] sm:$0xff]
    %v3822 = vld [vmem:[%s3816 + $0x28] sm:$0xff]
    %v3823 = vld [vmem:[%s3816 + $0x30] sm:$0xff]
    %v3824 = vld [vmem:[%s3816 + $0x38] sm:$0xff]
    %v3825 = vld [vmem:[%s3816 + $0x40] sm:$0xff]
    %v3826 = vld [vmem:[%s3816 + $0x48] sm:$0xff]
    %v3827 = vld [vmem:[%s3816 + $0x50] sm:$0xff]
    %v3828 = vld [vmem:[%s3816 + $0x58] sm:$0xff]
    %v3829 = vld [vmem:[%s3816 + $0x60] sm:$0xff]
    %v3830 = vld [vmem:[%s3816 + $0x68] sm:$0xff]
    %v3831 = vld [vmem:[%s3816 + $0x70] sm:$0xff]
    %v3832 = vld [vmem:[%s3816 + $0x78] sm:$0xff]
    %v3833 = vld [vmem:[%s3816 + $0x80] sm:$0xff]
    %v3834 = vld [vmem:[%s3816 + $0x88] sm:$0xff]
    %v3835 = vld [vmem:[%s3816 + $0x90] sm:$0xff]
    %v3836 = vld [vmem:[%s3816 + $0x98] sm:$0xff]
    %v3837 = vld [vmem:[%s3816 + $0xa0] sm:$0xff]
    %v3838 = vld [vmem:[%s3816 + $0xa8] sm:$0xff]
    %v3839 = vld [vmem:[%s3816 + $0xb0] sm:$0xff]
    %v3840 = vld [vmem:[%s3816 + $0xb8] sm:$0xff]
    %v3841 = vld [vmem:[%s3816 + $0xc0] sm:$0xff]
    %v3842 = vld [vmem:[%s3816 + $0xc8] sm:$0xff]
    %v3843 = vld [vmem:[%s3816 + $0xd0] sm:$0xff]
    %v3844 = vld [vmem:[%s3816 + $0xd8] sm:$0xff]
    %v3845 = vld [vmem:[%s3816 + $0xe0] sm:$0xff]
    %v3846 = vld [vmem:[%s3816 + $0xe8] sm:$0xff]
    %v3847 = vld [vmem:[%s3816 + $0xf0] sm:$0xff]
    %v3848 = vld [vmem:[%s3816 + $0xf8] sm:$0xff]
    %v3849 = vld [vmem:[%s3816 + $0x100] sm:$0xff]
    %v3850 = vld [vmem:[%s3816 + $0x108] sm:$0xff]
    %v3851 = vld [vmem:[%s3816 + $0x110] sm:$0xff]
    %v3852 = vld [vmem:[%s3816 + $0x118] sm:$0xff]
    %v3853 = vld [vmem:[%s3816 + $0x120] sm:$0xff]
    %v3854 = vld [vmem:[%s3816 + $0x128] sm:$0xff]
    %v3855 = vld [vmem:[%s3816 + $0x130] sm:$0xff]
    %v3856 = vld [vmem:[%s3816 + $0x138] sm:$0xff]
    %v3857 = vld [vmem:[%s3816 + $0x140] sm:$0xff]
    %v3858 = vld [vmem:[%s3816 + $0x148] sm:$0xff]
    %v3901 = vunpack.c.l.b16 %v3817
    %v3902 = vunpack.c.h.b16 %v3817
    %v3903 = vunpack.c.l.b16 %v3818
    %v3904 = vunpack.c.h.b16 %v3818
    %v3905 = vunpack.c.l.b16 %v3819
    %v3906 = vunpack.c.h.b16 %v3819
    %v3907 = vunpack.c.l.b16 %v3820
    %v3908 = vunpack.c.h.b16 %v3820
    %v3909 = vunpack.c.l.b16 %v3821
    %v3910 = vunpack.c.h.b16 %v3821
    %v3911 = vunpack.c.l.b16 %v3822
    %v3912 = vunpack.c.h.b16 %v3822
    %v3913 = vunpack.c.l.b16 %v3823
    %v3914 = vunpack.c.h.b16 %v3823
    %v3915 = vunpack.c.l.b16 %v3824
    %v3916 = vunpack.c.h.b16 %v3824
    %v3917 = vunpack.c.l.b16 %v3825
    %v3918 = vunpack.c.h.b16 %v3825
    %v3919 = vunpack.c.l.b16 %v3826
    %v3920 = vunpack.c.h.b16 %v3826
    %v3921 = vunpack.c.l.b16 %v3827
    %v3922 = vunpack.c.h.b16 %v3827
    %v3923 = vunpack.c.l.b16 %v3828
    %v3924 = vunpack.c.h.b16 %v3828
    %v3925 = vunpack.c.l.b16 %v3829
    %v3926 = vunpack.c.h.b16 %v3829
    %v3927 = vunpack.c.l.b16 %v3830
    %v3928 = vunpack.c.h.b16 %v3830
    %v3929 = vunpack.c.l.b16 %v3831
    %v3930 = vunpack.c.h.b16 %v3831
    %v3931 = vunpack.c.l.b16 %v3832
    %v3932 = vunpack.c.h.b16 %v3832
    %v3933 = vunpack.c.l.b16 %v3833
    %v3934 = vunpack.c.h.b16 %v3833
    %v3935 = vunpack.c.l.b16 %v3834
    %v3936 = vunpack.c.h.b16 %v3834
    %v3937 = vunpack.c.l.b16 %v3835
    %v3938 = vunpack.c.h.b16 %v3835
    %v3939 = vunpack.c.l.b16 %v3836
    %v3940 = vunpack.c.h.b16 %v3836
    %v3941 = vunpack.c.l.b16 %v3837
    %v3942 = vunpack.c.h.b16 %v3837
    %v3943 = vunpack.c.l.b16 %v3838
    %v3944 = vunpack.c.h.b16 %v3838
    %v3945 = vunpack.c.l.b16 %v3839
    %v3946 = vunpack.c.h.b16 %v3839
    %v3947 = vunpack.c.l.b16 %v3840
    %v3948 = vunpack.c.h.b16 %v3840
    %v3949 = vunpack.c.l.b16 %v3841
    %v3950 = vunpack.c.h.b16 %v3841
    %v3951 = vunpack.c.l.b16 %v3842
    %v3952 = vunpack.c.h.b16 %v3842
    %v3953 = vunpack.c.l.b16 %v3843
    %v3954 = vunpack.c.h.b16 %v3843
    %v3955 = vunpack.c.l.b16 %v3844
    %v3956 = vunpack.c.h.b16 %v3844
    %v3957 = vunpack.c.l.b16 %v3845
    %v3958 = vunpack.c.h.b16 %v3845
    %v3959 = vunpack.c.l.b16 %v3846
    %v3960 = vunpack.c.h.b16 %v3846
    %v3961 = vunpack.c.l.b16 %v3847
    %v3962 = vunpack.c.h.b16 %v3847
    %v3963 = vunpack.c.l.b16 %v3848
    %v3964 = vunpack.c.h.b16 %v3848
    %v3965 = vunpack.c.l.b16 %v3849
    %v3966 = vunpack.c.h.b16 %v3849
    %v3967 = vunpack.c.l.b16 %v3850
    %v3968 = vunpack.c.h.b16 %v3850
    %v3969 = vunpack.c.l.b16 %v3851
    %v3970 = vunpack.c.h.b16 %v3851
    %v3971 = vunpack.c.l.b16 %v3852
    %v3972 = vunpack.c.h.b16 %v3852
    %v3973 = vunpack.c.l.b16 %v3853
    %v3974 = vunpack.c.h.b16 %v3853
    %v3975 = vunpack.c.l.b16 %v3854
    %v3976 = vunpack.c.h.b16 %v3854
    %v3977 = vunpack.c.l.b16 %v3855
    %v3978 = vunpack.c.h.b16 %v3855
    %v3979 = vunpack.c.l.b16 %v3856
    %v3980 = vunpack.c.h.b16 %v3856
    %v3981 = vunpack.c.l.b16 %v3857
    %v3982 = vunpack.c.h.b16 %v3857
    %v3983 = vunpack.c.l.b16 %v3858
    %v3984 = vunpack.c.h.b16 %v3858
    %v3985 = vpack.c.b16 %v3905, %v3901
    %v3986 = vpack.c.b16 %v3906, %v3902
    %v3987 = vpack.c.b16 %v3907, %v3903
    %v3988 = vpack.c.b16 %v3908, %v3904
    %v3989 = vpack.c.b16 %v3913, %v3909
    %v3990 = vpack.c.b16 %v3914, %v3910
    %v3991 = vpack.c.b16 %v3915, %v3911
    %v3992 = vpack.c.b16 %v3916, %v3912
    %v3993 = vpack.c.b16 %v3921, %v3917
    %v3994 = vpack.c.b16 %v3922, %v3918
    %v3995 = vpack.c.b16 %v3923, %v3919
    %v3996 = vpack.c.b16 %v3924, %v3920
    %v3997 = vpack.c.b16 %v3929, %v3925
    %v3998 = vpack.c.b16 %v3930, %v3926
    %v3999 = vpack.c.b16 %v3931, %v3927
    %v4000 = vpack.c.b16 %v3932, %v3928
    %v4001 = vpack.c.b16 %v3937, %v3933
    %v4002 = vpack.c.b16 %v3938, %v3934
    %v4003 = vpack.c.b16 %v3939, %v3935
    %v4004 = vpack.c.b16 %v3940, %v3936
    %v4005 = vpack.c.b16 %v3945, %v3941
    %v4006 = vpack.c.b16 %v3946, %v3942
    %v4007 = vpack.c.b16 %v3947, %v3943
    %v4008 = vpack.c.b16 %v3948, %v3944
    %v4009 = vpack.c.b16 %v3953, %v3949
    %v4010 = vpack.c.b16 %v3954, %v3950
    %v4011 = vpack.c.b16 %v3955, %v3951
    %v4012 = vpack.c.b16 %v3956, %v3952
    %v4013 = vpack.c.b16 %v3961, %v3957
    %v4014 = vpack.c.b16 %v3962, %v3958
    %v4015 = vpack.c.b16 %v3963, %v3959
    %v4016 = vpack.c.b16 %v3964, %v3960
    %v4017 = vpack.c.b16 %v3969, %v3965
    %v4018 = vpack.c.b16 %v3970, %v3966
    %v4019 = vpack.c.b16 %v3971, %v3967
    %v4020 = vpack.c.b16 %v3972, %v3968
    %v4021 = vpack.c.b16 %v3977, %v3973
    %v4022 = vpack.c.b16 %v3978, %v3974
    %v4023 = vpack.c.b16 %v3979, %v3975
    %v4024 = vpack.c.b16 %v3980, %v3976
    %v4025 = vpack.c.b16 %v3981, %v3981
    %v4026 = vpack.c.b16 %v3982, %v3982
    %v4027 = vpack.c.b16 %v3983, %v3983
    %v4028 = vpack.c.b16 %v3984, %v3984
    %4073 = vmatprep.subr.bf16.mxu0 0
    %4074 = vmatpush1.bf16.msra.mxu0 %v1739
    %4075 = vmatprep.subr.bf16.mxu0 0
    %4076 = vmatpush1.bf16.msra.mxu0 %v1738
    %4077 = vmatprep.subr.bf16.mxu0 0
    %4078 = vmatpush1.bf16.msra.mxu0 %v1737
    %4079 = vmatprep.subr.bf16.mxu0 0
    %4080 = vmatpush1.bf16.msra.mxu0 %v1736
    %4081 = vmatprep.subr.bf16.mxu0 0
    %4082 = vmatpush1.bf16.msra.mxu0 %v1735
    %4083 = vmatprep.subr.bf16.mxu0 0
    %4084 = vmatpush1.bf16.msra.mxu0 %v1734
    %4085 = vmatprep.subr.bf16.mxu0 0
    %4086 = vmatpush1.bf16.msra.mxu0 %v1733
    %4087 = vmatprep.subr.bf16.mxu0 0
    %4088 = vmatpush1.bf16.msra.mxu0 %v1732
    %4089 = vmatprep.subr.bf16.mxu0 0
    %4090 = vmatpush2.bf16.msra.mxu0 %v1747
    %4091 = vmatprep.subr.bf16.mxu0 0
    %4092 = vmatpush2.bf16.msra.mxu0 %v1746
    %4093 = vmatprep.subr.bf16.mxu0 0
    %4094 = vmatpush2.bf16.msra.mxu0 %v1745
    %4095 = vmatprep.subr.bf16.mxu0 0
    %4096 = vmatpush2.bf16.msra.mxu0 %v1744
    %4097 = vmatprep.subr.bf16.mxu0 0
    %4098 = vmatpush2.bf16.msra.mxu0 %v1743
    %4099 = vmatprep.subr.bf16.mxu0 0
    %4100 = vmatpush2.bf16.msra.mxu0 %v1742
    %4101 = vmatprep.subr.bf16.mxu0 0
    %4102 = vmatpush2.bf16.msra.mxu0 %v1741
    %4103 = vmatprep.subr.bf16.mxu0 0
    %4104 = vmatpush2.bf16.msra.mxu0 %v1740
    %4105 = vmatprep.mubr.bf16.mxu0 %v3986
    %4106 = vmatmul.mubr.bf16.gmra.mxu0 %v3985
    %v4107 = vpop.f32.mrf.mxu0
    %v4108 = vadd.f32 0.0, %v4107
    %v4109 = vpop.f32.mrf.mxu0
    %v4110 = vpop.f32.mrf.mxu0
    %v4111 = vadd.f32 0.0, %v4110
    %v4112 = vpop.f32.mrf.mxu0
    %4113 = vmatprep.mubr.bf16.mxu0 %v3990
    %4114 = vmatmul.mubr.bf16.gmra.mxu0 %v3989
    %v4115 = vpop.f32.mrf.mxu0
    %v4116 = vadd.f32 0.0, %v4115
    %v4117 = vpop.f32.mrf.mxu0
    %v4118 = vpop.f32.mrf.mxu0
    %v4119 = vadd.f32 0.0, %v4118
    %v4120 = vpop.f32.mrf.mxu0
    %4121 = vmatprep.mubr.bf16.mxu0 %v3994
    %4122 = vmatmul.mubr.bf16.gmra.mxu0 %v3993
    %v4123 = vpop.f32.mrf.mxu0
    %v4124 = vadd.f32 0.0, %v4123
    %v4125 = vpop.f32.mrf.mxu0
    %v4126 = vpop.f32.mrf.mxu0
    %v4127 = vadd.f32 0.0, %v4126
    %v4128 = vpop.f32.mrf.mxu0
    %4129 = vmatprep.mubr.bf16.mxu0 %v3998
    %4130 = vmatmul.mubr.bf16.gmra.mxu0 %v3997
    %v4131 = vpop.f32.mrf.mxu0
    %v4132 = vadd.f32 0.0, %v4131
    %v4133 = vpop.f32.mrf.mxu0
    %v4134 = vpop.f32.mrf.mxu0
    %v4135 = vadd.f32 0.0, %v4134
    %v4136 = vpop.f32.mrf.mxu0
    %4137 = vmatprep.mubr.bf16.mxu0 %v4002
    %4138 = vmatmul.mubr.bf16.gmra.mxu0 %v4001
    %v4139 = vpop.f32.mrf.mxu0
    %v4140 = vadd.f32 0.0, %v4139
    %v4141 = vpop.f32.mrf.mxu0
    %v4142 = vpop.f32.mrf.mxu0
    %v4143 = vadd.f32 0.0, %v4142
    %v4144 = vpop.f32.mrf.mxu0
    %4145 = vmatprep.mubr.bf16.mxu0 %v4006
    %4146 = vmatmul.mubr.bf16.gmra.mxu0 %v4005
    %v4147 = vpop.f32.mrf.mxu0
    %v4148 = vadd.f32 0.0, %v4147
    %v4149 = vpop.f32.mrf.mxu0
    %v4150 = vpop.f32.mrf.mxu0
    %v4151 = vadd.f32 0.0, %v4150
    %v4152 = vpop.f32.mrf.mxu0
    %4153 = vmatprep.mubr.bf16.mxu0 %v4010
    %4154 = vmatmul.mubr.bf16.gmra.mxu0 %v4009
    %v4155 = vpop.f32.mrf.mxu0
    %v4156 = vadd.f32 0.0, %v4155
    %v4157 = vpop.f32.mrf.mxu0
    %v4158 = vpop.f32.mrf.mxu0
    %v4159 = vadd.f32 0.0, %v4158
    %v4160 = vpop.f32.mrf.mxu0
    %4161 = vmatprep.mubr.bf16.mxu0 %v4014
    %4162 = vmatmul.mubr.bf16.gmra.mxu0 %v4013
    %v4163 = vpop.f32.mrf.mxu0
    %v4164 = vadd.f32 0.0, %v4163
    %v4165 = vpop.f32.mrf.mxu0
    %v4166 = vpop.f32.mrf.mxu0
    %v4167 = vadd.f32 0.0, %v4166
    %v4168 = vpop.f32.mrf.mxu0
    %4169 = vmatprep.mubr.bf16.mxu0 %v4018
    %4170 = vmatmul.mubr.bf16.gmra.mxu0 %v4017
    %v4171 = vpop.f32.mrf.mxu0
    %v4172 = vadd.f32 0.0, %v4171
    %v4173 = vpop.f32.mrf.mxu0
    %v4174 = vpop.f32.mrf.mxu0
    %v4175 = vadd.f32 0.0, %v4174
    %v4176 = vpop.f32.mrf.mxu0
    %4177 = vmatprep.mubr.bf16.mxu0 %v4022
    %4178 = vmatmul.mubr.bf16.gmra.mxu0 %v4021
    %v4179 = vpop.f32.mrf.mxu0
    %v4180 = vadd.f32 0.0, %v4179
    %v4181 = vpop.f32.mrf.mxu0
    %v4182 = vpop.f32.mrf.mxu0
    %v4183 = vadd.f32 0.0, %v4182
    %v4184 = vpop.f32.mrf.mxu0
    %4185 = vmatprep.mubr.bf16.mxu0 %v4026
    %4186 = vmatmul.mubr.bf16.gmra.mxu0 %v4025
    %v4187 = vpop.f32.mrf.mxu0
    %v4188 = vadd.f32 0.0, %v4187
    %v4189 = vpop.f32.mrf.mxu0
    %v4190 = vpop.f32.mrf.mxu0
    %v4191 = vpop.f32.mrf.mxu0
    %4192 = vdwg.mxu0
    %4193 = vmatprep.subr.bf16.mxu0 0
    %4194 = vmatpush1.bf16.msra.mxu0 %v1755
    %4195 = vmatprep.subr.bf16.mxu0 0
    %4196 = vmatpush1.bf16.msra.mxu0 %v1754
    %4197 = vmatprep.subr.bf16.mxu0 0
    %4198 = vmatpush1.bf16.msra.mxu0 %v1753
    %4199 = vmatprep.subr.bf16.mxu0 0
    %4200 = vmatpush1.bf16.msra.mxu0 %v1752
    %4201 = vmatprep.subr.bf16.mxu0 0
    %4202 = vmatpush1.bf16.msra.mxu0 %v1751
    %4203 = vmatprep.subr.bf16.mxu0 0
    %4204 = vmatpush1.bf16.msra.mxu0 %v1750
    %4205 = vmatprep.subr.bf16.mxu0 0
    %4206 = vmatpush1.bf16.msra.mxu0 %v1749
    %4207 = vmatprep.subr.bf16.mxu0 0
    %4208 = vmatpush1.bf16.msra.mxu0 %v1748
    %4209 = vmatprep.subr.bf16.mxu0 0
    %4210 = vmatpush2.bf16.msra.mxu0 %v1763
    %4211 = vmatprep.subr.bf16.mxu0 0
    %4212 = vmatpush2.bf16.msra.mxu0 %v1762
    %4213 = vmatprep.subr.bf16.mxu0 0
    %4214 = vmatpush2.bf16.msra.mxu0 %v1761
    %4215 = vmatprep.subr.bf16.mxu0 0
    %4216 = vmatpush2.bf16.msra.mxu0 %v1760
    %4217 = vmatprep.subr.bf16.mxu0 0
    %4218 = vmatpush2.bf16.msra.mxu0 %v1759
    %4219 = vmatprep.subr.bf16.mxu0 0
    %4220 = vmatpush2.bf16.msra.mxu0 %v1758
    %4221 = vmatprep.subr.bf16.mxu0 0
    %4222 = vmatpush2.bf16.msra.mxu0 %v1757
    %4223 = vmatprep.subr.bf16.mxu0 0
    %4224 = vmatpush2.bf16.msra.mxu0 %v1756
    %4225 = vmatprep.mubr.bf16.mxu0 %v3988
    %4226 = vmatmul.mubr.bf16.gmra.mxu0 %v3987
    %v4227 = vpop.f32.mrf.mxu0
    %v4228 = vadd.f32 %v4108, %v4227
    %v4229 = vpop.f32.mrf.mxu0
    %v4230 = vpop.f32.mrf.mxu0
    %v4231 = vadd.f32 %v4111, %v4230
    %v4232 = vpop.f32.mrf.mxu0
    %4233 = vmatprep.mubr.bf16.mxu0 %v3992
    %4234 = vmatmul.mubr.bf16.gmra.mxu0 %v3991
    %v4235 = vpop.f32.mrf.mxu0
    %v4236 = vadd.f32 %v4116, %v4235
    %v4237 = vpop.f32.mrf.mxu0
    %v4238 = vpop.f32.mrf.mxu0
    %v4239 = vadd.f32 %v4119, %v4238
    %v4240 = vpop.f32.mrf.mxu0
    %4241 = vmatprep.mubr.bf16.mxu0 %v3996
    %4242 = vmatmul.mubr.bf16.gmra.mxu0 %v3995
    %v4243 = vpop.f32.mrf.mxu0
    %v4244 = vadd.f32 %v4124, %v4243
    %v4245 = vpop.f32.mrf.mxu0
    %v4246 = vpop.f32.mrf.mxu0
    %v4247 = vadd.f32 %v4127, %v4246
    %v4248 = vpop.f32.mrf.mxu0
    %4249 = vmatprep.mubr.bf16.mxu0 %v4000
    %4250 = vmatmul.mubr.bf16.gmra.mxu0 %v3999
    %v4251 = vpop.f32.mrf.mxu0
    %v4252 = vadd.f32 %v4132, %v4251
    %v4253 = vpop.f32.mrf.mxu0
    %v4254 = vpop.f32.mrf.mxu0
    %v4255 = vadd.f32 %v4135, %v4254
    %v4256 = vpop.f32.mrf.mxu0
    %4257 = vmatprep.mubr.bf16.mxu0 %v4004
    %4258 = vmatmul.mubr.bf16.gmra.mxu0 %v4003
    %v4259 = vpop.f32.mrf.mxu0
    %v4260 = vadd.f32 %v4140, %v4259
    %v4261 = vpop.f32.mrf.mxu0
    %v4262 = vpop.f32.mrf.mxu0
    %v4263 = vadd.f32 %v4143, %v4262
    %v4264 = vpop.f32.mrf.mxu0
    %4265 = vmatprep.mubr.bf16.mxu0 %v4008
    %4266 = vmatmul.mubr.bf16.gmra.mxu0 %v4007
    %v4267 = vpop.f32.mrf.mxu0
    %v4268 = vadd.f32 %v4148, %v4267
    %v4269 = vpop.f32.mrf.mxu0
    %v4270 = vpop.f32.mrf.mxu0
    %v4271 = vadd.f32 %v4151, %v4270
    %v4272 = vpop.f32.mrf.mxu0
    %4273 = vmatprep.mubr.bf16.mxu0 %v4012
    %4274 = vmatmul.mubr.bf16.gmra.mxu0 %v4011
    %v4275 = vpop.f32.mrf.mxu0
    %v4276 = vadd.f32 %v4156, %v4275
    %v4277 = vpop.f32.mrf.mxu0
    %v4278 = vpop.f32.mrf.mxu0
    %v4279 = vadd.f32 %v4159, %v4278
    %v4280 = vpop.f32.mrf.mxu0
    %4281 = vmatprep.mubr.bf16.mxu0 %v4016
    %4282 = vmatmul.mubr.bf16.gmra.mxu0 %v4015
    %v4283 = vpop.f32.mrf.mxu0
    %v4284 = vadd.f32 %v4164, %v4283
    %v4285 = vpop.f32.mrf.mxu0
    %v4286 = vpop.f32.mrf.mxu0
    %v4287 = vadd.f32 %v4167, %v4286
    %v4288 = vpop.f32.mrf.mxu0
    %4289 = vmatprep.mubr.bf16.mxu0 %v4020
    %4290 = vmatmul.mubr.bf16.gmra.mxu0 %v4019
    %v4291 = vpop.f32.mrf.mxu0
    %v4292 = vadd.f32 %v4172, %v4291
    %v4293 = vpop.f32.mrf.mxu0
    %v4294 = vpop.f32.mrf.mxu0
    %v4295 = vadd.f32 %v4175, %v4294
    %v4296 = vpop.f32.mrf.mxu0
    %4297 = vmatprep.mubr.bf16.mxu0 %v4024
    %4298 = vmatmul.mubr.bf16.gmra.mxu0 %v4023
    %v4299 = vpop.f32.mrf.mxu0
    %v4300 = vadd.f32 %v4180, %v4299
    %v4301 = vpop.f32.mrf.mxu0
    %v4302 = vpop.f32.mrf.mxu0
    %v4303 = vadd.f32 %v4183, %v4302
    %v4304 = vpop.f32.mrf.mxu0
    %4305 = vmatprep.mubr.bf16.mxu0 %v4028
    %4306 = vmatmul.mubr.bf16.gmra.mxu0 %v4027
    %v4307 = vpop.f32.mrf.mxu0
    %v4308 = vadd.f32 %v4188, %v4307
    %v4309 = vpop.f32.mrf.mxu0
    %v4310 = vpop.f32.mrf.mxu0
    %v4311 = vpop.f32.mrf.mxu0
    %4312 = vdwg.mxu0
    %v4313 = vpack.c.bf16 %v4231, %v4228
    %v4314 = vpack.c.bf16 %v4239, %v4236
    %v4315 = vpack.c.bf16 %v4247, %v4244
    %v4316 = vpack.c.bf16 %v4255, %v4252
    %v4317 = vpack.c.bf16 %v4263, %v4260
    %v4318 = vpack.c.bf16 %v4271, %v4268
    %v4319 = vpack.c.bf16 %v4279, %v4276
    %v4320 = vpack.c.bf16 %v4287, %v4284
    %v4321 = vpack.c.bf16 %v4295, %v4292
    %v4322 = vpack.c.bf16 %v4303, %v4300
    %v4323 = vpack.c.bf16 %v4308, %v4308
    %s4324 = scalar_lea.vmem [#allocation6], 1680
    %v4325 = vld [vmem:[%s4324] sm:$0xff]
    %v4326 = vld [vmem:[%s4324 + $0x8] sm:$0xff]
    %v4327 = vld [vmem:[%s4324 + $0x10] sm:$0xff]
    %v4328 = vld [vmem:[%s4324 + $0x18] sm:$0xff]
    %v4329 = vld [vmem:[%s4324 + $0x20] sm:$0xff]
    %v4330 = vld [vmem:[%s4324 + $0x28] sm:$0xff]
    %v4331 = vld [vmem:[%s4324 + $0x30] sm:$0xff]
    %v4332 = vld [vmem:[%s4324 + $0x38] sm:$0xff]
    %v4333 = vld [vmem:[%s4324 + $0x40] sm:$0xff]
    %v4334 = vld [vmem:[%s4324 + $0x48] sm:$0xff]
    %v4335 = vld [vmem:[%s4324 + $0x50] sm:$0xff]
    %v4336 = vld [vmem:[%s4324 + $0x58] sm:$0xff]
    %v4337 = vld [vmem:[%s4324 + $0x60] sm:$0xff]
    %v4338 = vld [vmem:[%s4324 + $0x68] sm:$0xff]
    %v4339 = vld [vmem:[%s4324 + $0x70] sm:$0xff]
    %v4340 = vld [vmem:[%s4324 + $0x78] sm:$0xff]
    %v4341 = vld [vmem:[%s4324 + $0x80] sm:$0xff]
    %v4342 = vld [vmem:[%s4324 + $0x88] sm:$0xff]
    %v4343 = vld [vmem:[%s4324 + $0x90] sm:$0xff]
    %v4344 = vld [vmem:[%s4324 + $0x98] sm:$0xff]
    %v4345 = vld [vmem:[%s4324 + $0xa0] sm:$0xff]
    %v4346 = vld [vmem:[%s4324 + $0xa8] sm:$0xff]
    %v4347 = vld [vmem:[%s4324 + $0xb0] sm:$0xff]
    %v4348 = vld [vmem:[%s4324 + $0xb8] sm:$0xff]
    %v4349 = vld [vmem:[%s4324 + $0xc0] sm:$0xff]
    %v4350 = vld [vmem:[%s4324 + $0xc8] sm:$0xff]
    %v4351 = vld [vmem:[%s4324 + $0xd0] sm:$0xff]
    %v4352 = vld [vmem:[%s4324 + $0xd8] sm:$0xff]
    %v4353 = vld [vmem:[%s4324 + $0xe0] sm:$0xff]
    %v4354 = vld [vmem:[%s4324 + $0xe8] sm:$0xff]
    %v4355 = vld [vmem:[%s4324 + $0xf0] sm:$0xff]
    %v4356 = vld [vmem:[%s4324 + $0xf8] sm:$0xff]
    %v4357 = vld [vmem:[%s4324 + $0x100] sm:$0xff]
    %v4358 = vld [vmem:[%s4324 + $0x108] sm:$0xff]
    %v4359 = vld [vmem:[%s4324 + $0x110] sm:$0xff]
    %v4360 = vld [vmem:[%s4324 + $0x118] sm:$0xff]
    %v4361 = vld [vmem:[%s4324 + $0x120] sm:$0xff]
    %v4362 = vld [vmem:[%s4324 + $0x128] sm:$0xff]
    %v4363 = vld [vmem:[%s4324 + $0x130] sm:$0xff]
    %v4364 = vld [vmem:[%s4324 + $0x138] sm:$0xff]
    %v4365 = vld [vmem:[%s4324 + $0x140] sm:$0xff]
    %v4366 = vld [vmem:[%s4324 + $0x148] sm:$0xff]
    %v4409 = vunpack.c.l.b16 %v4325
    %v4410 = vunpack.c.h.b16 %v4325
    %v4411 = vunpack.c.l.b16 %v4326
    %v4412 = vunpack.c.h.b16 %v4326
    %v4413 = vunpack.c.l.b16 %v4327
    %v4414 = vunpack.c.h.b16 %v4327
    %v4415 = vunpack.c.l.b16 %v4328
    %v4416 = vunpack.c.h.b16 %v4328
    %v4417 = vunpack.c.l.b16 %v4329
    %v4418 = vunpack.c.h.b16 %v4329
    %v4419 = vunpack.c.l.b16 %v4330
    %v4420 = vunpack.c.h.b16 %v4330
    %v4421 = vunpack.c.l.b16 %v4331
    %v4422 = vunpack.c.h.b16 %v4331
    %v4423 = vunpack.c.l.b16 %v4332
    %v4424 = vunpack.c.h.b16 %v4332
    %v4425 = vunpack.c.l.b16 %v4333
    %v4426 = vunpack.c.h.b16 %v4333
    %v4427 = vunpack.c.l.b16 %v4334
    %v4428 = vunpack.c.h.b16 %v4334
    %v4429 = vunpack.c.l.b16 %v4335
    %v4430 = vunpack.c.h.b16 %v4335
    %v4431 = vunpack.c.l.b16 %v4336
    %v4432 = vunpack.c.h.b16 %v4336
    %v4433 = vunpack.c.l.b16 %v4337
    %v4434 = vunpack.c.h.b16 %v4337
    %v4435 = vunpack.c.l.b16 %v4338
    %v4436 = vunpack.c.h.b16 %v4338
    %v4437 = vunpack.c.l.b16 %v4339
    %v4438 = vunpack.c.h.b16 %v4339
    %v4439 = vunpack.c.l.b16 %v4340
    %v4440 = vunpack.c.h.b16 %v4340
    %v4441 = vunpack.c.l.b16 %v4341
    %v4442 = vunpack.c.h.b16 %v4341
    %v4443 = vunpack.c.l.b16 %v4342
    %v4444 = vunpack.c.h.b16 %v4342
    %v4445 = vunpack.c.l.b16 %v4343
    %v4446 = vunpack.c.h.b16 %v4343
    %v4447 = vunpack.c.l.b16 %v4344
    %v4448 = vunpack.c.h.b16 %v4344
    %v4449 = vunpack.c.l.b16 %v4345
    %v4450 = vunpack.c.h.b16 %v4345
    %v4451 = vunpack.c.l.b16 %v4346
    %v4452 = vunpack.c.h.b16 %v4346
    %v4453 = vunpack.c.l.b16 %v4347
    %v4454 = vunpack.c.h.b16 %v4347
    %v4455 = vunpack.c.l.b16 %v4348
    %v4456 = vunpack.c.h.b16 %v4348
    %v4457 = vunpack.c.l.b16 %v4349
    %v4458 = vunpack.c.h.b16 %v4349
    %v4459 = vunpack.c.l.b16 %v4350
    %v4460 = vunpack.c.h.b16 %v4350
    %v4461 = vunpack.c.l.b16 %v4351
    %v4462 = vunpack.c.h.b16 %v4351
    %v4463 = vunpack.c.l.b16 %v4352
    %v4464 = vunpack.c.h.b16 %v4352
    %v4465 = vunpack.c.l.b16 %v4353
    %v4466 = vunpack.c.h.b16 %v4353
    %v4467 = vunpack.c.l.b16 %v4354
    %v4468 = vunpack.c.h.b16 %v4354
    %v4469 = vunpack.c.l.b16 %v4355
    %v4470 = vunpack.c.h.b16 %v4355
    %v4471 = vunpack.c.l.b16 %v4356
    %v4472 = vunpack.c.h.b16 %v4356
    %v4473 = vunpack.c.l.b16 %v4357
    %v4474 = vunpack.c.h.b16 %v4357
    %v4475 = vunpack.c.l.b16 %v4358
    %v4476 = vunpack.c.h.b16 %v4358
    %v4477 = vunpack.c.l.b16 %v4359
    %v4478 = vunpack.c.h.b16 %v4359
    %v4479 = vunpack.c.l.b16 %v4360
    %v4480 = vunpack.c.h.b16 %v4360
    %v4481 = vunpack.c.l.b16 %v4361
    %v4482 = vunpack.c.h.b16 %v4361
    %v4483 = vunpack.c.l.b16 %v4362
    %v4484 = vunpack.c.h.b16 %v4362
    %v4485 = vunpack.c.l.b16 %v4363
    %v4486 = vunpack.c.h.b16 %v4363
    %v4487 = vunpack.c.l.b16 %v4364
    %v4488 = vunpack.c.h.b16 %v4364
    %v4489 = vunpack.c.l.b16 %v4365
    %v4490 = vunpack.c.h.b16 %v4365
    %v4491 = vunpack.c.l.b16 %v4366
    %v4492 = vunpack.c.h.b16 %v4366
    %v4493 = vpack.c.b16 %v4413, %v4409
    %v4494 = vpack.c.b16 %v4414, %v4410
    %v4495 = vpack.c.b16 %v4415, %v4411
    %v4496 = vpack.c.b16 %v4416, %v4412
    %v4497 = vpack.c.b16 %v4421, %v4417
    %v4498 = vpack.c.b16 %v4422, %v4418
    %v4499 = vpack.c.b16 %v4423, %v4419
    %v4500 = vpack.c.b16 %v4424, %v4420
    %v4501 = vpack.c.b16 %v4429, %v4425
    %v4502 = vpack.c.b16 %v4430, %v4426
    %v4503 = vpack.c.b16 %v4431, %v4427
    %v4504 = vpack.c.b16 %v4432, %v4428
    %v4505 = vpack.c.b16 %v4437, %v4433
    %v4506 = vpack.c.b16 %v4438, %v4434
    %v4507 = vpack.c.b16 %v4439, %v4435
    %v4508 = vpack.c.b16 %v4440, %v4436
    %v4509 = vpack.c.b16 %v4445, %v4441
    %v4510 = vpack.c.b16 %v4446, %v4442
    %v4511 = vpack.c.b16 %v4447, %v4443
    %v4512 = vpack.c.b16 %v4448, %v4444
    %v4513 = vpack.c.b16 %v4453, %v4449
    %v4514 = vpack.c.b16 %v4454, %v4450
    %v4515 = vpack.c.b16 %v4455, %v4451
    %v4516 = vpack.c.b16 %v4456, %v4452
    %v4517 = vpack.c.b16 %v4461, %v4457
    %v4518 = vpack.c.b16 %v4462, %v4458
    %v4519 = vpack.c.b16 %v4463, %v4459
    %v4520 = vpack.c.b16 %v4464, %v4460
    %v4521 = vpack.c.b16 %v4469, %v4465
    %v4522 = vpack.c.b16 %v4470, %v4466
    %v4523 = vpack.c.b16 %v4471, %v4467
    %v4524 = vpack.c.b16 %v4472, %v4468
    %v4525 = vpack.c.b16 %v4477, %v4473
    %v4526 = vpack.c.b16 %v4478, %v4474
    %v4527 = vpack.c.b16 %v4479, %v4475
    %v4528 = vpack.c.b16 %v4480, %v4476
    %v4529 = vpack.c.b16 %v4485, %v4481
    %v4530 = vpack.c.b16 %v4486, %v4482
    %v4531 = vpack.c.b16 %v4487, %v4483
    %v4532 = vpack.c.b16 %v4488, %v4484
    %v4533 = vpack.c.b16 %v4489, %v4489
    %v4534 = vpack.c.b16 %v4490, %v4490
    %v4535 = vpack.c.b16 %v4491, %v4491
    %v4536 = vpack.c.b16 %v4492, %v4492
    %4581 = vmatprep.subr.bf16.mxu0 0
    %4582 = vmatpush1.bf16.msra.mxu0 %v1739
    %4583 = vmatprep.subr.bf16.mxu0 0
    %4584 = vmatpush1.bf16.msra.mxu0 %v1738
    %4585 = vmatprep.subr.bf16.mxu0 0
    %4586 = vmatpush1.bf16.msra.mxu0 %v1737
    %4587 = vmatprep.subr.bf16.mxu0 0
    %4588 = vmatpush1.bf16.msra.mxu0 %v1736
    %4589 = vmatprep.subr.bf16.mxu0 0
    %4590 = vmatpush1.bf16.msra.mxu0 %v1735
    %4591 = vmatprep.subr.bf16.mxu0 0
    %4592 = vmatpush1.bf16.msra.mxu0 %v1734
    %4593 = vmatprep.subr.bf16.mxu0 0
    %4594 = vmatpush1.bf16.msra.mxu0 %v1733
    %4595 = vmatprep.subr.bf16.mxu0 0
    %4596 = vmatpush1.bf16.msra.mxu0 %v1732
    %4597 = vmatprep.subr.bf16.mxu0 0
    %4598 = vmatpush2.bf16.msra.mxu0 %v1747
    %4599 = vmatprep.subr.bf16.mxu0 0
    %4600 = vmatpush2.bf16.msra.mxu0 %v1746
    %4601 = vmatprep.subr.bf16.mxu0 0
    %4602 = vmatpush2.bf16.msra.mxu0 %v1745
    %4603 = vmatprep.subr.bf16.mxu0 0
    %4604 = vmatpush2.bf16.msra.mxu0 %v1744
    %4605 = vmatprep.subr.bf16.mxu0 0
    %4606 = vmatpush2.bf16.msra.mxu0 %v1743
    %4607 = vmatprep.subr.bf16.mxu0 0
    %4608 = vmatpush2.bf16.msra.mxu0 %v1742
    %4609 = vmatprep.subr.bf16.mxu0 0
    %4610 = vmatpush2.bf16.msra.mxu0 %v1741
    %4611 = vmatprep.subr.bf16.mxu0 0
    %4612 = vmatpush2.bf16.msra.mxu0 %v1740
    %4613 = vmatprep.mubr.bf16.mxu0 %v4494
    %4614 = vmatmul.mubr.bf16.gmra.mxu0 %v4493
    %v4615 = vpop.f32.mrf.mxu0
    %v4616 = vadd.f32 0.0, %v4615
    %v4617 = vpop.f32.mrf.mxu0
    %v4618 = vpop.f32.mrf.mxu0
    %v4619 = vadd.f32 0.0, %v4618
    %v4620 = vpop.f32.mrf.mxu0
    %4621 = vmatprep.mubr.bf16.mxu0 %v4498
    %4622 = vmatmul.mubr.bf16.gmra.mxu0 %v4497
    %v4623 = vpop.f32.mrf.mxu0
    %v4624 = vadd.f32 0.0, %v4623
    %v4625 = vpop.f32.mrf.mxu0
    %v4626 = vpop.f32.mrf.mxu0
    %v4627 = vadd.f32 0.0, %v4626
    %v4628 = vpop.f32.mrf.mxu0
    %4629 = vmatprep.mubr.bf16.mxu0 %v4502
    %4630 = vmatmul.mubr.bf16.gmra.mxu0 %v4501
    %v4631 = vpop.f32.mrf.mxu0
    %v4632 = vadd.f32 0.0, %v4631
    %v4633 = vpop.f32.mrf.mxu0
    %v4634 = vpop.f32.mrf.mxu0
    %v4635 = vadd.f32 0.0, %v4634
    %v4636 = vpop.f32.mrf.mxu0
    %4637 = vmatprep.mubr.bf16.mxu0 %v4506
    %4638 = vmatmul.mubr.bf16.gmra.mxu0 %v4505
    %v4639 = vpop.f32.mrf.mxu0
    %v4640 = vadd.f32 0.0, %v4639
    %v4641 = vpop.f32.mrf.mxu0
    %v4642 = vpop.f32.mrf.mxu0
    %v4643 = vadd.f32 0.0, %v4642
    %v4644 = vpop.f32.mrf.mxu0
    %4645 = vmatprep.mubr.bf16.mxu0 %v4510
    %4646 = vmatmul.mubr.bf16.gmra.mxu0 %v4509
    %v4647 = vpop.f32.mrf.mxu0
    %v4648 = vadd.f32 0.0, %v4647
    %v4649 = vpop.f32.mrf.mxu0
    %v4650 = vpop.f32.mrf.mxu0
    %v4651 = vadd.f32 0.0, %v4650
    %v4652 = vpop.f32.mrf.mxu0
    %4653 = vmatprep.mubr.bf16.mxu0 %v4514
    %4654 = vmatmul.mubr.bf16.gmra.mxu0 %v4513
    %v4655 = vpop.f32.mrf.mxu0
    %v4656 = vadd.f32 0.0, %v4655
    %v4657 = vpop.f32.mrf.mxu0
    %v4658 = vpop.f32.mrf.mxu0
    %v4659 = vadd.f32 0.0, %v4658
    %v4660 = vpop.f32.mrf.mxu0
    %4661 = vmatprep.mubr.bf16.mxu0 %v4518
    %4662 = vmatmul.mubr.bf16.gmra.mxu0 %v4517
    %v4663 = vpop.f32.mrf.mxu0
    %v4664 = vadd.f32 0.0, %v4663
    %v4665 = vpop.f32.mrf.mxu0
    %v4666 = vpop.f32.mrf.mxu0
    %v4667 = vadd.f32 0.0, %v4666
    %v4668 = vpop.f32.mrf.mxu0
    %4669 = vmatprep.mubr.bf16.mxu0 %v4522
    %4670 = vmatmul.mubr.bf16.gmra.mxu0 %v4521
    %v4671 = vpop.f32.mrf.mxu0
    %v4672 = vadd.f32 0.0, %v4671
    %v4673 = vpop.f32.mrf.mxu0
    %v4674 = vpop.f32.mrf.mxu0
    %v4675 = vadd.f32 0.0, %v4674
    %v4676 = vpop.f32.mrf.mxu0
    %4677 = vmatprep.mubr.bf16.mxu0 %v4526
    %4678 = vmatmul.mubr.bf16.gmra.mxu0 %v4525
    %v4679 = vpop.f32.mrf.mxu0
    %v4680 = vadd.f32 0.0, %v4679
    %v4681 = vpop.f32.mrf.mxu0
    %v4682 = vpop.f32.mrf.mxu0
    %v4683 = vadd.f32 0.0, %v4682
    %v4684 = vpop.f32.mrf.mxu0
    %4685 = vmatprep.mubr.bf16.mxu0 %v4530
    %4686 = vmatmul.mubr.bf16.gmra.mxu0 %v4529
    %v4687 = vpop.f32.mrf.mxu0
    %v4688 = vadd.f32 0.0, %v4687
    %v4689 = vpop.f32.mrf.mxu0
    %v4690 = vpop.f32.mrf.mxu0
    %v4691 = vadd.f32 0.0, %v4690
    %v4692 = vpop.f32.mrf.mxu0
    %4693 = vmatprep.mubr.bf16.mxu0 %v4534
    %4694 = vmatmul.mubr.bf16.gmra.mxu0 %v4533
    %v4695 = vpop.f32.mrf.mxu0
    %v4696 = vadd.f32 0.0, %v4695
    %v4697 = vpop.f32.mrf.mxu0
    %v4698 = vpop.f32.mrf.mxu0
    %v4699 = vpop.f32.mrf.mxu0
    %4700 = vdwg.mxu0
    %4701 = vmatprep.subr.bf16.mxu0 0
    %4702 = vmatpush1.bf16.msra.mxu0 %v1755
    %4703 = vmatprep.subr.bf16.mxu0 0
    %4704 = vmatpush1.bf16.msra.mxu0 %v1754
    %4705 = vmatprep.subr.bf16.mxu0 0
    %4706 = vmatpush1.bf16.msra.mxu0 %v1753
    %4707 = vmatprep.subr.bf16.mxu0 0
    %4708 = vmatpush1.bf16.msra.mxu0 %v1752
    %4709 = vmatprep.subr.bf16.mxu0 0
    %4710 = vmatpush1.bf16.msra.mxu0 %v1751
    %4711 = vmatprep.subr.bf16.mxu0 0
    %4712 = vmatpush1.bf16.msra.mxu0 %v1750
    %4713 = vmatprep.subr.bf16.mxu0 0
    %4714 = vmatpush1.bf16.msra.mxu0 %v1749
    %4715 = vmatprep.subr.bf16.mxu0 0
    %4716 = vmatpush1.bf16.msra.mxu0 %v1748
    %4717 = vmatprep.subr.bf16.mxu0 0
    %4718 = vmatpush2.bf16.msra.mxu0 %v1763
    %4719 = vmatprep.subr.bf16.mxu0 0
    %4720 = vmatpush2.bf16.msra.mxu0 %v1762
    %4721 = vmatprep.subr.bf16.mxu0 0
    %4722 = vmatpush2.bf16.msra.mxu0 %v1761
    %4723 = vmatprep.subr.bf16.mxu0 0
    %4724 = vmatpush2.bf16.msra.mxu0 %v1760
    %4725 = vmatprep.subr.bf16.mxu0 0
    %4726 = vmatpush2.bf16.msra.mxu0 %v1759
    %4727 = vmatprep.subr.bf16.mxu0 0
    %4728 = vmatpush2.bf16.msra.mxu0 %v1758
    %4729 = vmatprep.subr.bf16.mxu0 0
    %4730 = vmatpush2.bf16.msra.mxu0 %v1757
    %4731 = vmatprep.subr.bf16.mxu0 0
    %4732 = vmatpush2.bf16.msra.mxu0 %v1756
    %4733 = vmatprep.mubr.bf16.mxu0 %v4496
    %4734 = vmatmul.mubr.bf16.gmra.mxu0 %v4495
    %v4735 = vpop.f32.mrf.mxu0
    %v4736 = vadd.f32 %v4616, %v4735
    %v4737 = vpop.f32.mrf.mxu0
    %v4738 = vpop.f32.mrf.mxu0
    %v4739 = vadd.f32 %v4619, %v4738
    %v4740 = vpop.f32.mrf.mxu0
    %4741 = vmatprep.mubr.bf16.mxu0 %v4500
    %4742 = vmatmul.mubr.bf16.gmra.mxu0 %v4499
    %v4743 = vpop.f32.mrf.mxu0
    %v4744 = vadd.f32 %v4624, %v4743
    %v4745 = vpop.f32.mrf.mxu0
    %v4746 = vpop.f32.mrf.mxu0
    %v4747 = vadd.f32 %v4627, %v4746
    %v4748 = vpop.f32.mrf.mxu0
    %4749 = vmatprep.mubr.bf16.mxu0 %v4504
    %4750 = vmatmul.mubr.bf16.gmra.mxu0 %v4503
    %v4751 = vpop.f32.mrf.mxu0
    %v4752 = vadd.f32 %v4632, %v4751
    %v4753 = vpop.f32.mrf.mxu0
    %v4754 = vpop.f32.mrf.mxu0
    %v4755 = vadd.f32 %v4635, %v4754
    %v4756 = vpop.f32.mrf.mxu0
    %4757 = vmatprep.mubr.bf16.mxu0 %v4508
    %4758 = vmatmul.mubr.bf16.gmra.mxu0 %v4507
    %v4759 = vpop.f32.mrf.mxu0
    %v4760 = vadd.f32 %v4640, %v4759
    %v4761 = vpop.f32.mrf.mxu0
    %v4762 = vpop.f32.mrf.mxu0
    %v4763 = vadd.f32 %v4643, %v4762
    %v4764 = vpop.f32.mrf.mxu0
    %4765 = vmatprep.mubr.bf16.mxu0 %v4512
    %4766 = vmatmul.mubr.bf16.gmra.mxu0 %v4511
    %v4767 = vpop.f32.mrf.mxu0
    %v4768 = vadd.f32 %v4648, %v4767
    %v4769 = vpop.f32.mrf.mxu0
    %v4770 = vpop.f32.mrf.mxu0
    %v4771 = vadd.f32 %v4651, %v4770
    %v4772 = vpop.f32.mrf.mxu0
    %4773 = vmatprep.mubr.bf16.mxu0 %v4516
    %4774 = vmatmul.mubr.bf16.gmra.mxu0 %v4515
    %v4775 = vpop.f32.mrf.mxu0
    %v4776 = vadd.f32 %v4656, %v4775
    %v4777 = vpop.f32.mrf.mxu0
    %v4778 = vpop.f32.mrf.mxu0
    %v4779 = vadd.f32 %v4659, %v4778
    %v4780 = vpop.f32.mrf.mxu0
    %4781 = vmatprep.mubr.bf16.mxu0 %v4520
    %4782 = vmatmul.mubr.bf16.gmra.mxu0 %v4519
    %v4783 = vpop.f32.mrf.mxu0
    %v4784 = vadd.f32 %v4664, %v4783
    %v4785 = vpop.f32.mrf.mxu0
    %v4786 = vpop.f32.mrf.mxu0
    %v4787 = vadd.f32 %v4667, %v4786
    %v4788 = vpop.f32.mrf.mxu0
    %4789 = vmatprep.mubr.bf16.mxu0 %v4524
    %4790 = vmatmul.mubr.bf16.gmra.mxu0 %v4523
    %v4791 = vpop.f32.mrf.mxu0
    %v4792 = vadd.f32 %v4672, %v4791
    %v4793 = vpop.f32.mrf.mxu0
    %v4794 = vpop.f32.mrf.mxu0
    %v4795 = vadd.f32 %v4675, %v4794
    %v4796 = vpop.f32.mrf.mxu0
    %4797 = vmatprep.mubr.bf16.mxu0 %v4528
    %4798 = vmatmul.mubr.bf16.gmra.mxu0 %v4527
    %v4799 = vpop.f32.mrf.mxu0
    %v4800 = vadd.f32 %v4680, %v4799
    %v4801 = vpop.f32.mrf.mxu0
    %v4802 = vpop.f32.mrf.mxu0
    %v4803 = vadd.f32 %v4683, %v4802
    %v4804 = vpop.f32.mrf.mxu0
    %4805 = vmatprep.mubr.bf16.mxu0 %v4532
    %4806 = vmatmul.mubr.bf16.gmra.mxu0 %v4531
    %v4807 = vpop.f32.mrf.mxu0
    %v4808 = vadd.f32 %v4688, %v4807
    %v4809 = vpop.f32.mrf.mxu0
    %v4810 = vpop.f32.mrf.mxu0
    %v4811 = vadd.f32 %v4691, %v4810
    %v4812 = vpop.f32.mrf.mxu0
    %4813 = vmatprep.mubr.bf16.mxu0 %v4536
    %4814 = vmatmul.mubr.bf16.gmra.mxu0 %v4535
    %v4815 = vpop.f32.mrf.mxu0
    %v4816 = vadd.f32 %v4696, %v4815
    %v4817 = vpop.f32.mrf.mxu0
    %v4818 = vpop.f32.mrf.mxu0
    %v4819 = vpop.f32.mrf.mxu0
    %4820 = vdwg.mxu0
    %v4821 = vpack.c.bf16 %v4739, %v4736
    %v4822 = vpack.c.bf16 %v4747, %v4744
    %v4823 = vpack.c.bf16 %v4755, %v4752
    %v4824 = vpack.c.bf16 %v4763, %v4760
    %v4825 = vpack.c.bf16 %v4771, %v4768
    %v4826 = vpack.c.bf16 %v4779, %v4776
    %v4827 = vpack.c.bf16 %v4787, %v4784
    %v4828 = vpack.c.bf16 %v4795, %v4792
    %v4829 = vpack.c.bf16 %v4803, %v4800
    %v4830 = vpack.c.bf16 %v4811, %v4808
    %v4831 = vpack.c.bf16 %v4816, %v4816
    %s4832 = scalar_lea.vmem [#allocation6], 2016
    %v4833 = vld [vmem:[%s4832] sm:$0xff]
    %v4834 = vld [vmem:[%s4832 + $0x8] sm:$0xff]
    %v4835 = vld [vmem:[%s4832 + $0x10] sm:$0xff]
    %v4836 = vld [vmem:[%s4832 + $0x18] sm:$0xff]
    %v4837 = vld [vmem:[%s4832 + $0x20] sm:$0xff]
    %v4838 = vld [vmem:[%s4832 + $0x28] sm:$0xff]
    %v4839 = vld [vmem:[%s4832 + $0x30] sm:$0xff]
    %v4840 = vld [vmem:[%s4832 + $0x38] sm:$0xff]
    %v4841 = vld [vmem:[%s4832 + $0x40] sm:$0xff]
    %v4842 = vld [vmem:[%s4832 + $0x48] sm:$0xff]
    %v4843 = vld [vmem:[%s4832 + $0x50] sm:$0xff]
    %v4844 = vld [vmem:[%s4832 + $0x58] sm:$0xff]
    %v4845 = vld [vmem:[%s4832 + $0x60] sm:$0xff]
    %v4846 = vld [vmem:[%s4832 + $0x68] sm:$0xff]
    %v4847 = vld [vmem:[%s4832 + $0x70] sm:$0xff]
    %v4848 = vld [vmem:[%s4832 + $0x78] sm:$0xff]
    %v4849 = vld [vmem:[%s4832 + $0x80] sm:$0xff]
    %v4850 = vld [vmem:[%s4832 + $0x88] sm:$0xff]
    %v4851 = vld [vmem:[%s4832 + $0x90] sm:$0xff]
    %v4852 = vld [vmem:[%s4832 + $0x98] sm:$0xff]
    %v4853 = vld [vmem:[%s4832 + $0xa0] sm:$0xff]
    %v4854 = vld [vmem:[%s4832 + $0xa8] sm:$0xff]
    %v4855 = vld [vmem:[%s4832 + $0xb0] sm:$0xff]
    %v4856 = vld [vmem:[%s4832 + $0xb8] sm:$0xff]
    %v4857 = vld [vmem:[%s4832 + $0xc0] sm:$0xff]
    %v4858 = vld [vmem:[%s4832 + $0xc8] sm:$0xff]
    %v4859 = vld [vmem:[%s4832 + $0xd0] sm:$0xff]
    %v4860 = vld [vmem:[%s4832 + $0xd8] sm:$0xff]
    %v4861 = vld [vmem:[%s4832 + $0xe0] sm:$0xff]
    %v4862 = vld [vmem:[%s4832 + $0xe8] sm:$0xff]
    %v4863 = vld [vmem:[%s4832 + $0xf0] sm:$0xff]
    %v4864 = vld [vmem:[%s4832 + $0xf8] sm:$0xff]
    %v4865 = vld [vmem:[%s4832 + $0x100] sm:$0xff]
    %v4866 = vld [vmem:[%s4832 + $0x108] sm:$0xff]
    %v4867 = vld [vmem:[%s4832 + $0x110] sm:$0xff]
    %v4868 = vld [vmem:[%s4832 + $0x118] sm:$0xff]
    %v4869 = vld [vmem:[%s4832 + $0x120] sm:$0xff]
    %v4870 = vld [vmem:[%s4832 + $0x128] sm:$0xff]
    %v4871 = vld [vmem:[%s4832 + $0x130] sm:$0xff]
    %v4872 = vld [vmem:[%s4832 + $0x138] sm:$0xff]
    %v4873 = vld [vmem:[%s4832 + $0x140] sm:$0xff]
    %v4874 = vld [vmem:[%s4832 + $0x148] sm:$0xff]
    %v4917 = vunpack.c.l.b16 %v4833
    %v4918 = vunpack.c.h.b16 %v4833
    %v4919 = vunpack.c.l.b16 %v4834
    %v4920 = vunpack.c.h.b16 %v4834
    %v4921 = vunpack.c.l.b16 %v4835
    %v4922 = vunpack.c.h.b16 %v4835
    %v4923 = vunpack.c.l.b16 %v4836
    %v4924 = vunpack.c.h.b16 %v4836
    %v4925 = vunpack.c.l.b16 %v4837
    %v4926 = vunpack.c.h.b16 %v4837
    %v4927 = vunpack.c.l.b16 %v4838
    %v4928 = vunpack.c.h.b16 %v4838
    %v4929 = vunpack.c.l.b16 %v4839
    %v4930 = vunpack.c.h.b16 %v4839
    %v4931 = vunpack.c.l.b16 %v4840
    %v4932 = vunpack.c.h.b16 %v4840
    %v4933 = vunpack.c.l.b16 %v4841
    %v4934 = vunpack.c.h.b16 %v4841
    %v4935 = vunpack.c.l.b16 %v4842
    %v4936 = vunpack.c.h.b16 %v4842
    %v4937 = vunpack.c.l.b16 %v4843
    %v4938 = vunpack.c.h.b16 %v4843
    %v4939 = vunpack.c.l.b16 %v4844
    %v4940 = vunpack.c.h.b16 %v4844
    %v4941 = vunpack.c.l.b16 %v4845
    %v4942 = vunpack.c.h.b16 %v4845
    %v4943 = vunpack.c.l.b16 %v4846
    %v4944 = vunpack.c.h.b16 %v4846
    %v4945 = vunpack.c.l.b16 %v4847
    %v4946 = vunpack.c.h.b16 %v4847
    %v4947 = vunpack.c.l.b16 %v4848
    %v4948 = vunpack.c.h.b16 %v4848
    %v4949 = vunpack.c.l.b16 %v4849
    %v4950 = vunpack.c.h.b16 %v4849
    %v4951 = vunpack.c.l.b16 %v4850
    %v4952 = vunpack.c.h.b16 %v4850
    %v4953 = vunpack.c.l.b16 %v4851
    %v4954 = vunpack.c.h.b16 %v4851
    %v4955 = vunpack.c.l.b16 %v4852
    %v4956 = vunpack.c.h.b16 %v4852
    %v4957 = vunpack.c.l.b16 %v4853
    %v4958 = vunpack.c.h.b16 %v4853
    %v4959 = vunpack.c.l.b16 %v4854
    %v4960 = vunpack.c.h.b16 %v4854
    %v4961 = vunpack.c.l.b16 %v4855
    %v4962 = vunpack.c.h.b16 %v4855
    %v4963 = vunpack.c.l.b16 %v4856
    %v4964 = vunpack.c.h.b16 %v4856
    %v4965 = vunpack.c.l.b16 %v4857
    %v4966 = vunpack.c.h.b16 %v4857
    %v4967 = vunpack.c.l.b16 %v4858
    %v4968 = vunpack.c.h.b16 %v4858
    %v4969 = vunpack.c.l.b16 %v4859
    %v4970 = vunpack.c.h.b16 %v4859
    %v4971 = vunpack.c.l.b16 %v4860
    %v4972 = vunpack.c.h.b16 %v4860
    %v4973 = vunpack.c.l.b16 %v4861
    %v4974 = vunpack.c.h.b16 %v4861
    %v4975 = vunpack.c.l.b16 %v4862
    %v4976 = vunpack.c.h.b16 %v4862
    %v4977 = vunpack.c.l.b16 %v4863
    %v4978 = vunpack.c.h.b16 %v4863
    %v4979 = vunpack.c.l.b16 %v4864
    %v4980 = vunpack.c.h.b16 %v4864
    %v4981 = vunpack.c.l.b16 %v4865
    %v4982 = vunpack.c.h.b16 %v4865
    %v4983 = vunpack.c.l.b16 %v4866
    %v4984 = vunpack.c.h.b16 %v4866
    %v4985 = vunpack.c.l.b16 %v4867
    %v4986 = vunpack.c.h.b16 %v4867
    %v4987 = vunpack.c.l.b16 %v4868
    %v4988 = vunpack.c.h.b16 %v4868
    %v4989 = vunpack.c.l.b16 %v4869
    %v4990 = vunpack.c.h.b16 %v4869
    %v4991 = vunpack.c.l.b16 %v4870
    %v4992 = vunpack.c.h.b16 %v4870
    %v4993 = vunpack.c.l.b16 %v4871
    %v4994 = vunpack.c.h.b16 %v4871
    %v4995 = vunpack.c.l.b16 %v4872
    %v4996 = vunpack.c.h.b16 %v4872
    %v4997 = vunpack.c.l.b16 %v4873
    %v4998 = vunpack.c.h.b16 %v4873
    %v4999 = vunpack.c.l.b16 %v4874
    %v5000 = vunpack.c.h.b16 %v4874
    %v5001 = vpack.c.b16 %v4921, %v4917
    %v5002 = vpack.c.b16 %v4922, %v4918
    %v5003 = vpack.c.b16 %v4923, %v4919
    %v5004 = vpack.c.b16 %v4924, %v4920
    %v5005 = vpack.c.b16 %v4929, %v4925
    %v5006 = vpack.c.b16 %v4930, %v4926
    %v5007 = vpack.c.b16 %v4931, %v4927
    %v5008 = vpack.c.b16 %v4932, %v4928
    %v5009 = vpack.c.b16 %v4937, %v4933
    %v5010 = vpack.c.b16 %v4938, %v4934
    %v5011 = vpack.c.b16 %v4939, %v4935
    %v5012 = vpack.c.b16 %v4940, %v4936
    %v5013 = vpack.c.b16 %v4945, %v4941
    %v5014 = vpack.c.b16 %v4946, %v4942
    %v5015 = vpack.c.b16 %v4947, %v4943
    %v5016 = vpack.c.b16 %v4948, %v4944
    %v5017 = vpack.c.b16 %v4953, %v4949
    %v5018 = vpack.c.b16 %v4954, %v4950
    %v5019 = vpack.c.b16 %v4955, %v4951
    %v5020 = vpack.c.b16 %v4956, %v4952
    %v5021 = vpack.c.b16 %v4961, %v4957
    %v5022 = vpack.c.b16 %v4962, %v4958
    %v5023 = vpack.c.b16 %v4963, %v4959
    %v5024 = vpack.c.b16 %v4964, %v4960
    %v5025 = vpack.c.b16 %v4969, %v4965
    %v5026 = vpack.c.b16 %v4970, %v4966
    %v5027 = vpack.c.b16 %v4971, %v4967
    %v5028 = vpack.c.b16 %v4972, %v4968
    %v5029 = vpack.c.b16 %v4977, %v4973
    %v5030 = vpack.c.b16 %v4978, %v4974
    %v5031 = vpack.c.b16 %v4979, %v4975
    %v5032 = vpack.c.b16 %v4980, %v4976
    %v5033 = vpack.c.b16 %v4985, %v4981
    %v5034 = vpack.c.b16 %v4986, %v4982
    %v5035 = vpack.c.b16 %v4987, %v4983
    %v5036 = vpack.c.b16 %v4988, %v4984
    %v5037 = vpack.c.b16 %v4993, %v4989
    %v5038 = vpack.c.b16 %v4994, %v4990
    %v5039 = vpack.c.b16 %v4995, %v4991
    %v5040 = vpack.c.b16 %v4996, %v4992
    %v5041 = vpack.c.b16 %v4997, %v4997
    %v5042 = vpack.c.b16 %v4998, %v4998
    %v5043 = vpack.c.b16 %v4999, %v4999
    %v5044 = vpack.c.b16 %v5000, %v5000
    %5089 = vmatprep.subr.bf16.mxu0 0
    %5090 = vmatpush1.bf16.msra.mxu0 %v1739
    %5091 = vmatprep.subr.bf16.mxu0 0
    %5092 = vmatpush1.bf16.msra.mxu0 %v1738
    %5093 = vmatprep.subr.bf16.mxu0 0
    %5094 = vmatpush1.bf16.msra.mxu0 %v1737
    %5095 = vmatprep.subr.bf16.mxu0 0
    %5096 = vmatpush1.bf16.msra.mxu0 %v1736
    %5097 = vmatprep.subr.bf16.mxu0 0
    %5098 = vmatpush1.bf16.msra.mxu0 %v1735
    %5099 = vmatprep.subr.bf16.mxu0 0
    %5100 = vmatpush1.bf16.msra.mxu0 %v1734
    %5101 = vmatprep.subr.bf16.mxu0 0
    %5102 = vmatpush1.bf16.msra.mxu0 %v1733
    %5103 = vmatprep.subr.bf16.mxu0 0
    %5104 = vmatpush1.bf16.msra.mxu0 %v1732
    %5105 = vmatprep.subr.bf16.mxu0 0
    %5106 = vmatpush2.bf16.msra.mxu0 %v1747
    %5107 = vmatprep.subr.bf16.mxu0 0
    %5108 = vmatpush2.bf16.msra.mxu0 %v1746
    %5109 = vmatprep.subr.bf16.mxu0 0
    %5110 = vmatpush2.bf16.msra.mxu0 %v1745
    %5111 = vmatprep.subr.bf16.mxu0 0
    %5112 = vmatpush2.bf16.msra.mxu0 %v1744
    %5113 = vmatprep.subr.bf16.mxu0 0
    %5114 = vmatpush2.bf16.msra.mxu0 %v1743
    %5115 = vmatprep.subr.bf16.mxu0 0
    %5116 = vmatpush2.bf16.msra.mxu0 %v1742
    %5117 = vmatprep.subr.bf16.mxu0 0
    %5118 = vmatpush2.bf16.msra.mxu0 %v1741
    %5119 = vmatprep.subr.bf16.mxu0 0
    %5120 = vmatpush2.bf16.msra.mxu0 %v1740
    %5121 = vmatprep.mubr.bf16.mxu0 %v5002
    %5122 = vmatmul.mubr.bf16.gmra.mxu0 %v5001
    %v5123 = vpop.f32.mrf.mxu0
    %v5124 = vadd.f32 0.0, %v5123
    %v5125 = vpop.f32.mrf.mxu0
    %v5126 = vpop.f32.mrf.mxu0
    %v5127 = vadd.f32 0.0, %v5126
    %v5128 = vpop.f32.mrf.mxu0
    %5129 = vmatprep.mubr.bf16.mxu0 %v5006
    %5130 = vmatmul.mubr.bf16.gmra.mxu0 %v5005
    %v5131 = vpop.f32.mrf.mxu0
    %v5132 = vadd.f32 0.0, %v5131
    %v5133 = vpop.f32.mrf.mxu0
    %v5134 = vpop.f32.mrf.mxu0
    %v5135 = vadd.f32 0.0, %v5134
    %v5136 = vpop.f32.mrf.mxu0
    %5137 = vmatprep.mubr.bf16.mxu0 %v5010
    %5138 = vmatmul.mubr.bf16.gmra.mxu0 %v5009
    %v5139 = vpop.f32.mrf.mxu0
    %v5140 = vadd.f32 0.0, %v5139
    %v5141 = vpop.f32.mrf.mxu0
    %v5142 = vpop.f32.mrf.mxu0
    %v5143 = vadd.f32 0.0, %v5142
    %v5144 = vpop.f32.mrf.mxu0
    %5145 = vmatprep.mubr.bf16.mxu0 %v5014
    %5146 = vmatmul.mubr.bf16.gmra.mxu0 %v5013
    %v5147 = vpop.f32.mrf.mxu0
    %v5148 = vadd.f32 0.0, %v5147
    %v5149 = vpop.f32.mrf.mxu0
    %v5150 = vpop.f32.mrf.mxu0
    %v5151 = vadd.f32 0.0, %v5150
    %v5152 = vpop.f32.mrf.mxu0
    %5153 = vmatprep.mubr.bf16.mxu0 %v5018
    %5154 = vmatmul.mubr.bf16.gmra.mxu0 %v5017
    %v5155 = vpop.f32.mrf.mxu0
    %v5156 = vadd.f32 0.0, %v5155
    %v5157 = vpop.f32.mrf.mxu0
    %v5158 = vpop.f32.mrf.mxu0
    %v5159 = vadd.f32 0.0, %v5158
    %v5160 = vpop.f32.mrf.mxu0
    %5161 = vmatprep.mubr.bf16.mxu0 %v5022
    %5162 = vmatmul.mubr.bf16.gmra.mxu0 %v5021
    %v5163 = vpop.f32.mrf.mxu0
    %v5164 = vadd.f32 0.0, %v5163
    %v5165 = vpop.f32.mrf.mxu0
    %v5166 = vpop.f32.mrf.mxu0
    %v5167 = vadd.f32 0.0, %v5166
    %v5168 = vpop.f32.mrf.mxu0
    %5169 = vmatprep.mubr.bf16.mxu0 %v5026
    %5170 = vmatmul.mubr.bf16.gmra.mxu0 %v5025
    %v5171 = vpop.f32.mrf.mxu0
    %v5172 = vadd.f32 0.0, %v5171
    %v5173 = vpop.f32.mrf.mxu0
    %v5174 = vpop.f32.mrf.mxu0
    %v5175 = vadd.f32 0.0, %v5174
    %v5176 = vpop.f32.mrf.mxu0
    %5177 = vmatprep.mubr.bf16.mxu0 %v5030
    %5178 = vmatmul.mubr.bf16.gmra.mxu0 %v5029
    %v5179 = vpop.f32.mrf.mxu0
    %v5180 = vadd.f32 0.0, %v5179
    %v5181 = vpop.f32.mrf.mxu0
    %v5182 = vpop.f32.mrf.mxu0
    %v5183 = vadd.f32 0.0, %v5182
    %v5184 = vpop.f32.mrf.mxu0
    %5185 = vmatprep.mubr.bf16.mxu0 %v5034
    %5186 = vmatmul.mubr.bf16.gmra.mxu0 %v5033
    %v5187 = vpop.f32.mrf.mxu0
    %v5188 = vadd.f32 0.0, %v5187
    %v5189 = vpop.f32.mrf.mxu0
    %v5190 = vpop.f32.mrf.mxu0
    %v5191 = vadd.f32 0.0, %v5190
    %v5192 = vpop.f32.mrf.mxu0
    %5193 = vmatprep.mubr.bf16.mxu0 %v5038
    %5194 = vmatmul.mubr.bf16.gmra.mxu0 %v5037
    %v5195 = vpop.f32.mrf.mxu0
    %v5196 = vadd.f32 0.0, %v5195
    %v5197 = vpop.f32.mrf.mxu0
    %v5198 = vpop.f32.mrf.mxu0
    %v5199 = vadd.f32 0.0, %v5198
    %v5200 = vpop.f32.mrf.mxu0
    %5201 = vmatprep.mubr.bf16.mxu0 %v5042
    %5202 = vmatmul.mubr.bf16.gmra.mxu0 %v5041
    %v5203 = vpop.f32.mrf.mxu0
    %v5204 = vadd.f32 0.0, %v5203
    %v5205 = vpop.f32.mrf.mxu0
    %v5206 = vpop.f32.mrf.mxu0
    %v5207 = vpop.f32.mrf.mxu0
    %5208 = vdwg.mxu0
    %5209 = vmatprep.subr.bf16.mxu0 0
    %5210 = vmatpush1.bf16.msra.mxu0 %v1755
    %5211 = vmatprep.subr.bf16.mxu0 0
    %5212 = vmatpush1.bf16.msra.mxu0 %v1754
    %5213 = vmatprep.subr.bf16.mxu0 0
    %5214 = vmatpush1.bf16.msra.mxu0 %v1753
    %5215 = vmatprep.subr.bf16.mxu0 0
    %5216 = vmatpush1.bf16.msra.mxu0 %v1752
    %5217 = vmatprep.subr.bf16.mxu0 0
    %5218 = vmatpush1.bf16.msra.mxu0 %v1751
    %5219 = vmatprep.subr.bf16.mxu0 0
    %5220 = vmatpush1.bf16.msra.mxu0 %v1750
    %5221 = vmatprep.subr.bf16.mxu0 0
    %5222 = vmatpush1.bf16.msra.mxu0 %v1749
    %5223 = vmatprep.subr.bf16.mxu0 0
    %5224 = vmatpush1.bf16.msra.mxu0 %v1748
    %5225 = vmatprep.subr.bf16.mxu0 0
    %5226 = vmatpush2.bf16.msra.mxu0 %v1763
    %5227 = vmatprep.subr.bf16.mxu0 0
    %5228 = vmatpush2.bf16.msra.mxu0 %v1762
    %5229 = vmatprep.subr.bf16.mxu0 0
    %5230 = vmatpush2.bf16.msra.mxu0 %v1761
    %5231 = vmatprep.subr.bf16.mxu0 0
    %5232 = vmatpush2.bf16.msra.mxu0 %v1760
    %5233 = vmatprep.subr.bf16.mxu0 0
    %5234 = vmatpush2.bf16.msra.mxu0 %v1759
    %5235 = vmatprep.subr.bf16.mxu0 0
    %5236 = vmatpush2.bf16.msra.mxu0 %v1758
    %5237 = vmatprep.subr.bf16.mxu0 0
    %5238 = vmatpush2.bf16.msra.mxu0 %v1757
    %5239 = vmatprep.subr.bf16.mxu0 0
    %5240 = vmatpush2.bf16.msra.mxu0 %v1756
    %5241 = vmatprep.mubr.bf16.mxu0 %v5004
    %5242 = vmatmul.mubr.bf16.gmra.mxu0 %v5003
    %v5243 = vpop.f32.mrf.mxu0
    %v5244 = vadd.f32 %v5124, %v5243
    %v5245 = vpop.f32.mrf.mxu0
    %v5246 = vpop.f32.mrf.mxu0
    %v5247 = vadd.f32 %v5127, %v5246
    %v5248 = vpop.f32.mrf.mxu0
    %5249 = vmatprep.mubr.bf16.mxu0 %v5008
    %5250 = vmatmul.mubr.bf16.gmra.mxu0 %v5007
    %v5251 = vpop.f32.mrf.mxu0
    %v5252 = vadd.f32 %v5132, %v5251
    %v5253 = vpop.f32.mrf.mxu0
    %v5254 = vpop.f32.mrf.mxu0
    %v5255 = vadd.f32 %v5135, %v5254
    %v5256 = vpop.f32.mrf.mxu0
    %5257 = vmatprep.mubr.bf16.mxu0 %v5012
    %5258 = vmatmul.mubr.bf16.gmra.mxu0 %v5011
    %v5259 = vpop.f32.mrf.mxu0
    %v5260 = vadd.f32 %v5140, %v5259
    %v5261 = vpop.f32.mrf.mxu0
    %v5262 = vpop.f32.mrf.mxu0
    %v5263 = vadd.f32 %v5143, %v5262
    %v5264 = vpop.f32.mrf.mxu0
    %5265 = vmatprep.mubr.bf16.mxu0 %v5016
    %5266 = vmatmul.mubr.bf16.gmra.mxu0 %v5015
    %v5267 = vpop.f32.mrf.mxu0
    %v5268 = vadd.f32 %v5148, %v5267
    %v5269 = vpop.f32.mrf.mxu0
    %v5270 = vpop.f32.mrf.mxu0
    %v5271 = vadd.f32 %v5151, %v5270
    %v5272 = vpop.f32.mrf.mxu0
    %5273 = vmatprep.mubr.bf16.mxu0 %v5020
    %5274 = vmatmul.mubr.bf16.gmra.mxu0 %v5019
    %v5275 = vpop.f32.mrf.mxu0
    %v5276 = vadd.f32 %v5156, %v5275
    %v5277 = vpop.f32.mrf.mxu0
    %v5278 = vpop.f32.mrf.mxu0
    %v5279 = vadd.f32 %v5159, %v5278
    %v5280 = vpop.f32.mrf.mxu0
    %5281 = vmatprep.mubr.bf16.mxu0 %v5024
    %5282 = vmatmul.mubr.bf16.gmra.mxu0 %v5023
    %v5283 = vpop.f32.mrf.mxu0
    %v5284 = vadd.f32 %v5164, %v5283
    %v5285 = vpop.f32.mrf.mxu0
    %v5286 = vpop.f32.mrf.mxu0
    %v5287 = vadd.f32 %v5167, %v5286
    %v5288 = vpop.f32.mrf.mxu0
    %5289 = vmatprep.mubr.bf16.mxu0 %v5028
    %5290 = vmatmul.mubr.bf16.gmra.mxu0 %v5027
    %v5291 = vpop.f32.mrf.mxu0
    %v5292 = vadd.f32 %v5172, %v5291
    %v5293 = vpop.f32.mrf.mxu0
    %v5294 = vpop.f32.mrf.mxu0
    %v5295 = vadd.f32 %v5175, %v5294
    %v5296 = vpop.f32.mrf.mxu0
    %5297 = vmatprep.mubr.bf16.mxu0 %v5032
    %5298 = vmatmul.mubr.bf16.gmra.mxu0 %v5031
    %v5299 = vpop.f32.mrf.mxu0
    %v5300 = vadd.f32 %v5180, %v5299
    %v5301 = vpop.f32.mrf.mxu0
    %v5302 = vpop.f32.mrf.mxu0
    %v5303 = vadd.f32 %v5183, %v5302
    %v5304 = vpop.f32.mrf.mxu0
    %5305 = vmatprep.mubr.bf16.mxu0 %v5036
    %5306 = vmatmul.mubr.bf16.gmra.mxu0 %v5035
    %v5307 = vpop.f32.mrf.mxu0
    %v5308 = vadd.f32 %v5188, %v5307
    %v5309 = vpop.f32.mrf.mxu0
    %v5310 = vpop.f32.mrf.mxu0
    %v5311 = vadd.f32 %v5191, %v5310
    %v5312 = vpop.f32.mrf.mxu0
    %5313 = vmatprep.mubr.bf16.mxu0 %v5040
    %5314 = vmatmul.mubr.bf16.gmra.mxu0 %v5039
    %v5315 = vpop.f32.mrf.mxu0
    %v5316 = vadd.f32 %v5196, %v5315
    %v5317 = vpop.f32.mrf.mxu0
    %v5318 = vpop.f32.mrf.mxu0
    %v5319 = vadd.f32 %v5199, %v5318
    %v5320 = vpop.f32.mrf.mxu0
    %5321 = vmatprep.mubr.bf16.mxu0 %v5044
    %5322 = vmatmul.mubr.bf16.gmra.mxu0 %v5043
    %v5323 = vpop.f32.mrf.mxu0
    %v5324 = vadd.f32 %v5204, %v5323
    %v5325 = vpop.f32.mrf.mxu0
    %v5326 = vpop.f32.mrf.mxu0
    %v5327 = vpop.f32.mrf.mxu0
    %5328 = vdwg.mxu0
    %v5329 = vpack.c.bf16 %v5247, %v5244
    %v5330 = vpack.c.bf16 %v5255, %v5252
    %v5331 = vpack.c.bf16 %v5263, %v5260
    %v5332 = vpack.c.bf16 %v5271, %v5268
    %v5333 = vpack.c.bf16 %v5279, %v5276
    %v5334 = vpack.c.bf16 %v5287, %v5284
    %v5335 = vpack.c.bf16 %v5295, %v5292
    %v5336 = vpack.c.bf16 %v5303, %v5300
    %v5337 = vpack.c.bf16 %v5311, %v5308
    %v5338 = vpack.c.bf16 %v5319, %v5316
    %v5339 = vpack.c.bf16 %v5324, %v5324
    %s5340 = scalar_lea.vmem [#allocation6], 2352
    %v5341 = vld [vmem:[%s5340] sm:$0xff]
    %v5342 = vld [vmem:[%s5340 + $0x8] sm:$0xff]
    %v5343 = vld [vmem:[%s5340 + $0x10] sm:$0xff]
    %v5344 = vld [vmem:[%s5340 + $0x18] sm:$0xff]
    %v5345 = vld [vmem:[%s5340 + $0x20] sm:$0xff]
    %v5346 = vld [vmem:[%s5340 + $0x28] sm:$0xff]
    %v5347 = vld [vmem:[%s5340 + $0x30] sm:$0xff]
    %v5348 = vld [vmem:[%s5340 + $0x38] sm:$0xff]
    %v5349 = vld [vmem:[%s5340 + $0x40] sm:$0xff]
    %v5350 = vld [vmem:[%s5340 + $0x48] sm:$0xff]
    %v5351 = vld [vmem:[%s5340 + $0x50] sm:$0xff]
    %v5352 = vld [vmem:[%s5340 + $0x58] sm:$0xff]
    %v5353 = vld [vmem:[%s5340 + $0x60] sm:$0xff]
    %v5354 = vld [vmem:[%s5340 + $0x68] sm:$0xff]
    %v5355 = vld [vmem:[%s5340 + $0x70] sm:$0xff]
    %v5356 = vld [vmem:[%s5340 + $0x78] sm:$0xff]
    %v5357 = vld [vmem:[%s5340 + $0x80] sm:$0xff]
    %v5358 = vld [vmem:[%s5340 + $0x88] sm:$0xff]
    %v5359 = vld [vmem:[%s5340 + $0x90] sm:$0xff]
    %v5360 = vld [vmem:[%s5340 + $0x98] sm:$0xff]
    %v5361 = vld [vmem:[%s5340 + $0xa0] sm:$0xff]
    %v5362 = vld [vmem:[%s5340 + $0xa8] sm:$0xff]
    %v5363 = vld [vmem:[%s5340 + $0xb0] sm:$0xff]
    %v5364 = vld [vmem:[%s5340 + $0xb8] sm:$0xff]
    %v5365 = vld [vmem:[%s5340 + $0xc0] sm:$0xff]
    %v5366 = vld [vmem:[%s5340 + $0xc8] sm:$0xff]
    %v5367 = vld [vmem:[%s5340 + $0xd0] sm:$0xff]
    %v5368 = vld [vmem:[%s5340 + $0xd8] sm:$0xff]
    %v5369 = vld [vmem:[%s5340 + $0xe0] sm:$0xff]
    %v5370 = vld [vmem:[%s5340 + $0xe8] sm:$0xff]
    %v5371 = vld [vmem:[%s5340 + $0xf0] sm:$0xff]
    %v5372 = vld [vmem:[%s5340 + $0xf8] sm:$0xff]
    %v5373 = vld [vmem:[%s5340 + $0x100] sm:$0xff]
    %v5374 = vld [vmem:[%s5340 + $0x108] sm:$0xff]
    %v5375 = vld [vmem:[%s5340 + $0x110] sm:$0xff]
    %v5376 = vld [vmem:[%s5340 + $0x118] sm:$0xff]
    %v5377 = vld [vmem:[%s5340 + $0x120] sm:$0xff]
    %v5378 = vld [vmem:[%s5340 + $0x128] sm:$0xff]
    %v5379 = vld [vmem:[%s5340 + $0x130] sm:$0xff]
    %v5380 = vld [vmem:[%s5340 + $0x138] sm:$0xff]
    %v5381 = vld [vmem:[%s5340 + $0x140] sm:$0xff]
    %v5382 = vld [vmem:[%s5340 + $0x148] sm:$0xff]
    %v5425 = vunpack.c.l.b16 %v5341
    %v5426 = vunpack.c.h.b16 %v5341
    %v5427 = vunpack.c.l.b16 %v5342
    %v5428 = vunpack.c.h.b16 %v5342
    %v5429 = vunpack.c.l.b16 %v5343
    %v5430 = vunpack.c.h.b16 %v5343
    %v5431 = vunpack.c.l.b16 %v5344
    %v5432 = vunpack.c.h.b16 %v5344
    %v5433 = vunpack.c.l.b16 %v5345
    %v5434 = vunpack.c.h.b16 %v5345
    %v5435 = vunpack.c.l.b16 %v5346
    %v5436 = vunpack.c.h.b16 %v5346
    %v5437 = vunpack.c.l.b16 %v5347
    %v5438 = vunpack.c.h.b16 %v5347
    %v5439 = vunpack.c.l.b16 %v5348
    %v5440 = vunpack.c.h.b16 %v5348
    %v5441 = vunpack.c.l.b16 %v5349
    %v5442 = vunpack.c.h.b16 %v5349
    %v5443 = vunpack.c.l.b16 %v5350
    %v5444 = vunpack.c.h.b16 %v5350
    %v5445 = vunpack.c.l.b16 %v5351
    %v5446 = vunpack.c.h.b16 %v5351
    %v5447 = vunpack.c.l.b16 %v5352
    %v5448 = vunpack.c.h.b16 %v5352
    %v5449 = vunpack.c.l.b16 %v5353
    %v5450 = vunpack.c.h.b16 %v5353
    %v5451 = vunpack.c.l.b16 %v5354
    %v5452 = vunpack.c.h.b16 %v5354
    %v5453 = vunpack.c.l.b16 %v5355
    %v5454 = vunpack.c.h.b16 %v5355
    %v5455 = vunpack.c.l.b16 %v5356
    %v5456 = vunpack.c.h.b16 %v5356
    %v5457 = vunpack.c.l.b16 %v5357
    %v5458 = vunpack.c.h.b16 %v5357
    %v5459 = vunpack.c.l.b16 %v5358
    %v5460 = vunpack.c.h.b16 %v5358
    %v5461 = vunpack.c.l.b16 %v5359
    %v5462 = vunpack.c.h.b16 %v5359
    %v5463 = vunpack.c.l.b16 %v5360
    %v5464 = vunpack.c.h.b16 %v5360
    %v5465 = vunpack.c.l.b16 %v5361
    %v5466 = vunpack.c.h.b16 %v5361
    %v5467 = vunpack.c.l.b16 %v5362
    %v5468 = vunpack.c.h.b16 %v5362
    %v5469 = vunpack.c.l.b16 %v5363
    %v5470 = vunpack.c.h.b16 %v5363
    %v5471 = vunpack.c.l.b16 %v5364
    %v5472 = vunpack.c.h.b16 %v5364
    %v5473 = vunpack.c.l.b16 %v5365
    %v5474 = vunpack.c.h.b16 %v5365
    %v5475 = vunpack.c.l.b16 %v5366
    %v5476 = vunpack.c.h.b16 %v5366
    %v5477 = vunpack.c.l.b16 %v5367
    %v5478 = vunpack.c.h.b16 %v5367
    %v5479 = vunpack.c.l.b16 %v5368
    %v5480 = vunpack.c.h.b16 %v5368
    %v5481 = vunpack.c.l.b16 %v5369
    %v5482 = vunpack.c.h.b16 %v5369
    %v5483 = vunpack.c.l.b16 %v5370
    %v5484 = vunpack.c.h.b16 %v5370
    %v5485 = vunpack.c.l.b16 %v5371
    %v5486 = vunpack.c.h.b16 %v5371
    %v5487 = vunpack.c.l.b16 %v5372
    %v5488 = vunpack.c.h.b16 %v5372
    %v5489 = vunpack.c.l.b16 %v5373
    %v5490 = vunpack.c.h.b16 %v5373
    %v5491 = vunpack.c.l.b16 %v5374
    %v5492 = vunpack.c.h.b16 %v5374
    %v5493 = vunpack.c.l.b16 %v5375
    %v5494 = vunpack.c.h.b16 %v5375
    %v5495 = vunpack.c.l.b16 %v5376
    %v5496 = vunpack.c.h.b16 %v5376
    %v5497 = vunpack.c.l.b16 %v5377
    %v5498 = vunpack.c.h.b16 %v5377
    %v5499 = vunpack.c.l.b16 %v5378
    %v5500 = vunpack.c.h.b16 %v5378
    %v5501 = vunpack.c.l.b16 %v5379
    %v5502 = vunpack.c.h.b16 %v5379
    %v5503 = vunpack.c.l.b16 %v5380
    %v5504 = vunpack.c.h.b16 %v5380
    %v5505 = vunpack.c.l.b16 %v5381
    %v5506 = vunpack.c.h.b16 %v5381
    %v5507 = vunpack.c.l.b16 %v5382
    %v5508 = vunpack.c.h.b16 %v5382
    %v5509 = vpack.c.b16 %v5429, %v5425
    %v5510 = vpack.c.b16 %v5430, %v5426
    %v5511 = vpack.c.b16 %v5431, %v5427
    %v5512 = vpack.c.b16 %v5432, %v5428
    %v5513 = vpack.c.b16 %v5437, %v5433
    %v5514 = vpack.c.b16 %v5438, %v5434
    %v5515 = vpack.c.b16 %v5439, %v5435
    %v5516 = vpack.c.b16 %v5440, %v5436
    %v5517 = vpack.c.b16 %v5445, %v5441
    %v5518 = vpack.c.b16 %v5446, %v5442
    %v5519 = vpack.c.b16 %v5447, %v5443
    %v5520 = vpack.c.b16 %v5448, %v5444
    %v5521 = vpack.c.b16 %v5453, %v5449
    %v5522 = vpack.c.b16 %v5454, %v5450
    %v5523 = vpack.c.b16 %v5455, %v5451
    %v5524 = vpack.c.b16 %v5456, %v5452
    %v5525 = vpack.c.b16 %v5461, %v5457
    %v5526 = vpack.c.b16 %v5462, %v5458
    %v5527 = vpack.c.b16 %v5463, %v5459
    %v5528 = vpack.c.b16 %v5464, %v5460
    %v5529 = vpack.c.b16 %v5469, %v5465
    %v5530 = vpack.c.b16 %v5470, %v5466
    %v5531 = vpack.c.b16 %v5471, %v5467
    %v5532 = vpack.c.b16 %v5472, %v5468
    %v5533 = vpack.c.b16 %v5477, %v5473
    %v5534 = vpack.c.b16 %v5478, %v5474
    %v5535 = vpack.c.b16 %v5479, %v5475
    %v5536 = vpack.c.b16 %v5480, %v5476
    %v5537 = vpack.c.b16 %v5485, %v5481
    %v5538 = vpack.c.b16 %v5486, %v5482
    %v5539 = vpack.c.b16 %v5487, %v5483
    %v5540 = vpack.c.b16 %v5488, %v5484
    %v5541 = vpack.c.b16 %v5493, %v5489
    %v5542 = vpack.c.b16 %v5494, %v5490
    %v5543 = vpack.c.b16 %v5495, %v5491
    %v5544 = vpack.c.b16 %v5496, %v5492
    %v5545 = vpack.c.b16 %v5501, %v5497
    %v5546 = vpack.c.b16 %v5502, %v5498
    %v5547 = vpack.c.b16 %v5503, %v5499
    %v5548 = vpack.c.b16 %v5504, %v5500
    %v5549 = vpack.c.b16 %v5505, %v5505
    %v5550 = vpack.c.b16 %v5506, %v5506
    %v5551 = vpack.c.b16 %v5507, %v5507
    %v5552 = vpack.c.b16 %v5508, %v5508
    %5597 = vmatprep.subr.bf16.mxu0 0
    %5598 = vmatpush1.bf16.msra.mxu0 %v1739
    %5599 = vmatprep.subr.bf16.mxu0 0
    %5600 = vmatpush1.bf16.msra.mxu0 %v1738
    %5601 = vmatprep.subr.bf16.mxu0 0
    %5602 = vmatpush1.bf16.msra.mxu0 %v1737
    %5603 = vmatprep.subr.bf16.mxu0 0
    %5604 = vmatpush1.bf16.msra.mxu0 %v1736
    %5605 = vmatprep.subr.bf16.mxu0 0
    %5606 = vmatpush1.bf16.msra.mxu0 %v1735
    %5607 = vmatprep.subr.bf16.mxu0 0
    %5608 = vmatpush1.bf16.msra.mxu0 %v1734
    %5609 = vmatprep.subr.bf16.mxu0 0
    %5610 = vmatpush1.bf16.msra.mxu0 %v1733
    %5611 = vmatprep.subr.bf16.mxu0 0
    %5612 = vmatpush1.bf16.msra.mxu0 %v1732
    %5613 = vmatprep.subr.bf16.mxu0 0
    %5614 = vmatpush2.bf16.msra.mxu0 %v1747
    %5615 = vmatprep.subr.bf16.mxu0 0
    %5616 = vmatpush2.bf16.msra.mxu0 %v1746
    %5617 = vmatprep.subr.bf16.mxu0 0
    %5618 = vmatpush2.bf16.msra.mxu0 %v1745
    %5619 = vmatprep.subr.bf16.mxu0 0
    %5620 = vmatpush2.bf16.msra.mxu0 %v1744
    %5621 = vmatprep.subr.bf16.mxu0 0
    %5622 = vmatpush2.bf16.msra.mxu0 %v1743
    %5623 = vmatprep.subr.bf16.mxu0 0
    %5624 = vmatpush2.bf16.msra.mxu0 %v1742
    %5625 = vmatprep.subr.bf16.mxu0 0
    %5626 = vmatpush2.bf16.msra.mxu0 %v1741
    %5627 = vmatprep.subr.bf16.mxu0 0
    %5628 = vmatpush2.bf16.msra.mxu0 %v1740
    %5629 = vmatprep.mubr.bf16.mxu0 %v5510
    %5630 = vmatmul.mubr.bf16.gmra.mxu0 %v5509
    %v5631 = vpop.f32.mrf.mxu0
    %v5632 = vadd.f32 0.0, %v5631
    %v5633 = vpop.f32.mrf.mxu0
    %v5634 = vpop.f32.mrf.mxu0
    %v5635 = vadd.f32 0.0, %v5634
    %v5636 = vpop.f32.mrf.mxu0
    %5637 = vmatprep.mubr.bf16.mxu0 %v5514
    %5638 = vmatmul.mubr.bf16.gmra.mxu0 %v5513
    %v5639 = vpop.f32.mrf.mxu0
    %v5640 = vadd.f32 0.0, %v5639
    %v5641 = vpop.f32.mrf.mxu0
    %v5642 = vpop.f32.mrf.mxu0
    %v5643 = vadd.f32 0.0, %v5642
    %v5644 = vpop.f32.mrf.mxu0
    %5645 = vmatprep.mubr.bf16.mxu0 %v5518
    %5646 = vmatmul.mubr.bf16.gmra.mxu0 %v5517
    %v5647 = vpop.f32.mrf.mxu0
    %v5648 = vadd.f32 0.0, %v5647
    %v5649 = vpop.f32.mrf.mxu0
    %v5650 = vpop.f32.mrf.mxu0
    %v5651 = vadd.f32 0.0, %v5650
    %v5652 = vpop.f32.mrf.mxu0
    %5653 = vmatprep.mubr.bf16.mxu0 %v5522
    %5654 = vmatmul.mubr.bf16.gmra.mxu0 %v5521
    %v5655 = vpop.f32.mrf.mxu0
    %v5656 = vadd.f32 0.0, %v5655
    %v5657 = vpop.f32.mrf.mxu0
    %v5658 = vpop.f32.mrf.mxu0
    %v5659 = vadd.f32 0.0, %v5658
    %v5660 = vpop.f32.mrf.mxu0
    %5661 = vmatprep.mubr.bf16.mxu0 %v5526
    %5662 = vmatmul.mubr.bf16.gmra.mxu0 %v5525
    %v5663 = vpop.f32.mrf.mxu0
    %v5664 = vadd.f32 0.0, %v5663
    %v5665 = vpop.f32.mrf.mxu0
    %v5666 = vpop.f32.mrf.mxu0
    %v5667 = vadd.f32 0.0, %v5666
    %v5668 = vpop.f32.mrf.mxu0
    %5669 = vmatprep.mubr.bf16.mxu0 %v5530
    %5670 = vmatmul.mubr.bf16.gmra.mxu0 %v5529
    %v5671 = vpop.f32.mrf.mxu0
    %v5672 = vadd.f32 0.0, %v5671
    %v5673 = vpop.f32.mrf.mxu0
    %v5674 = vpop.f32.mrf.mxu0
    %v5675 = vadd.f32 0.0, %v5674
    %v5676 = vpop.f32.mrf.mxu0
    %5677 = vmatprep.mubr.bf16.mxu0 %v5534
    %5678 = vmatmul.mubr.bf16.gmra.mxu0 %v5533
    %v5679 = vpop.f32.mrf.mxu0
    %v5680 = vadd.f32 0.0, %v5679
    %v5681 = vpop.f32.mrf.mxu0
    %v5682 = vpop.f32.mrf.mxu0
    %v5683 = vadd.f32 0.0, %v5682
    %v5684 = vpop.f32.mrf.mxu0
    %5685 = vmatprep.mubr.bf16.mxu0 %v5538
    %5686 = vmatmul.mubr.bf16.gmra.mxu0 %v5537
    %v5687 = vpop.f32.mrf.mxu0
    %v5688 = vadd.f32 0.0, %v5687
    %v5689 = vpop.f32.mrf.mxu0
    %v5690 = vpop.f32.mrf.mxu0
    %v5691 = vadd.f32 0.0, %v5690
    %v5692 = vpop.f32.mrf.mxu0
    %5693 = vmatprep.mubr.bf16.mxu0 %v5542
    %5694 = vmatmul.mubr.bf16.gmra.mxu0 %v5541
    %v5695 = vpop.f32.mrf.mxu0
    %v5696 = vadd.f32 0.0, %v5695
    %v5697 = vpop.f32.mrf.mxu0
    %v5698 = vpop.f32.mrf.mxu0
    %v5699 = vadd.f32 0.0, %v5698
    %v5700 = vpop.f32.mrf.mxu0
    %5701 = vmatprep.mubr.bf16.mxu0 %v5546
    %5702 = vmatmul.mubr.bf16.gmra.mxu0 %v5545
    %v5703 = vpop.f32.mrf.mxu0
    %v5704 = vadd.f32 0.0, %v5703
    %v5705 = vpop.f32.mrf.mxu0
    %v5706 = vpop.f32.mrf.mxu0
    %v5707 = vadd.f32 0.0, %v5706
    %v5708 = vpop.f32.mrf.mxu0
    %5709 = vmatprep.mubr.bf16.mxu0 %v5550
    %5710 = vmatmul.mubr.bf16.gmra.mxu0 %v5549
    %v5711 = vpop.f32.mrf.mxu0
    %v5712 = vadd.f32 0.0, %v5711
    %v5713 = vpop.f32.mrf.mxu0
    %v5714 = vpop.f32.mrf.mxu0
    %v5715 = vpop.f32.mrf.mxu0
    %5716 = vdwg.mxu0
    %5717 = vmatprep.subr.bf16.mxu0 0
    %5718 = vmatpush1.bf16.msra.mxu0 %v1755
    %5719 = vmatprep.subr.bf16.mxu0 0
    %5720 = vmatpush1.bf16.msra.mxu0 %v1754
    %5721 = vmatprep.subr.bf16.mxu0 0
    %5722 = vmatpush1.bf16.msra.mxu0 %v1753
    %5723 = vmatprep.subr.bf16.mxu0 0
    %5724 = vmatpush1.bf16.msra.mxu0 %v1752
    %5725 = vmatprep.subr.bf16.mxu0 0
    %5726 = vmatpush1.bf16.msra.mxu0 %v1751
    %5727 = vmatprep.subr.bf16.mxu0 0
    %5728 = vmatpush1.bf16.msra.mxu0 %v1750
    %5729 = vmatprep.subr.bf16.mxu0 0
    %5730 = vmatpush1.bf16.msra.mxu0 %v1749
    %5731 = vmatprep.subr.bf16.mxu0 0
    %5732 = vmatpush1.bf16.msra.mxu0 %v1748
    %5733 = vmatprep.subr.bf16.mxu0 0
    %5734 = vmatpush2.bf16.msra.mxu0 %v1763
    %5735 = vmatprep.subr.bf16.mxu0 0
    %5736 = vmatpush2.bf16.msra.mxu0 %v1762
    %5737 = vmatprep.subr.bf16.mxu0 0
    %5738 = vmatpush2.bf16.msra.mxu0 %v1761
    %5739 = vmatprep.subr.bf16.mxu0 0
    %5740 = vmatpush2.bf16.msra.mxu0 %v1760
    %5741 = vmatprep.subr.bf16.mxu0 0
    %5742 = vmatpush2.bf16.msra.mxu0 %v1759
    %5743 = vmatprep.subr.bf16.mxu0 0
    %5744 = vmatpush2.bf16.msra.mxu0 %v1758
    %5745 = vmatprep.subr.bf16.mxu0 0
    %5746 = vmatpush2.bf16.msra.mxu0 %v1757
    %5747 = vmatprep.subr.bf16.mxu0 0
    %5748 = vmatpush2.bf16.msra.mxu0 %v1756
    %5749 = vmatprep.mubr.bf16.mxu0 %v5512
    %5750 = vmatmul.mubr.bf16.gmra.mxu0 %v5511
    %v5751 = vpop.f32.mrf.mxu0
    %v5752 = vadd.f32 %v5632, %v5751
    %v5753 = vpop.f32.mrf.mxu0
    %v5754 = vpop.f32.mrf.mxu0
    %v5755 = vadd.f32 %v5635, %v5754
    %v5756 = vpop.f32.mrf.mxu0
    %5757 = vmatprep.mubr.bf16.mxu0 %v5516
    %5758 = vmatmul.mubr.bf16.gmra.mxu0 %v5515
    %v5759 = vpop.f32.mrf.mxu0
    %v5760 = vadd.f32 %v5640, %v5759
    %v5761 = vpop.f32.mrf.mxu0
    %v5762 = vpop.f32.mrf.mxu0
    %v5763 = vadd.f32 %v5643, %v5762
    %v5764 = vpop.f32.mrf.mxu0
    %5765 = vmatprep.mubr.bf16.mxu0 %v5520
    %5766 = vmatmul.mubr.bf16.gmra.mxu0 %v5519
    %v5767 = vpop.f32.mrf.mxu0
    %v5768 = vadd.f32 %v5648, %v5767
    %v5769 = vpop.f32.mrf.mxu0
    %v5770 = vpop.f32.mrf.mxu0
    %v5771 = vadd.f32 %v5651, %v5770
    %v5772 = vpop.f32.mrf.mxu0
    %5773 = vmatprep.mubr.bf16.mxu0 %v5524
    %5774 = vmatmul.mubr.bf16.gmra.mxu0 %v5523
    %v5775 = vpop.f32.mrf.mxu0
    %v5776 = vadd.f32 %v5656, %v5775
    %v5777 = vpop.f32.mrf.mxu0
    %v5778 = vpop.f32.mrf.mxu0
    %v5779 = vadd.f32 %v5659, %v5778
    %v5780 = vpop.f32.mrf.mxu0
    %5781 = vmatprep.mubr.bf16.mxu0 %v5528
    %5782 = vmatmul.mubr.bf16.gmra.mxu0 %v5527
    %v5783 = vpop.f32.mrf.mxu0
    %v5784 = vadd.f32 %v5664, %v5783
    %v5785 = vpop.f32.mrf.mxu0
    %v5786 = vpop.f32.mrf.mxu0
    %v5787 = vadd.f32 %v5667, %v5786
    %v5788 = vpop.f32.mrf.mxu0
    %5789 = vmatprep.mubr.bf16.mxu0 %v5532
    %5790 = vmatmul.mubr.bf16.gmra.mxu0 %v5531
    %v5791 = vpop.f32.mrf.mxu0
    %v5792 = vadd.f32 %v5672, %v5791
    %v5793 = vpop.f32.mrf.mxu0
    %v5794 = vpop.f32.mrf.mxu0
    %v5795 = vadd.f32 %v5675, %v5794
    %v5796 = vpop.f32.mrf.mxu0
    %5797 = vmatprep.mubr.bf16.mxu0 %v5536
    %5798 = vmatmul.mubr.bf16.gmra.mxu0 %v5535
    %v5799 = vpop.f32.mrf.mxu0
    %v5800 = vadd.f32 %v5680, %v5799
    %v5801 = vpop.f32.mrf.mxu0
    %v5802 = vpop.f32.mrf.mxu0
    %v5803 = vadd.f32 %v5683, %v5802
    %v5804 = vpop.f32.mrf.mxu0
    %5805 = vmatprep.mubr.bf16.mxu0 %v5540
    %5806 = vmatmul.mubr.bf16.gmra.mxu0 %v5539
    %v5807 = vpop.f32.mrf.mxu0
    %v5808 = vadd.f32 %v5688, %v5807
    %v5809 = vpop.f32.mrf.mxu0
    %v5810 = vpop.f32.mrf.mxu0
    %v5811 = vadd.f32 %v5691, %v5810
    %v5812 = vpop.f32.mrf.mxu0
    %5813 = vmatprep.mubr.bf16.mxu0 %v5544
    %5814 = vmatmul.mubr.bf16.gmra.mxu0 %v5543
    %v5815 = vpop.f32.mrf.mxu0
    %v5816 = vadd.f32 %v5696, %v5815
    %v5817 = vpop.f32.mrf.mxu0
    %v5818 = vpop.f32.mrf.mxu0
    %v5819 = vadd.f32 %v5699, %v5818
    %v5820 = vpop.f32.mrf.mxu0
    %5821 = vmatprep.mubr.bf16.mxu0 %v5548
    %5822 = vmatmul.mubr.bf16.gmra.mxu0 %v5547
    %v5823 = vpop.f32.mrf.mxu0
    %v5824 = vadd.f32 %v5704, %v5823
    %v5825 = vpop.f32.mrf.mxu0
    %v5826 = vpop.f32.mrf.mxu0
    %v5827 = vadd.f32 %v5707, %v5826
    %v5828 = vpop.f32.mrf.mxu0
    %5829 = vmatprep.mubr.bf16.mxu0 %v5552
    %5830 = vmatmul.mubr.bf16.gmra.mxu0 %v5551
    %v5831 = vpop.f32.mrf.mxu0
    %v5832 = vadd.f32 %v5712, %v5831
    %v5833 = vpop.f32.mrf.mxu0
    %v5834 = vpop.f32.mrf.mxu0
    %v5835 = vpop.f32.mrf.mxu0
    %5836 = vdwg.mxu0
    %v5837 = vpack.c.bf16 %v5755, %v5752
    %v5838 = vpack.c.bf16 %v5763, %v5760
    %v5839 = vpack.c.bf16 %v5771, %v5768
    %v5840 = vpack.c.bf16 %v5779, %v5776
    %v5841 = vpack.c.bf16 %v5787, %v5784
    %v5842 = vpack.c.bf16 %v5795, %v5792
    %v5843 = vpack.c.bf16 %v5803, %v5800
    %v5844 = vpack.c.bf16 %v5811, %v5808
    %v5845 = vpack.c.bf16 %v5819, %v5816
    %v5846 = vpack.c.bf16 %v5827, %v5824
    %v5847 = vpack.c.bf16 %v5832, %v5832
    %s5848 = scalar_lea.vmem [#allocation6], 2688
    %v5849 = vld [vmem:[%s5848] sm:$0xff]
    %v5850 = vld [vmem:[%s5848 + $0x8] sm:$0xff]
    %v5851 = vld [vmem:[%s5848 + $0x10] sm:$0xff]
    %v5852 = vld [vmem:[%s5848 + $0x18] sm:$0xff]
    %v5853 = vld [vmem:[%s5848 + $0x20] sm:$0xff]
    %v5854 = vld [vmem:[%s5848 + $0x28] sm:$0xff]
    %v5855 = vld [vmem:[%s5848 + $0x30] sm:$0xff]
    %v5856 = vld [vmem:[%s5848 + $0x38] sm:$0xff]
    %v5857 = vld [vmem:[%s5848 + $0x40] sm:$0xff]
    %v5858 = vld [vmem:[%s5848 + $0x48] sm:$0xff]
    %v5859 = vld [vmem:[%s5848 + $0x50] sm:$0xff]
    %v5860 = vld [vmem:[%s5848 + $0x58] sm:$0xff]
    %v5861 = vld [vmem:[%s5848 + $0x60] sm:$0xff]
    %v5862 = vld [vmem:[%s5848 + $0x68] sm:$0xff]
    %v5863 = vld [vmem:[%s5848 + $0x70] sm:$0xff]
    %v5864 = vld [vmem:[%s5848 + $0x78] sm:$0xff]
    %v5865 = vld [vmem:[%s5848 + $0x80] sm:$0xff]
    %v5866 = vld [vmem:[%s5848 + $0x88] sm:$0xff]
    %v5867 = vld [vmem:[%s5848 + $0x90] sm:$0xff]
    %v5868 = vld [vmem:[%s5848 + $0x98] sm:$0xff]
    %v5869 = vld [vmem:[%s5848 + $0xa0] sm:$0xff]
    %v5870 = vld [vmem:[%s5848 + $0xa8] sm:$0xff]
    %v5871 = vld [vmem:[%s5848 + $0xb0] sm:$0xff]
    %v5872 = vld [vmem:[%s5848 + $0xb8] sm:$0xff]
    %v5873 = vld [vmem:[%s5848 + $0xc0] sm:$0xff]
    %v5874 = vld [vmem:[%s5848 + $0xc8] sm:$0xff]
    %v5875 = vld [vmem:[%s5848 + $0xd0] sm:$0xff]
    %v5876 = vld [vmem:[%s5848 + $0xd8] sm:$0xff]
    %v5877 = vld [vmem:[%s5848 + $0xe0] sm:$0xff]
    %v5878 = vld [vmem:[%s5848 + $0xe8] sm:$0xff]
    %v5879 = vld [vmem:[%s5848 + $0xf0] sm:$0xff]
    %v5880 = vld [vmem:[%s5848 + $0xf8] sm:$0xff]
    %v5881 = vld [vmem:[%s5848 + $0x100] sm:$0xff]
    %v5882 = vld [vmem:[%s5848 + $0x108] sm:$0xff]
    %v5883 = vld [vmem:[%s5848 + $0x110] sm:$0xff]
    %v5884 = vld [vmem:[%s5848 + $0x118] sm:$0xff]
    %v5885 = vld [vmem:[%s5848 + $0x120] sm:$0xff]
    %v5886 = vld [vmem:[%s5848 + $0x128] sm:$0xff]
    %v5887 = vld [vmem:[%s5848 + $0x130] sm:$0xff]
    %v5888 = vld [vmem:[%s5848 + $0x138] sm:$0xff]
    %v5889 = vld [vmem:[%s5848 + $0x140] sm:$0xff]
    %v5890 = vld [vmem:[%s5848 + $0x148] sm:$0xff]
    %v5933 = vunpack.c.l.b16 %v5849
    %v5934 = vunpack.c.h.b16 %v5849
    %v5935 = vunpack.c.l.b16 %v5850
    %v5936 = vunpack.c.h.b16 %v5850
    %v5937 = vunpack.c.l.b16 %v5851
    %v5938 = vunpack.c.h.b16 %v5851
    %v5939 = vunpack.c.l.b16 %v5852
    %v5940 = vunpack.c.h.b16 %v5852
    %v5941 = vunpack.c.l.b16 %v5853
    %v5942 = vunpack.c.h.b16 %v5853
    %v5943 = vunpack.c.l.b16 %v5854
    %v5944 = vunpack.c.h.b16 %v5854
    %v5945 = vunpack.c.l.b16 %v5855
    %v5946 = vunpack.c.h.b16 %v5855
    %v5947 = vunpack.c.l.b16 %v5856
    %v5948 = vunpack.c.h.b16 %v5856
    %v5949 = vunpack.c.l.b16 %v5857
    %v5950 = vunpack.c.h.b16 %v5857
    %v5951 = vunpack.c.l.b16 %v5858
    %v5952 = vunpack.c.h.b16 %v5858
    %v5953 = vunpack.c.l.b16 %v5859
    %v5954 = vunpack.c.h.b16 %v5859
    %v5955 = vunpack.c.l.b16 %v5860
    %v5956 = vunpack.c.h.b16 %v5860
    %v5957 = vunpack.c.l.b16 %v5861
    %v5958 = vunpack.c.h.b16 %v5861
    %v5959 = vunpack.c.l.b16 %v5862
    %v5960 = vunpack.c.h.b16 %v5862
    %v5961 = vunpack.c.l.b16 %v5863
    %v5962 = vunpack.c.h.b16 %v5863
    %v5963 = vunpack.c.l.b16 %v5864
    %v5964 = vunpack.c.h.b16 %v5864
    %v5965 = vunpack.c.l.b16 %v5865
    %v5966 = vunpack.c.h.b16 %v5865
    %v5967 = vunpack.c.l.b16 %v5866
    %v5968 = vunpack.c.h.b16 %v5866
    %v5969 = vunpack.c.l.b16 %v5867
    %v5970 = vunpack.c.h.b16 %v5867
    %v5971 = vunpack.c.l.b16 %v5868
    %v5972 = vunpack.c.h.b16 %v5868
    %v5973 = vunpack.c.l.b16 %v5869
    %v5974 = vunpack.c.h.b16 %v5869
    %v5975 = vunpack.c.l.b16 %v5870
    %v5976 = vunpack.c.h.b16 %v5870
    %v5977 = vunpack.c.l.b16 %v5871
    %v5978 = vunpack.c.h.b16 %v5871
    %v5979 = vunpack.c.l.b16 %v5872
    %v5980 = vunpack.c.h.b16 %v5872
    %v5981 = vunpack.c.l.b16 %v5873
    %v5982 = vunpack.c.h.b16 %v5873
    %v5983 = vunpack.c.l.b16 %v5874
    %v5984 = vunpack.c.h.b16 %v5874
    %v5985 = vunpack.c.l.b16 %v5875
    %v5986 = vunpack.c.h.b16 %v5875
    %v5987 = vunpack.c.l.b16 %v5876
    %v5988 = vunpack.c.h.b16 %v5876
    %v5989 = vunpack.c.l.b16 %v5877
    %v5990 = vunpack.c.h.b16 %v5877
    %v5991 = vunpack.c.l.b16 %v5878
    %v5992 = vunpack.c.h.b16 %v5878
    %v5993 = vunpack.c.l.b16 %v5879
    %v5994 = vunpack.c.h.b16 %v5879
    %v5995 = vunpack.c.l.b16 %v5880
    %v5996 = vunpack.c.h.b16 %v5880
    %v5997 = vunpack.c.l.b16 %v5881
    %v5998 = vunpack.c.h.b16 %v5881
    %v5999 = vunpack.c.l.b16 %v5882
    %v6000 = vunpack.c.h.b16 %v5882
    %v6001 = vunpack.c.l.b16 %v5883
    %v6002 = vunpack.c.h.b16 %v5883
    %v6003 = vunpack.c.l.b16 %v5884
    %v6004 = vunpack.c.h.b16 %v5884
    %v6005 = vunpack.c.l.b16 %v5885
    %v6006 = vunpack.c.h.b16 %v5885
    %v6007 = vunpack.c.l.b16 %v5886
    %v6008 = vunpack.c.h.b16 %v5886
    %v6009 = vunpack.c.l.b16 %v5887
    %v6010 = vunpack.c.h.b16 %v5887
    %v6011 = vunpack.c.l.b16 %v5888
    %v6012 = vunpack.c.h.b16 %v5888
    %v6013 = vunpack.c.l.b16 %v5889
    %v6014 = vunpack.c.h.b16 %v5889
    %v6015 = vunpack.c.l.b16 %v5890
    %v6016 = vunpack.c.h.b16 %v5890
    %v6017 = vpack.c.b16 %v5937, %v5933
    %v6018 = vpack.c.b16 %v5938, %v5934
    %v6019 = vpack.c.b16 %v5939, %v5935
    %v6020 = vpack.c.b16 %v5940, %v5936
    %v6021 = vpack.c.b16 %v5945, %v5941
    %v6022 = vpack.c.b16 %v5946, %v5942
    %v6023 = vpack.c.b16 %v5947, %v5943
    %v6024 = vpack.c.b16 %v5948, %v5944
    %v6025 = vpack.c.b16 %v5953, %v5949
    %v6026 = vpack.c.b16 %v5954, %v5950
    %v6027 = vpack.c.b16 %v5955, %v5951
    %v6028 = vpack.c.b16 %v5956, %v5952
    %v6029 = vpack.c.b16 %v5961, %v5957
    %v6030 = vpack.c.b16 %v5962, %v5958
    %v6031 = vpack.c.b16 %v5963, %v5959
    %v6032 = vpack.c.b16 %v5964, %v5960
    %v6033 = vpack.c.b16 %v5969, %v5965
    %v6034 = vpack.c.b16 %v5970, %v5966
    %v6035 = vpack.c.b16 %v5971, %v5967
    %v6036 = vpack.c.b16 %v5972, %v5968
    %v6037 = vpack.c.b16 %v5977, %v5973
    %v6038 = vpack.c.b16 %v5978, %v5974
    %v6039 = vpack.c.b16 %v5979, %v5975
    %v6040 = vpack.c.b16 %v5980, %v5976
    %v6041 = vpack.c.b16 %v5985, %v5981
    %v6042 = vpack.c.b16 %v5986, %v5982
    %v6043 = vpack.c.b16 %v5987, %v5983
    %v6044 = vpack.c.b16 %v5988, %v5984
    %v6045 = vpack.c.b16 %v5993, %v5989
    %v6046 = vpack.c.b16 %v5994, %v5990
    %v6047 = vpack.c.b16 %v5995, %v5991
    %v6048 = vpack.c.b16 %v5996, %v5992
    %v6049 = vpack.c.b16 %v6001, %v5997
    %v6050 = vpack.c.b16 %v6002, %v5998
    %v6051 = vpack.c.b16 %v6003, %v5999
    %v6052 = vpack.c.b16 %v6004, %v6000
    %v6053 = vpack.c.b16 %v6009, %v6005
    %v6054 = vpack.c.b16 %v6010, %v6006
    %v6055 = vpack.c.b16 %v6011, %v6007
    %v6056 = vpack.c.b16 %v6012, %v6008
    %v6057 = vpack.c.b16 %v6013, %v6013
    %v6058 = vpack.c.b16 %v6014, %v6014
    %v6059 = vpack.c.b16 %v6015, %v6015
    %v6060 = vpack.c.b16 %v6016, %v6016
    %6105 = vmatprep.subr.bf16.mxu0 0
    %6106 = vmatpush1.bf16.msra.mxu0 %v1739
    %6107 = vmatprep.subr.bf16.mxu0 0
    %6108 = vmatpush1.bf16.msra.mxu0 %v1738
    %6109 = vmatprep.subr.bf16.mxu0 0
    %6110 = vmatpush1.bf16.msra.mxu0 %v1737
    %6111 = vmatprep.subr.bf16.mxu0 0
    %6112 = vmatpush1.bf16.msra.mxu0 %v1736
    %6113 = vmatprep.subr.bf16.mxu0 0
    %6114 = vmatpush1.bf16.msra.mxu0 %v1735
    %6115 = vmatprep.subr.bf16.mxu0 0
    %6116 = vmatpush1.bf16.msra.mxu0 %v1734
    %6117 = vmatprep.subr.bf16.mxu0 0
    %6118 = vmatpush1.bf16.msra.mxu0 %v1733
    %6119 = vmatprep.subr.bf16.mxu0 0
    %6120 = vmatpush1.bf16.msra.mxu0 %v1732
    %6121 = vmatprep.subr.bf16.mxu0 0
    %6122 = vmatpush2.bf16.msra.mxu0 %v1747
    %6123 = vmatprep.subr.bf16.mxu0 0
    %6124 = vmatpush2.bf16.msra.mxu0 %v1746
    %6125 = vmatprep.subr.bf16.mxu0 0
    %6126 = vmatpush2.bf16.msra.mxu0 %v1745
    %6127 = vmatprep.subr.bf16.mxu0 0
    %6128 = vmatpush2.bf16.msra.mxu0 %v1744
    %6129 = vmatprep.subr.bf16.mxu0 0
    %6130 = vmatpush2.bf16.msra.mxu0 %v1743
    %6131 = vmatprep.subr.bf16.mxu0 0
    %6132 = vmatpush2.bf16.msra.mxu0 %v1742
    %6133 = vmatprep.subr.bf16.mxu0 0
    %6134 = vmatpush2.bf16.msra.mxu0 %v1741
    %6135 = vmatprep.subr.bf16.mxu0 0
    %6136 = vmatpush2.bf16.msra.mxu0 %v1740
    %6137 = vmatprep.mubr.bf16.mxu0 %v6018
    %6138 = vmatmul.mubr.bf16.gmra.mxu0 %v6017
    %v6139 = vpop.f32.mrf.mxu0
    %v6140 = vadd.f32 0.0, %v6139
    %v6141 = vpop.f32.mrf.mxu0
    %v6142 = vpop.f32.mrf.mxu0
    %v6143 = vadd.f32 0.0, %v6142
    %v6144 = vpop.f32.mrf.mxu0
    %6145 = vmatprep.mubr.bf16.mxu0 %v6022
    %6146 = vmatmul.mubr.bf16.gmra.mxu0 %v6021
    %v6147 = vpop.f32.mrf.mxu0
    %v6148 = vadd.f32 0.0, %v6147
    %v6149 = vpop.f32.mrf.mxu0
    %v6150 = vpop.f32.mrf.mxu0
    %v6151 = vadd.f32 0.0, %v6150
    %v6152 = vpop.f32.mrf.mxu0
    %6153 = vmatprep.mubr.bf16.mxu0 %v6026
    %6154 = vmatmul.mubr.bf16.gmra.mxu0 %v6025
    %v6155 = vpop.f32.mrf.mxu0
    %v6156 = vadd.f32 0.0, %v6155
    %v6157 = vpop.f32.mrf.mxu0
    %v6158 = vpop.f32.mrf.mxu0
    %v6159 = vadd.f32 0.0, %v6158
    %v6160 = vpop.f32.mrf.mxu0
    %6161 = vmatprep.mubr.bf16.mxu0 %v6030
    %6162 = vmatmul.mubr.bf16.gmra.mxu0 %v6029
    %v6163 = vpop.f32.mrf.mxu0
    %v6164 = vadd.f32 0.0, %v6163
    %v6165 = vpop.f32.mrf.mxu0
    %v6166 = vpop.f32.mrf.mxu0
    %v6167 = vadd.f32 0.0, %v6166
    %v6168 = vpop.f32.mrf.mxu0
    %6169 = vmatprep.mubr.bf16.mxu0 %v6034
    %6170 = vmatmul.mubr.bf16.gmra.mxu0 %v6033
    %v6171 = vpop.f32.mrf.mxu0
    %v6172 = vadd.f32 0.0, %v6171
    %v6173 = vpop.f32.mrf.mxu0
    %v6174 = vpop.f32.mrf.mxu0
    %v6175 = vadd.f32 0.0, %v6174
    %v6176 = vpop.f32.mrf.mxu0
    %6177 = vmatprep.mubr.bf16.mxu0 %v6038
    %6178 = vmatmul.mubr.bf16.gmra.mxu0 %v6037
    %v6179 = vpop.f32.mrf.mxu0
    %v6180 = vadd.f32 0.0, %v6179
    %v6181 = vpop.f32.mrf.mxu0
    %v6182 = vpop.f32.mrf.mxu0
    %v6183 = vadd.f32 0.0, %v6182
    %v6184 = vpop.f32.mrf.mxu0
    %6185 = vmatprep.mubr.bf16.mxu0 %v6042
    %6186 = vmatmul.mubr.bf16.gmra.mxu0 %v6041
    %v6187 = vpop.f32.mrf.mxu0
    %v6188 = vadd.f32 0.0, %v6187
    %v6189 = vpop.f32.mrf.mxu0
    %v6190 = vpop.f32.mrf.mxu0
    %v6191 = vadd.f32 0.0, %v6190
    %v6192 = vpop.f32.mrf.mxu0
    %6193 = vmatprep.mubr.bf16.mxu0 %v6046
    %6194 = vmatmul.mubr.bf16.gmra.mxu0 %v6045
    %v6195 = vpop.f32.mrf.mxu0
    %v6196 = vadd.f32 0.0, %v6195
    %v6197 = vpop.f32.mrf.mxu0
    %v6198 = vpop.f32.mrf.mxu0
    %v6199 = vadd.f32 0.0, %v6198
    %v6200 = vpop.f32.mrf.mxu0
    %6201 = vmatprep.mubr.bf16.mxu0 %v6050
    %6202 = vmatmul.mubr.bf16.gmra.mxu0 %v6049
    %v6203 = vpop.f32.mrf.mxu0
    %v6204 = vadd.f32 0.0, %v6203
    %v6205 = vpop.f32.mrf.mxu0
    %v6206 = vpop.f32.mrf.mxu0
    %v6207 = vadd.f32 0.0, %v6206
    %v6208 = vpop.f32.mrf.mxu0
    %6209 = vmatprep.mubr.bf16.mxu0 %v6054
    %6210 = vmatmul.mubr.bf16.gmra.mxu0 %v6053
    %v6211 = vpop.f32.mrf.mxu0
    %v6212 = vadd.f32 0.0, %v6211
    %v6213 = vpop.f32.mrf.mxu0
    %v6214 = vpop.f32.mrf.mxu0
    %v6215 = vadd.f32 0.0, %v6214
    %v6216 = vpop.f32.mrf.mxu0
    %6217 = vmatprep.mubr.bf16.mxu0 %v6058
    %6218 = vmatmul.mubr.bf16.gmra.mxu0 %v6057
    %v6219 = vpop.f32.mrf.mxu0
    %v6220 = vadd.f32 0.0, %v6219
    %v6221 = vpop.f32.mrf.mxu0
    %v6222 = vpop.f32.mrf.mxu0
    %v6223 = vpop.f32.mrf.mxu0
    %6224 = vdwg.mxu0
    %6225 = vmatprep.subr.bf16.mxu0 0
    %6226 = vmatpush1.bf16.msra.mxu0 %v1755
    %6227 = vmatprep.subr.bf16.mxu0 0
    %6228 = vmatpush1.bf16.msra.mxu0 %v1754
    %6229 = vmatprep.subr.bf16.mxu0 0
    %6230 = vmatpush1.bf16.msra.mxu0 %v1753
    %6231 = vmatprep.subr.bf16.mxu0 0
    %6232 = vmatpush1.bf16.msra.mxu0 %v1752
    %6233 = vmatprep.subr.bf16.mxu0 0
    %6234 = vmatpush1.bf16.msra.mxu0 %v1751
    %6235 = vmatprep.subr.bf16.mxu0 0
    %6236 = vmatpush1.bf16.msra.mxu0 %v1750
    %6237 = vmatprep.subr.bf16.mxu0 0
    %6238 = vmatpush1.bf16.msra.mxu0 %v1749
    %6239 = vmatprep.subr.bf16.mxu0 0
    %6240 = vmatpush1.bf16.msra.mxu0 %v1748
    %6241 = vmatprep.subr.bf16.mxu0 0
    %6242 = vmatpush2.bf16.msra.mxu0 %v1763
    %6243 = vmatprep.subr.bf16.mxu0 0
    %6244 = vmatpush2.bf16.msra.mxu0 %v1762
    %6245 = vmatprep.subr.bf16.mxu0 0
    %6246 = vmatpush2.bf16.msra.mxu0 %v1761
    %6247 = vmatprep.subr.bf16.mxu0 0
    %6248 = vmatpush2.bf16.msra.mxu0 %v1760
    %6249 = vmatprep.subr.bf16.mxu0 0
    %6250 = vmatpush2.bf16.msra.mxu0 %v1759
    %6251 = vmatprep.subr.bf16.mxu0 0
    %6252 = vmatpush2.bf16.msra.mxu0 %v1758
    %6253 = vmatprep.subr.bf16.mxu0 0
    %6254 = vmatpush2.bf16.msra.mxu0 %v1757
    %6255 = vmatprep.subr.bf16.mxu0 0
    %6256 = vmatpush2.bf16.msra.mxu0 %v1756
    %6257 = vmatprep.mubr.bf16.mxu0 %v6020
    %6258 = vmatmul.mubr.bf16.gmra.mxu0 %v6019
    %v6259 = vpop.f32.mrf.mxu0
    %v6260 = vadd.f32 %v6140, %v6259
    %v6261 = vpop.f32.mrf.mxu0
    %v6262 = vpop.f32.mrf.mxu0
    %v6263 = vadd.f32 %v6143, %v6262
    %v6264 = vpop.f32.mrf.mxu0
    %6265 = vmatprep.mubr.bf16.mxu0 %v6024
    %6266 = vmatmul.mubr.bf16.gmra.mxu0 %v6023
    %v6267 = vpop.f32.mrf.mxu0
    %v6268 = vadd.f32 %v6148, %v6267
    %v6269 = vpop.f32.mrf.mxu0
    %v6270 = vpop.f32.mrf.mxu0
    %v6271 = vadd.f32 %v6151, %v6270
    %v6272 = vpop.f32.mrf.mxu0
    %6273 = vmatprep.mubr.bf16.mxu0 %v6028
    %6274 = vmatmul.mubr.bf16.gmra.mxu0 %v6027
    %v6275 = vpop.f32.mrf.mxu0
    %v6276 = vadd.f32 %v6156, %v6275
    %v6277 = vpop.f32.mrf.mxu0
    %v6278 = vpop.f32.mrf.mxu0
    %v6279 = vadd.f32 %v6159, %v6278
    %v6280 = vpop.f32.mrf.mxu0
    %6281 = vmatprep.mubr.bf16.mxu0 %v6032
    %6282 = vmatmul.mubr.bf16.gmra.mxu0 %v6031
    %v6283 = vpop.f32.mrf.mxu0
    %v6284 = vadd.f32 %v6164, %v6283
    %v6285 = vpop.f32.mrf.mxu0
    %v6286 = vpop.f32.mrf.mxu0
    %v6287 = vadd.f32 %v6167, %v6286
    %v6288 = vpop.f32.mrf.mxu0
    %6289 = vmatprep.mubr.bf16.mxu0 %v6036
    %6290 = vmatmul.mubr.bf16.gmra.mxu0 %v6035
    %v6291 = vpop.f32.mrf.mxu0
    %v6292 = vadd.f32 %v6172, %v6291
    %v6293 = vpop.f32.mrf.mxu0
    %v6294 = vpop.f32.mrf.mxu0
    %v6295 = vadd.f32 %v6175, %v6294
    %v6296 = vpop.f32.mrf.mxu0
    %6297 = vmatprep.mubr.bf16.mxu0 %v6040
    %6298 = vmatmul.mubr.bf16.gmra.mxu0 %v6039
    %v6299 = vpop.f32.mrf.mxu0
    %v6300 = vadd.f32 %v6180, %v6299
    %v6301 = vpop.f32.mrf.mxu0
    %v6302 = vpop.f32.mrf.mxu0
    %v6303 = vadd.f32 %v6183, %v6302
    %v6304 = vpop.f32.mrf.mxu0
    %6305 = vmatprep.mubr.bf16.mxu0 %v6044
    %6306 = vmatmul.mubr.bf16.gmra.mxu0 %v6043
    %v6307 = vpop.f32.mrf.mxu0
    %v6308 = vadd.f32 %v6188, %v6307
    %v6309 = vpop.f32.mrf.mxu0
    %v6310 = vpop.f32.mrf.mxu0
    %v6311 = vadd.f32 %v6191, %v6310
    %v6312 = vpop.f32.mrf.mxu0
    %6313 = vmatprep.mubr.bf16.mxu0 %v6048
    %6314 = vmatmul.mubr.bf16.gmra.mxu0 %v6047
    %v6315 = vpop.f32.mrf.mxu0
    %v6316 = vadd.f32 %v6196, %v6315
    %v6317 = vpop.f32.mrf.mxu0
    %v6318 = vpop.f32.mrf.mxu0
    %v6319 = vadd.f32 %v6199, %v6318
    %v6320 = vpop.f32.mrf.mxu0
    %6321 = vmatprep.mubr.bf16.mxu0 %v6052
    %6322 = vmatmul.mubr.bf16.gmra.mxu0 %v6051
    %v6323 = vpop.f32.mrf.mxu0
    %v6324 = vadd.f32 %v6204, %v6323
    %v6325 = vpop.f32.mrf.mxu0
    %v6326 = vpop.f32.mrf.mxu0
    %v6327 = vadd.f32 %v6207, %v6326
    %v6328 = vpop.f32.mrf.mxu0
    %6329 = vmatprep.mubr.bf16.mxu0 %v6056
    %6330 = vmatmul.mubr.bf16.gmra.mxu0 %v6055
    %v6331 = vpop.f32.mrf.mxu0
    %v6332 = vadd.f32 %v6212, %v6331
    %v6333 = vpop.f32.mrf.mxu0
    %v6334 = vpop.f32.mrf.mxu0
    %v6335 = vadd.f32 %v6215, %v6334
    %v6336 = vpop.f32.mrf.mxu0
    %6337 = vmatprep.mubr.bf16.mxu0 %v6060
    %6338 = vmatmul.mubr.bf16.gmra.mxu0 %v6059
    %v6339 = vpop.f32.mrf.mxu0
    %v6340 = vadd.f32 %v6220, %v6339
    %v6341 = vpop.f32.mrf.mxu0
    %v6342 = vpop.f32.mrf.mxu0
    %v6343 = vpop.f32.mrf.mxu0
    %6344 = vdwg.mxu0
    %v6345 = vpack.c.bf16 %v6263, %v6260
    %v6346 = vpack.c.bf16 %v6271, %v6268
    %v6347 = vpack.c.bf16 %v6279, %v6276
    %v6348 = vpack.c.bf16 %v6287, %v6284
    %v6349 = vpack.c.bf16 %v6295, %v6292
    %v6350 = vpack.c.bf16 %v6303, %v6300
    %v6351 = vpack.c.bf16 %v6311, %v6308
    %v6352 = vpack.c.bf16 %v6319, %v6316
    %v6353 = vpack.c.bf16 %v6327, %v6324
    %v6354 = vpack.c.bf16 %v6335, %v6332
    %v6355 = vpack.c.bf16 %v6340, %v6340
    %6367 = vrot.lane.b32.xlu0 %v2789, 32
    %v6368 = vpop.permute.xlu0 %6367
    %6369 = vrot.lane.b32.xlu0 %v2790, 32
    %v6370 = vpop.permute.xlu0 %6369
    %6371 = vrot.lane.b32.xlu0 %v2791, 32
    %v6372 = vpop.permute.xlu0 %6371
    %6373 = vrot.lane.b32.xlu0 %v2792, 32
    %v6374 = vpop.permute.xlu0 %6373
    %6375 = vrot.lane.b32.xlu0 %v2793, 32
    %v6376 = vpop.permute.xlu0 %6375
    %6377 = vrot.lane.b32.xlu0 %v2794, 32
    %v6378 = vpop.permute.xlu0 %6377
    %6379 = vrot.lane.b32.xlu0 %v2795, 32
    %v6380 = vpop.permute.xlu0 %6379
    %6381 = vrot.lane.b32.xlu0 %v2796, 32
    %v6382 = vpop.permute.xlu0 %6381
    %6383 = vrot.lane.b32.xlu0 %v2797, 32
    %v6384 = vpop.permute.xlu0 %6383
    %6385 = vrot.lane.b32.xlu0 %v2798, 32
    %v6386 = vpop.permute.xlu0 %6385
    %6387 = vrot.lane.b32.xlu0 %v2799, 32
    %v6388 = vpop.permute.xlu0 %6387
    %6400 = vrot.lane.b32.xlu0 %v3297, 64
    %v6401 = vpop.permute.xlu0 %6400
    %6402 = vrot.lane.b32.xlu0 %v3298, 64
    %v6403 = vpop.permute.xlu0 %6402
    %6404 = vrot.lane.b32.xlu0 %v3299, 64
    %v6405 = vpop.permute.xlu0 %6404
    %6406 = vrot.lane.b32.xlu0 %v3300, 64
    %v6407 = vpop.permute.xlu0 %6406
    %6408 = vrot.lane.b32.xlu0 %v3301, 64
    %v6409 = vpop.permute.xlu0 %6408
    %6410 = vrot.lane.b32.xlu0 %v3302, 64
    %v6411 = vpop.permute.xlu0 %6410
    %6412 = vrot.lane.b32.xlu0 %v3303, 64
    %v6413 = vpop.permute.xlu0 %6412
    %6414 = vrot.lane.b32.xlu0 %v3304, 64
    %v6415 = vpop.permute.xlu0 %6414
    %6416 = vrot.lane.b32.xlu0 %v3305, 64
    %v6417 = vpop.permute.xlu0 %6416
    %6418 = vrot.lane.b32.xlu0 %v3306, 64
    %v6419 = vpop.permute.xlu0 %6418
    %6420 = vrot.lane.b32.xlu0 %v3307, 64
    %v6421 = vpop.permute.xlu0 %6420
    %6433 = vrot.lane.b32.xlu0 %v3805, 96
    %v6434 = vpop.permute.xlu0 %6433
    %6435 = vrot.lane.b32.xlu0 %v3806, 96
    %v6436 = vpop.permute.xlu0 %6435
    %6437 = vrot.lane.b32.xlu0 %v3807, 96
    %v6438 = vpop.permute.xlu0 %6437
    %6439 = vrot.lane.b32.xlu0 %v3808, 96
    %v6440 = vpop.permute.xlu0 %6439
    %6441 = vrot.lane.b32.xlu0 %v3809, 96
    %v6442 = vpop.permute.xlu0 %6441
    %6443 = vrot.lane.b32.xlu0 %v3810, 96
    %v6444 = vpop.permute.xlu0 %6443
    %6445 = vrot.lane.b32.xlu0 %v3811, 96
    %v6446 = vpop.permute.xlu0 %6445
    %6447 = vrot.lane.b32.xlu0 %v3812, 96
    %v6448 = vpop.permute.xlu0 %6447
    %6449 = vrot.lane.b32.xlu0 %v3813, 96
    %v6450 = vpop.permute.xlu0 %6449
    %6451 = vrot.lane.b32.xlu0 %v3814, 96
    %v6452 = vpop.permute.xlu0 %6451
    %6453 = vrot.lane.b32.xlu0 %v3815, 96
    %v6454 = vpop.permute.xlu0 %6453
    %6466 = vrot.lane.b32.xlu0 %v4821, 32
    %v6467 = vpop.permute.xlu0 %6466
    %6468 = vrot.lane.b32.xlu0 %v4822, 32
    %v6469 = vpop.permute.xlu0 %6468
    %6470 = vrot.lane.b32.xlu0 %v4823, 32
    %v6471 = vpop.permute.xlu0 %6470
    %6472 = vrot.lane.b32.xlu0 %v4824, 32
    %v6473 = vpop.permute.xlu0 %6472
    %6474 = vrot.lane.b32.xlu0 %v4825, 32
    %v6475 = vpop.permute.xlu0 %6474
    %6476 = vrot.lane.b32.xlu0 %v4826, 32
    %v6477 = vpop.permute.xlu0 %6476
    %6478 = vrot.lane.b32.xlu0 %v4827, 32
    %v6479 = vpop.permute.xlu0 %6478
    %6480 = vrot.lane.b32.xlu0 %v4828, 32
    %v6481 = vpop.permute.xlu0 %6480
    %6482 = vrot.lane.b32.xlu0 %v4829, 32
    %v6483 = vpop.permute.xlu0 %6482
    %6484 = vrot.lane.b32.xlu0 %v4830, 32
    %v6485 = vpop.permute.xlu0 %6484
    %6486 = vrot.lane.b32.xlu0 %v4831, 32
    %v6487 = vpop.permute.xlu0 %6486
    %6499 = vrot.lane.b32.xlu0 %v5329, 64
    %v6500 = vpop.permute.xlu0 %6499
    %6501 = vrot.lane.b32.xlu0 %v5330, 64
    %v6502 = vpop.permute.xlu0 %6501
    %6503 = vrot.lane.b32.xlu0 %v5331, 64
    %v6504 = vpop.permute.xlu0 %6503
    %6505 = vrot.lane.b32.xlu0 %v5332, 64
    %v6506 = vpop.permute.xlu0 %6505
    %6507 = vrot.lane.b32.xlu0 %v5333, 64
    %v6508 = vpop.permute.xlu0 %6507
    %6509 = vrot.lane.b32.xlu0 %v5334, 64
    %v6510 = vpop.permute.xlu0 %6509
    %6511 = vrot.lane.b32.xlu0 %v5335, 64
    %v6512 = vpop.permute.xlu0 %6511
    %6513 = vrot.lane.b32.xlu0 %v5336, 64
    %v6514 = vpop.permute.xlu0 %6513
    %6515 = vrot.lane.b32.xlu0 %v5337, 64
    %v6516 = vpop.permute.xlu0 %6515
    %6517 = vrot.lane.b32.xlu0 %v5338, 64
    %v6518 = vpop.permute.xlu0 %6517
    %6519 = vrot.lane.b32.xlu0 %v5339, 64
    %v6520 = vpop.permute.xlu0 %6519
    %6532 = vrot.lane.b32.xlu0 %v5837, 96
    %v6533 = vpop.permute.xlu0 %6532
    %6534 = vrot.lane.b32.xlu0 %v5838, 96
    %v6535 = vpop.permute.xlu0 %6534
    %6536 = vrot.lane.b32.xlu0 %v5839, 96
    %v6537 = vpop.permute.xlu0 %6536
    %6538 = vrot.lane.b32.xlu0 %v5840, 96
    %v6539 = vpop.permute.xlu0 %6538
    %6540 = vrot.lane.b32.xlu0 %v5841, 96
    %v6541 = vpop.permute.xlu0 %6540
    %6542 = vrot.lane.b32.xlu0 %v5842, 96
    %v6543 = vpop.permute.xlu0 %6542
    %6544 = vrot.lane.b32.xlu0 %v5843, 96
    %v6545 = vpop.permute.xlu0 %6544
    %6546 = vrot.lane.b32.xlu0 %v5844, 96
    %v6547 = vpop.permute.xlu0 %6546
    %6548 = vrot.lane.b32.xlu0 %v5845, 96
    %v6549 = vpop.permute.xlu0 %6548
    %6550 = vrot.lane.b32.xlu0 %v5846, 96
    %v6551 = vpop.permute.xlu0 %6550
    %6552 = vrot.lane.b32.xlu0 %v5847, 96
    %v6553 = vpop.permute.xlu0 %6552
    %vm6554 = vcmask 261120
    %v6557 = vsel %vm6554, %v2281, %v6368
    %v6560 = vsel %vm6554, %v2282, %v6370
    %v6563 = vsel %vm6554, %v2283, %v6372
    %v6566 = vsel %vm6554, %v2284, %v6374
    %v6569 = vsel %vm6554, %v2285, %v6376
    %v6572 = vsel %vm6554, %v2286, %v6378
    %v6575 = vsel %vm6554, %v2287, %v6380
    %v6578 = vsel %vm6554, %v2288, %v6382
    %v6581 = vsel %vm6554, %v2289, %v6384
    %v6584 = vsel %vm6554, %v2290, %v6386
    %v6587 = vsel %vm6554, %v2291, %v6388
    %vm6588 = vcmask 523264
    %v6590 = vsel %vm6588, %v6557, %v6401
    %v6592 = vsel %vm6588, %v6560, %v6403
    %v6594 = vsel %vm6588, %v6563, %v6405
    %v6596 = vsel %vm6588, %v6566, %v6407
    %v6598 = vsel %vm6588, %v6569, %v6409
    %v6600 = vsel %vm6588, %v6572, %v6411
    %v6602 = vsel %vm6588, %v6575, %v6413
    %v6604 = vsel %vm6588, %v6578, %v6415
    %v6606 = vsel %vm6588, %v6581, %v6417
    %v6608 = vsel %vm6588, %v6584, %v6419
    %v6610 = vsel %vm6588, %v6587, %v6421
    %vm6611 = vcmask 785408
    %v6613 = vsel %vm6611, %v6590, %v6434
    %v6616 = vsel %vm6611, %v6592, %v6436
    %v6619 = vsel %vm6611, %v6594, %v6438
    %v6622 = vsel %vm6611, %v6596, %v6440
    %v6625 = vsel %vm6611, %v6598, %v6442
    %v6628 = vsel %vm6611, %v6600, %v6444
    %v6631 = vsel %vm6611, %v6602, %v6446
    %v6634 = vsel %vm6611, %v6604, %v6448
    %v6637 = vsel %vm6611, %v6606, %v6450
    %v6640 = vsel %vm6611, %v6608, %v6452
    %v6643 = vsel %vm6611, %v6610, %v6454
    %v6647 = vsel %vm6554, %v4313, %v6467
    %v6650 = vsel %vm6554, %v4314, %v6469
    %v6653 = vsel %vm6554, %v4315, %v6471
    %v6656 = vsel %vm6554, %v4316, %v6473
    %v6659 = vsel %vm6554, %v4317, %v6475
    %v6662 = vsel %vm6554, %v4318, %v6477
    %v6665 = vsel %vm6554, %v4319, %v6479
    %v6668 = vsel %vm6554, %v4320, %v6481
    %v6671 = vsel %vm6554, %v4321, %v6483
    %v6674 = vsel %vm6554, %v4322, %v6485
    %v6677 = vsel %vm6554, %v4323, %v6487
    %v6679 = vsel %vm6588, %v6647, %v6500
    %v6681 = vsel %vm6588, %v6650, %v6502
    %v6683 = vsel %vm6588, %v6653, %v6504
    %v6685 = vsel %vm6588, %v6656, %v6506
    %v6687 = vsel %vm6588, %v6659, %v6508
    %v6689 = vsel %vm6588, %v6662, %v6510
    %v6691 = vsel %vm6588, %v6665, %v6512
    %v6693 = vsel %vm6588, %v6668, %v6514
    %v6695 = vsel %vm6588, %v6671, %v6516
    %v6697 = vsel %vm6588, %v6674, %v6518
    %v6699 = vsel %vm6588, %v6677, %v6520
    %v6701 = vsel %vm6611, %v6679, %v6533
    %v6704 = vsel %vm6611, %v6681, %v6535
    %v6707 = vsel %vm6611, %v6683, %v6537
    %v6710 = vsel %vm6611, %v6685, %v6539
    %v6713 = vsel %vm6611, %v6687, %v6541
    %v6716 = vsel %vm6611, %v6689, %v6543
    %v6719 = vsel %vm6611, %v6691, %v6545
    %v6722 = vsel %vm6611, %v6693, %v6547
    %v6725 = vsel %vm6611, %v6695, %v6549
    %v6728 = vsel %vm6611, %v6697, %v6551
    %v6731 = vsel %vm6611, %v6699, %v6553
    %v6733 = vld [vmem:[%s5] sm:$0xf]
    %v6734 = vld [vmem:[%s5 + $0x4] sm:$0xf]
    %v6735 = vld [vmem:[%s5 + $0x8] sm:$0xf]
    %v6736 = vld [vmem:[%s5 + $0xc] sm:$0xf]
    %v6737 = vld [vmem:[%s5 + $0x10] sm:$0xf]
    %v6738 = vld [vmem:[%s5 + $0x14] sm:$0xf]
    %v6739 = vld [vmem:[%s5 + $0x18] sm:$0xf]
    %v6740 = vld [vmem:[%s5 + $0x1c] sm:$0xf]
    %v6741 = vld [vmem:[%s5 + $0x20] sm:$0xf]
    %v6742 = vld [vmem:[%s5 + $0x24] sm:$0xf]
    %v6743 = vld [vmem:[%s5 + $0x28] sm:$0xf]
    %v6744 = vld [vmem:[%s5 + $0x2c] sm:$0xf]
    %v6745 = vld [vmem:[%s5 + $0x30] sm:$0xf]
    %v6746 = vld [vmem:[%s5 + $0x34] sm:$0xf]
    %v6747 = vld [vmem:[%s5 + $0x38] sm:$0xf]
    %v6748 = vld [vmem:[%s5 + $0x3c] sm:$0xf]
    %v6749 = vld [vmem:[%s5 + $0x40] sm:$0xf]
    %v6750 = vld [vmem:[%s5 + $0x44] sm:$0xf]
    %v6751 = vld [vmem:[%s5 + $0x48] sm:$0xf]
    %v6752 = vld [vmem:[%s5 + $0x4c] sm:$0xf]
    %v6753 = vld [vmem:[%s5 + $0x50] sm:$0xf]
    %v6754 = vld [vmem:[%s5 + $0x54] sm:$0xf]
    %v6755 = vld [vmem:[%s5 + $0x58] sm:$0xf]
    %v6756 = vld [vmem:[%s5 + $0x5c] sm:$0xf]
    %v6757 = vld [vmem:[%s5 + $0x60] sm:$0xf]
    %v6758 = vld [vmem:[%s5 + $0x64] sm:$0xf]
    %v6759 = vld [vmem:[%s5 + $0x68] sm:$0xf]
    %v6760 = vld [vmem:[%s5 + $0x6c] sm:$0xf]
    %v6761 = vld [vmem:[%s5 + $0x70] sm:$0xf]
    %v6762 = vld [vmem:[%s5 + $0x74] sm:$0xf]
    %v6763 = vld [vmem:[%s5 + $0x78] sm:$0xf]
    %v6764 = vld [vmem:[%s5 + $0x7c] sm:$0xf]
    %v6765 = vld [vmem:[%s5 + $0x80] sm:$0xf]
    %v6766 = vld [vmem:[%s5 + $0x84] sm:$0xf]
    %v6767 = vld [vmem:[%s5 + $0x88] sm:$0xf]
    %v6768 = vld [vmem:[%s5 + $0x8c] sm:$0xf]
    %v6805 = vunpack.c.l.b16 %v6733
    %v6806 = vunpack.c.l.b16 %v6734
    %v6807 = vunpack.c.l.b16 %v6735
    %v6808 = vunpack.c.l.b16 %v6736
    %v6809 = vunpack.c.l.b16 %v6737
    %v6810 = vunpack.c.l.b16 %v6738
    %v6811 = vunpack.c.l.b16 %v6739
    %v6812 = vunpack.c.l.b16 %v6740
    %v6813 = vunpack.c.l.b16 %v6741
    %v6814 = vunpack.c.l.b16 %v6742
    %v6815 = vunpack.c.l.b16 %v6743
    %v6816 = vunpack.c.l.b16 %v6744
    %v6817 = vunpack.c.l.b16 %v6745
    %v6818 = vunpack.c.l.b16 %v6746
    %v6819 = vunpack.c.l.b16 %v6747
    %v6820 = vunpack.c.l.b16 %v6748
    %v6821 = vunpack.c.l.b16 %v6749
    %v6822 = vunpack.c.l.b16 %v6750
    %v6823 = vunpack.c.l.b16 %v6751
    %v6824 = vunpack.c.l.b16 %v6752
    %v6825 = vunpack.c.l.b16 %v6753
    %v6826 = vunpack.c.l.b16 %v6754
    %v6827 = vunpack.c.l.b16 %v6755
    %v6828 = vunpack.c.l.b16 %v6756
    %v6829 = vunpack.c.l.b16 %v6757
    %v6830 = vunpack.c.l.b16 %v6758
    %v6831 = vunpack.c.l.b16 %v6759
    %v6832 = vunpack.c.l.b16 %v6760
    %v6833 = vunpack.c.l.b16 %v6761
    %v6834 = vunpack.c.l.b16 %v6762
    %v6835 = vunpack.c.l.b16 %v6763
    %v6836 = vunpack.c.l.b16 %v6764
    %v6837 = vunpack.c.l.b16 %v6765
    %v6838 = vunpack.c.l.b16 %v6766
    %v6839 = vunpack.c.l.b16 %v6767
    %v6840 = vunpack.c.l.b16 %v6768
    %v6841 = vpack.c.b16 %v6806, %v6805
    %v6842 = vpack.c.b16 %v6808, %v6807
    %v6843 = vpack.c.b16 %v6810, %v6809
    %v6844 = vpack.c.b16 %v6812, %v6811
    %v6845 = vpack.c.b16 %v6814, %v6813
    %v6846 = vpack.c.b16 %v6816, %v6815
    %v6847 = vpack.c.b16 %v6818, %v6817
    %v6848 = vpack.c.b16 %v6820, %v6819
    %v6849 = vpack.c.b16 %v6822, %v6821
    %v6850 = vpack.c.b16 %v6824, %v6823
    %v6851 = vpack.c.b16 %v6826, %v6825
    %v6852 = vpack.c.b16 %v6828, %v6827
    %v6853 = vpack.c.b16 %v6830, %v6829
    %v6854 = vpack.c.b16 %v6832, %v6831
    %v6855 = vpack.c.b16 %v6834, %v6833
    %v6856 = vpack.c.b16 %v6836, %v6835
    %v6857 = vpack.c.b16 %v6838, %v6837
    %v6858 = vpack.c.b16 %v6840, %v6839
    %v6878 = vsel %vm6554, %v6345, 0
    %v6881 = vsel %vm6554, %v6346, 0
    %v6884 = vsel %vm6554, %v6347, 0
    %v6887 = vsel %vm6554, %v6348, 0
    %v6890 = vsel %vm6554, %v6349, 0
    %v6893 = vsel %vm6554, %v6350, 0
    %v6896 = vsel %vm6554, %v6351, 0
    %v6899 = vsel %vm6554, %v6352, 0
    %v6902 = vsel %vm6554, %v6353, 0
    %v6905 = vsel %vm6554, %v6354, 0
    %v6908 = vsel %vm6554, %v6355, 0
    %6910 = vmatprep.subr.bf16.mxu0 0
    %6911 = vmatpush1.bf16.msra.mxu0 %v6848
    %6912 = vmatprep.subr.bf16.mxu0 0
    %6913 = vmatpush1.bf16.msra.mxu0 %v6847
    %6914 = vmatprep.subr.bf16.mxu0 0
    %6915 = vmatpush1.bf16.msra.mxu0 %v6846
    %6916 = vmatprep.subr.bf16.mxu0 0
    %6917 = vmatpush1.bf16.msra.mxu0 %v6845
    %6918 = vmatprep.subr.bf16.mxu0 0
    %6919 = vmatpush1.bf16.msra.mxu0 %v6844
    %6920 = vmatprep.subr.bf16.mxu0 0
    %6921 = vmatpush1.bf16.msra.mxu0 %v6843
    %6922 = vmatprep.subr.bf16.mxu0 0
    %6923 = vmatpush1.bf16.msra.mxu0 %v6842
    %6924 = vmatprep.subr.bf16.mxu0 0
    %6925 = vmatpush1.bf16.msra.mxu0 %v6841
    %6926 = vmatprep.subr.bf16.mxu0 0
    %6927 = vmatpush2.bf16.msra.mxu0 %v6856
    %6928 = vmatprep.subr.bf16.mxu0 0
    %6929 = vmatpush2.bf16.msra.mxu0 %v6855
    %6930 = vmatprep.subr.bf16.mxu0 0
    %6931 = vmatpush2.bf16.msra.mxu0 %v6854
    %6932 = vmatprep.subr.bf16.mxu0 0
    %6933 = vmatpush2.bf16.msra.mxu0 %v6853
    %6934 = vmatprep.subr.bf16.mxu0 0
    %6935 = vmatpush2.bf16.msra.mxu0 %v6852
    %6936 = vmatprep.subr.bf16.mxu0 0
    %6937 = vmatpush2.bf16.msra.mxu0 %v6851
    %6938 = vmatprep.subr.bf16.mxu0 0
    %6939 = vmatpush2.bf16.msra.mxu0 %v6850
    %6940 = vmatprep.subr.bf16.mxu0 0
    %6941 = vmatpush2.bf16.msra.mxu0 %v6849
    %6942 = vmatprep.mubr.bf16.mxu0 %v6701
    %6943 = vmatmul.mubr.bf16.gmra.mxu0 %v6613
    %v6944 = vpop.f32.mrf.mxu0
    %v6945 = vadd.f32 %v1764, %v6944
    %v6946 = vpop.f32.mrf.mxu0
    %v6947 = vpop.f32.mrf.mxu0
    %v6948 = vadd.f32 %v1765, %v6947
    %v6949 = vpop.f32.mrf.mxu0
    %6950 = vmatprep.mubr.bf16.mxu0 %v6704
    %6951 = vmatmul.mubr.bf16.gmra.mxu0 %v6616
    %v6952 = vpop.f32.mrf.mxu0
    %v6953 = vadd.f32 %v1766, %v6952
    %v6954 = vpop.f32.mrf.mxu0
    %v6955 = vpop.f32.mrf.mxu0
    %v6956 = vadd.f32 %v1767, %v6955
    %v6957 = vpop.f32.mrf.mxu0
    %6958 = vmatprep.mubr.bf16.mxu0 %v6707
    %6959 = vmatmul.mubr.bf16.gmra.mxu0 %v6619
    %v6960 = vpop.f32.mrf.mxu0
    %v6961 = vadd.f32 %v1768, %v6960
    %v6962 = vpop.f32.mrf.mxu0
    %v6963 = vpop.f32.mrf.mxu0
    %v6964 = vadd.f32 %v1769, %v6963
    %v6965 = vpop.f32.mrf.mxu0
    %6966 = vmatprep.mubr.bf16.mxu0 %v6710
    %6967 = vmatmul.mubr.bf16.gmra.mxu0 %v6622
    %v6968 = vpop.f32.mrf.mxu0
    %v6969 = vadd.f32 %v1770, %v6968
    %v6970 = vpop.f32.mrf.mxu0
    %v6971 = vpop.f32.mrf.mxu0
    %v6972 = vadd.f32 %v1771, %v6971
    %v6973 = vpop.f32.mrf.mxu0
    %6974 = vmatprep.mubr.bf16.mxu0 %v6713
    %6975 = vmatmul.mubr.bf16.gmra.mxu0 %v6625
    %v6976 = vpop.f32.mrf.mxu0
    %v6977 = vadd.f32 %v1772, %v6976
    %v6978 = vpop.f32.mrf.mxu0
    %v6979 = vpop.f32.mrf.mxu0
    %v6980 = vadd.f32 %v1773, %v6979
    %v6981 = vpop.f32.mrf.mxu0
    %6982 = vmatprep.mubr.bf16.mxu0 %v6716
    %6983 = vmatmul.mubr.bf16.gmra.mxu0 %v6628
    %v6984 = vpop.f32.mrf.mxu0
    %v6985 = vadd.f32 %v1774, %v6984
    %v6986 = vpop.f32.mrf.mxu0
    %v6987 = vpop.f32.mrf.mxu0
    %v6988 = vadd.f32 %v1775, %v6987
    %v6989 = vpop.f32.mrf.mxu0
    %6990 = vmatprep.mubr.bf16.mxu0 %v6719
    %6991 = vmatmul.mubr.bf16.gmra.mxu0 %v6631
    %v6992 = vpop.f32.mrf.mxu0
    %v6993 = vadd.f32 %v1776, %v6992
    %v6994 = vpop.f32.mrf.mxu0
    %v6995 = vpop.f32.mrf.mxu0
    %v6996 = vadd.f32 %v1777, %v6995
    %v6997 = vpop.f32.mrf.mxu0
    %6998 = vmatprep.mubr.bf16.mxu0 %v6722
    %6999 = vmatmul.mubr.bf16.gmra.mxu0 %v6634
    %v7000 = vpop.f32.mrf.mxu0
    %v7001 = vadd.f32 %v1778, %v7000
    %v7002 = vpop.f32.mrf.mxu0
    %v7003 = vpop.f32.mrf.mxu0
    %v7004 = vadd.f32 %v1779, %v7003
    %v7005 = vpop.f32.mrf.mxu0
    %7006 = vmatprep.mubr.bf16.mxu0 %v6725
    %7007 = vmatmul.mubr.bf16.gmra.mxu0 %v6637
    %v7008 = vpop.f32.mrf.mxu0
    %v7009 = vadd.f32 %v1780, %v7008
    %v7010 = vpop.f32.mrf.mxu0
    %v7011 = vpop.f32.mrf.mxu0
    %v7012 = vadd.f32 %v1781, %v7011
    %v7013 = vpop.f32.mrf.mxu0
    %7014 = vmatprep.mubr.bf16.mxu0 %v6728
    %7015 = vmatmul.mubr.bf16.gmra.mxu0 %v6640
    %v7016 = vpop.f32.mrf.mxu0
    %v7017 = vadd.f32 %v1782, %v7016
    %v7018 = vpop.f32.mrf.mxu0
    %v7019 = vpop.f32.mrf.mxu0
    %v7020 = vadd.f32 %v1783, %v7019
    %v7021 = vpop.f32.mrf.mxu0
    %7022 = vmatprep.mubr.bf16.mxu0 %v6731
    %7023 = vmatmul.mubr.bf16.gmra.mxu0 %v6643
    %v7024 = vpop.f32.mrf.mxu0
    %v7025 = vadd.f32 %v1784, %v7024
    %v7026 = vpop.f32.mrf.mxu0
    %v7027 = vpop.f32.mrf.mxu0
    %v7028 = vpop.f32.mrf.mxu0
    %7029 = vdwg.mxu0
    %7030 = vmatprep.subr.bf16.mxu0 0
    %7031 = vmatpush1.bf16.msra.mxu0 0
    %7032 = vmatprep.subr.bf16.mxu0 0
    %7033 = vmatpush1.bf16.msra.mxu0 0
    %7034 = vmatprep.subr.bf16.mxu0 0
    %7035 = vmatpush1.bf16.msra.mxu0 0
    %7036 = vmatprep.subr.bf16.mxu0 0
    %7037 = vmatpush1.bf16.msra.mxu0 0
    %7038 = vmatprep.subr.bf16.mxu0 0
    %7039 = vmatpush1.bf16.msra.mxu0 0
    %7040 = vmatprep.subr.bf16.mxu0 0
    %7041 = vmatpush1.bf16.msra.mxu0 0
    %7042 = vmatprep.subr.bf16.mxu0 0
    %7043 = vmatpush1.bf16.msra.mxu0 %v6858
    %7044 = vmatprep.subr.bf16.mxu0 0
    %7045 = vmatpush1.bf16.msra.mxu0 %v6857
    %7046 = vmatprep.subr.bf16.mxu0 0
    %7047 = vmatpush2.bf16.msra.mxu0 0
    %7048 = vmatprep.subr.bf16.mxu0 0
    %7049 = vmatpush2.bf16.msra.mxu0 0
    %7050 = vmatprep.subr.bf16.mxu0 0
    %7051 = vmatpush2.bf16.msra.mxu0 0
    %7052 = vmatprep.subr.bf16.mxu0 0
    %7053 = vmatpush2.bf16.msra.mxu0 0
    %7054 = vmatprep.subr.bf16.mxu0 0
    %7055 = vmatpush2.bf16.msra.mxu0 0
    %7056 = vmatprep.subr.bf16.mxu0 0
    %7057 = vmatpush2.bf16.msra.mxu0 0
    %7058 = vmatprep.subr.bf16.mxu0 0
    %7059 = vmatpush2.bf16.msra.mxu0 0
    %7060 = vmatprep.subr.bf16.mxu0 0
    %7061 = vmatpush2.bf16.msra.mxu0 0
    %7062 = vmatprep.mubr.bf16.mxu0 0
    %7063 = vmatmul.mubr.bf16.gmra.mxu0 %v6878
    %v7064 = vpop.f32.mrf.mxu0
    %v7065 = vadd.f32 %v6945, %v7064
    %v7066 = vpop.f32.mrf.mxu0
    %v7067 = vpop.f32.mrf.mxu0
    %v7068 = vadd.f32 %v6948, %v7067
    %v7069 = vpop.f32.mrf.mxu0
    %7070 = vmatprep.mubr.bf16.mxu0 0
    %7071 = vmatmul.mubr.bf16.gmra.mxu0 %v6881
    %v7072 = vpop.f32.mrf.mxu0
    %v7073 = vadd.f32 %v6953, %v7072
    %v7074 = vpop.f32.mrf.mxu0
    %v7075 = vpop.f32.mrf.mxu0
    %v7076 = vadd.f32 %v6956, %v7075
    %v7077 = vpop.f32.mrf.mxu0
    %7078 = vmatprep.mubr.bf16.mxu0 0
    %7079 = vmatmul.mubr.bf16.gmra.mxu0 %v6884
    %v7080 = vpop.f32.mrf.mxu0
    %v7081 = vadd.f32 %v6961, %v7080
    %v7082 = vpop.f32.mrf.mxu0
    %v7083 = vpop.f32.mrf.mxu0
    %v7084 = vadd.f32 %v6964, %v7083
    %v7085 = vpop.f32.mrf.mxu0
    %7086 = vmatprep.mubr.bf16.mxu0 0
    %7087 = vmatmul.mubr.bf16.gmra.mxu0 %v6887
    %v7088 = vpop.f32.mrf.mxu0
    %v7089 = vadd.f32 %v6969, %v7088
    %v7090 = vpop.f32.mrf.mxu0
    %v7091 = vpop.f32.mrf.mxu0
    %v7092 = vadd.f32 %v6972, %v7091
    %v7093 = vpop.f32.mrf.mxu0
    %7094 = vmatprep.mubr.bf16.mxu0 0
    %7095 = vmatmul.mubr.bf16.gmra.mxu0 %v6890
    %v7096 = vpop.f32.mrf.mxu0
    %v7097 = vadd.f32 %v6977, %v7096
    %v7098 = vpop.f32.mrf.mxu0
    %v7099 = vpop.f32.mrf.mxu0
    %v7100 = vadd.f32 %v6980, %v7099
    %v7101 = vpop.f32.mrf.mxu0
    %7102 = vmatprep.mubr.bf16.mxu0 0
    %7103 = vmatmul.mubr.bf16.gmra.mxu0 %v6893
    %v7104 = vpop.f32.mrf.mxu0
    %v7105 = vadd.f32 %v6985, %v7104
    %v7106 = vpop.f32.mrf.mxu0
    %v7107 = vpop.f32.mrf.mxu0
    %v7108 = vadd.f32 %v6988, %v7107
    %v7109 = vpop.f32.mrf.mxu0
    %7110 = vmatprep.mubr.bf16.mxu0 0
    %7111 = vmatmul.mubr.bf16.gmra.mxu0 %v6896
    %v7112 = vpop.f32.mrf.mxu0
    %v7113 = vadd.f32 %v6993, %v7112
    %v7114 = vpop.f32.mrf.mxu0
    %v7115 = vpop.f32.mrf.mxu0
    %v7116 = vadd.f32 %v6996, %v7115
    %v7117 = vpop.f32.mrf.mxu0
    %7118 = vmatprep.mubr.bf16.mxu0 0
    %7119 = vmatmul.mubr.bf16.gmra.mxu0 %v6899
    %v7120 = vpop.f32.mrf.mxu0
    %v7121 = vadd.f32 %v7001, %v7120
    %v7122 = vpop.f32.mrf.mxu0
    %v7123 = vpop.f32.mrf.mxu0
    %v7124 = vadd.f32 %v7004, %v7123
    %v7125 = vpop.f32.mrf.mxu0
    %7126 = vmatprep.mubr.bf16.mxu0 0
    %7127 = vmatmul.mubr.bf16.gmra.mxu0 %v6902
    %v7128 = vpop.f32.mrf.mxu0
    %v7129 = vadd.f32 %v7009, %v7128
    %v7130 = vpop.f32.mrf.mxu0
    %v7131 = vpop.f32.mrf.mxu0
    %v7132 = vadd.f32 %v7012, %v7131
    %v7133 = vpop.f32.mrf.mxu0
    %7134 = vmatprep.mubr.bf16.mxu0 0
    %7135 = vmatmul.mubr.bf16.gmra.mxu0 %v6905
    %v7136 = vpop.f32.mrf.mxu0
    %v7137 = vadd.f32 %v7017, %v7136
    %v7138 = vpop.f32.mrf.mxu0
    %v7139 = vpop.f32.mrf.mxu0
    %v7140 = vadd.f32 %v7020, %v7139
    %v7141 = vpop.f32.mrf.mxu0
    %7142 = vmatprep.mubr.bf16.mxu0 0
    %7143 = vmatmul.mubr.bf16.gmra.mxu0 %v6908
    %v7144 = vpop.f32.mrf.mxu0
    %v7145 = vadd.f32 %v7025, %v7144
    %v7146 = vpop.f32.mrf.mxu0
    %v7147 = vpop.f32.mrf.mxu0
    %v7148 = vpop.f32.mrf.mxu0
    %7149 = vdwg.mxu0
    %v7150 = vpack.c.bf16 %v7068, %v7065
    %v7151 = vpack.c.bf16 %v7076, %v7073
    %v7152 = vpack.c.bf16 %v7084, %v7081
    %v7153 = vpack.c.bf16 %v7092, %v7089
    %v7154 = vpack.c.bf16 %v7100, %v7097
    %v7155 = vpack.c.bf16 %v7108, %v7105
    %v7156 = vpack.c.bf16 %v7116, %v7113
    %v7157 = vpack.c.bf16 %v7124, %v7121
    %v7158 = vpack.c.bf16 %v7132, %v7129
    %v7159 = vpack.c.bf16 %v7140, %v7137
    %v7160 = vpack.c.bf16 %v7145, %v7145
    %v7161 = vld [vmem:[#allocation7] sm:$0x1]
    %v7162 = vld [vmem:[%s7] sm:$0xff]
    %v7163 = vld [vmem:[%s7 + $0x8] sm:$0xff]
    %v7164 = vld [vmem:[%s7 + $0x10] sm:$0xff]
    %v7165 = vld [vmem:[%s7 + $0x18] sm:$0xff]
    %v7166 = vld [vmem:[%s7 + $0x20] sm:$0xff]
    %v7167 = vld [vmem:[%s7 + $0x28] sm:$0xff]
    %v7168 = vld [vmem:[%s7 + $0x30] sm:$0xff]
    %v7176 = vunpack.c.l.b16 %v7162
    %v7177 = vunpack.c.h.b16 %v7162
    %v7178 = vunpack.c.l.b16 %v7163
    %v7179 = vunpack.c.h.b16 %v7163
    %v7180 = vunpack.c.l.b16 %v7164
    %v7181 = vunpack.c.h.b16 %v7164
    %v7182 = vunpack.c.l.b16 %v7165
    %v7183 = vunpack.c.h.b16 %v7165
    %v7184 = vunpack.c.l.b16 %v7166
    %v7185 = vunpack.c.h.b16 %v7166
    %v7186 = vunpack.c.l.b16 %v7167
    %v7187 = vunpack.c.h.b16 %v7167
    %v7188 = vunpack.c.l.b16 %v7168
    %v7189 = vunpack.c.h.b16 %v7168
    %v7190 = vpack.c.b16 %v7178, %v7176
    %v7191 = vpack.c.b16 %v7179, %v7177
    %v7192 = vpack.c.b16 %v7182, %v7180
    %v7193 = vpack.c.b16 %v7183, %v7181
    %v7194 = vpack.c.b16 %v7186, %v7184
    %v7195 = vpack.c.b16 %v7187, %v7185
    %v7196 = vpack.c.b16 %v7188, %v7188
    %v7197 = vpack.c.b16 %v7189, %v7189
    %vm7202 = vcmask 326656
    %v7204 = vsel %vm7202, %v7191, 0
    %v7207 = vsel %vm7202, %v7193, 0
    %v7210 = vsel %vm7202, %v7195, 0
    %v7213 = vsel %vm7202, %v7197, 0
    %vm7215 = vcmask 1043456
    %v7217 = vsel %vm7215, %v7160, 0
    %7219 = vmatprep.subr.bf16.mxu0 0
    %7220 = vmatpush1.bf16.msra.mxu0 %v7157
    %7221 = vmatprep.subr.bf16.mxu0 0
    %7222 = vmatpush1.bf16.msra.mxu0 %v7156
    %7223 = vmatprep.subr.bf16.mxu0 0
    %7224 = vmatpush1.bf16.msra.mxu0 %v7155
    %7225 = vmatprep.subr.bf16.mxu0 0
    %7226 = vmatpush1.bf16.msra.mxu0 %v7154
    %7227 = vmatprep.subr.bf16.mxu0 0
    %7228 = vmatpush1.bf16.msra.mxu0 %v7153
    %7229 = vmatprep.subr.bf16.mxu0 0
    %7230 = vmatpush1.bf16.msra.mxu0 %v7152
    %7231 = vmatprep.subr.bf16.mxu0 0
    %7232 = vmatpush1.bf16.msra.mxu0 %v7151
    %7233 = vmatprep.subr.bf16.mxu0 0
    %7234 = vmatpush1.bf16.msra.mxu0 %v7150
    %7235 = vmatprep.subr.bf16.mxu0 0
    %7236 = vmatpush2.bf16.msra.mxu0 0
    %7237 = vmatprep.subr.bf16.mxu0 0
    %7238 = vmatpush2.bf16.msra.mxu0 0
    %7239 = vmatprep.subr.bf16.mxu0 0
    %7240 = vmatpush2.bf16.msra.mxu0 0
    %7241 = vmatprep.subr.bf16.mxu0 0
    %7242 = vmatpush2.bf16.msra.mxu0 0
    %7243 = vmatprep.subr.bf16.mxu0 0
    %7244 = vmatpush2.bf16.msra.mxu0 0
    %7245 = vmatprep.subr.bf16.mxu0 0
    %7246 = vmatpush2.bf16.msra.mxu0 %v7217
    %7247 = vmatprep.subr.bf16.mxu0 0
    %7248 = vmatpush2.bf16.msra.mxu0 %v7159
    %7249 = vmatprep.subr.bf16.mxu0 0
    %7250 = vmatpush2.bf16.msra.mxu0 %v7158
    %7251 = vmatprep.mubr.bf16.mxu0 %v7204
    %7252 = vmatmul.mubr.bf16.gmra.mxu0 %v7190
    %v7253 = vpop.f32.mrf.mxu0
    %v7254 = vadd.f32 0.0, %v7253
    %v7255 = vpop.f32.mrf.mxu0
    %v7256 = vpop.f32.mrf.mxu0
    %v7257 = vadd.f32 0.0, %v7256
    %v7258 = vpop.f32.mrf.mxu0
    %7259 = vmatprep.mubr.bf16.mxu0 %v7207
    %7260 = vmatmul.mubr.bf16.gmra.mxu0 %v7192
    %v7261 = vpop.f32.mrf.mxu0
    %v7262 = vadd.f32 0.0, %v7261
    %v7263 = vpop.f32.mrf.mxu0
    %v7264 = vpop.f32.mrf.mxu0
    %v7265 = vadd.f32 0.0, %v7264
    %v7266 = vpop.f32.mrf.mxu0
    %7267 = vmatprep.mubr.bf16.mxu0 %v7210
    %7268 = vmatmul.mubr.bf16.gmra.mxu0 %v7194
    %v7269 = vpop.f32.mrf.mxu0
    %v7270 = vadd.f32 0.0, %v7269
    %v7271 = vpop.f32.mrf.mxu0
    %v7272 = vpop.f32.mrf.mxu0
    %v7273 = vadd.f32 0.0, %v7272
    %v7274 = vpop.f32.mrf.mxu0
    %7275 = vmatprep.mubr.bf16.mxu0 %v7213
    %7276 = vmatmul.mubr.bf16.gmra.mxu0 %v7196
    %v7277 = vpop.f32.mrf.mxu0
    %v7278 = vadd.f32 0.0, %v7277
    %v7279 = vpop.f32.mrf.mxu0
    %v7280 = vpop.f32.mrf.mxu0
    %v7281 = vpop.f32.mrf.mxu0
    %7282 = vdwg.mxu0
    %v7283 = vpack.c.bf16 %v7257, %v7254
    %v7284 = vpack.c.bf16 %v7265, %v7262
    %v7285 = vpack.c.bf16 %v7273, %v7270
    %v7286 = vpack.c.bf16 %v7278, %v7278
    %s7287 = scalar_lea.vmem %s7, 56
    %v7288 = vld [vmem:[%s7287] sm:$0xff]
    %v7289 = vld [vmem:[%s7287 + $0x8] sm:$0xff]
    %v7290 = vld [vmem:[%s7287 + $0x10] sm:$0xff]
    %v7291 = vld [vmem:[%s7287 + $0x18] sm:$0xff]
    %v7292 = vld [vmem:[%s7287 + $0x20] sm:$0xff]
    %v7293 = vld [vmem:[%s7287 + $0x28] sm:$0xff]
    %v7294 = vld [vmem:[%s7287 + $0x30] sm:$0xff]
    %v7302 = vunpack.c.l.b16 %v7288
    %v7303 = vunpack.c.h.b16 %v7288
    %v7304 = vunpack.c.l.b16 %v7289
    %v7305 = vunpack.c.h.b16 %v7289
    %v7306 = vunpack.c.l.b16 %v7290
    %v7307 = vunpack.c.h.b16 %v7290
    %v7308 = vunpack.c.l.b16 %v7291
    %v7309 = vunpack.c.h.b16 %v7291
    %v7310 = vunpack.c.l.b16 %v7292
    %v7311 = vunpack.c.h.b16 %v7292
    %v7312 = vunpack.c.l.b16 %v7293
    %v7313 = vunpack.c.h.b16 %v7293
    %v7314 = vunpack.c.l.b16 %v7294
    %v7315 = vunpack.c.h.b16 %v7294
    %v7316 = vpack.c.b16 %v7304, %v7302
    %v7317 = vpack.c.b16 %v7305, %v7303
    %v7318 = vpack.c.b16 %v7308, %v7306
    %v7319 = vpack.c.b16 %v7309, %v7307
    %v7320 = vpack.c.b16 %v7312, %v7310
    %v7321 = vpack.c.b16 %v7313, %v7311
    %v7322 = vpack.c.b16 %v7314, %v7314
    %v7323 = vpack.c.b16 %v7315, %v7315
    %v7329 = vsel %vm7202, %v7317, 0
    %v7332 = vsel %vm7202, %v7319, 0
    %v7335 = vsel %vm7202, %v7321, 0
    %v7338 = vsel %vm7202, %v7323, 0
    %7340 = vmatprep.subr.bf16.mxu0 0
    %7341 = vmatpush1.bf16.msra.mxu0 %v7157
    %7342 = vmatprep.subr.bf16.mxu0 0
    %7343 = vmatpush1.bf16.msra.mxu0 %v7156
    %7344 = vmatprep.subr.bf16.mxu0 0
    %7345 = vmatpush1.bf16.msra.mxu0 %v7155
    %7346 = vmatprep.subr.bf16.mxu0 0
    %7347 = vmatpush1.bf16.msra.mxu0 %v7154
    %7348 = vmatprep.subr.bf16.mxu0 0
    %7349 = vmatpush1.bf16.msra.mxu0 %v7153
    %7350 = vmatprep.subr.bf16.mxu0 0
    %7351 = vmatpush1.bf16.msra.mxu0 %v7152
    %7352 = vmatprep.subr.bf16.mxu0 0
    %7353 = vmatpush1.bf16.msra.mxu0 %v7151
    %7354 = vmatprep.subr.bf16.mxu0 0
    %7355 = vmatpush1.bf16.msra.mxu0 %v7150
    %7356 = vmatprep.subr.bf16.mxu0 0
    %7357 = vmatpush2.bf16.msra.mxu0 0
    %7358 = vmatprep.subr.bf16.mxu0 0
    %7359 = vmatpush2.bf16.msra.mxu0 0
    %7360 = vmatprep.subr.bf16.mxu0 0
    %7361 = vmatpush2.bf16.msra.mxu0 0
    %7362 = vmatprep.subr.bf16.mxu0 0
    %7363 = vmatpush2.bf16.msra.mxu0 0
    %7364 = vmatprep.subr.bf16.mxu0 0
    %7365 = vmatpush2.bf16.msra.mxu0 0
    %7366 = vmatprep.subr.bf16.mxu0 0
    %7367 = vmatpush2.bf16.msra.mxu0 %v7217
    %7368 = vmatprep.subr.bf16.mxu0 0
    %7369 = vmatpush2.bf16.msra.mxu0 %v7159
    %7370 = vmatprep.subr.bf16.mxu0 0
    %7371 = vmatpush2.bf16.msra.mxu0 %v7158
    %7372 = vmatprep.mubr.bf16.mxu0 %v7329
    %7373 = vmatmul.mubr.bf16.gmra.mxu0 %v7316
    %v7374 = vpop.f32.mrf.mxu0
    %v7375 = vadd.f32 0.0, %v7374
    %v7376 = vpop.f32.mrf.mxu0
    %v7377 = vpop.f32.mrf.mxu0
    %v7378 = vadd.f32 0.0, %v7377
    %v7379 = vpop.f32.mrf.mxu0
    %7380 = vmatprep.mubr.bf16.mxu0 %v7332
    %7381 = vmatmul.mubr.bf16.gmra.mxu0 %v7318
    %v7382 = vpop.f32.mrf.mxu0
    %v7383 = vadd.f32 0.0, %v7382
    %v7384 = vpop.f32.mrf.mxu0
    %v7385 = vpop.f32.mrf.mxu0
    %v7386 = vadd.f32 0.0, %v7385
    %v7387 = vpop.f32.mrf.mxu0
    %7388 = vmatprep.mubr.bf16.mxu0 %v7335
    %7389 = vmatmul.mubr.bf16.gmra.mxu0 %v7320
    %v7390 = vpop.f32.mrf.mxu0
    %v7391 = vadd.f32 0.0, %v7390
    %v7392 = vpop.f32.mrf.mxu0
    %v7393 = vpop.f32.mrf.mxu0
    %v7394 = vadd.f32 0.0, %v7393
    %v7395 = vpop.f32.mrf.mxu0
    %7396 = vmatprep.mubr.bf16.mxu0 %v7338
    %7397 = vmatmul.mubr.bf16.gmra.mxu0 %v7322
    %v7398 = vpop.f32.mrf.mxu0
    %v7399 = vadd.f32 0.0, %v7398
    %v7400 = vpop.f32.mrf.mxu0
    %v7401 = vpop.f32.mrf.mxu0
    %v7402 = vpop.f32.mrf.mxu0
    %7403 = vdwg.mxu0
    %v7404 = vpack.c.bf16 %v7378, %v7375
    %v7405 = vpack.c.bf16 %v7386, %v7383
    %v7406 = vpack.c.bf16 %v7394, %v7391
    %v7407 = vpack.c.bf16 %v7399, %v7399
    %s7408 = scalar_lea.vmem %s7, 112
    %v7409 = vld [vmem:[%s7408] sm:$0xff]
    %v7410 = vld [vmem:[%s7408 + $0x8] sm:$0xff]
    %v7411 = vld [vmem:[%s7408 + $0x10] sm:$0xff]
    %v7412 = vld [vmem:[%s7408 + $0x18] sm:$0xff]
    %v7413 = vld [vmem:[%s7408 + $0x20] sm:$0xff]
    %v7414 = vld [vmem:[%s7408 + $0x28] sm:$0xff]
    %v7415 = vld [vmem:[%s7408 + $0x30] sm:$0xff]
    %v7423 = vunpack.c.l.b16 %v7409
    %v7424 = vunpack.c.h.b16 %v7409
    %v7425 = vunpack.c.l.b16 %v7410
    %v7426 = vunpack.c.h.b16 %v7410
    %v7427 = vunpack.c.l.b16 %v7411
    %v7428 = vunpack.c.h.b16 %v7411
    %v7429 = vunpack.c.l.b16 %v7412
    %v7430 = vunpack.c.h.b16 %v7412
    %v7431 = vunpack.c.l.b16 %v7413
    %v7432 = vunpack.c.h.b16 %v7413
    %v7433 = vunpack.c.l.b16 %v7414
    %v7434 = vunpack.c.h.b16 %v7414
    %v7435 = vunpack.c.l.b16 %v7415
    %v7436 = vunpack.c.h.b16 %v7415
    %v7437 = vpack.c.b16 %v7425, %v7423
    %v7438 = vpack.c.b16 %v7426, %v7424
    %v7439 = vpack.c.b16 %v7429, %v7427
    %v7440 = vpack.c.b16 %v7430, %v7428
    %v7441 = vpack.c.b16 %v7433, %v7431
    %v7442 = vpack.c.b16 %v7434, %v7432
    %v7443 = vpack.c.b16 %v7435, %v7435
    %v7444 = vpack.c.b16 %v7436, %v7436
    %v7450 = vsel %vm7202, %v7438, 0
    %v7453 = vsel %vm7202, %v7440, 0
    %v7456 = vsel %vm7202, %v7442, 0
    %v7459 = vsel %vm7202, %v7444, 0
    %7461 = vmatprep.subr.bf16.mxu0 0
    %7462 = vmatpush1.bf16.msra.mxu0 %v7157
    %7463 = vmatprep.subr.bf16.mxu0 0
    %7464 = vmatpush1.bf16.msra.mxu0 %v7156
    %7465 = vmatprep.subr.bf16.mxu0 0
    %7466 = vmatpush1.bf16.msra.mxu0 %v7155
    %7467 = vmatprep.subr.bf16.mxu0 0
    %7468 = vmatpush1.bf16.msra.mxu0 %v7154
    %7469 = vmatprep.subr.bf16.mxu0 0
    %7470 = vmatpush1.bf16.msra.mxu0 %v7153
    %7471 = vmatprep.subr.bf16.mxu0 0
    %7472 = vmatpush1.bf16.msra.mxu0 %v7152
    %7473 = vmatprep.subr.bf16.mxu0 0
    %7474 = vmatpush1.bf16.msra.mxu0 %v7151
    %7475 = vmatprep.subr.bf16.mxu0 0
    %7476 = vmatpush1.bf16.msra.mxu0 %v7150
    %7477 = vmatprep.subr.bf16.mxu0 0
    %7478 = vmatpush2.bf16.msra.mxu0 0
    %7479 = vmatprep.subr.bf16.mxu0 0
    %7480 = vmatpush2.bf16.msra.mxu0 0
    %7481 = vmatprep.subr.bf16.mxu0 0
    %7482 = vmatpush2.bf16.msra.mxu0 0
    %7483 = vmatprep.subr.bf16.mxu0 0
    %7484 = vmatpush2.bf16.msra.mxu0 0
    %7485 = vmatprep.subr.bf16.mxu0 0
    %7486 = vmatpush2.bf16.msra.mxu0 0
    %7487 = vmatprep.subr.bf16.mxu0 0
    %7488 = vmatpush2.bf16.msra.mxu0 %v7217
    %7489 = vmatprep.subr.bf16.mxu0 0
    %7490 = vmatpush2.bf16.msra.mxu0 %v7159
    %7491 = vmatprep.subr.bf16.mxu0 0
    %7492 = vmatpush2.bf16.msra.mxu0 %v7158
    %7493 = vmatprep.mubr.bf16.mxu0 %v7450
    %7494 = vmatmul.mubr.bf16.gmra.mxu0 %v7437
    %v7495 = vpop.f32.mrf.mxu0
    %v7496 = vadd.f32 0.0, %v7495
    %v7497 = vpop.f32.mrf.mxu0
    %v7498 = vpop.f32.mrf.mxu0
    %v7499 = vadd.f32 0.0, %v7498
    %v7500 = vpop.f32.mrf.mxu0
    %7501 = vmatprep.mubr.bf16.mxu0 %v7453
    %7502 = vmatmul.mubr.bf16.gmra.mxu0 %v7439
    %v7503 = vpop.f32.mrf.mxu0
    %v7504 = vadd.f32 0.0, %v7503
    %v7505 = vpop.f32.mrf.mxu0
    %v7506 = vpop.f32.mrf.mxu0
    %v7507 = vadd.f32 0.0, %v7506
    %v7508 = vpop.f32.mrf.mxu0
    %7509 = vmatprep.mubr.bf16.mxu0 %v7456
    %7510 = vmatmul.mubr.bf16.gmra.mxu0 %v7441
    %v7511 = vpop.f32.mrf.mxu0
    %v7512 = vadd.f32 0.0, %v7511
    %v7513 = vpop.f32.mrf.mxu0
    %v7514 = vpop.f32.mrf.mxu0
    %v7515 = vadd.f32 0.0, %v7514
    %v7516 = vpop.f32.mrf.mxu0
    %7517 = vmatprep.mubr.bf16.mxu0 %v7459
    %7518 = vmatmul.mubr.bf16.gmra.mxu0 %v7443
    %v7519 = vpop.f32.mrf.mxu0
    %v7520 = vadd.f32 0.0, %v7519
    %v7521 = vpop.f32.mrf.mxu0
    %v7522 = vpop.f32.mrf.mxu0
    %v7523 = vpop.f32.mrf.mxu0
    %7524 = vdwg.mxu0
    %v7525 = vpack.c.bf16 %v7499, %v7496
    %v7526 = vpack.c.bf16 %v7507, %v7504
    %v7527 = vpack.c.bf16 %v7515, %v7512
    %v7528 = vpack.c.bf16 %v7520, %v7520
    %s7529 = scalar_lea.vmem %s7, 168
    %v7530 = vld [vmem:[%s7529] sm:$0xff]
    %v7531 = vld [vmem:[%s7529 + $0x8] sm:$0xff]
    %v7532 = vld [vmem:[%s7529 + $0x10] sm:$0xff]
    %v7533 = vld [vmem:[%s7529 + $0x18] sm:$0xff]
    %v7534 = vld [vmem:[%s7529 + $0x20] sm:$0xff]
    %v7535 = vld [vmem:[%s7529 + $0x28] sm:$0xff]
    %v7536 = vld [vmem:[%s7529 + $0x30] sm:$0xff]
    %v7544 = vunpack.c.l.b16 %v7530
    %v7545 = vunpack.c.h.b16 %v7530
    %v7546 = vunpack.c.l.b16 %v7531
    %v7547 = vunpack.c.h.b16 %v7531
    %v7548 = vunpack.c.l.b16 %v7532
    %v7549 = vunpack.c.h.b16 %v7532
    %v7550 = vunpack.c.l.b16 %v7533
    %v7551 = vunpack.c.h.b16 %v7533
    %v7552 = vunpack.c.l.b16 %v7534
    %v7553 = vunpack.c.h.b16 %v7534
    %v7554 = vunpack.c.l.b16 %v7535
    %v7555 = vunpack.c.h.b16 %v7535
    %v7556 = vunpack.c.l.b16 %v7536
    %v7557 = vunpack.c.h.b16 %v7536
    %v7558 = vpack.c.b16 %v7546, %v7544
    %v7559 = vpack.c.b16 %v7547, %v7545
    %v7560 = vpack.c.b16 %v7550, %v7548
    %v7561 = vpack.c.b16 %v7551, %v7549
    %v7562 = vpack.c.b16 %v7554, %v7552
    %v7563 = vpack.c.b16 %v7555, %v7553
    %v7564 = vpack.c.b16 %v7556, %v7556
    %v7565 = vpack.c.b16 %v7557, %v7557
    %v7571 = vsel %vm7202, %v7559, 0
    %v7574 = vsel %vm7202, %v7561, 0
    %v7577 = vsel %vm7202, %v7563, 0
    %v7580 = vsel %vm7202, %v7565, 0
    %7582 = vmatprep.subr.bf16.mxu0 0
    %7583 = vmatpush1.bf16.msra.mxu0 %v7157
    %7584 = vmatprep.subr.bf16.mxu0 0
    %7585 = vmatpush1.bf16.msra.mxu0 %v7156
    %7586 = vmatprep.subr.bf16.mxu0 0
    %7587 = vmatpush1.bf16.msra.mxu0 %v7155
    %7588 = vmatprep.subr.bf16.mxu0 0
    %7589 = vmatpush1.bf16.msra.mxu0 %v7154
    %7590 = vmatprep.subr.bf16.mxu0 0
    %7591 = vmatpush1.bf16.msra.mxu0 %v7153
    %7592 = vmatprep.subr.bf16.mxu0 0
    %7593 = vmatpush1.bf16.msra.mxu0 %v7152
    %7594 = vmatprep.subr.bf16.mxu0 0
    %7595 = vmatpush1.bf16.msra.mxu0 %v7151
    %7596 = vmatprep.subr.bf16.mxu0 0
    %7597 = vmatpush1.bf16.msra.mxu0 %v7150
    %7598 = vmatprep.subr.bf16.mxu0 0
    %7599 = vmatpush2.bf16.msra.mxu0 0
    %7600 = vmatprep.subr.bf16.mxu0 0
    %7601 = vmatpush2.bf16.msra.mxu0 0
    %7602 = vmatprep.subr.bf16.mxu0 0
    %7603 = vmatpush2.bf16.msra.mxu0 0
    %7604 = vmatprep.subr.bf16.mxu0 0
    %7605 = vmatpush2.bf16.msra.mxu0 0
    %7606 = vmatprep.subr.bf16.mxu0 0
    %7607 = vmatpush2.bf16.msra.mxu0 0
    %7608 = vmatprep.subr.bf16.mxu0 0
    %7609 = vmatpush2.bf16.msra.mxu0 %v7217
    %7610 = vmatprep.subr.bf16.mxu0 0
    %7611 = vmatpush2.bf16.msra.mxu0 %v7159
    %7612 = vmatprep.subr.bf16.mxu0 0
    %7613 = vmatpush2.bf16.msra.mxu0 %v7158
    %7614 = vmatprep.mubr.bf16.mxu0 %v7571
    %7615 = vmatmul.mubr.bf16.gmra.mxu0 %v7558
    %v7616 = vpop.f32.mrf.mxu0
    %v7617 = vadd.f32 0.0, %v7616
    %v7618 = vpop.f32.mrf.mxu0
    %v7619 = vpop.f32.mrf.mxu0
    %v7620 = vadd.f32 0.0, %v7619
    %v7621 = vpop.f32.mrf.mxu0
    %7622 = vmatprep.mubr.bf16.mxu0 %v7574
    %7623 = vmatmul.mubr.bf16.gmra.mxu0 %v7560
    %v7624 = vpop.f32.mrf.mxu0
    %v7625 = vadd.f32 0.0, %v7624
    %v7626 = vpop.f32.mrf.mxu0
    %v7627 = vpop.f32.mrf.mxu0
    %v7628 = vadd.f32 0.0, %v7627
    %v7629 = vpop.f32.mrf.mxu0
    %7630 = vmatprep.mubr.bf16.mxu0 %v7577
    %7631 = vmatmul.mubr.bf16.gmra.mxu0 %v7562
    %v7632 = vpop.f32.mrf.mxu0
    %v7633 = vadd.f32 0.0, %v7632
    %v7634 = vpop.f32.mrf.mxu0
    %v7635 = vpop.f32.mrf.mxu0
    %v7636 = vadd.f32 0.0, %v7635
    %v7637 = vpop.f32.mrf.mxu0
    %7638 = vmatprep.mubr.bf16.mxu0 %v7580
    %7639 = vmatmul.mubr.bf16.gmra.mxu0 %v7564
    %v7640 = vpop.f32.mrf.mxu0
    %v7641 = vadd.f32 0.0, %v7640
    %v7642 = vpop.f32.mrf.mxu0
    %v7643 = vpop.f32.mrf.mxu0
    %v7644 = vpop.f32.mrf.mxu0
    %7645 = vdwg.mxu0
    %v7646 = vpack.c.bf16 %v7620, %v7617
    %v7647 = vpack.c.bf16 %v7628, %v7625
    %v7648 = vpack.c.bf16 %v7636, %v7633
    %v7649 = vpack.c.bf16 %v7641, %v7641
    %s7650 = scalar_lea.vmem %s7, 224
    %v7651 = vld [vmem:[%s7650] sm:$0xff]
    %v7652 = vld [vmem:[%s7650 + $0x8] sm:$0xff]
    %v7653 = vld [vmem:[%s7650 + $0x10] sm:$0xff]
    %v7654 = vld [vmem:[%s7650 + $0x18] sm:$0xff]
    %v7655 = vld [vmem:[%s7650 + $0x20] sm:$0xff]
    %v7656 = vld [vmem:[%s7650 + $0x28] sm:$0xff]
    %v7657 = vld [vmem:[%s7650 + $0x30] sm:$0xff]
    %v7665 = vunpack.c.l.b16 %v7651
    %v7666 = vunpack.c.h.b16 %v7651
    %v7667 = vunpack.c.l.b16 %v7652
    %v7668 = vunpack.c.h.b16 %v7652
    %v7669 = vunpack.c.l.b16 %v7653
    %v7670 = vunpack.c.h.b16 %v7653
    %v7671 = vunpack.c.l.b16 %v7654
    %v7672 = vunpack.c.h.b16 %v7654
    %v7673 = vunpack.c.l.b16 %v7655
    %v7674 = vunpack.c.h.b16 %v7655
    %v7675 = vunpack.c.l.b16 %v7656
    %v7676 = vunpack.c.h.b16 %v7656
    %v7677 = vunpack.c.l.b16 %v7657
    %v7678 = vunpack.c.h.b16 %v7657
    %v7679 = vpack.c.b16 %v7667, %v7665
    %v7680 = vpack.c.b16 %v7668, %v7666
    %v7681 = vpack.c.b16 %v7671, %v7669
    %v7682 = vpack.c.b16 %v7672, %v7670
    %v7683 = vpack.c.b16 %v7675, %v7673
    %v7684 = vpack.c.b16 %v7676, %v7674
    %v7685 = vpack.c.b16 %v7677, %v7677
    %v7686 = vpack.c.b16 %v7678, %v7678
    %v7692 = vsel %vm7202, %v7680, 0
    %v7695 = vsel %vm7202, %v7682, 0
    %v7698 = vsel %vm7202, %v7684, 0
    %v7701 = vsel %vm7202, %v7686, 0
    %7703 = vmatprep.subr.bf16.mxu0 0
    %7704 = vmatpush1.bf16.msra.mxu0 %v7157
    %7705 = vmatprep.subr.bf16.mxu0 0
    %7706 = vmatpush1.bf16.msra.mxu0 %v7156
    %7707 = vmatprep.subr.bf16.mxu0 0
    %7708 = vmatpush1.bf16.msra.mxu0 %v7155
    %7709 = vmatprep.subr.bf16.mxu0 0
    %7710 = vmatpush1.bf16.msra.mxu0 %v7154
    %7711 = vmatprep.subr.bf16.mxu0 0
    %7712 = vmatpush1.bf16.msra.mxu0 %v7153
    %7713 = vmatprep.subr.bf16.mxu0 0
    %7714 = vmatpush1.bf16.msra.mxu0 %v7152
    %7715 = vmatprep.subr.bf16.mxu0 0
    %7716 = vmatpush1.bf16.msra.mxu0 %v7151
    %7717 = vmatprep.subr.bf16.mxu0 0
    %7718 = vmatpush1.bf16.msra.mxu0 %v7150
    %7719 = vmatprep.subr.bf16.mxu0 0
    %7720 = vmatpush2.bf16.msra.mxu0 0
    %7721 = vmatprep.subr.bf16.mxu0 0
    %7722 = vmatpush2.bf16.msra.mxu0 0
    %7723 = vmatprep.subr.bf16.mxu0 0
    %7724 = vmatpush2.bf16.msra.mxu0 0
    %7725 = vmatprep.subr.bf16.mxu0 0
    %7726 = vmatpush2.bf16.msra.mxu0 0
    %7727 = vmatprep.subr.bf16.mxu0 0
    %7728 = vmatpush2.bf16.msra.mxu0 0
    %7729 = vmatprep.subr.bf16.mxu0 0
    %7730 = vmatpush2.bf16.msra.mxu0 %v7217
    %7731 = vmatprep.subr.bf16.mxu0 0
    %7732 = vmatpush2.bf16.msra.mxu0 %v7159
    %7733 = vmatprep.subr.bf16.mxu0 0
    %7734 = vmatpush2.bf16.msra.mxu0 %v7158
    %7735 = vmatprep.mubr.bf16.mxu0 %v7692
    %7736 = vmatmul.mubr.bf16.gmra.mxu0 %v7679
    %v7737 = vpop.f32.mrf.mxu0
    %v7738 = vadd.f32 0.0, %v7737
    %v7739 = vpop.f32.mrf.mxu0
    %v7740 = vpop.f32.mrf.mxu0
    %v7741 = vadd.f32 0.0, %v7740
    %v7742 = vpop.f32.mrf.mxu0
    %7743 = vmatprep.mubr.bf16.mxu0 %v7695
    %7744 = vmatmul.mubr.bf16.gmra.mxu0 %v7681
    %v7745 = vpop.f32.mrf.mxu0
    %v7746 = vadd.f32 0.0, %v7745
    %v7747 = vpop.f32.mrf.mxu0
    %v7748 = vpop.f32.mrf.mxu0
    %v7749 = vadd.f32 0.0, %v7748
    %v7750 = vpop.f32.mrf.mxu0
    %7751 = vmatprep.mubr.bf16.mxu0 %v7698
    %7752 = vmatmul.mubr.bf16.gmra.mxu0 %v7683
    %v7753 = vpop.f32.mrf.mxu0
    %v7754 = vadd.f32 0.0, %v7753
    %v7755 = vpop.f32.mrf.mxu0
    %v7756 = vpop.f32.mrf.mxu0
    %v7757 = vadd.f32 0.0, %v7756
    %v7758 = vpop.f32.mrf.mxu0
    %7759 = vmatprep.mubr.bf16.mxu0 %v7701
    %7760 = vmatmul.mubr.bf16.gmra.mxu0 %v7685
    %v7761 = vpop.f32.mrf.mxu0
    %v7762 = vadd.f32 0.0, %v7761
    %v7763 = vpop.f32.mrf.mxu0
    %v7764 = vpop.f32.mrf.mxu0
    %v7765 = vpop.f32.mrf.mxu0
    %7766 = vdwg.mxu0
    %v7767 = vpack.c.bf16 %v7741, %v7738
    %v7768 = vpack.c.bf16 %v7749, %v7746
    %v7769 = vpack.c.bf16 %v7757, %v7754
    %v7770 = vpack.c.bf16 %v7762, %v7762
    %s7771 = scalar_lea.vmem %s7, 280
    %v7772 = vld [vmem:[%s7771] sm:$0xff]
    %v7773 = vld [vmem:[%s7771 + $0x8] sm:$0xff]
    %v7774 = vld [vmem:[%s7771 + $0x10] sm:$0xff]
    %v7775 = vld [vmem:[%s7771 + $0x18] sm:$0xff]
    %v7776 = vld [vmem:[%s7771 + $0x20] sm:$0xff]
    %v7777 = vld [vmem:[%s7771 + $0x28] sm:$0xff]
    %v7778 = vld [vmem:[%s7771 + $0x30] sm:$0xff]
    %v7786 = vunpack.c.l.b16 %v7772
    %v7787 = vunpack.c.h.b16 %v7772
    %v7788 = vunpack.c.l.b16 %v7773
    %v7789 = vunpack.c.h.b16 %v7773
    %v7790 = vunpack.c.l.b16 %v7774
    %v7791 = vunpack.c.h.b16 %v7774
    %v7792 = vunpack.c.l.b16 %v7775
    %v7793 = vunpack.c.h.b16 %v7775
    %v7794 = vunpack.c.l.b16 %v7776
    %v7795 = vunpack.c.h.b16 %v7776
    %v7796 = vunpack.c.l.b16 %v7777
    %v7797 = vunpack.c.h.b16 %v7777
    %v7798 = vunpack.c.l.b16 %v7778
    %v7799 = vunpack.c.h.b16 %v7778
    %v7800 = vpack.c.b16 %v7788, %v7786
    %v7801 = vpack.c.b16 %v7789, %v7787
    %v7802 = vpack.c.b16 %v7792, %v7790
    %v7803 = vpack.c.b16 %v7793, %v7791
    %v7804 = vpack.c.b16 %v7796, %v7794
    %v7805 = vpack.c.b16 %v7797, %v7795
    %v7806 = vpack.c.b16 %v7798, %v7798
    %v7807 = vpack.c.b16 %v7799, %v7799
    %v7813 = vsel %vm7202, %v7801, 0
    %v7816 = vsel %vm7202, %v7803, 0
    %v7819 = vsel %vm7202, %v7805, 0
    %v7822 = vsel %vm7202, %v7807, 0
    %7824 = vmatprep.subr.bf16.mxu0 0
    %7825 = vmatpush1.bf16.msra.mxu0 %v7157
    %7826 = vmatprep.subr.bf16.mxu0 0
    %7827 = vmatpush1.bf16.msra.mxu0 %v7156
    %7828 = vmatprep.subr.bf16.mxu0 0
    %7829 = vmatpush1.bf16.msra.mxu0 %v7155
    %7830 = vmatprep.subr.bf16.mxu0 0
    %7831 = vmatpush1.bf16.msra.mxu0 %v7154
    %7832 = vmatprep.subr.bf16.mxu0 0
    %7833 = vmatpush1.bf16.msra.mxu0 %v7153
    %7834 = vmatprep.subr.bf16.mxu0 0
    %7835 = vmatpush1.bf16.msra.mxu0 %v7152
    %7836 = vmatprep.subr.bf16.mxu0 0
    %7837 = vmatpush1.bf16.msra.mxu0 %v7151
    %7838 = vmatprep.subr.bf16.mxu0 0
    %7839 = vmatpush1.bf16.msra.mxu0 %v7150
    %7840 = vmatprep.subr.bf16.mxu0 0
    %7841 = vmatpush2.bf16.msra.mxu0 0
    %7842 = vmatprep.subr.bf16.mxu0 0
    %7843 = vmatpush2.bf16.msra.mxu0 0
    %7844 = vmatprep.subr.bf16.mxu0 0
    %7845 = vmatpush2.bf16.msra.mxu0 0
    %7846 = vmatprep.subr.bf16.mxu0 0
    %7847 = vmatpush2.bf16.msra.mxu0 0
    %7848 = vmatprep.subr.bf16.mxu0 0
    %7849 = vmatpush2.bf16.msra.mxu0 0
    %7850 = vmatprep.subr.bf16.mxu0 0
    %7851 = vmatpush2.bf16.msra.mxu0 %v7217
    %7852 = vmatprep.subr.bf16.mxu0 0
    %7853 = vmatpush2.bf16.msra.mxu0 %v7159
    %7854 = vmatprep.subr.bf16.mxu0 0
    %7855 = vmatpush2.bf16.msra.mxu0 %v7158
    %7856 = vmatprep.mubr.bf16.mxu0 %v7813
    %7857 = vmatmul.mubr.bf16.gmra.mxu0 %v7800
    %v7858 = vpop.f32.mrf.mxu0
    %v7859 = vadd.f32 0.0, %v7858
    %v7860 = vpop.f32.mrf.mxu0
    %v7861 = vpop.f32.mrf.mxu0
    %v7862 = vadd.f32 0.0, %v7861
    %v7863 = vpop.f32.mrf.mxu0
    %7864 = vmatprep.mubr.bf16.mxu0 %v7816
    %7865 = vmatmul.mubr.bf16.gmra.mxu0 %v7802
    %v7866 = vpop.f32.mrf.mxu0
    %v7867 = vadd.f32 0.0, %v7866
    %v7868 = vpop.f32.mrf.mxu0
    %v7869 = vpop.f32.mrf.mxu0
    %v7870 = vadd.f32 0.0, %v7869
    %v7871 = vpop.f32.mrf.mxu0
    %7872 = vmatprep.mubr.bf16.mxu0 %v7819
    %7873 = vmatmul.mubr.bf16.gmra.mxu0 %v7804
    %v7874 = vpop.f32.mrf.mxu0
    %v7875 = vadd.f32 0.0, %v7874
    %v7876 = vpop.f32.mrf.mxu0
    %v7877 = vpop.f32.mrf.mxu0
    %v7878 = vadd.f32 0.0, %v7877
    %v7879 = vpop.f32.mrf.mxu0
    %7880 = vmatprep.mubr.bf16.mxu0 %v7822
    %7881 = vmatmul.mubr.bf16.gmra.mxu0 %v7806
    %v7882 = vpop.f32.mrf.mxu0
    %v7883 = vadd.f32 0.0, %v7882
    %v7884 = vpop.f32.mrf.mxu0
    %v7885 = vpop.f32.mrf.mxu0
    %v7886 = vpop.f32.mrf.mxu0
    %7887 = vdwg.mxu0
    %v7888 = vpack.c.bf16 %v7862, %v7859
    %v7889 = vpack.c.bf16 %v7870, %v7867
    %v7890 = vpack.c.bf16 %v7878, %v7875
    %v7891 = vpack.c.bf16 %v7883, %v7883
    %s7892 = scalar_lea.vmem %s7, 336
    %v7893 = vld [vmem:[%s7892] sm:$0xff]
    %v7894 = vld [vmem:[%s7892 + $0x8] sm:$0xff]
    %v7895 = vld [vmem:[%s7892 + $0x10] sm:$0xff]
    %v7896 = vld [vmem:[%s7892 + $0x18] sm:$0xff]
    %v7897 = vld [vmem:[%s7892 + $0x20] sm:$0xff]
    %v7898 = vld [vmem:[%s7892 + $0x28] sm:$0xff]
    %v7899 = vld [vmem:[%s7892 + $0x30] sm:$0xff]
    %v7907 = vunpack.c.l.b16 %v7893
    %v7908 = vunpack.c.h.b16 %v7893
    %v7909 = vunpack.c.l.b16 %v7894
    %v7910 = vunpack.c.h.b16 %v7894
    %v7911 = vunpack.c.l.b16 %v7895
    %v7912 = vunpack.c.h.b16 %v7895
    %v7913 = vunpack.c.l.b16 %v7896
    %v7914 = vunpack.c.h.b16 %v7896
    %v7915 = vunpack.c.l.b16 %v7897
    %v7916 = vunpack.c.h.b16 %v7897
    %v7917 = vunpack.c.l.b16 %v7898
    %v7918 = vunpack.c.h.b16 %v7898
    %v7919 = vunpack.c.l.b16 %v7899
    %v7920 = vunpack.c.h.b16 %v7899
    %v7921 = vpack.c.b16 %v7909, %v7907
    %v7922 = vpack.c.b16 %v7910, %v7908
    %v7923 = vpack.c.b16 %v7913, %v7911
    %v7924 = vpack.c.b16 %v7914, %v7912
    %v7925 = vpack.c.b16 %v7917, %v7915
    %v7926 = vpack.c.b16 %v7918, %v7916
    %v7927 = vpack.c.b16 %v7919, %v7919
    %v7928 = vpack.c.b16 %v7920, %v7920
    %v7934 = vsel %vm7202, %v7922, 0
    %v7937 = vsel %vm7202, %v7924, 0
    %v7940 = vsel %vm7202, %v7926, 0
    %v7943 = vsel %vm7202, %v7928, 0
    %7945 = vmatprep.subr.bf16.mxu0 0
    %7946 = vmatpush1.bf16.msra.mxu0 %v7157
    %7947 = vmatprep.subr.bf16.mxu0 0
    %7948 = vmatpush1.bf16.msra.mxu0 %v7156
    %7949 = vmatprep.subr.bf16.mxu0 0
    %7950 = vmatpush1.bf16.msra.mxu0 %v7155
    %7951 = vmatprep.subr.bf16.mxu0 0
    %7952 = vmatpush1.bf16.msra.mxu0 %v7154
    %7953 = vmatprep.subr.bf16.mxu0 0
    %7954 = vmatpush1.bf16.msra.mxu0 %v7153
    %7955 = vmatprep.subr.bf16.mxu0 0
    %7956 = vmatpush1.bf16.msra.mxu0 %v7152
    %7957 = vmatprep.subr.bf16.mxu0 0
    %7958 = vmatpush1.bf16.msra.mxu0 %v7151
    %7959 = vmatprep.subr.bf16.mxu0 0
    %7960 = vmatpush1.bf16.msra.mxu0 %v7150
    %7961 = vmatprep.subr.bf16.mxu0 0
    %7962 = vmatpush2.bf16.msra.mxu0 0
    %7963 = vmatprep.subr.bf16.mxu0 0
    %7964 = vmatpush2.bf16.msra.mxu0 0
    %7965 = vmatprep.subr.bf16.mxu0 0
    %7966 = vmatpush2.bf16.msra.mxu0 0
    %7967 = vmatprep.subr.bf16.mxu0 0
    %7968 = vmatpush2.bf16.msra.mxu0 0
    %7969 = vmatprep.subr.bf16.mxu0 0
    %7970 = vmatpush2.bf16.msra.mxu0 0
    %7971 = vmatprep.subr.bf16.mxu0 0
    %7972 = vmatpush2.bf16.msra.mxu0 %v7217
    %7973 = vmatprep.subr.bf16.mxu0 0
    %7974 = vmatpush2.bf16.msra.mxu0 %v7159
    %7975 = vmatprep.subr.bf16.mxu0 0
    %7976 = vmatpush2.bf16.msra.mxu0 %v7158
    %7977 = vmatprep.mubr.bf16.mxu0 %v7934
    %7978 = vmatmul.mubr.bf16.gmra.mxu0 %v7921
    %v7979 = vpop.f32.mrf.mxu0
    %v7980 = vadd.f32 0.0, %v7979
    %v7981 = vpop.f32.mrf.mxu0
    %v7982 = vpop.f32.mrf.mxu0
    %v7983 = vadd.f32 0.0, %v7982
    %v7984 = vpop.f32.mrf.mxu0
    %7985 = vmatprep.mubr.bf16.mxu0 %v7937
    %7986 = vmatmul.mubr.bf16.gmra.mxu0 %v7923
    %v7987 = vpop.f32.mrf.mxu0
    %v7988 = vadd.f32 0.0, %v7987
    %v7989 = vpop.f32.mrf.mxu0
    %v7990 = vpop.f32.mrf.mxu0
    %v7991 = vadd.f32 0.0, %v7990
    %v7992 = vpop.f32.mrf.mxu0
    %7993 = vmatprep.mubr.bf16.mxu0 %v7940
    %7994 = vmatmul.mubr.bf16.gmra.mxu0 %v7925
    %v7995 = vpop.f32.mrf.mxu0
    %v7996 = vadd.f32 0.0, %v7995
    %v7997 = vpop.f32.mrf.mxu0
    %v7998 = vpop.f32.mrf.mxu0
    %v7999 = vadd.f32 0.0, %v7998
    %v8000 = vpop.f32.mrf.mxu0
    %8001 = vmatprep.mubr.bf16.mxu0 %v7943
    %8002 = vmatmul.mubr.bf16.gmra.mxu0 %v7927
    %v8003 = vpop.f32.mrf.mxu0
    %v8004 = vadd.f32 0.0, %v8003
    %v8005 = vpop.f32.mrf.mxu0
    %v8006 = vpop.f32.mrf.mxu0
    %v8007 = vpop.f32.mrf.mxu0
    %8008 = vdwg.mxu0
    %v8009 = vpack.c.bf16 %v7983, %v7980
    %v8010 = vpack.c.bf16 %v7991, %v7988
    %v8011 = vpack.c.bf16 %v7999, %v7996
    %v8012 = vpack.c.bf16 %v8004, %v8004
    %s8013 = scalar_lea.vmem %s7, 392
    %v8014 = vld [vmem:[%s8013] sm:$0xff]
    %v8015 = vld [vmem:[%s8013 + $0x8] sm:$0xff]
    %v8016 = vld [vmem:[%s8013 + $0x10] sm:$0xff]
    %v8017 = vld [vmem:[%s8013 + $0x18] sm:$0xff]
    %v8018 = vld [vmem:[%s8013 + $0x20] sm:$0xff]
    %v8019 = vld [vmem:[%s8013 + $0x28] sm:$0xff]
    %v8020 = vld [vmem:[%s8013 + $0x30] sm:$0xff]
    %v8028 = vunpack.c.l.b16 %v8014
    %v8029 = vunpack.c.h.b16 %v8014
    %v8030 = vunpack.c.l.b16 %v8015
    %v8031 = vunpack.c.h.b16 %v8015
    %v8032 = vunpack.c.l.b16 %v8016
    %v8033 = vunpack.c.h.b16 %v8016
    %v8034 = vunpack.c.l.b16 %v8017
    %v8035 = vunpack.c.h.b16 %v8017
    %v8036 = vunpack.c.l.b16 %v8018
    %v8037 = vunpack.c.h.b16 %v8018
    %v8038 = vunpack.c.l.b16 %v8019
    %v8039 = vunpack.c.h.b16 %v8019
    %v8040 = vunpack.c.l.b16 %v8020
    %v8041 = vunpack.c.h.b16 %v8020
    %v8042 = vpack.c.b16 %v8030, %v8028
    %v8043 = vpack.c.b16 %v8031, %v8029
    %v8044 = vpack.c.b16 %v8034, %v8032
    %v8045 = vpack.c.b16 %v8035, %v8033
    %v8046 = vpack.c.b16 %v8038, %v8036
    %v8047 = vpack.c.b16 %v8039, %v8037
    %v8048 = vpack.c.b16 %v8040, %v8040
    %v8049 = vpack.c.b16 %v8041, %v8041
    %v8055 = vsel %vm7202, %v8043, 0
    %v8058 = vsel %vm7202, %v8045, 0
    %v8061 = vsel %vm7202, %v8047, 0
    %v8064 = vsel %vm7202, %v8049, 0
    %8066 = vmatprep.subr.bf16.mxu0 0
    %8067 = vmatpush1.bf16.msra.mxu0 %v7157
    %8068 = vmatprep.subr.bf16.mxu0 0
    %8069 = vmatpush1.bf16.msra.mxu0 %v7156
    %8070 = vmatprep.subr.bf16.mxu0 0
    %8071 = vmatpush1.bf16.msra.mxu0 %v7155
    %8072 = vmatprep.subr.bf16.mxu0 0
    %8073 = vmatpush1.bf16.msra.mxu0 %v7154
    %8074 = vmatprep.subr.bf16.mxu0 0
    %8075 = vmatpush1.bf16.msra.mxu0 %v7153
    %8076 = vmatprep.subr.bf16.mxu0 0
    %8077 = vmatpush1.bf16.msra.mxu0 %v7152
    %8078 = vmatprep.subr.bf16.mxu0 0
    %8079 = vmatpush1.bf16.msra.mxu0 %v7151
    %8080 = vmatprep.subr.bf16.mxu0 0
    %8081 = vmatpush1.bf16.msra.mxu0 %v7150
    %8082 = vmatprep.subr.bf16.mxu0 0
    %8083 = vmatpush2.bf16.msra.mxu0 0
    %8084 = vmatprep.subr.bf16.mxu0 0
    %8085 = vmatpush2.bf16.msra.mxu0 0
    %8086 = vmatprep.subr.bf16.mxu0 0
    %8087 = vmatpush2.bf16.msra.mxu0 0
    %8088 = vmatprep.subr.bf16.mxu0 0
    %8089 = vmatpush2.bf16.msra.mxu0 0
    %8090 = vmatprep.subr.bf16.mxu0 0
    %8091 = vmatpush2.bf16.msra.mxu0 0
    %8092 = vmatprep.subr.bf16.mxu0 0
    %8093 = vmatpush2.bf16.msra.mxu0 %v7217
    %8094 = vmatprep.subr.bf16.mxu0 0
    %8095 = vmatpush2.bf16.msra.mxu0 %v7159
    %8096 = vmatprep.subr.bf16.mxu0 0
    %8097 = vmatpush2.bf16.msra.mxu0 %v7158
    %8098 = vmatprep.mubr.bf16.mxu0 %v8055
    %8099 = vmatmul.mubr.bf16.gmra.mxu0 %v8042
    %v8100 = vpop.f32.mrf.mxu0
    %v8101 = vadd.f32 0.0, %v8100
    %v8102 = vpop.f32.mrf.mxu0
    %v8103 = vpop.f32.mrf.mxu0
    %v8104 = vadd.f32 0.0, %v8103
    %v8105 = vpop.f32.mrf.mxu0
    %8106 = vmatprep.mubr.bf16.mxu0 %v8058
    %8107 = vmatmul.mubr.bf16.gmra.mxu0 %v8044
    %v8108 = vpop.f32.mrf.mxu0
    %v8109 = vadd.f32 0.0, %v8108
    %v8110 = vpop.f32.mrf.mxu0
    %v8111 = vpop.f32.mrf.mxu0
    %v8112 = vadd.f32 0.0, %v8111
    %v8113 = vpop.f32.mrf.mxu0
    %8114 = vmatprep.mubr.bf16.mxu0 %v8061
    %8115 = vmatmul.mubr.bf16.gmra.mxu0 %v8046
    %v8116 = vpop.f32.mrf.mxu0
    %v8117 = vadd.f32 0.0, %v8116
    %v8118 = vpop.f32.mrf.mxu0
    %v8119 = vpop.f32.mrf.mxu0
    %v8120 = vadd.f32 0.0, %v8119
    %v8121 = vpop.f32.mrf.mxu0
    %8122 = vmatprep.mubr.bf16.mxu0 %v8064
    %8123 = vmatmul.mubr.bf16.gmra.mxu0 %v8048
    %v8124 = vpop.f32.mrf.mxu0
    %v8125 = vadd.f32 0.0, %v8124
    %v8126 = vpop.f32.mrf.mxu0
    %v8127 = vpop.f32.mrf.mxu0
    %v8128 = vpop.f32.mrf.mxu0
    %8129 = vdwg.mxu0
    %v8130 = vpack.c.bf16 %v8104, %v8101
    %v8131 = vpack.c.bf16 %v8112, %v8109
    %v8132 = vpack.c.bf16 %v8120, %v8117
    %v8133 = vpack.c.bf16 %v8125, %v8125
    %s8134 = scalar_lea.vmem %s7, 448
    %v8135 = vld [vmem:[%s8134] sm:$0xff]
    %v8136 = vld [vmem:[%s8134 + $0x8] sm:$0xff]
    %v8137 = vld [vmem:[%s8134 + $0x10] sm:$0xff]
    %v8138 = vld [vmem:[%s8134 + $0x18] sm:$0xff]
    %v8139 = vld [vmem:[%s8134 + $0x20] sm:$0xff]
    %v8140 = vld [vmem:[%s8134 + $0x28] sm:$0xff]
    %v8141 = vld [vmem:[%s8134 + $0x30] sm:$0xff]
    %v8149 = vunpack.c.l.b16 %v8135
    %v8150 = vunpack.c.h.b16 %v8135
    %v8151 = vunpack.c.l.b16 %v8136
    %v8152 = vunpack.c.h.b16 %v8136
    %v8153 = vunpack.c.l.b16 %v8137
    %v8154 = vunpack.c.h.b16 %v8137
    %v8155 = vunpack.c.l.b16 %v8138
    %v8156 = vunpack.c.h.b16 %v8138
    %v8157 = vunpack.c.l.b16 %v8139
    %v8158 = vunpack.c.h.b16 %v8139
    %v8159 = vunpack.c.l.b16 %v8140
    %v8160 = vunpack.c.h.b16 %v8140
    %v8161 = vunpack.c.l.b16 %v8141
    %v8162 = vunpack.c.h.b16 %v8141
    %v8163 = vpack.c.b16 %v8151, %v8149
    %v8164 = vpack.c.b16 %v8152, %v8150
    %v8165 = vpack.c.b16 %v8155, %v8153
    %v8166 = vpack.c.b16 %v8156, %v8154
    %v8167 = vpack.c.b16 %v8159, %v8157
    %v8168 = vpack.c.b16 %v8160, %v8158
    %v8169 = vpack.c.b16 %v8161, %v8161
    %v8170 = vpack.c.b16 %v8162, %v8162
    %v8176 = vsel %vm7202, %v8164, 0
    %v8179 = vsel %vm7202, %v8166, 0
    %v8182 = vsel %vm7202, %v8168, 0
    %v8185 = vsel %vm7202, %v8170, 0
    %8187 = vmatprep.subr.bf16.mxu0 0
    %8188 = vmatpush1.bf16.msra.mxu0 %v7157
    %8189 = vmatprep.subr.bf16.mxu0 0
    %8190 = vmatpush1.bf16.msra.mxu0 %v7156
    %8191 = vmatprep.subr.bf16.mxu0 0
    %8192 = vmatpush1.bf16.msra.mxu0 %v7155
    %8193 = vmatprep.subr.bf16.mxu0 0
    %8194 = vmatpush1.bf16.msra.mxu0 %v7154
    %8195 = vmatprep.subr.bf16.mxu0 0
    %8196 = vmatpush1.bf16.msra.mxu0 %v7153
    %8197 = vmatprep.subr.bf16.mxu0 0
    %8198 = vmatpush1.bf16.msra.mxu0 %v7152
    %8199 = vmatprep.subr.bf16.mxu0 0
    %8200 = vmatpush1.bf16.msra.mxu0 %v7151
    %8201 = vmatprep.subr.bf16.mxu0 0
    %8202 = vmatpush1.bf16.msra.mxu0 %v7150
    %8203 = vmatprep.subr.bf16.mxu0 0
    %8204 = vmatpush2.bf16.msra.mxu0 0
    %8205 = vmatprep.subr.bf16.mxu0 0
    %8206 = vmatpush2.bf16.msra.mxu0 0
    %8207 = vmatprep.subr.bf16.mxu0 0
    %8208 = vmatpush2.bf16.msra.mxu0 0
    %8209 = vmatprep.subr.bf16.mxu0 0
    %8210 = vmatpush2.bf16.msra.mxu0 0
    %8211 = vmatprep.subr.bf16.mxu0 0
    %8212 = vmatpush2.bf16.msra.mxu0 0
    %8213 = vmatprep.subr.bf16.mxu0 0
    %8214 = vmatpush2.bf16.msra.mxu0 %v7217
    %8215 = vmatprep.subr.bf16.mxu0 0
    %8216 = vmatpush2.bf16.msra.mxu0 %v7159
    %8217 = vmatprep.subr.bf16.mxu0 0
    %8218 = vmatpush2.bf16.msra.mxu0 %v7158
    %8219 = vmatprep.mubr.bf16.mxu0 %v8176
    %8220 = vmatmul.mubr.bf16.gmra.mxu0 %v8163
    %v8221 = vpop.f32.mrf.mxu0
    %v8222 = vadd.f32 0.0, %v8221
    %v8223 = vpop.f32.mrf.mxu0
    %v8224 = vpop.f32.mrf.mxu0
    %v8225 = vadd.f32 0.0, %v8224
    %v8226 = vpop.f32.mrf.mxu0
    %8227 = vmatprep.mubr.bf16.mxu0 %v8179
    %8228 = vmatmul.mubr.bf16.gmra.mxu0 %v8165
    %v8229 = vpop.f32.mrf.mxu0
    %v8230 = vadd.f32 0.0, %v8229
    %v8231 = vpop.f32.mrf.mxu0
    %v8232 = vpop.f32.mrf.mxu0
    %v8233 = vadd.f32 0.0, %v8232
    %v8234 = vpop.f32.mrf.mxu0
    %8235 = vmatprep.mubr.bf16.mxu0 %v8182
    %8236 = vmatmul.mubr.bf16.gmra.mxu0 %v8167
    %v8237 = vpop.f32.mrf.mxu0
    %v8238 = vadd.f32 0.0, %v8237
    %v8239 = vpop.f32.mrf.mxu0
    %v8240 = vpop.f32.mrf.mxu0
    %v8241 = vadd.f32 0.0, %v8240
    %v8242 = vpop.f32.mrf.mxu0
    %8243 = vmatprep.mubr.bf16.mxu0 %v8185
    %8244 = vmatmul.mubr.bf16.gmra.mxu0 %v8169
    %v8245 = vpop.f32.mrf.mxu0
    %v8246 = vadd.f32 0.0, %v8245
    %v8247 = vpop.f32.mrf.mxu0
    %v8248 = vpop.f32.mrf.mxu0
    %v8249 = vpop.f32.mrf.mxu0
    %8250 = vdwg.mxu0
    %v8251 = vpack.c.bf16 %v8225, %v8222
    %v8252 = vpack.c.bf16 %v8233, %v8230
    %v8253 = vpack.c.bf16 %v8241, %v8238
    %v8254 = vpack.c.bf16 %v8246, %v8246
    %8259 = vrot.lane.b32.xlu0 %v7404, 64
    %v8260 = vpop.permute.xlu0 %8259
    %8261 = vrot.lane.b32.xlu0 %v7405, 64
    %v8262 = vpop.permute.xlu0 %8261
    %8263 = vrot.lane.b32.xlu0 %v7406, 64
    %v8264 = vpop.permute.xlu0 %8263
    %8265 = vrot.lane.b32.xlu0 %v7407, 64
    %v8266 = vpop.permute.xlu0 %8265
    %8271 = vrot.lane.b32.xlu0 %v7646, 64
    %v8272 = vpop.permute.xlu0 %8271
    %8273 = vrot.lane.b32.xlu0 %v7647, 64
    %v8274 = vpop.permute.xlu0 %8273
    %8275 = vrot.lane.b32.xlu0 %v7648, 64
    %v8276 = vpop.permute.xlu0 %8275
    %8277 = vrot.lane.b32.xlu0 %v7649, 64
    %v8278 = vpop.permute.xlu0 %8277
    %8283 = vrot.lane.b32.xlu0 %v7888, 64
    %v8284 = vpop.permute.xlu0 %8283
    %8285 = vrot.lane.b32.xlu0 %v7889, 64
    %v8286 = vpop.permute.xlu0 %8285
    %8287 = vrot.lane.b32.xlu0 %v7890, 64
    %v8288 = vpop.permute.xlu0 %8287
    %8289 = vrot.lane.b32.xlu0 %v7891, 64
    %v8290 = vpop.permute.xlu0 %8289
    %8295 = vrot.lane.b32.xlu0 %v8130, 64
    %v8296 = vpop.permute.xlu0 %8295
    %8297 = vrot.lane.b32.xlu0 %v8131, 64
    %v8298 = vpop.permute.xlu0 %8297
    %8299 = vrot.lane.b32.xlu0 %v8132, 64
    %v8300 = vpop.permute.xlu0 %8299
    %8301 = vrot.lane.b32.xlu0 %v8133, 64
    %v8302 = vpop.permute.xlu0 %8301
    %v8305 = vsel %vm6588, %v7283, %v8260
    %v8309 = vsel %vm6588, %v7284, %v8262
    %v8313 = vsel %vm6588, %v7285, %v8264
    %v8317 = vsel %vm6588, %v7286, %v8266
    %v8321 = vsel %vm6588, %v7525, %v8272
    %v8325 = vsel %vm6588, %v7526, %v8274
    %v8329 = vsel %vm6588, %v7527, %v8276
    %v8333 = vsel %vm6588, %v7528, %v8278
    %v8337 = vsel %vm6588, %v7767, %v8284
    %v8341 = vsel %vm6588, %v7768, %v8286
    %v8345 = vsel %vm6588, %v7769, %v8288
    %v8349 = vsel %vm6588, %v7770, %v8290
    %v8353 = vsel %vm6588, %v8009, %v8296
    %v8357 = vsel %vm6588, %v8010, %v8298
    %v8361 = vsel %vm6588, %v8011, %v8300
    %v8365 = vsel %vm6588, %v8012, %v8302
    %v8367 = vld [vmem:[%s8] sm:$0xf]
    %v8368 = vld [vmem:[%s8 + $0x4] sm:$0xf]
    %v8369 = vld [vmem:[%s8 + $0x8] sm:$0xf]
    %v8370 = vld [vmem:[%s8 + $0xc] sm:$0xf]
    %v8371 = vld [vmem:[%s8 + $0x10] sm:$0xf]
    %v8372 = vld [vmem:[%s8 + $0x14] sm:$0xf]
    %v8373 = vld [vmem:[%s8 + $0x18] sm:$0xf]
    %v8374 = vld [vmem:[%s8 + $0x1c] sm:$0xf]
    %v8375 = vld [vmem:[%s8 + $0x20] sm:$0xf]
    %v8376 = vld [vmem:[%s8 + $0x24] sm:$0xf]
    %v8377 = vld [vmem:[%s8 + $0x28] sm:$0xf]
    %v8378 = vld [vmem:[%s8 + $0x2c] sm:$0xf]
    %v8379 = vld [vmem:[%s8 + $0x30] sm:$0xf]
    %v8380 = vld [vmem:[%s8 + $0x34] sm:$0xf]
    %v8381 = vld [vmem:[%s8 + $0x38] sm:$0xf]
    %v8382 = vld [vmem:[%s8 + $0x3c] sm:$0xf]
    %v8383 = vld [vmem:[%s8 + $0x40] sm:$0xf]
    %v8384 = vld [vmem:[%s8 + $0x44] sm:$0xf]
    %v8385 = vld [vmem:[%s8 + $0x48] sm:$0xf]
    %v8386 = vld [vmem:[%s8 + $0x4c] sm:$0xf]
    %v8387 = vld [vmem:[%s8 + $0x50] sm:$0xf]
    %v8388 = vld [vmem:[%s8 + $0x54] sm:$0xf]
    %v8389 = vld [vmem:[%s8 + $0x58] sm:$0xf]
    %v8390 = vld [vmem:[%s8 + $0x5c] sm:$0xf]
    %v8391 = vld [vmem:[%s8 + $0x60] sm:$0xf]
    %v8392 = vld [vmem:[%s8 + $0x64] sm:$0xf]
    %v8393 = vld [vmem:[%s8 + $0x68] sm:$0xf]
    %v8394 = vld [vmem:[%s8 + $0x6c] sm:$0xf]
    %v8395 = vld [vmem:[%s8 + $0x70] sm:$0xf]
    %v8396 = vld [vmem:[%s8 + $0x74] sm:$0xf]
    %v8397 = vld [vmem:[%s8 + $0x78] sm:$0xf]
    %v8398 = vld [vmem:[%s8 + $0x7c] sm:$0xf]
    %v8399 = vld [vmem:[%s8 + $0x80] sm:$0xf]
    %v8400 = vld [vmem:[%s8 + $0x84] sm:$0xf]
    %v8401 = vld [vmem:[%s8 + $0x88] sm:$0xf]
    %v8402 = vld [vmem:[%s8 + $0x8c] sm:$0xf]
    %v8403 = vld [vmem:[%s8 + $0x90] sm:$0xf]
    %v8404 = vld [vmem:[%s8 + $0x94] sm:$0xf]
    %v8405 = vld [vmem:[%s8 + $0x98] sm:$0xf]
    %v8406 = vld [vmem:[%s8 + $0x9c] sm:$0xf]
    %v8407 = vld [vmem:[%s8 + $0xa0] sm:$0xf]
    %v8408 = vld [vmem:[%s8 + $0xa4] sm:$0xf]
    %v8409 = vld [vmem:[%s8 + $0xa8] sm:$0xf]
    %v8410 = vld [vmem:[%s8 + $0xac] sm:$0xf]
    %v8411 = vld [vmem:[%s8 + $0xb0] sm:$0xf]
    %v8412 = vld [vmem:[%s8 + $0xb4] sm:$0xf]
    %v8413 = vld [vmem:[%s8 + $0xb8] sm:$0xf]
    %v8414 = vld [vmem:[%s8 + $0xbc] sm:$0xf]
    %v8415 = vld [vmem:[%s8 + $0xc0] sm:$0xf]
    %v8416 = vld [vmem:[%s8 + $0xc4] sm:$0xf]
    %v8417 = vld [vmem:[%s8 + $0xc8] sm:$0xf]
    %v8418 = vld [vmem:[%s8 + $0xcc] sm:$0xf]
    %v8419 = vld [vmem:[%s8 + $0xd0] sm:$0xf]
    %v8420 = vld [vmem:[%s8 + $0xd4] sm:$0xf]
    %v8421 = vld [vmem:[%s8 + $0xd8] sm:$0xf]
    %v8422 = vld [vmem:[%s8 + $0xdc] sm:$0xf]
    %v8423 = vld [vmem:[%s8 + $0xe0] sm:$0xf]
    %v8424 = vld [vmem:[%s8 + $0xe4] sm:$0xf]
    %v8425 = vld [vmem:[%s8 + $0xe8] sm:$0xf]
    %v8426 = vld [vmem:[%s8 + $0xec] sm:$0xf]
    %v8427 = vld [vmem:[%s8 + $0xf0] sm:$0xf]
    %v8428 = vld [vmem:[%s8 + $0xf4] sm:$0xf]
    %v8429 = vld [vmem:[%s8 + $0xf8] sm:$0xf]
    %v8430 = vld [vmem:[%s8 + $0xfc] sm:$0xf]
    %v8431 = vld [vmem:[%s8 + $0x100] sm:$0xf]
    %v8432 = vld [vmem:[%s8 + $0x104] sm:$0xf]
    %v8433 = vld [vmem:[%s8 + $0x108] sm:$0xf]
    %v8434 = vld [vmem:[%s8 + $0x10c] sm:$0xf]
    %v8435 = vld [vmem:[%s8 + $0x110] sm:$0xf]
    %v8436 = vld [vmem:[%s8 + $0x114] sm:$0xf]
    %v8437 = vld [vmem:[%s8 + $0x118] sm:$0xf]
    %v8438 = vld [vmem:[%s8 + $0x11c] sm:$0xf]
    %v8440 = vlaneseq
    %v8441 = vshrl.u32 %v8440, 7
    %v8442 = vsub.s32 0, %v8441
    %v8443 = vrot.slane %v7161, %v8442
    %v8517 = vunpack.c.l.b16 %v8367
    %v8518 = vunpack.c.l.b16 %v8368
    %v8519 = vunpack.c.l.b16 %v8369
    %v8520 = vunpack.c.l.b16 %v8370
    %v8521 = vunpack.c.l.b16 %v8371
    %v8522 = vunpack.c.l.b16 %v8372
    %v8523 = vunpack.c.l.b16 %v8373
    %v8524 = vunpack.c.l.b16 %v8374
    %v8525 = vunpack.c.l.b16 %v8375
    %v8526 = vunpack.c.l.b16 %v8376
    %v8527 = vunpack.c.l.b16 %v8377
    %v8528 = vunpack.c.l.b16 %v8378
    %v8529 = vunpack.c.l.b16 %v8379
    %v8530 = vunpack.c.l.b16 %v8380
    %v8531 = vunpack.c.l.b16 %v8381
    %v8532 = vunpack.c.l.b16 %v8382
    %v8533 = vunpack.c.l.b16 %v8383
    %v8534 = vunpack.c.l.b16 %v8384
    %v8535 = vunpack.c.l.b16 %v8385
    %v8536 = vunpack.c.l.b16 %v8386
    %v8537 = vunpack.c.l.b16 %v8387
    %v8538 = vunpack.c.l.b16 %v8388
    %v8539 = vunpack.c.l.b16 %v8389
    %v8540 = vunpack.c.l.b16 %v8390
    %v8541 = vunpack.c.l.b16 %v8391
    %v8542 = vunpack.c.l.b16 %v8392
    %v8543 = vunpack.c.l.b16 %v8393
    %v8544 = vunpack.c.l.b16 %v8394
    %v8545 = vunpack.c.l.b16 %v8395
    %v8546 = vunpack.c.l.b16 %v8396
    %v8547 = vunpack.c.l.b16 %v8397
    %v8548 = vunpack.c.l.b16 %v8398
    %v8549 = vunpack.c.l.b16 %v8399
    %v8550 = vunpack.c.l.b16 %v8400
    %v8551 = vunpack.c.l.b16 %v8401
    %v8552 = vunpack.c.l.b16 %v8402
    %v8553 = vunpack.c.l.b16 %v8403
    %v8554 = vunpack.c.l.b16 %v8404
    %v8555 = vunpack.c.l.b16 %v8405
    %v8556 = vunpack.c.l.b16 %v8406
    %v8557 = vunpack.c.l.b16 %v8407
    %v8558 = vunpack.c.l.b16 %v8408
    %v8559 = vunpack.c.l.b16 %v8409
    %v8560 = vunpack.c.l.b16 %v8410
    %v8561 = vunpack.c.l.b16 %v8411
    %v8562 = vunpack.c.l.b16 %v8412
    %v8563 = vunpack.c.l.b16 %v8413
    %v8564 = vunpack.c.l.b16 %v8414
    %v8565 = vunpack.c.l.b16 %v8415
    %v8566 = vunpack.c.l.b16 %v8416
    %v8567 = vunpack.c.l.b16 %v8417
    %v8568 = vunpack.c.l.b16 %v8418
    %v8569 = vunpack.c.l.b16 %v8419
    %v8570 = vunpack.c.l.b16 %v8420
    %v8571 = vunpack.c.l.b16 %v8421
    %v8572 = vunpack.c.l.b16 %v8422
    %v8573 = vunpack.c.l.b16 %v8423
    %v8574 = vunpack.c.l.b16 %v8424
    %v8575 = vunpack.c.l.b16 %v8425
    %v8576 = vunpack.c.l.b16 %v8426
    %v8577 = vunpack.c.l.b16 %v8427
    %v8578 = vunpack.c.l.b16 %v8428
    %v8579 = vunpack.c.l.b16 %v8429
    %v8580 = vunpack.c.l.b16 %v8430
    %v8581 = vunpack.c.l.b16 %v8431
    %v8582 = vunpack.c.l.b16 %v8432
    %v8583 = vunpack.c.l.b16 %v8433
    %v8584 = vunpack.c.l.b16 %v8434
    %v8585 = vunpack.c.l.b16 %v8435
    %v8586 = vunpack.c.l.b16 %v8436
    %v8587 = vunpack.c.l.b16 %v8437
    %v8588 = vunpack.c.l.b16 %v8438
    %v8589 = vpack.c.b16 %v8518, %v8517
    %v8590 = vpack.c.b16 %v8520, %v8519
    %v8591 = vpack.c.b16 %v8522, %v8521
    %v8592 = vpack.c.b16 %v8524, %v8523
    %v8593 = vpack.c.b16 %v8526, %v8525
    %v8594 = vpack.c.b16 %v8528, %v8527
    %v8595 = vpack.c.b16 %v8530, %v8529
    %v8596 = vpack.c.b16 %v8532, %v8531
    %v8597 = vpack.c.b16 %v8534, %v8533
    %v8598 = vpack.c.b16 %v8536, %v8535
    %v8599 = vpack.c.b16 %v8538, %v8537
    %v8600 = vpack.c.b16 %v8540, %v8539
    %v8601 = vpack.c.b16 %v8542, %v8541
    %v8602 = vpack.c.b16 %v8544, %v8543
    %v8603 = vpack.c.b16 %v8546, %v8545
    %v8604 = vpack.c.b16 %v8548, %v8547
    %v8605 = vpack.c.b16 %v8550, %v8549
    %v8606 = vpack.c.b16 %v8552, %v8551
    %v8607 = vpack.c.b16 %v8554, %v8553
    %v8608 = vpack.c.b16 %v8556, %v8555
    %v8609 = vpack.c.b16 %v8558, %v8557
    %v8610 = vpack.c.b16 %v8560, %v8559
    %v8611 = vpack.c.b16 %v8562, %v8561
    %v8612 = vpack.c.b16 %v8564, %v8563
    %v8613 = vpack.c.b16 %v8566, %v8565
    %v8614 = vpack.c.b16 %v8568, %v8567
    %v8615 = vpack.c.b16 %v8570, %v8569
    %v8616 = vpack.c.b16 %v8572, %v8571
    %v8617 = vpack.c.b16 %v8574, %v8573
    %v8618 = vpack.c.b16 %v8576, %v8575
    %v8619 = vpack.c.b16 %v8578, %v8577
    %v8620 = vpack.c.b16 %v8580, %v8579
    %v8621 = vpack.c.b16 %v8582, %v8581
    %v8622 = vpack.c.b16 %v8584, %v8583
    %v8623 = vpack.c.b16 %v8586, %v8585
    %v8624 = vpack.c.b16 %v8588, %v8587
    %v8662 = vsel %vm6588, %v8251, 0
    %v8665 = vsel %vm6588, %v8252, 0
    %v8668 = vsel %vm6588, %v8253, 0
    %v8671 = vsel %vm6588, %v8254, 0
    %8673 = vmatprep.subr.bf16.mxu0 0
    %8674 = vmatpush1.bf16.msra.mxu0 %v8596
    %8675 = vmatprep.subr.bf16.mxu0 0
    %8676 = vmatpush1.bf16.msra.mxu0 %v8595
    %8677 = vmatprep.subr.bf16.mxu0 0
    %8678 = vmatpush1.bf16.msra.mxu0 %v8594
    %8679 = vmatprep.subr.bf16.mxu0 0
    %8680 = vmatpush1.bf16.msra.mxu0 %v8593
    %8681 = vmatprep.subr.bf16.mxu0 0
    %8682 = vmatpush1.bf16.msra.mxu0 %v8592
    %8683 = vmatprep.subr.bf16.mxu0 0
    %8684 = vmatpush1.bf16.msra.mxu0 %v8591
    %8685 = vmatprep.subr.bf16.mxu0 0
    %8686 = vmatpush1.bf16.msra.mxu0 %v8590
    %8687 = vmatprep.subr.bf16.mxu0 0
    %8688 = vmatpush1.bf16.msra.mxu0 %v8589
    %8689 = vmatprep.subr.bf16.mxu0 0
    %8690 = vmatpush2.bf16.msra.mxu0 %v8604
    %8691 = vmatprep.subr.bf16.mxu0 0
    %8692 = vmatpush2.bf16.msra.mxu0 %v8603
    %8693 = vmatprep.subr.bf16.mxu0 0
    %8694 = vmatpush2.bf16.msra.mxu0 %v8602
    %8695 = vmatprep.subr.bf16.mxu0 0
    %8696 = vmatpush2.bf16.msra.mxu0 %v8601
    %8697 = vmatprep.subr.bf16.mxu0 0
    %8698 = vmatpush2.bf16.msra.mxu0 %v8600
    %8699 = vmatprep.subr.bf16.mxu0 0
    %8700 = vmatpush2.bf16.msra.mxu0 %v8599
    %8701 = vmatprep.subr.bf16.mxu0 0
    %8702 = vmatpush2.bf16.msra.mxu0 %v8598
    %8703 = vmatprep.subr.bf16.mxu0 0
    %8704 = vmatpush2.bf16.msra.mxu0 %v8597
    %8705 = vmatprep.mubr.bf16.mxu0 %v8321
    %8706 = vmatmul.mubr.bf16.gmra.mxu0 %v8305
    %v8707 = vpop.f32.mrf.mxu0
    %v8708 = vadd.f32 %v8443, %v8707
    %v8709 = vpop.f32.mrf.mxu0
    %v8710 = vpop.f32.mrf.mxu0
    %v8711 = vadd.f32 %v8443, %v8710
    %v8712 = vpop.f32.mrf.mxu0
    %8713 = vmatprep.mubr.bf16.mxu0 %v8325
    %8714 = vmatmul.mubr.bf16.gmra.mxu0 %v8309
    %v8715 = vpop.f32.mrf.mxu0
    %v8716 = vadd.f32 %v8443, %v8715
    %v8717 = vpop.f32.mrf.mxu0
    %v8718 = vpop.f32.mrf.mxu0
    %v8719 = vadd.f32 %v8443, %v8718
    %v8720 = vpop.f32.mrf.mxu0
    %8721 = vmatprep.mubr.bf16.mxu0 %v8329
    %8722 = vmatmul.mubr.bf16.gmra.mxu0 %v8313
    %v8723 = vpop.f32.mrf.mxu0
    %v8724 = vadd.f32 %v8443, %v8723
    %v8725 = vpop.f32.mrf.mxu0
    %v8726 = vpop.f32.mrf.mxu0
    %v8727 = vadd.f32 %v8443, %v8726
    %v8728 = vpop.f32.mrf.mxu0
    %8729 = vmatprep.mubr.bf16.mxu0 %v8333
    %8730 = vmatmul.mubr.bf16.gmra.mxu0 %v8317
    %v8731 = vpop.f32.mrf.mxu0
    %v8732 = vadd.f32 %v8443, %v8731
    %v8733 = vpop.f32.mrf.mxu0
    %v8734 = vpop.f32.mrf.mxu0
    %v8735 = vpop.f32.mrf.mxu0
    %8736 = vdwg.mxu0
    %8737 = vmatprep.subr.bf16.mxu0 0
    %8738 = vmatpush1.bf16.msra.mxu0 %v8612
    %8739 = vmatprep.subr.bf16.mxu0 0
    %8740 = vmatpush1.bf16.msra.mxu0 %v8611
    %8741 = vmatprep.subr.bf16.mxu0 0
    %8742 = vmatpush1.bf16.msra.mxu0 %v8610
    %8743 = vmatprep.subr.bf16.mxu0 0
    %8744 = vmatpush1.bf16.msra.mxu0 %v8609
    %8745 = vmatprep.subr.bf16.mxu0 0
    %8746 = vmatpush1.bf16.msra.mxu0 %v8608
    %8747 = vmatprep.subr.bf16.mxu0 0
    %8748 = vmatpush1.bf16.msra.mxu0 %v8607
    %8749 = vmatprep.subr.bf16.mxu0 0
    %8750 = vmatpush1.bf16.msra.mxu0 %v8606
    %8751 = vmatprep.subr.bf16.mxu0 0
    %8752 = vmatpush1.bf16.msra.mxu0 %v8605
    %8753 = vmatprep.subr.bf16.mxu0 0
    %8754 = vmatpush2.bf16.msra.mxu0 %v8620
    %8755 = vmatprep.subr.bf16.mxu0 0
    %8756 = vmatpush2.bf16.msra.mxu0 %v8619
    %8757 = vmatprep.subr.bf16.mxu0 0
    %8758 = vmatpush2.bf16.msra.mxu0 %v8618
    %8759 = vmatprep.subr.bf16.mxu0 0
    %8760 = vmatpush2.bf16.msra.mxu0 %v8617
    %8761 = vmatprep.subr.bf16.mxu0 0
    %8762 = vmatpush2.bf16.msra.mxu0 %v8616
    %8763 = vmatprep.subr.bf16.mxu0 0
    %8764 = vmatpush2.bf16.msra.mxu0 %v8615
    %8765 = vmatprep.subr.bf16.mxu0 0
    %8766 = vmatpush2.bf16.msra.mxu0 %v8614
    %8767 = vmatprep.subr.bf16.mxu0 0
    %8768 = vmatpush2.bf16.msra.mxu0 %v8613
    %8769 = vmatprep.mubr.bf16.mxu0 %v8353
    %8770 = vmatmul.mubr.bf16.gmra.mxu0 %v8337
    %v8771 = vpop.f32.mrf.mxu0
    %v8772 = vadd.f32 %v8708, %v8771
    %v8773 = vpop.f32.mrf.mxu0
    %v8774 = vpop.f32.mrf.mxu0
    %v8775 = vadd.f32 %v8711, %v8774
    %v8776 = vpop.f32.mrf.mxu0
    %8777 = vmatprep.mubr.bf16.mxu0 %v8357
    %8778 = vmatmul.mubr.bf16.gmra.mxu0 %v8341
    %v8779 = vpop.f32.mrf.mxu0
    %v8780 = vadd.f32 %v8716, %v8779
    %v8781 = vpop.f32.mrf.mxu0
    %v8782 = vpop.f32.mrf.mxu0
    %v8783 = vadd.f32 %v8719, %v8782
    %v8784 = vpop.f32.mrf.mxu0
    %8785 = vmatprep.mubr.bf16.mxu0 %v8361
    %8786 = vmatmul.mubr.bf16.gmra.mxu0 %v8345
    %v8787 = vpop.f32.mrf.mxu0
    %v8788 = vadd.f32 %v8724, %v8787
    %v8789 = vpop.f32.mrf.mxu0
    %v8790 = vpop.f32.mrf.mxu0
    %v8791 = vadd.f32 %v8727, %v8790
    %v8792 = vpop.f32.mrf.mxu0
    %8793 = vmatprep.mubr.bf16.mxu0 %v8365
    %8794 = vmatmul.mubr.bf16.gmra.mxu0 %v8349
    %v8795 = vpop.f32.mrf.mxu0
    %v8796 = vadd.f32 %v8732, %v8795
    %v8797 = vpop.f32.mrf.mxu0
    %v8798 = vpop.f32.mrf.mxu0
    %v8799 = vpop.f32.mrf.mxu0
    %8800 = vdwg.mxu0
    %8801 = vmatprep.subr.bf16.mxu0 0
    %8802 = vmatpush1.bf16.msra.mxu0 0
    %8803 = vmatprep.subr.bf16.mxu0 0
    %8804 = vmatpush1.bf16.msra.mxu0 0
    %8805 = vmatprep.subr.bf16.mxu0 0
    %8806 = vmatpush1.bf16.msra.mxu0 0
    %8807 = vmatprep.subr.bf16.mxu0 0
    %8808 = vmatpush1.bf16.msra.mxu0 0
    %8809 = vmatprep.subr.bf16.mxu0 0
    %8810 = vmatpush1.bf16.msra.mxu0 %v8624
    %8811 = vmatprep.subr.bf16.mxu0 0
    %8812 = vmatpush1.bf16.msra.mxu0 %v8623
    %8813 = vmatprep.subr.bf16.mxu0 0
    %8814 = vmatpush1.bf16.msra.mxu0 %v8622
    %8815 = vmatprep.subr.bf16.mxu0 0
    %8816 = vmatpush1.bf16.msra.mxu0 %v8621
    %8817 = vmatprep.subr.bf16.mxu0 0
    %8818 = vmatpush2.bf16.msra.mxu0 0
    %8819 = vmatprep.subr.bf16.mxu0 0
    %8820 = vmatpush2.bf16.msra.mxu0 0
    %8821 = vmatprep.subr.bf16.mxu0 0
    %8822 = vmatpush2.bf16.msra.mxu0 0
    %8823 = vmatprep.subr.bf16.mxu0 0
    %8824 = vmatpush2.bf16.msra.mxu0 0
    %8825 = vmatprep.subr.bf16.mxu0 0
    %8826 = vmatpush2.bf16.msra.mxu0 0
    %8827 = vmatprep.subr.bf16.mxu0 0
    %8828 = vmatpush2.bf16.msra.mxu0 0
    %8829 = vmatprep.subr.bf16.mxu0 0
    %8830 = vmatpush2.bf16.msra.mxu0 0
    %8831 = vmatprep.subr.bf16.mxu0 0
    %8832 = vmatpush2.bf16.msra.mxu0 0
    %8833 = vmatprep.mubr.bf16.mxu0 0
    %8834 = vmatmul.mubr.bf16.gmra.mxu0 %v8662
    %v8835 = vpop.f32.mrf.mxu0
    %v8836 = vadd.f32 %v8772, %v8835
    %v8837 = vpop.f32.mrf.mxu0
    %v8838 = vpop.f32.mrf.mxu0
    %v8839 = vadd.f32 %v8775, %v8838
    %v8840 = vpop.f32.mrf.mxu0
    %8841 = vmatprep.mubr.bf16.mxu0 0
    %8842 = vmatmul.mubr.bf16.gmra.mxu0 %v8665
    %v8843 = vpop.f32.mrf.mxu0
    %v8844 = vadd.f32 %v8780, %v8843
    %v8845 = vpop.f32.mrf.mxu0
    %v8846 = vpop.f32.mrf.mxu0
    %v8847 = vadd.f32 %v8783, %v8846
    %v8848 = vpop.f32.mrf.mxu0
    %8849 = vmatprep.mubr.bf16.mxu0 0
    %8850 = vmatmul.mubr.bf16.gmra.mxu0 %v8668
    %v8851 = vpop.f32.mrf.mxu0
    %v8852 = vadd.f32 %v8788, %v8851
    %v8853 = vpop.f32.mrf.mxu0
    %v8854 = vpop.f32.mrf.mxu0
    %v8855 = vadd.f32 %v8791, %v8854
    %v8856 = vpop.f32.mrf.mxu0
    %8857 = vmatprep.mubr.bf16.mxu0 0
    %8858 = vmatmul.mubr.bf16.gmra.mxu0 %v8671
    %v8859 = vpop.f32.mrf.mxu0
    %v8860 = vadd.f32 %v8796, %v8859
    %v8861 = vpop.f32.mrf.mxu0
    %v8862 = vpop.f32.mrf.mxu0
    %v8863 = vpop.f32.mrf.mxu0
    %8864 = vdwg.mxu0
    %v8865 = vpack.c.bf16 %v8839, %v8836
    %v8866 = vpack.c.bf16 %v8847, %v8844
    %v8867 = vpack.c.bf16 %v8855, %v8852
    %v8868 = vpack.c.bf16 %v8860, %v8860
    %v8869 = vld [vmem:[#allocation10] sm:$0x1]
    %v8870 = vld [vmem:[#allocation9] sm:$0xf]
    %v8871 = vld [vmem:[#allocation9 + $0x4] sm:$0xf]
    %v8872 = vld [vmem:[#allocation9 + $0x8] sm:$0xf]
    %v8876 = vunpack.c.l.b16 %v8870
    %v8877 = vunpack.c.l.b16 %v8871
    %v8878 = vunpack.c.l.b16 %v8872
    %v8879 = vpack.c.b16 %v8877, %v8876
    %v8880 = vpack.c.b16 %v8878, %v8878
    %vm8881 = vcmask 457728
    %v8883 = vsel %vm8881, %v8879, 0
    %v8886 = vsel %vm8881, %v8880, 0
    %v8889 = vsel %vm7215, %v8868, 0
    %8891 = vmatprep.subr.bf16.mxu0 0
    %8892 = vmatpush1.bf16.msra.mxu0 0
    %8893 = vmatprep.subr.bf16.mxu0 0
    %8894 = vmatpush1.bf16.msra.mxu0 0
    %8895 = vmatprep.subr.bf16.mxu0 0
    %8896 = vmatpush1.bf16.msra.mxu0 0
    %8897 = vmatprep.subr.bf16.mxu0 0
    %8898 = vmatpush1.bf16.msra.mxu0 0
    %8899 = vmatprep.subr.bf16.mxu0 0
    %8900 = vmatpush1.bf16.msra.mxu0 %v8889
    %8901 = vmatprep.subr.bf16.mxu0 0
    %8902 = vmatpush1.bf16.msra.mxu0 %v8867
    %8903 = vmatprep.subr.bf16.mxu0 0
    %8904 = vmatpush1.bf16.msra.mxu0 %v8866
    %8905 = vmatprep.subr.bf16.mxu0 0
    %8906 = vmatpush1.bf16.msra.mxu0 %v8865
    %8907 = vmatprep.subr.bf16.mxu0 0
    %8908 = vmatpush2.bf16.msra.mxu0 0
    %8909 = vmatprep.subr.bf16.mxu0 0
    %8910 = vmatpush2.bf16.msra.mxu0 0
    %8911 = vmatprep.subr.bf16.mxu0 0
    %8912 = vmatpush2.bf16.msra.mxu0 0
    %8913 = vmatprep.subr.bf16.mxu0 0
    %8914 = vmatpush2.bf16.msra.mxu0 0
    %8915 = vmatprep.subr.bf16.mxu0 0
    %8916 = vmatpush2.bf16.msra.mxu0 0
    %8917 = vmatprep.subr.bf16.mxu0 0
    %8918 = vmatpush2.bf16.msra.mxu0 0
    %8919 = vmatprep.subr.bf16.mxu0 0
    %8920 = vmatpush2.bf16.msra.mxu0 0
    %8921 = vmatprep.subr.bf16.mxu0 0
    %8922 = vmatpush2.bf16.msra.mxu0 0
    %8923 = vmatprep.mubr.bf16.mxu0 0
    %8924 = vmatmul.mubr.bf16.gmra.mxu0 %v8883
    %v8925 = vpop.f32.mrf.mxu0
    %v8926 = vadd.f32 0.0, %v8925
    %v8927 = vpop.f32.mrf.mxu0
    %v8928 = vpop.f32.mrf.mxu0
    %v8929 = vadd.f32 0.0, %v8928
    %v8930 = vpop.f32.mrf.mxu0
    %8931 = vmatprep.mubr.bf16.mxu0 0
    %8932 = vmatmul.mubr.bf16.gmra.mxu0 %v8886
    %v8933 = vpop.f32.mrf.mxu0
    %v8934 = vadd.f32 0.0, %v8933
    %v8935 = vpop.f32.mrf.mxu0
    %v8936 = vpop.f32.mrf.mxu0
    %v8937 = vpop.f32.mrf.mxu0
    %8938 = vdwg.mxu0
    %v8939 = vpack.c.bf16 %v8929, %v8926
    %v8940 = vpack.c.bf16 %v8934, %v8934
    %s8941 = scalar_lea.vmem [#allocation9], 12
    %v8942 = vld [vmem:[%s8941] sm:$0xf]
    %v8943 = vld [vmem:[%s8941 + $0x4] sm:$0xf]
    %v8944 = vld [vmem:[%s8941 + $0x8] sm:$0xf]
    %v8948 = vunpack.c.l.b16 %v8942
    %v8949 = vunpack.c.l.b16 %v8943
    %v8950 = vunpack.c.l.b16 %v8944
    %v8951 = vpack.c.b16 %v8949, %v8948
    %v8952 = vpack.c.b16 %v8950, %v8950
    %v8954 = vsel %vm8881, %v8951, 0
    %v8957 = vsel %vm8881, %v8952, 0
    %8959 = vmatprep.subr.bf16.mxu0 0
    %8960 = vmatpush1.bf16.msra.mxu0 0
    %8961 = vmatprep.subr.bf16.mxu0 0
    %8962 = vmatpush1.bf16.msra.mxu0 0
    %8963 = vmatprep.subr.bf16.mxu0 0
    %8964 = vmatpush1.bf16.msra.mxu0 0
    %8965 = vmatprep.subr.bf16.mxu0 0
    %8966 = vmatpush1.bf16.msra.mxu0 0
    %8967 = vmatprep.subr.bf16.mxu0 0
    %8968 = vmatpush1.bf16.msra.mxu0 %v8889
    %8969 = vmatprep.subr.bf16.mxu0 0
    %8970 = vmatpush1.bf16.msra.mxu0 %v8867
    %8971 = vmatprep.subr.bf16.mxu0 0
    %8972 = vmatpush1.bf16.msra.mxu0 %v8866
    %8973 = vmatprep.subr.bf16.mxu0 0
    %8974 = vmatpush1.bf16.msra.mxu0 %v8865
    %8975 = vmatprep.subr.bf16.mxu0 0
    %8976 = vmatpush2.bf16.msra.mxu0 0
    %8977 = vmatprep.subr.bf16.mxu0 0
    %8978 = vmatpush2.bf16.msra.mxu0 0
    %8979 = vmatprep.subr.bf16.mxu0 0
    %8980 = vmatpush2.bf16.msra.mxu0 0
    %8981 = vmatprep.subr.bf16.mxu0 0
    %8982 = vmatpush2.bf16.msra.mxu0 0
    %8983 = vmatprep.subr.bf16.mxu0 0
    %8984 = vmatpush2.bf16.msra.mxu0 0
    %8985 = vmatprep.subr.bf16.mxu0 0
    %8986 = vmatpush2.bf16.msra.mxu0 0
    %8987 = vmatprep.subr.bf16.mxu0 0
    %8988 = vmatpush2.bf16.msra.mxu0 0
    %8989 = vmatprep.subr.bf16.mxu0 0
    %8990 = vmatpush2.bf16.msra.mxu0 0
    %8991 = vmatprep.mubr.bf16.mxu0 0
    %8992 = vmatmul.mubr.bf16.gmra.mxu0 %v8954
    %v8993 = vpop.f32.mrf.mxu0
    %v8994 = vadd.f32 0.0, %v8993
    %v8995 = vpop.f32.mrf.mxu0
    %v8996 = vpop.f32.mrf.mxu0
    %v8997 = vadd.f32 0.0, %v8996
    %v8998 = vpop.f32.mrf.mxu0
    %8999 = vmatprep.mubr.bf16.mxu0 0
    %9000 = vmatmul.mubr.bf16.gmra.mxu0 %v8957
    %v9001 = vpop.f32.mrf.mxu0
    %v9002 = vadd.f32 0.0, %v9001
    %v9003 = vpop.f32.mrf.mxu0
    %v9004 = vpop.f32.mrf.mxu0
    %v9005 = vpop.f32.mrf.mxu0
    %9006 = vdwg.mxu0
    %v9007 = vpack.c.bf16 %v8997, %v8994
    %v9008 = vpack.c.bf16 %v9002, %v9002
    %s9009 = scalar_lea.vmem [#allocation9], 24
    %v9010 = vld [vmem:[%s9009] sm:$0xf]
    %v9011 = vld [vmem:[%s9009 + $0x4] sm:$0xf]
    %v9012 = vld [vmem:[%s9009 + $0x8] sm:$0xf]
    %v9016 = vunpack.c.l.b16 %v9010
    %v9017 = vunpack.c.l.b16 %v9011
    %v9018 = vunpack.c.l.b16 %v9012
    %v9019 = vpack.c.b16 %v9017, %v9016
    %v9020 = vpack.c.b16 %v9018, %v9018
    %v9022 = vsel %vm8881, %v9019, 0
    %v9025 = vsel %vm8881, %v9020, 0
    %9027 = vmatprep.subr.bf16.mxu0 0
    %9028 = vmatpush1.bf16.msra.mxu0 0
    %9029 = vmatprep.subr.bf16.mxu0 0
    %9030 = vmatpush1.bf16.msra.mxu0 0
    %9031 = vmatprep.subr.bf16.mxu0 0
    %9032 = vmatpush1.bf16.msra.mxu0 0
    %9033 = vmatprep.subr.bf16.mxu0 0
    %9034 = vmatpush1.bf16.msra.mxu0 0
    %9035 = vmatprep.subr.bf16.mxu0 0
    %9036 = vmatpush1.bf16.msra.mxu0 %v8889
    %9037 = vmatprep.subr.bf16.mxu0 0
    %9038 = vmatpush1.bf16.msra.mxu0 %v8867
    %9039 = vmatprep.subr.bf16.mxu0 0
    %9040 = vmatpush1.bf16.msra.mxu0 %v8866
    %9041 = vmatprep.subr.bf16.mxu0 0
    %9042 = vmatpush1.bf16.msra.mxu0 %v8865
    %9043 = vmatprep.subr.bf16.mxu0 0
    %9044 = vmatpush2.bf16.msra.mxu0 0
    %9045 = vmatprep.subr.bf16.mxu0 0
    %9046 = vmatpush2.bf16.msra.mxu0 0
    %9047 = vmatprep.subr.bf16.mxu0 0
    %9048 = vmatpush2.bf16.msra.mxu0 0
    %9049 = vmatprep.subr.bf16.mxu0 0
    %9050 = vmatpush2.bf16.msra.mxu0 0
    %9051 = vmatprep.subr.bf16.mxu0 0
    %9052 = vmatpush2.bf16.msra.mxu0 0
    %9053 = vmatprep.subr.bf16.mxu0 0
    %9054 = vmatpush2.bf16.msra.mxu0 0
    %9055 = vmatprep.subr.bf16.mxu0 0
    %9056 = vmatpush2.bf16.msra.mxu0 0
    %9057 = vmatprep.subr.bf16.mxu0 0
    %9058 = vmatpush2.bf16.msra.mxu0 0
    %9059 = vmatprep.mubr.bf16.mxu0 0
    %9060 = vmatmul.mubr.bf16.gmra.mxu0 %v9022
    %v9061 = vpop.f32.mrf.mxu0
    %v9062 = vadd.f32 0.0, %v9061
    %v9063 = vpop.f32.mrf.mxu0
    %v9064 = vpop.f32.mrf.mxu0
    %v9065 = vadd.f32 0.0, %v9064
    %v9066 = vpop.f32.mrf.mxu0
    %9067 = vmatprep.mubr.bf16.mxu0 0
    %9068 = vmatmul.mubr.bf16.gmra.mxu0 %v9025
    %v9069 = vpop.f32.mrf.mxu0
    %v9070 = vadd.f32 0.0, %v9069
    %v9071 = vpop.f32.mrf.mxu0
    %v9072 = vpop.f32.mrf.mxu0
    %v9073 = vpop.f32.mrf.mxu0
    %9074 = vdwg.mxu0
    %v9075 = vpack.c.bf16 %v9065, %v9062
    %v9076 = vpack.c.bf16 %v9070, %v9070
    %s9077 = scalar_lea.vmem [#allocation9], 36
    %v9078 = vld [vmem:[%s9077] sm:$0xf]
    %v9079 = vld [vmem:[%s9077 + $0x4] sm:$0xf]
    %v9080 = vld [vmem:[%s9077 + $0x8] sm:$0xf]
    %v9084 = vunpack.c.l.b16 %v9078
    %v9085 = vunpack.c.l.b16 %v9079
    %v9086 = vunpack.c.l.b16 %v9080
    %v9087 = vpack.c.b16 %v9085, %v9084
    %v9088 = vpack.c.b16 %v9086, %v9086
    %v9090 = vsel %vm8881, %v9087, 0
    %v9093 = vsel %vm8881, %v9088, 0
    %9095 = vmatprep.subr.bf16.mxu0 0
    %9096 = vmatpush1.bf16.msra.mxu0 0
    %9097 = vmatprep.subr.bf16.mxu0 0
    %9098 = vmatpush1.bf16.msra.mxu0 0
    %9099 = vmatprep.subr.bf16.mxu0 0
    %9100 = vmatpush1.bf16.msra.mxu0 0
    %9101 = vmatprep.subr.bf16.mxu0 0
    %9102 = vmatpush1.bf16.msra.mxu0 0
    %9103 = vmatprep.subr.bf16.mxu0 0
    %9104 = vmatpush1.bf16.msra.mxu0 %v8889
    %9105 = vmatprep.subr.bf16.mxu0 0
    %9106 = vmatpush1.bf16.msra.mxu0 %v8867
    %9107 = vmatprep.subr.bf16.mxu0 0
    %9108 = vmatpush1.bf16.msra.mxu0 %v8866
    %9109 = vmatprep.subr.bf16.mxu0 0
    %9110 = vmatpush1.bf16.msra.mxu0 %v8865
    %9111 = vmatprep.subr.bf16.mxu0 0
    %9112 = vmatpush2.bf16.msra.mxu0 0
    %9113 = vmatprep.subr.bf16.mxu0 0
    %9114 = vmatpush2.bf16.msra.mxu0 0
    %9115 = vmatprep.subr.bf16.mxu0 0
    %9116 = vmatpush2.bf16.msra.mxu0 0
    %9117 = vmatprep.subr.bf16.mxu0 0
    %9118 = vmatpush2.bf16.msra.mxu0 0
    %9119 = vmatprep.subr.bf16.mxu0 0
    %9120 = vmatpush2.bf16.msra.mxu0 0
    %9121 = vmatprep.subr.bf16.mxu0 0
    %9122 = vmatpush2.bf16.msra.mxu0 0
    %9123 = vmatprep.subr.bf16.mxu0 0
    %9124 = vmatpush2.bf16.msra.mxu0 0
    %9125 = vmatprep.subr.bf16.mxu0 0
    %9126 = vmatpush2.bf16.msra.mxu0 0
    %9127 = vmatprep.mubr.bf16.mxu0 0
    %9128 = vmatmul.mubr.bf16.gmra.mxu0 %v9090
    %v9129 = vpop.f32.mrf.mxu0
    %v9130 = vadd.f32 0.0, %v9129
    %v9131 = vpop.f32.mrf.mxu0
    %v9132 = vpop.f32.mrf.mxu0
    %v9133 = vadd.f32 0.0, %v9132
    %v9134 = vpop.f32.mrf.mxu0
    %9135 = vmatprep.mubr.bf16.mxu0 0
    %9136 = vmatmul.mubr.bf16.gmra.mxu0 %v9093
    %v9137 = vpop.f32.mrf.mxu0
    %v9138 = vadd.f32 0.0, %v9137
    %v9139 = vpop.f32.mrf.mxu0
    %v9140 = vpop.f32.mrf.mxu0
    %v9141 = vpop.f32.mrf.mxu0
    %9142 = vdwg.mxu0
    %v9143 = vpack.c.bf16 %v9133, %v9130
    %v9144 = vpack.c.bf16 %v9138, %v9138
    %s9145 = scalar_lea.vmem [#allocation9], 48
    %v9146 = vld [vmem:[%s9145] sm:$0xf]
    %v9147 = vld [vmem:[%s9145 + $0x4] sm:$0xf]
    %v9148 = vld [vmem:[%s9145 + $0x8] sm:$0xf]
    %v9152 = vunpack.c.l.b16 %v9146
    %v9153 = vunpack.c.l.b16 %v9147
    %v9154 = vunpack.c.l.b16 %v9148
    %v9155 = vpack.c.b16 %v9153, %v9152
    %v9156 = vpack.c.b16 %v9154, %v9154
    %v9158 = vsel %vm8881, %v9155, 0
    %v9161 = vsel %vm8881, %v9156, 0
    %9163 = vmatprep.subr.bf16.mxu0 0
    %9164 = vmatpush1.bf16.msra.mxu0 0
    %9165 = vmatprep.subr.bf16.mxu0 0
    %9166 = vmatpush1.bf16.msra.mxu0 0
    %9167 = vmatprep.subr.bf16.mxu0 0
    %9168 = vmatpush1.bf16.msra.mxu0 0
    %9169 = vmatprep.subr.bf16.mxu0 0
    %9170 = vmatpush1.bf16.msra.mxu0 0
    %9171 = vmatprep.subr.bf16.mxu0 0
    %9172 = vmatpush1.bf16.msra.mxu0 %v8889
    %9173 = vmatprep.subr.bf16.mxu0 0
    %9174 = vmatpush1.bf16.msra.mxu0 %v8867
    %9175 = vmatprep.subr.bf16.mxu0 0
    %9176 = vmatpush1.bf16.msra.mxu0 %v8866
    %9177 = vmatprep.subr.bf16.mxu0 0
    %9178 = vmatpush1.bf16.msra.mxu0 %v8865
    %9179 = vmatprep.subr.bf16.mxu0 0
    %9180 = vmatpush2.bf16.msra.mxu0 0
    %9181 = vmatprep.subr.bf16.mxu0 0
    %9182 = vmatpush2.bf16.msra.mxu0 0
    %9183 = vmatprep.subr.bf16.mxu0 0
    %9184 = vmatpush2.bf16.msra.mxu0 0
    %9185 = vmatprep.subr.bf16.mxu0 0
    %9186 = vmatpush2.bf16.msra.mxu0 0
    %9187 = vmatprep.subr.bf16.mxu0 0
    %9188 = vmatpush2.bf16.msra.mxu0 0
    %9189 = vmatprep.subr.bf16.mxu0 0
    %9190 = vmatpush2.bf16.msra.mxu0 0
    %9191 = vmatprep.subr.bf16.mxu0 0
    %9192 = vmatpush2.bf16.msra.mxu0 0
    %9193 = vmatprep.subr.bf16.mxu0 0
    %9194 = vmatpush2.bf16.msra.mxu0 0
    %9195 = vmatprep.mubr.bf16.mxu0 0
    %9196 = vmatmul.mubr.bf16.gmra.mxu0 %v9158
    %v9197 = vpop.f32.mrf.mxu0
    %v9198 = vadd.f32 0.0, %v9197
    %v9199 = vpop.f32.mrf.mxu0
    %v9200 = vpop.f32.mrf.mxu0
    %v9201 = vadd.f32 0.0, %v9200
    %v9202 = vpop.f32.mrf.mxu0
    %9203 = vmatprep.mubr.bf16.mxu0 0
    %9204 = vmatmul.mubr.bf16.gmra.mxu0 %v9161
    %v9205 = vpop.f32.mrf.mxu0
    %v9206 = vadd.f32 0.0, %v9205
    %v9207 = vpop.f32.mrf.mxu0
    %v9208 = vpop.f32.mrf.mxu0
    %v9209 = vpop.f32.mrf.mxu0
    %9210 = vdwg.mxu0
    %v9211 = vpack.c.bf16 %v9201, %v9198
    %v9212 = vpack.c.bf16 %v9206, %v9206
    %s9213 = scalar_lea.vmem [#allocation9], 60
    %v9214 = vld [vmem:[%s9213] sm:$0xf]
    %v9215 = vld [vmem:[%s9213 + $0x4] sm:$0xf]
    %v9216 = vld [vmem:[%s9213 + $0x8] sm:$0xf]
    %v9220 = vunpack.c.l.b16 %v9214
    %v9221 = vunpack.c.l.b16 %v9215
    %v9222 = vunpack.c.l.b16 %v9216
    %v9223 = vpack.c.b16 %v9221, %v9220
    %v9224 = vpack.c.b16 %v9222, %v9222
    %v9226 = vsel %vm8881, %v9223, 0
    %v9229 = vsel %vm8881, %v9224, 0
    %9231 = vmatprep.subr.bf16.mxu0 0
    %9232 = vmatpush1.bf16.msra.mxu0 0
    %9233 = vmatprep.subr.bf16.mxu0 0
    %9234 = vmatpush1.bf16.msra.mxu0 0
    %9235 = vmatprep.subr.bf16.mxu0 0
    %9236 = vmatpush1.bf16.msra.mxu0 0
    %9237 = vmatprep.subr.bf16.mxu0 0
    %9238 = vmatpush1.bf16.msra.mxu0 0
    %9239 = vmatprep.subr.bf16.mxu0 0
    %9240 = vmatpush1.bf16.msra.mxu0 %v8889
    %9241 = vmatprep.subr.bf16.mxu0 0
    %9242 = vmatpush1.bf16.msra.mxu0 %v8867
    %9243 = vmatprep.subr.bf16.mxu0 0
    %9244 = vmatpush1.bf16.msra.mxu0 %v8866
    %9245 = vmatprep.subr.bf16.mxu0 0
    %9246 = vmatpush1.bf16.msra.mxu0 %v8865
    %9247 = vmatprep.subr.bf16.mxu0 0
    %9248 = vmatpush2.bf16.msra.mxu0 0
    %9249 = vmatprep.subr.bf16.mxu0 0
    %9250 = vmatpush2.bf16.msra.mxu0 0
    %9251 = vmatprep.subr.bf16.mxu0 0
    %9252 = vmatpush2.bf16.msra.mxu0 0
    %9253 = vmatprep.subr.bf16.mxu0 0
    %9254 = vmatpush2.bf16.msra.mxu0 0
    %9255 = vmatprep.subr.bf16.mxu0 0
    %9256 = vmatpush2.bf16.msra.mxu0 0
    %9257 = vmatprep.subr.bf16.mxu0 0
    %9258 = vmatpush2.bf16.msra.mxu0 0
    %9259 = vmatprep.subr.bf16.mxu0 0
    %9260 = vmatpush2.bf16.msra.mxu0 0
    %9261 = vmatprep.subr.bf16.mxu0 0
    %9262 = vmatpush2.bf16.msra.mxu0 0
    %9263 = vmatprep.mubr.bf16.mxu0 0
    %9264 = vmatmul.mubr.bf16.gmra.mxu0 %v9226
    %v9265 = vpop.f32.mrf.mxu0
    %v9266 = vadd.f32 0.0, %v9265
    %v9267 = vpop.f32.mrf.mxu0
    %v9268 = vpop.f32.mrf.mxu0
    %v9269 = vadd.f32 0.0, %v9268
    %v9270 = vpop.f32.mrf.mxu0
    %9271 = vmatprep.mubr.bf16.mxu0 0
    %9272 = vmatmul.mubr.bf16.gmra.mxu0 %v9229
    %v9273 = vpop.f32.mrf.mxu0
    %v9274 = vadd.f32 0.0, %v9273
    %v9275 = vpop.f32.mrf.mxu0
    %v9276 = vpop.f32.mrf.mxu0
    %v9277 = vpop.f32.mrf.mxu0
    %9278 = vdwg.mxu0
    %v9279 = vpack.c.bf16 %v9269, %v9266
    %v9280 = vpack.c.bf16 %v9274, %v9274
    %s9281 = scalar_lea.vmem [#allocation9], 72
    %v9282 = vld [vmem:[%s9281] sm:$0xf]
    %v9283 = vld [vmem:[%s9281 + $0x4] sm:$0xf]
    %v9284 = vld [vmem:[%s9281 + $0x8] sm:$0xf]
    %v9288 = vunpack.c.l.b16 %v9282
    %v9289 = vunpack.c.l.b16 %v9283
    %v9290 = vunpack.c.l.b16 %v9284
    %v9291 = vpack.c.b16 %v9289, %v9288
    %v9292 = vpack.c.b16 %v9290, %v9290
    %v9294 = vsel %vm8881, %v9291, 0
    %v9297 = vsel %vm8881, %v9292, 0
    %9299 = vmatprep.subr.bf16.mxu0 0
    %9300 = vmatpush1.bf16.msra.mxu0 0
    %9301 = vmatprep.subr.bf16.mxu0 0
    %9302 = vmatpush1.bf16.msra.mxu0 0
    %9303 = vmatprep.subr.bf16.mxu0 0
    %9304 = vmatpush1.bf16.msra.mxu0 0
    %9305 = vmatprep.subr.bf16.mxu0 0
    %9306 = vmatpush1.bf16.msra.mxu0 0
    %9307 = vmatprep.subr.bf16.mxu0 0
    %9308 = vmatpush1.bf16.msra.mxu0 %v8889
    %9309 = vmatprep.subr.bf16.mxu0 0
    %9310 = vmatpush1.bf16.msra.mxu0 %v8867
    %9311 = vmatprep.subr.bf16.mxu0 0
    %9312 = vmatpush1.bf16.msra.mxu0 %v8866
    %9313 = vmatprep.subr.bf16.mxu0 0
    %9314 = vmatpush1.bf16.msra.mxu0 %v8865
    %9315 = vmatprep.subr.bf16.mxu0 0
    %9316 = vmatpush2.bf16.msra.mxu0 0
    %9317 = vmatprep.subr.bf16.mxu0 0
    %9318 = vmatpush2.bf16.msra.mxu0 0
    %9319 = vmatprep.subr.bf16.mxu0 0
    %9320 = vmatpush2.bf16.msra.mxu0 0
    %9321 = vmatprep.subr.bf16.mxu0 0
    %9322 = vmatpush2.bf16.msra.mxu0 0
    %9323 = vmatprep.subr.bf16.mxu0 0
    %9324 = vmatpush2.bf16.msra.mxu0 0
    %9325 = vmatprep.subr.bf16.mxu0 0
    %9326 = vmatpush2.bf16.msra.mxu0 0
    %9327 = vmatprep.subr.bf16.mxu0 0
    %9328 = vmatpush2.bf16.msra.mxu0 0
    %9329 = vmatprep.subr.bf16.mxu0 0
    %9330 = vmatpush2.bf16.msra.mxu0 0
    %9331 = vmatprep.mubr.bf16.mxu0 0
    %9332 = vmatmul.mubr.bf16.gmra.mxu0 %v9294
    %v9333 = vpop.f32.mrf.mxu0
    %v9334 = vadd.f32 0.0, %v9333
    %v9335 = vpop.f32.mrf.mxu0
    %v9336 = vpop.f32.mrf.mxu0
    %v9337 = vadd.f32 0.0, %v9336
    %v9338 = vpop.f32.mrf.mxu0
    %9339 = vmatprep.mubr.bf16.mxu0 0
    %9340 = vmatmul.mubr.bf16.gmra.mxu0 %v9297
    %v9341 = vpop.f32.mrf.mxu0
    %v9342 = vadd.f32 0.0, %v9341
    %v9343 = vpop.f32.mrf.mxu0
    %v9344 = vpop.f32.mrf.mxu0
    %v9345 = vpop.f32.mrf.mxu0
    %9346 = vdwg.mxu0
    %v9347 = vpack.c.bf16 %v9337, %v9334
    %v9348 = vpack.c.bf16 %v9342, %v9342
    %s9349 = scalar_lea.vmem [#allocation9], 84
    %v9350 = vld [vmem:[%s9349] sm:$0xf]
    %v9351 = vld [vmem:[%s9349 + $0x4] sm:$0xf]
    %v9352 = vld [vmem:[%s9349 + $0x8] sm:$0xf]
    %v9356 = vunpack.c.l.b16 %v9350
    %v9357 = vunpack.c.l.b16 %v9351
    %v9358 = vunpack.c.l.b16 %v9352
    %v9359 = vpack.c.b16 %v9357, %v9356
    %v9360 = vpack.c.b16 %v9358, %v9358
    %v9362 = vsel %vm8881, %v9359, 0
    %v9365 = vsel %vm8881, %v9360, 0
    %9367 = vmatprep.subr.bf16.mxu0 0
    %9368 = vmatpush1.bf16.msra.mxu0 0
    %9369 = vmatprep.subr.bf16.mxu0 0
    %9370 = vmatpush1.bf16.msra.mxu0 0
    %9371 = vmatprep.subr.bf16.mxu0 0
    %9372 = vmatpush1.bf16.msra.mxu0 0
    %9373 = vmatprep.subr.bf16.mxu0 0
    %9374 = vmatpush1.bf16.msra.mxu0 0
    %9375 = vmatprep.subr.bf16.mxu0 0
    %9376 = vmatpush1.bf16.msra.mxu0 %v8889
    %9377 = vmatprep.subr.bf16.mxu0 0
    %9378 = vmatpush1.bf16.msra.mxu0 %v8867
    %9379 = vmatprep.subr.bf16.mxu0 0
    %9380 = vmatpush1.bf16.msra.mxu0 %v8866
    %9381 = vmatprep.subr.bf16.mxu0 0
    %9382 = vmatpush1.bf16.msra.mxu0 %v8865
    %9383 = vmatprep.subr.bf16.mxu0 0
    %9384 = vmatpush2.bf16.msra.mxu0 0
    %9385 = vmatprep.subr.bf16.mxu0 0
    %9386 = vmatpush2.bf16.msra.mxu0 0
    %9387 = vmatprep.subr.bf16.mxu0 0
    %9388 = vmatpush2.bf16.msra.mxu0 0
    %9389 = vmatprep.subr.bf16.mxu0 0
    %9390 = vmatpush2.bf16.msra.mxu0 0
    %9391 = vmatprep.subr.bf16.mxu0 0
    %9392 = vmatpush2.bf16.msra.mxu0 0
    %9393 = vmatprep.subr.bf16.mxu0 0
    %9394 = vmatpush2.bf16.msra.mxu0 0
    %9395 = vmatprep.subr.bf16.mxu0 0
    %9396 = vmatpush2.bf16.msra.mxu0 0
    %9397 = vmatprep.subr.bf16.mxu0 0
    %9398 = vmatpush2.bf16.msra.mxu0 0
    %9399 = vmatprep.mubr.bf16.mxu0 0
    %9400 = vmatmul.mubr.bf16.gmra.mxu0 %v9362
    %v9401 = vpop.f32.mrf.mxu0
    %v9402 = vadd.f32 0.0, %v9401
    %v9403 = vpop.f32.mrf.mxu0
    %v9404 = vpop.f32.mrf.mxu0
    %v9405 = vadd.f32 0.0, %v9404
    %v9406 = vpop.f32.mrf.mxu0
    %9407 = vmatprep.mubr.bf16.mxu0 0
    %9408 = vmatmul.mubr.bf16.gmra.mxu0 %v9365
    %v9409 = vpop.f32.mrf.mxu0
    %v9410 = vadd.f32 0.0, %v9409
    %v9411 = vpop.f32.mrf.mxu0
    %v9412 = vpop.f32.mrf.mxu0
    %v9413 = vpop.f32.mrf.mxu0
    %9414 = vdwg.mxu0
    %v9415 = vpack.c.bf16 %v9405, %v9402
    %v9416 = vpack.c.bf16 %v9410, %v9410
    %s9417 = scalar_lea.vmem [#allocation9], 96
    %v9418 = vld [vmem:[%s9417] sm:$0xf]
    %v9419 = vld [vmem:[%s9417 + $0x4] sm:$0xf]
    %v9420 = vld [vmem:[%s9417 + $0x8] sm:$0xf]
    %v9424 = vunpack.c.l.b16 %v9418
    %v9425 = vunpack.c.l.b16 %v9419
    %v9426 = vunpack.c.l.b16 %v9420
    %v9427 = vpack.c.b16 %v9425, %v9424
    %v9428 = vpack.c.b16 %v9426, %v9426
    %v9430 = vsel %vm8881, %v9427, 0
    %v9433 = vsel %vm8881, %v9428, 0
    %9435 = vmatprep.subr.bf16.mxu0 0
    %9436 = vmatpush1.bf16.msra.mxu0 0
    %9437 = vmatprep.subr.bf16.mxu0 0
    %9438 = vmatpush1.bf16.msra.mxu0 0
    %9439 = vmatprep.subr.bf16.mxu0 0
    %9440 = vmatpush1.bf16.msra.mxu0 0
    %9441 = vmatprep.subr.bf16.mxu0 0
    %9442 = vmatpush1.bf16.msra.mxu0 0
    %9443 = vmatprep.subr.bf16.mxu0 0
    %9444 = vmatpush1.bf16.msra.mxu0 %v8889
    %9445 = vmatprep.subr.bf16.mxu0 0
    %9446 = vmatpush1.bf16.msra.mxu0 %v8867
    %9447 = vmatprep.subr.bf16.mxu0 0
    %9448 = vmatpush1.bf16.msra.mxu0 %v8866
    %9449 = vmatprep.subr.bf16.mxu0 0
    %9450 = vmatpush1.bf16.msra.mxu0 %v8865
    %9451 = vmatprep.subr.bf16.mxu0 0
    %9452 = vmatpush2.bf16.msra.mxu0 0
    %9453 = vmatprep.subr.bf16.mxu0 0
    %9454 = vmatpush2.bf16.msra.mxu0 0
    %9455 = vmatprep.subr.bf16.mxu0 0
    %9456 = vmatpush2.bf16.msra.mxu0 0
    %9457 = vmatprep.subr.bf16.mxu0 0
    %9458 = vmatpush2.bf16.msra.mxu0 0
    %9459 = vmatprep.subr.bf16.mxu0 0
    %9460 = vmatpush2.bf16.msra.mxu0 0
    %9461 = vmatprep.subr.bf16.mxu0 0
    %9462 = vmatpush2.bf16.msra.mxu0 0
    %9463 = vmatprep.subr.bf16.mxu0 0
    %9464 = vmatpush2.bf16.msra.mxu0 0
    %9465 = vmatprep.subr.bf16.mxu0 0
    %9466 = vmatpush2.bf16.msra.mxu0 0
    %9467 = vmatprep.mubr.bf16.mxu0 0
    %9468 = vmatmul.mubr.bf16.gmra.mxu0 %v9430
    %v9469 = vpop.f32.mrf.mxu0
    %v9470 = vadd.f32 0.0, %v9469
    %v9471 = vpop.f32.mrf.mxu0
    %v9472 = vpop.f32.mrf.mxu0
    %v9473 = vadd.f32 0.0, %v9472
    %v9474 = vpop.f32.mrf.mxu0
    %9475 = vmatprep.mubr.bf16.mxu0 0
    %9476 = vmatmul.mubr.bf16.gmra.mxu0 %v9433
    %v9477 = vpop.f32.mrf.mxu0
    %v9478 = vadd.f32 0.0, %v9477
    %v9479 = vpop.f32.mrf.mxu0
    %v9480 = vpop.f32.mrf.mxu0
    %v9481 = vpop.f32.mrf.mxu0
    %9482 = vdwg.mxu0
    %v9483 = vpack.c.bf16 %v9473, %v9470
    %v9484 = vpack.c.bf16 %v9478, %v9478
    %9487 = vrot.lane.b32.xlu0 %v9007, 64
    %v9488 = vpop.permute.xlu0 %9487
    %9489 = vrot.lane.b32.xlu0 %v9008, 64
    %v9490 = vpop.permute.xlu0 %9489
    %9493 = vrot.lane.b32.xlu0 %v9143, 64
    %v9494 = vpop.permute.xlu0 %9493
    %9495 = vrot.lane.b32.xlu0 %v9144, 64
    %v9496 = vpop.permute.xlu0 %9495
    %9499 = vrot.lane.b32.xlu0 %v9279, 64
    %v9500 = vpop.permute.xlu0 %9499
    %9501 = vrot.lane.b32.xlu0 %v9280, 64
    %v9502 = vpop.permute.xlu0 %9501
    %9505 = vrot.lane.b32.xlu0 %v9415, 64
    %v9506 = vpop.permute.xlu0 %9505
    %9507 = vrot.lane.b32.xlu0 %v9416, 64
    %v9508 = vpop.permute.xlu0 %9507
    %v9511 = vsel %vm6588, %v8939, %v9488
    %v9515 = vsel %vm6588, %v8940, %v9490
    %v9519 = vsel %vm6588, %v9075, %v9494
    %v9523 = vsel %vm6588, %v9076, %v9496
    %v9527 = vsel %vm6588, %v9211, %v9500
    %v9531 = vsel %vm6588, %v9212, %v9502
    %v9535 = vsel %vm6588, %v9347, %v9506
    %v9539 = vsel %vm6588, %v9348, %v9508
    %v9541 = vld [vmem:[%s11] sm:$0xf]
    %v9542 = vld [vmem:[%s11 + $0x4] sm:$0xf]
    %v9543 = vld [vmem:[%s11 + $0x8] sm:$0xf]
    %v9544 = vld [vmem:[%s11 + $0xc] sm:$0xf]
    %v9545 = vld [vmem:[%s11 + $0x10] sm:$0xf]
    %v9546 = vld [vmem:[%s11 + $0x14] sm:$0xf]
    %v9547 = vld [vmem:[%s11 + $0x18] sm:$0xf]
    %v9548 = vld [vmem:[%s11 + $0x1c] sm:$0xf]
    %v9549 = vld [vmem:[%s11 + $0x20] sm:$0xf]
    %v9550 = vld [vmem:[%s11 + $0x24] sm:$0xf]
    %v9551 = vld [vmem:[%s11 + $0x28] sm:$0xf]
    %v9552 = vld [vmem:[%s11 + $0x2c] sm:$0xf]
    %v9553 = vld [vmem:[%s11 + $0x30] sm:$0xf]
    %v9554 = vld [vmem:[%s11 + $0x34] sm:$0xf]
    %v9555 = vld [vmem:[%s11 + $0x38] sm:$0xf]
    %v9556 = vld [vmem:[%s11 + $0x3c] sm:$0xf]
    %v9557 = vld [vmem:[%s11 + $0x40] sm:$0xf]
    %v9558 = vld [vmem:[%s11 + $0x44] sm:$0xf]
    %v9559 = vld [vmem:[%s11 + $0x48] sm:$0xf]
    %v9560 = vld [vmem:[%s11 + $0x4c] sm:$0xf]
    %v9561 = vld [vmem:[%s11 + $0x50] sm:$0xf]
    %v9562 = vld [vmem:[%s11 + $0x54] sm:$0xf]
    %v9563 = vld [vmem:[%s11 + $0x58] sm:$0xf]
    %v9564 = vld [vmem:[%s11 + $0x5c] sm:$0xf]
    %v9565 = vld [vmem:[%s11 + $0x60] sm:$0xf]
    %v9566 = vld [vmem:[%s11 + $0x64] sm:$0xf]
    %v9567 = vld [vmem:[%s11 + $0x68] sm:$0xf]
    %v9568 = vld [vmem:[%s11 + $0x6c] sm:$0xf]
    %v9569 = vld [vmem:[%s11 + $0x70] sm:$0xf]
    %v9570 = vld [vmem:[%s11 + $0x74] sm:$0xf]
    %v9571 = vld [vmem:[%s11 + $0x78] sm:$0xf]
    %v9572 = vld [vmem:[%s11 + $0x7c] sm:$0xf]
    %v9573 = vld [vmem:[%s11 + $0x80] sm:$0xf]
    %v9574 = vld [vmem:[%s11 + $0x84] sm:$0xf]
    %v9575 = vld [vmem:[%s11 + $0x88] sm:$0xf]
    %v9576 = vld [vmem:[%s11 + $0x8c] sm:$0xf]
    %v9577 = vld [vmem:[%s11 + $0x90] sm:$0xf]
    %v9578 = vld [vmem:[%s11 + $0x94] sm:$0xf]
    %v9579 = vld [vmem:[%s11 + $0x98] sm:$0xf]
    %v9580 = vld [vmem:[%s11 + $0x9c] sm:$0xf]
    %v9581 = vld [vmem:[%s11 + $0xa0] sm:$0xf]
    %v9582 = vld [vmem:[%s11 + $0xa4] sm:$0xf]
    %v9583 = vld [vmem:[%s11 + $0xa8] sm:$0xf]
    %v9584 = vld [vmem:[%s11 + $0xac] sm:$0xf]
    %v9585 = vld [vmem:[%s11 + $0xb0] sm:$0xf]
    %v9586 = vld [vmem:[%s11 + $0xb4] sm:$0xf]
    %v9587 = vld [vmem:[%s11 + $0xb8] sm:$0xf]
    %v9588 = vld [vmem:[%s11 + $0xbc] sm:$0xf]
    %v9589 = vld [vmem:[%s11 + $0xc0] sm:$0xf]
    %v9590 = vld [vmem:[%s11 + $0xc4] sm:$0xf]
    %v9591 = vld [vmem:[%s11 + $0xc8] sm:$0xf]
    %v9592 = vld [vmem:[%s11 + $0xcc] sm:$0xf]
    %v9593 = vld [vmem:[%s11 + $0xd0] sm:$0xf]
    %v9594 = vld [vmem:[%s11 + $0xd4] sm:$0xf]
    %v9595 = vld [vmem:[%s11 + $0xd8] sm:$0xf]
    %v9596 = vld [vmem:[%s11 + $0xdc] sm:$0xf]
    %v9597 = vld [vmem:[%s11 + $0xe0] sm:$0xf]
    %v9598 = vld [vmem:[%s11 + $0xe4] sm:$0xf]
    %v9599 = vld [vmem:[%s11 + $0xe8] sm:$0xf]
    %v9600 = vld [vmem:[%s11 + $0xec] sm:$0xf]
    %v9601 = vld [vmem:[%s11 + $0xf0] sm:$0xf]
    %v9602 = vld [vmem:[%s11 + $0xf4] sm:$0xf]
    %v9603 = vld [vmem:[%s11 + $0xf8] sm:$0xf]
    %v9604 = vld [vmem:[%s11 + $0xfc] sm:$0xf]
    %v9605 = vld [vmem:[%s11 + $0x100] sm:$0xf]
    %v9606 = vld [vmem:[%s11 + $0x104] sm:$0xf]
    %v9607 = vld [vmem:[%s11 + $0x108] sm:$0xf]
    %v9608 = vld [vmem:[%s11 + $0x10c] sm:$0xf]
    %v9609 = vld [vmem:[%s11 + $0x110] sm:$0xf]
    %v9610 = vld [vmem:[%s11 + $0x114] sm:$0xf]
    %v9611 = vld [vmem:[%s11 + $0x118] sm:$0xf]
    %v9612 = vld [vmem:[%s11 + $0x11c] sm:$0xf]
    %v9614 = vlaneseq
    %v9615 = vshrl.u32 %v9614, 7
    %v9616 = vsub.s32 0, %v9615
    %v9617 = vrot.slane %v8869, %v9616
    %v9691 = vunpack.c.l.b16 %v9541
    %v9692 = vunpack.c.l.b16 %v9542
    %v9693 = vunpack.c.l.b16 %v9543
    %v9694 = vunpack.c.l.b16 %v9544
    %v9695 = vunpack.c.l.b16 %v9545
    %v9696 = vunpack.c.l.b16 %v9546
    %v9697 = vunpack.c.l.b16 %v9547
    %v9698 = vunpack.c.l.b16 %v9548
    %v9699 = vunpack.c.l.b16 %v9549
    %v9700 = vunpack.c.l.b16 %v9550
    %v9701 = vunpack.c.l.b16 %v9551
    %v9702 = vunpack.c.l.b16 %v9552
    %v9703 = vunpack.c.l.b16 %v9553
    %v9704 = vunpack.c.l.b16 %v9554
    %v9705 = vunpack.c.l.b16 %v9555
    %v9706 = vunpack.c.l.b16 %v9556
    %v9707 = vunpack.c.l.b16 %v9557
    %v9708 = vunpack.c.l.b16 %v9558
    %v9709 = vunpack.c.l.b16 %v9559
    %v9710 = vunpack.c.l.b16 %v9560
    %v9711 = vunpack.c.l.b16 %v9561
    %v9712 = vunpack.c.l.b16 %v9562
    %v9713 = vunpack.c.l.b16 %v9563
    %v9714 = vunpack.c.l.b16 %v9564
    %v9715 = vunpack.c.l.b16 %v9565
    %v9716 = vunpack.c.l.b16 %v9566
    %v9717 = vunpack.c.l.b16 %v9567
    %v9718 = vunpack.c.l.b16 %v9568
    %v9719 = vunpack.c.l.b16 %v9569
    %v9720 = vunpack.c.l.b16 %v9570
    %v9721 = vunpack.c.l.b16 %v9571
    %v9722 = vunpack.c.l.b16 %v9572
    %v9723 = vunpack.c.l.b16 %v9573
    %v9724 = vunpack.c.l.b16 %v9574
    %v9725 = vunpack.c.l.b16 %v9575
    %v9726 = vunpack.c.l.b16 %v9576
    %v9727 = vunpack.c.l.b16 %v9577
    %v9728 = vunpack.c.l.b16 %v9578
    %v9729 = vunpack.c.l.b16 %v9579
    %v9730 = vunpack.c.l.b16 %v9580
    %v9731 = vunpack.c.l.b16 %v9581
    %v9732 = vunpack.c.l.b16 %v9582
    %v9733 = vunpack.c.l.b16 %v9583
    %v9734 = vunpack.c.l.b16 %v9584
    %v9735 = vunpack.c.l.b16 %v9585
    %v9736 = vunpack.c.l.b16 %v9586
    %v9737 = vunpack.c.l.b16 %v9587
    %v9738 = vunpack.c.l.b16 %v9588
    %v9739 = vunpack.c.l.b16 %v9589
    %v9740 = vunpack.c.l.b16 %v9590
    %v9741 = vunpack.c.l.b16 %v9591
    %v9742 = vunpack.c.l.b16 %v9592
    %v9743 = vunpack.c.l.b16 %v9593
    %v9744 = vunpack.c.l.b16 %v9594
    %v9745 = vunpack.c.l.b16 %v9595
    %v9746 = vunpack.c.l.b16 %v9596
    %v9747 = vunpack.c.l.b16 %v9597
    %v9748 = vunpack.c.l.b16 %v9598
    %v9749 = vunpack.c.l.b16 %v9599
    %v9750 = vunpack.c.l.b16 %v9600
    %v9751 = vunpack.c.l.b16 %v9601
    %v9752 = vunpack.c.l.b16 %v9602
    %v9753 = vunpack.c.l.b16 %v9603
    %v9754 = vunpack.c.l.b16 %v9604
    %v9755 = vunpack.c.l.b16 %v9605
    %v9756 = vunpack.c.l.b16 %v9606
    %v9757 = vunpack.c.l.b16 %v9607
    %v9758 = vunpack.c.l.b16 %v9608
    %v9759 = vunpack.c.l.b16 %v9609
    %v9760 = vunpack.c.l.b16 %v9610
    %v9761 = vunpack.c.l.b16 %v9611
    %v9762 = vunpack.c.l.b16 %v9612
    %v9763 = vpack.c.b16 %v9692, %v9691
    %v9764 = vpack.c.b16 %v9694, %v9693
    %v9765 = vpack.c.b16 %v9696, %v9695
    %v9766 = vpack.c.b16 %v9698, %v9697
    %v9767 = vpack.c.b16 %v9700, %v9699
    %v9768 = vpack.c.b16 %v9702, %v9701
    %v9769 = vpack.c.b16 %v9704, %v9703
    %v9770 = vpack.c.b16 %v9706, %v9705
    %v9771 = vpack.c.b16 %v9708, %v9707
    %v9772 = vpack.c.b16 %v9710, %v9709
    %v9773 = vpack.c.b16 %v9712, %v9711
    %v9774 = vpack.c.b16 %v9714, %v9713
    %v9775 = vpack.c.b16 %v9716, %v9715
    %v9776 = vpack.c.b16 %v9718, %v9717
    %v9777 = vpack.c.b16 %v9720, %v9719
    %v9778 = vpack.c.b16 %v9722, %v9721
    %v9779 = vpack.c.b16 %v9724, %v9723
    %v9780 = vpack.c.b16 %v9726, %v9725
    %v9781 = vpack.c.b16 %v9728, %v9727
    %v9782 = vpack.c.b16 %v9730, %v9729
    %v9783 = vpack.c.b16 %v9732, %v9731
    %v9784 = vpack.c.b16 %v9734, %v9733
    %v9785 = vpack.c.b16 %v9736, %v9735
    %v9786 = vpack.c.b16 %v9738, %v9737
    %v9787 = vpack.c.b16 %v9740, %v9739
    %v9788 = vpack.c.b16 %v9742, %v9741
    %v9789 = vpack.c.b16 %v9744, %v9743
    %v9790 = vpack.c.b16 %v9746, %v9745
    %v9791 = vpack.c.b16 %v9748, %v9747
    %v9792 = vpack.c.b16 %v9750, %v9749
    %v9793 = vpack.c.b16 %v9752, %v9751
    %v9794 = vpack.c.b16 %v9754, %v9753
    %v9795 = vpack.c.b16 %v9756, %v9755
    %v9796 = vpack.c.b16 %v9758, %v9757
    %v9797 = vpack.c.b16 %v9760, %v9759
    %v9798 = vpack.c.b16 %v9762, %v9761
    %v9836 = vsel %vm6588, %v9483, 0
    %v9839 = vsel %vm6588, %v9484, 0
    %9841 = vmatprep.subr.bf16.mxu0 0
    %9842 = vmatpush1.bf16.msra.mxu0 %v9770
    %9843 = vmatprep.subr.bf16.mxu0 0
    %9844 = vmatpush1.bf16.msra.mxu0 %v9769
    %9845 = vmatprep.subr.bf16.mxu0 0
    %9846 = vmatpush1.bf16.msra.mxu0 %v9768
    %9847 = vmatprep.subr.bf16.mxu0 0
    %9848 = vmatpush1.bf16.msra.mxu0 %v9767
    %9849 = vmatprep.subr.bf16.mxu0 0
    %9850 = vmatpush1.bf16.msra.mxu0 %v9766
    %9851 = vmatprep.subr.bf16.mxu0 0
    %9852 = vmatpush1.bf16.msra.mxu0 %v9765
    %9853 = vmatprep.subr.bf16.mxu0 0
    %9854 = vmatpush1.bf16.msra.mxu0 %v9764
    %9855 = vmatprep.subr.bf16.mxu0 0
    %9856 = vmatpush1.bf16.msra.mxu0 %v9763
    %9857 = vmatprep.subr.bf16.mxu0 0
    %9858 = vmatpush2.bf16.msra.mxu0 %v9778
    %9859 = vmatprep.subr.bf16.mxu0 0
    %9860 = vmatpush2.bf16.msra.mxu0 %v9777
    %9861 = vmatprep.subr.bf16.mxu0 0
    %9862 = vmatpush2.bf16.msra.mxu0 %v9776
    %9863 = vmatprep.subr.bf16.mxu0 0
    %9864 = vmatpush2.bf16.msra.mxu0 %v9775
    %9865 = vmatprep.subr.bf16.mxu0 0
    %9866 = vmatpush2.bf16.msra.mxu0 %v9774
    %9867 = vmatprep.subr.bf16.mxu0 0
    %9868 = vmatpush2.bf16.msra.mxu0 %v9773
    %9869 = vmatprep.subr.bf16.mxu0 0
    %9870 = vmatpush2.bf16.msra.mxu0 %v9772
    %9871 = vmatprep.subr.bf16.mxu0 0
    %9872 = vmatpush2.bf16.msra.mxu0 %v9771
    %9873 = vmatprep.mubr.bf16.mxu0 %v9519
    %9874 = vmatmul.mubr.bf16.gmra.mxu0 %v9511
    %v9875 = vpop.f32.mrf.mxu0
    %v9876 = vadd.f32 %v9617, %v9875
    %v9877 = vpop.f32.mrf.mxu0
    %v9878 = vpop.f32.mrf.mxu0
    %v9879 = vadd.f32 %v9617, %v9878
    %v9880 = vpop.f32.mrf.mxu0
    %9881 = vmatprep.mubr.bf16.mxu0 %v9523
    %9882 = vmatmul.mubr.bf16.gmra.mxu0 %v9515
    %v9883 = vpop.f32.mrf.mxu0
    %v9884 = vadd.f32 %v9617, %v9883
    %v9885 = vpop.f32.mrf.mxu0
    %v9886 = vpop.f32.mrf.mxu0
    %v9887 = vpop.f32.mrf.mxu0
    %9888 = vdwg.mxu0
    %9889 = vmatprep.subr.bf16.mxu0 0
    %9890 = vmatpush1.bf16.msra.mxu0 %v9786
    %9891 = vmatprep.subr.bf16.mxu0 0
    %9892 = vmatpush1.bf16.msra.mxu0 %v9785
    %9893 = vmatprep.subr.bf16.mxu0 0
    %9894 = vmatpush1.bf16.msra.mxu0 %v9784
    %9895 = vmatprep.subr.bf16.mxu0 0
    %9896 = vmatpush1.bf16.msra.mxu0 %v9783
    %9897 = vmatprep.subr.bf16.mxu0 0
    %9898 = vmatpush1.bf16.msra.mxu0 %v9782
    %9899 = vmatprep.subr.bf16.mxu0 0
    %9900 = vmatpush1.bf16.msra.mxu0 %v9781
    %9901 = vmatprep.subr.bf16.mxu0 0
    %9902 = vmatpush1.bf16.msra.mxu0 %v9780
    %9903 = vmatprep.subr.bf16.mxu0 0
    %9904 = vmatpush1.bf16.msra.mxu0 %v9779
    %9905 = vmatprep.subr.bf16.mxu0 0
    %9906 = vmatpush2.bf16.msra.mxu0 %v9794
    %9907 = vmatprep.subr.bf16.mxu0 0
    %9908 = vmatpush2.bf16.msra.mxu0 %v9793
    %9909 = vmatprep.subr.bf16.mxu0 0
    %9910 = vmatpush2.bf16.msra.mxu0 %v9792
    %9911 = vmatprep.subr.bf16.mxu0 0
    %9912 = vmatpush2.bf16.msra.mxu0 %v9791
    %9913 = vmatprep.subr.bf16.mxu0 0
    %9914 = vmatpush2.bf16.msra.mxu0 %v9790
    %9915 = vmatprep.subr.bf16.mxu0 0
    %9916 = vmatpush2.bf16.msra.mxu0 %v9789
    %9917 = vmatprep.subr.bf16.mxu0 0
    %9918 = vmatpush2.bf16.msra.mxu0 %v9788
    %9919 = vmatprep.subr.bf16.mxu0 0
    %9920 = vmatpush2.bf16.msra.mxu0 %v9787
    %9921 = vmatprep.mubr.bf16.mxu0 %v9535
    %9922 = vmatmul.mubr.bf16.gmra.mxu0 %v9527
    %v9923 = vpop.f32.mrf.mxu0
    %v9924 = vadd.f32 %v9876, %v9923
    %v9925 = vpop.f32.mrf.mxu0
    %v9926 = vpop.f32.mrf.mxu0
    %v9927 = vadd.f32 %v9879, %v9926
    %v9928 = vpop.f32.mrf.mxu0
    %9929 = vmatprep.mubr.bf16.mxu0 %v9539
    %9930 = vmatmul.mubr.bf16.gmra.mxu0 %v9531
    %v9931 = vpop.f32.mrf.mxu0
    %v9932 = vadd.f32 %v9884, %v9931
    %v9933 = vpop.f32.mrf.mxu0
    %v9934 = vpop.f32.mrf.mxu0
    %v9935 = vpop.f32.mrf.mxu0
    %9936 = vdwg.mxu0
    %9937 = vmatprep.subr.bf16.mxu0 0
    %9938 = vmatpush1.bf16.msra.mxu0 0
    %9939 = vmatprep.subr.bf16.mxu0 0
    %9940 = vmatpush1.bf16.msra.mxu0 0
    %9941 = vmatprep.subr.bf16.mxu0 0
    %9942 = vmatpush1.bf16.msra.mxu0 0
    %9943 = vmatprep.subr.bf16.mxu0 0
    %9944 = vmatpush1.bf16.msra.mxu0 0
    %9945 = vmatprep.subr.bf16.mxu0 0
    %9946 = vmatpush1.bf16.msra.mxu0 %v9798
    %9947 = vmatprep.subr.bf16.mxu0 0
    %9948 = vmatpush1.bf16.msra.mxu0 %v9797
    %9949 = vmatprep.subr.bf16.mxu0 0
    %9950 = vmatpush1.bf16.msra.mxu0 %v9796
    %9951 = vmatprep.subr.bf16.mxu0 0
    %9952 = vmatpush1.bf16.msra.mxu0 %v9795
    %9953 = vmatprep.subr.bf16.mxu0 0
    %9954 = vmatpush2.bf16.msra.mxu0 0
    %9955 = vmatprep.subr.bf16.mxu0 0
    %9956 = vmatpush2.bf16.msra.mxu0 0
    %9957 = vmatprep.subr.bf16.mxu0 0
    %9958 = vmatpush2.bf16.msra.mxu0 0
    %9959 = vmatprep.subr.bf16.mxu0 0
    %9960 = vmatpush2.bf16.msra.mxu0 0
    %9961 = vmatprep.subr.bf16.mxu0 0
    %9962 = vmatpush2.bf16.msra.mxu0 0
    %9963 = vmatprep.subr.bf16.mxu0 0
    %9964 = vmatpush2.bf16.msra.mxu0 0
    %9965 = vmatprep.subr.bf16.mxu0 0
    %9966 = vmatpush2.bf16.msra.mxu0 0
    %9967 = vmatprep.subr.bf16.mxu0 0
    %9968 = vmatpush2.bf16.msra.mxu0 0
    %9969 = vmatprep.mubr.bf16.mxu0 0
    %9970 = vmatmul.mubr.bf16.gmra.mxu0 %v9836
    %v9971 = vpop.f32.mrf.mxu0
    %v9972 = vadd.f32 %v9924, %v9971
    %v9973 = vpop.f32.mrf.mxu0
    %v9974 = vpop.f32.mrf.mxu0
    %v9975 = vadd.f32 %v9927, %v9974
    %v9976 = vpop.f32.mrf.mxu0
    %9977 = vmatprep.mubr.bf16.mxu0 0
    %9978 = vmatmul.mubr.bf16.gmra.mxu0 %v9839
    %v9979 = vpop.f32.mrf.mxu0
    %v9980 = vadd.f32 %v9932, %v9979
    %v9981 = vpop.f32.mrf.mxu0
    %v9982 = vpop.f32.mrf.mxu0
    %v9983 = vpop.f32.mrf.mxu0
    %9984 = vdwg.mxu0
    %9985 = vst.msk [vmem:[%s13] sm:$0xff] %vm6554, %v9972
    %9986 = vst.msk [vmem:[%s13 + $0x8] sm:$0xff] %vm6554, %v9975
    %9987 = vst.msk [vmem:[%s13 + $0x10] sm:$0xff] %vm6554, %v9980
    // Predicated region
    $region78: #{model_forward.1} parent=1 // pred_check
      _
    $region79: #{model_forward.1} parent=1 // pred_check_branch
      %9989 = sbr.rel (0) target = $region81
    $region80: #{model_forward.1} parent=1 // pred_region
      _
    $region81: #{model_forward.1} parent=1 // pred_fallthru
      _
    // Predicated region
    $region82: #{model_forward.1} parent=1 // pred_check
      _
    $region83: #{model_forward.1} parent=1 // pred_check_branch
      %9991 = sbr.rel (0) target = $region85
    $region84: #{model_forward.1} parent=1 // pred_region
      _
    $region85: #{model_forward.1} parent=1 // pred_fallthru
      _
    %9992 = vsyncpa [#allocation3], 1
    %9993 = vsyncpa [#allocation5], 1
    %9994 = vsyncpa [#allocation8], 1
    %9995 = vsyncpa [#allocation11], 1

</llo_original>
